<compile_context>
chip_gen: v5e
topology: v5e:2x2
jax: 0.10.0
libtpu: 0.0.40
codegen_flags: <defaults>
</compile_context>

<pallas_src>
import jax
import jax.numpy as jnp
from jax.experimental import pallas as pl
from jax.experimental.pallas import tpu as pltpu

_LANE = 128
_MIN_KERNEL_ELEMS = 1 << 16   # below this, pallas_call fixed cost dominates
_MAX_TILE_ROWS = 16384        # cap block at 8 MiB (f32) -> safe on v7x 64 MiB VMEM


def _sin_kernel(x_ref, o_ref):
    # Pure elementwise EUP/VPU op on the whole VMEM tile.
    o_ref[...] = jnp.sin(x_ref[...])


def _round_up(v, m):
    return ((v + m - 1) // m) * m


def _sin_2d(x2d, block_rows, vmem_limit, n_elems, itemsize):
    rows, lane = x2d.shape
    grid = (pl.cdiv(rows, block_rows),)
    return pl.pallas_call(
        _sin_kernel,
        out_shape=jax.ShapeDtypeStruct((rows, lane), x2d.dtype),
        grid_spec=pltpu.PrefetchScalarGridSpec(
            num_scalar_prefetch=0,
            grid=grid,
            in_specs=[pl.BlockSpec((block_rows, lane), lambda i: (i, 0))],
            out_specs=pl.BlockSpec((block_rows, lane), lambda i: (i, 0)),
        ),
        compiler_params=pltpu.CompilerParams(
            dimension_semantics=("parallel",),   # lets v7x shard grid steps over both TCs
            vmem_limit_bytes=vmem_limit,
        ),
        cost_estimate=pl.CostEstimate(
            flops=0,
            transcendentals=n_elems,
            bytes_accessed=2 * n_elems * itemsize,
        ),
    )(x2d)


def sin_pallas(x, *, tile_rows=8192, lane=_LANE):
    """Elementwise sin via a Pallas TPU kernel (torch.sin semantics)."""
    orig_shape = x.shape

    # torch.sin promotes integer inputs to floating point.
    if not jnp.issubdtype(x.dtype, jnp.floating):
        x = x.astype(jnp.float32)
    dtype = x.dtype
    n = x.size

    # Tiny / empty inputs: kernel launch + pipeline setup costs more than the work.
    if n < _MIN_KERNEL_ELEMS:
        return jnp.sin(x)

    itemsize = jnp.dtype(dtype).itemsize

    # Clamp tile_rows: multiple of 16 rows (bf16 sublane packing) and bounded
    # so the double-buffered in+out pipeline never exceeds v7x's 64 MiB VMEM.
    tile_rows = max(16, min((int(tile_rows) // 16) * 16, _MAX_TILE_ROWS))

    flat = x.reshape(-1)
    rows = n // lane
    tail = n - rows * lane

    # Aligned prefix only (free reshape when tail == 0; no pad/unpad copies).
    if tail:
        x2d = flat[: rows * lane].reshape(rows, lane)
    else:
        x2d = flat.reshape(rows, lane)

    if rows > tile_rows:
        block_rows = tile_rows
    else:
        # Aim for >= ~4 grid steps so v7x's two TensorCores both get work,
        # while keeping blocks >= 256 rows (>=128 KiB f32) so the ~0.35 us
        # per-step overhead stays negligible.
        block_rows = _round_up(pl.cdiv(rows, 4), 16)
        block_rows = max(256, min(block_rows, tile_rows))

    block_bytes = block_rows * lane * itemsize
    # 2x double-buffer for input + 2x for output, plus headroom; keep at least
    # 16 MiB so small blocks also compile with the default pipeline depth.
    vmem_limit = int(max(4 * block_bytes + (4 << 20), 16 << 20))

    y2d = _sin_2d(x2d, block_rows, vmem_limit, rows * lane, itemsize)

    if tail:
        # <128-element tail handled by plain jnp.sin; stitch on the flat output.
        y_tail = jnp.sin(flat[rows * lane:])
        out = jnp.concatenate([y2d.reshape(-1), y_tail]).reshape(orig_shape)
    else:
        out = y2d.reshape(orig_shape)
    return out


if __name__ == "__main__":
    key = jax.random.PRNGKey(0)
    k1, k2, k3 = jax.random.split(key, 3)

    # Small NCHW input consistent with typical usage of this module
    # (exercises the tiny-input fallback path).
    x_small = jax.random.normal(k1, (2, 4, 16, 16), dtype=jnp.float32)
    y_small = jax.block_until_ready(sin_pallas(x_small))
    assert y_small.shape == x_small.shape and y_small.dtype == x_small.dtype
    assert jnp.allclose(y_small, jnp.sin(x_small), atol=1e-6, rtol=1e-6)

    # Larger lane-aligned input that exercises the Pallas kernel path
    # (rows=2048, block_rows=512, grid=(4,) -> both v7x TCs get work).
    x_big = jax.random.normal(k2, (256, 1024), dtype=jnp.float32)
    y_big = jax.block_until_ready(sin_pallas(x_big))
    assert y_big.shape == x_big.shape and y_big.dtype == x_big.dtype
    assert jnp.allclose(y_big, jnp.sin(x_big), atol=1e-6, rtol=1e-6)

    # Non-lane-aligned size: kernel on the aligned prefix, jnp.sin on the
    # <128-element tail (no full-array pad/unpad round trip).
    x_tail = jax.random.normal(k3, (66600,), dtype=jnp.float32)
    y_tail = jax.block_until_ready(sin_pallas(x_tail))
    assert y_tail.shape == x_tail.shape and y_tail.dtype == x_tail.dtype
    assert jnp.allclose(y_tail, jnp.sin(x_tail), atol=1e-6, rtol=1e-6)

    print("KERNEL_OK")
</pallas_src>

<mosaic_0001>
module attributes {stable_mosaic.version = 11 : i64} {
  func.func @_sin_kernel(%arg0: i32, %arg1: memref<512x128xf32, #tpu.memory_space<vmem>>, %arg2: memref<512x128xf32, #tpu.memory_space<vmem>>) attributes {dimension_semantics = [#tpu.dimension_semantics<parallel>], iteration_bounds = array<i64: 4>, scalar_prefetch = 0 : i64, scratch_operands = 0 : i64, tpu.core_type = #tpu.core_type<tc>, window_params = [{transform_indices = @transform_0, window_bounds = array<i64: 512, 128>}, {transform_indices = @transform_1, window_bounds = array<i64: 512, 128>}]} {
    %c0 = arith.constant 0 : index
    %c0_0 = arith.constant 0 : index
    %0 = vector.load %arg1[%c0, %c0_0] : memref<512x128xf32, #tpu.memory_space<vmem>>, vector<512x128xf32>
    %1 = math.sin %0 : vector<512x128xf32>
    %c0_1 = arith.constant 0 : index
    %c0_2 = arith.constant 0 : index
    %2 = vector.load %arg2[%c0_1, %c0_2] : memref<512x128xf32, #tpu.memory_space<vmem>>, vector<512x128xf32>
    tpu.vector_store %arg2[%c0_1, %c0_2], %1 {strides = array<i32>} : memref<512x128xf32, #tpu.memory_space<vmem>>, vector<512x128xf32>,
    return
  }
  func.func @transform_0(%arg0: i32) -> (i32, i32) {
    %c0_i32 = arith.constant 0 : i32
    %c0_i32_0 = arith.constant 0 : i32
    return %arg0, %c0_i32 : i32, i32
  }
  func.func @transform_1(%arg0: i32) -> (i32, i32) {
    %c0_i32 = arith.constant 0 : i32
    %c0_i32_0 = arith.constant 0 : i32
    return %arg0, %c0_i32 : i32, i32
  }
}

</mosaic_0001>

<llo_original>
// kernel: tpu_custom_call.1
$region0: #{tpu_custom_call.1}
  #allocation0 [shape = 'u32[]', space=smem, size = 0x4, offset = 0x4, fixed_abs, tag = 'smem constant byte address 0x4 - core index']
  #allocation1 [shape = 'u32[72,128]{1,0:T(1,128)}', space=vmem, size = 0x9000, scoped, tag = 'internal scratch']
  %s0 = inlined_call_operand.hbm [shape: f32[2048,128], index: 0, kind: input, shape index: {}]
  %s1 = inlined_call_operand.hbm [shape: f32[2048,128], index: 1, kind: output, shape index: {}]
  %s2 = sld [smem:[#allocation0]]
  $region41: #{tpu_custom_call.1} parent=0
    _
  %s4 = ssub.s32 1, %s2
  %s5 = scalar_select 0, %s4, %s2
  $region1: #{tpu_custom_call.1} parent=0
    #allocation2 [shape = 'u8[524288]{0}', space=vmem, size = 0x80000, scoped, tag = 'input window, operand 0']
    #allocation3 [shape = 's32[2]{0}', space=sflag, size = 0x8, scoped, tag = 'scoped memory for tpu_custom_call.1']
    #allocation4 [shape = 's32[2]{0}', space=sflag, size = 0x8, scoped, tag = 'scoped memory for tpu_custom_call.1']
    #allocation5 [shape = 'u8[524288]{0}', space=vmem, size = 0x80000, scoped, tag = 'output window, operand 0']
    %6 = vsyncpa [#allocation3], 0
    %s7 = scalar_lea.sflag [#allocation3], 1
    %8 = vsyncpa %s7, 0
    %9 = vsyncpa [#allocation4], 0
    %s10 = scalar_lea.sflag [#allocation4], 1
    %11 = vsyncpa %s10, 0
    loop: start=0, step=1, limit=6
    $region2: #{tpu_custom_call.1} parent=1 // loop_pre_header
      _
    $region3: #{tpu_custom_call.1} parent=1 // loop_header
      %s13 = sphi 0, %s17
      %p14 = scmp.ge.s32.totalorder %s13, 6
      %s23 = sphi 0, %s25
      %s26 = sphi 0, %s23
      %s27 = sphi 0, %s26
      %s43 = sphi 0, %s27
      %s49 = sphi 0, %s51
      %s52 = sphi 0, %s49
      %s53 = sphi 0, %s52
      %s69 = sphi 0, %s53
    $region4: #{tpu_custom_call.1} parent=1 // loop_header_branch
      %16 = sbr.rel (%p14) target = $region8
    $region5: #{tpu_custom_call.1} parent=1 // loop_body
      %s18 = ssub.s32 %s13, 1
      %s19 = ssub.s32 %s13, 2
      %s20 = sadd.s32 %s13, 1
      %s21 = ssub.s32 %s13, %s20
      %p22 = scmp.eq.s32.totalorder %s21, 0
      %s24 = sadd.s32 %s23, 1
      %s25 = scalar_select %p22, %s23, %s24
      %p28 = pneg %p22
      %p29 = scmp.eq.s32.totalorder %s13, 3
      %p30 = por %p28, %p29
      %p31 = scmp.ne.s32.totalorder %s23, %s26
      %p32 = scmp.eq.s32.totalorder %s13, 0
      %p33 = por %p31, %p32
      %p34 = scmp.ne.s32.totalorder %s23, %s26
      %p35 = scmp.eq.s32.totalorder %s18, 3
      %p36 = por %p34, %p35
      %p37 = scmp.ne.s32.totalorder %s26, %s27
      %p38 = scmp.eq.s32.totalorder %s18, 0
      %p39 = por %p37, %p38
      %p40 = scmp.ne.s32.totalorder %s26, %s27
      %p41 = scmp.eq.s32.totalorder %s19, 3
      %p42 = por %p40, %p41
      %p44 = scmp.ne.s32.totalorder %s27, %s43
      %p45 = scmp.eq.s32.totalorder %s19, 0
      %p46 = por %p44, %p45
      %s47 = ssub.s32 %s13, %s20
      %p48 = scmp.eq.s32.totalorder %s47, 0
      %s50 = sadd.s32 %s49, 1
      %s51 = scalar_select %p48, %s49, %s50
      %p54 = pneg %p48
      %p55 = scmp.eq.s32.totalorder %s13, 3
      %p56 = por %p54, %p55
      %p57 = scmp.ne.s32.totalorder %s49, %s52
      %p58 = scmp.eq.s32.totalorder %s13, 0
      %p59 = por %p57, %p58
      %p60 = scmp.ne.s32.totalorder %s49, %s52
      %p61 = scmp.eq.s32.totalorder %s18, 3
      %p62 = por %p60, %p61
      %p63 = scmp.ne.s32.totalorder %s52, %s53
      %p64 = scmp.eq.s32.totalorder %s18, 0
      %p65 = por %p63, %p64
      %p66 = scmp.ne.s32.totalorder %s52, %s53
      %p67 = scmp.eq.s32.totalorder %s19, 3
      %p68 = por %p66, %p67
      %p70 = scmp.ne.s32.totalorder %s53, %s69
      %p71 = scmp.eq.s32.totalorder %s19, 0
      %p72 = por %p70, %p71
      %p73 = scmp.le.s32.totalorder 1, %s13
      %p74 = scmp.lt.s32.totalorder %s13, 5
      %p75 = pnand %p73, %p74
      %p76 = pneg %p75
      // Predicated region
      $region9: #{tpu_custom_call.1} parent=5 // pred_check
        _
      $region10: #{tpu_custom_call.1} parent=5 // pred_check_branch
        %78 = sbr.rel (%p75) target = $region12
      $region11: #{tpu_custom_call.1} parent=5 // pred_region
        %s79 = ssub.s32 %s13, 1
      $region12: #{tpu_custom_call.1} parent=5 // pred_fallthru
        _
      %p80 = scmp.lt.s32.totalorder %s13, 4
      // Predicated region
      $region13: #{tpu_custom_call.1} parent=5 // pred_check
        %p81 = pneg %p80
      $region14: #{tpu_custom_call.1} parent=5 // pred_check_branch
        %83 = sbr.rel (%p81) target = $region16
      $region15: #{tpu_custom_call.1} parent=5 // pred_region
        // Predicated region
        $region17: #{tpu_custom_call.1} parent=15 // pred_check
          %p84 = pneg %p33
        $region18: #{tpu_custom_call.1} parent=15 // pred_check_branch
          %86 = sbr.rel (%p84) target = $region20
        $region19: #{tpu_custom_call.1} parent=15 // pred_region
          %s87 = sand.u32 %s23, 1
          %s88 = scalar_lea.sflag [#allocation3], %s87
          %s89 = sand.u32 %s23, 1
          %s90 = smul.addr %s89, 512
          %s91 = scalar_lea.vmem [#allocation2], %s90
          %s92 = smul.u32 64, %s13
          %94 = vsyncadd %s88, 0
          %s95 = smul.addr %s92, 8
          %s96 = scalar_lea.hbm %s0, %s95
          %s97 = sshll.u32 %s96, 4
          %s98 = int_to_ptr.hbm [resolvable:$true] %s97
          %s99 = sshll.u32 %s91, 4
          %s100 = int_to_ptr.vmem [resolvable:$true] %s99
          %105 = dma.hbm_to_vmem [thread:$0]  %s98, 8192, %s100, %s88, 128, 128, 8
        $region20: #{tpu_custom_call.1} parent=15 // pred_fallthru
          _
      $region16: #{tpu_custom_call.1} parent=5 // pred_fallthru
        _
      %p106 = scmp.le.s32.totalorder 1, %s13
      %p107 = scmp.lt.s32.totalorder %s13, 5
      %p108 = pnand %p106, %p107
      %p109 = pneg %p108
      // Predicated region
      $region21: #{tpu_custom_call.1} parent=5 // pred_check
        _
      $region22: #{tpu_custom_call.1} parent=5 // pred_check_branch
        %111 = sbr.rel (%p108) target = $region24
      $region23: #{tpu_custom_call.1} parent=5 // pred_region
        %s112 = ssub.s32 %s13, 1
        %s113 = sand.u32 %s26, 1
        %s114 = scalar_lea.sflag [#allocation3], %s113
        %s115 = sand.u32 %s26, 1
        %s116 = smul.addr %s115, 512
        %s117 = scalar_lea.vmem [#allocation2], %s116
        // Predicated region
        $region25: #{tpu_custom_call.1} parent=23 // pred_check
          %p118 = pneg %p39
        $region26: #{tpu_custom_call.1} parent=23 // pred_check_branch
          %120 = sbr.rel (%p118) target = $region28
        $region27: #{tpu_custom_call.1} parent=23 // pred_region
          %122 = dma.done %s114, 8192
        $region28: #{tpu_custom_call.1} parent=23 // pred_fallthru
          _
        %s123 = sand.u32 %s26, 1
        %s124 = scalar_lea.sflag [#allocation3], %s123
        %s125 = sand.u32 %s26, 1
        %s126 = smul.addr %s125, 512
        %s127 = scalar_lea.vmem [#allocation2], %s126
        %p128 = pneg %p39
        %p129 = pneg %p36
        %p130 = pneg %p65
        %p131 = pneg %p62
        %s132 = sand.u32 %s52, 1
        %s133 = scalar_lea.sflag [#allocation4], %s132
        %s134 = sand.u32 %s52, 1
        %s135 = smul.addr %s134, 512
        %s136 = scalar_lea.vmem [#allocation5], %s135
        %s137 = smul.u32 64, %s18
        %s138 = smul.u32 64, %s18
        %v139 = vld [vmem:[%s117] sm:$0xff]
        %v140 = vld [vmem:[%s117 + $0x8] sm:$0xff]
        %v141 = vld [vmem:[%s117 + $0x10] sm:$0xff]
        %v142 = vld [vmem:[%s117 + $0x18] sm:$0xff]
        %v143 = vld [vmem:[%s117 + $0x20] sm:$0xff]
        %v144 = vld [vmem:[%s117 + $0x28] sm:$0xff]
        %v145 = vld [vmem:[%s117 + $0x30] sm:$0xff]
        %v146 = vld [vmem:[%s117 + $0x38] sm:$0xff]
        %v147 = vld [vmem:[%s117 + $0x40] sm:$0xff]
        %v148 = vld [vmem:[%s117 + $0x48] sm:$0xff]
        %v149 = vld [vmem:[%s117 + $0x50] sm:$0xff]
        %v150 = vld [vmem:[%s117 + $0x58] sm:$0xff]
        %v151 = vld [vmem:[%s117 + $0x60] sm:$0xff]
        %v152 = vld [vmem:[%s117 + $0x68] sm:$0xff]
        %v153 = vld [vmem:[%s117 + $0x70] sm:$0xff]
        %v154 = vld [vmem:[%s117 + $0x78] sm:$0xff]
        %v155 = vld [vmem:[%s117 + $0x80] sm:$0xff]
        %v156 = vld [vmem:[%s117 + $0x88] sm:$0xff]
        %v157 = vld [vmem:[%s117 + $0x90] sm:$0xff]
        %v158 = vld [vmem:[%s117 + $0x98] sm:$0xff]
        %v159 = vld [vmem:[%s117 + $0xa0] sm:$0xff]
        %v160 = vld [vmem:[%s117 + $0xa8] sm:$0xff]
        %v161 = vld [vmem:[%s117 + $0xb0] sm:$0xff]
        %v162 = vld [vmem:[%s117 + $0xb8] sm:$0xff]
        %v163 = vld [vmem:[%s117 + $0xc0] sm:$0xff]
        %v164 = vld [vmem:[%s117 + $0xc8] sm:$0xff]
        %v165 = vld [vmem:[%s117 + $0xd0] sm:$0xff]
        %v166 = vld [vmem:[%s117 + $0xd8] sm:$0xff]
        %v167 = vld [vmem:[%s117 + $0xe0] sm:$0xff]
        %v168 = vld [vmem:[%s117 + $0xe8] sm:$0xff]
        %v169 = vld [vmem:[%s117 + $0xf0] sm:$0xff]
        %v170 = vld [vmem:[%s117 + $0xf8] sm:$0xff]
        %v171 = vld [vmem:[%s117 + $0x100] sm:$0xff]
        %v172 = vld [vmem:[%s117 + $0x108] sm:$0xff]
        %v173 = vld [vmem:[%s117 + $0x110] sm:$0xff]
        %v174 = vld [vmem:[%s117 + $0x118] sm:$0xff]
        %v175 = vld [vmem:[%s117 + $0x120] sm:$0xff]
        %v176 = vld [vmem:[%s117 + $0x128] sm:$0xff]
        %v177 = vld [vmem:[%s117 + $0x130] sm:$0xff]
        %v178 = vld [vmem:[%s117 + $0x138] sm:$0xff]
        %v179 = vld [vmem:[%s117 + $0x140] sm:$0xff]
        %v180 = vld [vmem:[%s117 + $0x148] sm:$0xff]
        %v181 = vld [vmem:[%s117 + $0x150] sm:$0xff]
        %v182 = vld [vmem:[%s117 + $0x158] sm:$0xff]
        %v183 = vld [vmem:[%s117 + $0x160] sm:$0xff]
        %v184 = vld [vmem:[%s117 + $0x168] sm:$0xff]
        %v185 = vld [vmem:[%s117 + $0x170] sm:$0xff]
        %v186 = vld [vmem:[%s117 + $0x178] sm:$0xff]
        %v187 = vld [vmem:[%s117 + $0x180] sm:$0xff]
        %v188 = vld [vmem:[%s117 + $0x188] sm:$0xff]
        %v189 = vld [vmem:[%s117 + $0x190] sm:$0xff]
        %v190 = vld [vmem:[%s117 + $0x198] sm:$0xff]
        %v191 = vld [vmem:[%s117 + $0x1a0] sm:$0xff]
        %v192 = vld [vmem:[%s117 + $0x1a8] sm:$0xff]
        %v193 = vld [vmem:[%s117 + $0x1b0] sm:$0xff]
        %v194 = vld [vmem:[%s117 + $0x1b8] sm:$0xff]
        %v195 = vld [vmem:[%s117 + $0x1c0] sm:$0xff]
        %v196 = vld [vmem:[%s117 + $0x1c8] sm:$0xff]
        %v197 = vld [vmem:[%s117 + $0x1d0] sm:$0xff]
        %v198 = vld [vmem:[%s117 + $0x1d8] sm:$0xff]
        %v199 = vld [vmem:[%s117 + $0x1e0] sm:$0xff]
        %v200 = vld [vmem:[%s117 + $0x1e8] sm:$0xff]
        %v201 = vld [vmem:[%s117 + $0x1f0] sm:$0xff]
        %v202 = vld [vmem:[%s117 + $0x1f8] sm:$0xff]
        %v203 = vand.u32 2147483647, %v139
        %vm204 = vcmp.le.f32.partialorder %v203, 0.7853982
        %vm205 = vcmp.lt.s32.totalorder %v139, 0
        %v206 = vand.u32 %v139, 2139095040
        %v207 = vshrl.u32 %v206, 23
        %v208 = vsub.s32 %v207, 127
        %v209 = vand.u32 2147483647, %v139
        %v210 = vand.u32 %v209, 8388607
        %v211 = vor.u32 %v210, 8388608
        %v212 = vsub.s32 0, %v211
        %v213 = vadd.s32 %v208, 1
        %vm214 = vcmp.gt.s32.totalorder %v213, 0
        %v215 = vsel %vm214, %v213, 0
        %v216 = vshrl.u32 %v215, 5
        %v217 = vand.u32 %v215, 31
        %v218 = vsub.s32 32, %v217
        %v219 = vshrl.u32 683565275, %v218
        %v220 = vshll.u32 683565275, %v217
        %v221 = vshrl.u32 2475754826, %v218
        %v222 = vor.u32 %v220, %v221
        %v223 = vshll.u32 2475754826, %v217
        %v224 = vshrl.u32 2131351028, %v218
        %v225 = vor.u32 %v223, %v224
        %v226 = vshll.u32 2131351028, %v217
        %v227 = vshrl.u32 2102212464, %v218
        %v228 = vor.u32 %v226, %v227
        %v229 = vshll.u32 2102212464, %v217
        %v230 = vshrl.u32 920167782, %v218
        %v231 = vor.u32 %v229, %v230
        %v232 = vshll.u32 920167782, %v217
        %v233 = vshrl.u32 1326507024, %v218
        %v234 = vor.u32 %v232, %v233
        %vm235 = vcmp.lt.s32.totalorder %v216, 1
        %vm236 = vcmp.lt.s32.totalorder %v216, 2
        %vm237 = vcmp.lt.s32.totalorder %v216, 3
        %vm238 = vcmp.lt.s32.totalorder %v216, 4
        %v239 = vsel %vm235, %v219, %v222
        %v240 = vsel %vm238, %v228, 2102212464
        %v241 = vsel %vm237, %v225, %v240
        %v242 = vsel %vm236, %v239, %v241
        %v243 = vsel %vm235, %v222, %v225
        %v244 = vsel %vm238, %v231, 920167782
        %v245 = vsel %vm237, %v228, %v244
        %v246 = vsel %vm236, %v243, %v245
        %v247 = vsel %vm235, %v225, %v228
        %v248 = vsel %vm238, %v234, 1326507024
        %v249 = vsel %vm237, %v231, %v248
        %v250 = vsel %vm236, %v247, %v249
        %v251 = vshll.u32 %v211, 8
        %v252 = vand.u32 %v251, 65535
        %v253 = vshrl.u32 %v251, 16
        %v254 = vand.u32 %v250, 65535
        %v255 = vshrl.u32 %v250, 16
        %v256 = vmul.u32 %v252, %v254
        %v257 = vmul.u32 %v252, %v255
        %v258 = vmul.u32 %v253, %v254
        %v259 = vmul.u32 %v253, %v255
        %v260 = vshll.u32 %v257, 16
        %v261 = vshrl.u32 %v257, 16
        %v262 = vshll.u32 %v258, 16
        %v263 = vshrl.u32 %v258, 16
        %vm264 = vc.u32 %v256, %v260
        %v265 = vsel %vm264, 1, 0
        %v266 = vadd.s32 %v256, %v260
        %v267 = vadd.s32 %v259, %v265
        %vm268 = vc.u32 %v266, %v262
        %v269 = vsel %vm268, 1, 0
        %v270 = vadd.s32 %v266, %v262
        %v271 = vadd.s32 %v267, %v269
        %v272 = vadd.s32 %v271, %v261
        %v273 = vadd.s32 %v272, %v263
        %v274 = vand.u32 %v251, 65535
        %v275 = vshrl.u32 %v251, 16
        %v276 = vand.u32 %v246, 65535
        %v277 = vshrl.u32 %v246, 16
        %v278 = vmul.u32 %v274, %v276
        %v279 = vmul.u32 %v274, %v277
        %v280 = vmul.u32 %v275, %v276
        %v281 = vmul.u32 %v275, %v277
        %v282 = vshll.u32 %v279, 16
        %v283 = vshrl.u32 %v279, 16
        %v284 = vshll.u32 %v280, 16
        %v285 = vshrl.u32 %v280, 16
        %vm286 = vc.u32 %v278, %v282
        %v287 = vsel %vm286, 1, 0
        %v288 = vadd.s32 %v278, %v282
        %v289 = vadd.s32 %v281, %v287
        %vm290 = vc.u32 %v288, %v284
        %v291 = vsel %vm290, 1, 0
        %v292 = vadd.s32 %v288, %v284
        %v293 = vadd.s32 %v289, %v291
        %v294 = vadd.s32 %v293, %v283
        %v295 = vadd.s32 %v294, %v285
        %v296 = vmul.u32 %v251, %v242
        %v297 = vadd.s32 %v273, %v292
        %vm298 = vc.u32 %v273, %v292
        %v299 = vadd.s32 %v295, 1
        %v300 = vsel %vm298, %v299, %v295
        %v301 = vadd.s32 %v296, %v300
        %v302 = vadd.s32 %v301, 536870912
        %v303 = vshrl.u32 %v302, 30
        %v304 = vshll.u32 %v303, 30
        %v305 = vsub.s32 %v301, %v304
        %vm306 = vcmp.lt.s32.totalorder %v305, 0
        %v307 = vsub.s32 0, %v305
        %v308 = vsel %vm306, %v307, %v305
        %v309 = vclz %v308
        %v310 = vsub.s32 %v309, 2
        %vm311 = vcmp.gt.s32.totalorder 0, %v310
        %v312 = vsel %vm311, 0, %v310
        %v313 = vsub.s32 32, %v312
        %v314 = vshll.u32 %v305, %v312
        %v315 = vshrl.u32 %v297, %v313
        %v316 = vor.u32 %v314, %v315
        %v317 = vsub.s32 4294967266, %v312
        %v318 = vadd.s32 %v317, 127
        %v319 = vshll.u32 %v318, 23
        %v320 = vor.u32 4788187, %v319
        %v321 = vand.u32 2147483647, %v320
        %v323 = vcvt.s32.f32 %v316
        %v324 = vmul.f32 %v323, %v321
        %v325 = vxor.u32 %v324, 2147483648
        %v326 = vsel %vm205, %v325, %v324
        %v327 = vsub.s32 4, %v303
        %v328 = vsel %vm205, %v327, %v303
        %v329 = vsel %vm204, %v139, %v326
        %v330 = vsel %vm204, 0, %v328
        %v331 = vmul.f32 %v329, %v329
        %v332 = vmul.f32 %v331, -0.001358992
        %v333 = vadd.f32 %v332, 0.041655596
        %v334 = vmul.f32 %v331, %v333
        %v335 = vadd.f32 %v334, -0.4999988
        %v336 = vmul.f32 %v331, %v335
        %v337 = vadd.f32 1.0, %v336
        %v338 = vmul.f32 %v329, %v329
        %v339 = vmul.f32 %v338, -0.00019511016
        %v340 = vadd.f32 %v339, 0.008332121
        %v341 = vmul.f32 %v338, %v340
        %v342 = vadd.f32 %v341, -0.16666654
        %v343 = vmul.f32 %v338, %v342
        %v344 = vadd.f32 %v343, 1.0
        %v345 = vmul.f32 %v344, %v329
        %vm346 = vweird.f32 %v139
        %v347 = vadd.s32 %v330, 3
        %v348 = vand.u32 %v347, 3
        %vm349 = vcmp.lt.s32.totalorder %v348, 2
        %vm350 = vcmp.eq.s32.totalorder %v348, 0
        %v351 = vxor.u32 %v345, 2147483648
        %v352 = vsel %vm350, %v337, %v351
        %vm353 = vcmp.eq.s32.totalorder %v348, 2
        %v354 = vxor.u32 %v337, 2147483648
        %v355 = vsel %vm353, %v354, %v345
        %v356 = vsel %vm349, %v352, %v355
        %v357 = vsel %vm346, nan, %v356
        %v358 = vand.u32 2147483647, %v140
        %vm359 = vcmp.le.f32.partialorder %v358, 0.7853982
        %vm360 = vcmp.lt.s32.totalorder %v140, 0
        %v361 = vand.u32 %v140, 2139095040
        %v362 = vshrl.u32 %v361, 23
        %v363 = vsub.s32 %v362, 127
        %v364 = vand.u32 2147483647, %v140
        %v365 = vand.u32 %v364, 8388607
        %v366 = vor.u32 %v365, 8388608
        %v367 = vsub.s32 0, %v366
        %v368 = vadd.s32 %v363, 1
        %vm369 = vcmp.gt.s32.totalorder %v368, 0
        %v370 = vsel %vm369, %v368, 0
        %v371 = vshrl.u32 %v370, 5
        %v372 = vand.u32 %v370, 31
        %v373 = vsub.s32 32, %v372
        %v374 = vshrl.u32 683565275, %v373
        %v375 = vshll.u32 683565275, %v372
        %v376 = vshrl.u32 2475754826, %v373
        %v377 = vor.u32 %v375, %v376
        %v378 = vshll.u32 2475754826, %v372
        %v379 = vshrl.u32 2131351028, %v373
        %v380 = vor.u32 %v378, %v379
        %v381 = vshll.u32 2131351028, %v372
        %v382 = vshrl.u32 2102212464, %v373
        %v383 = vor.u32 %v381, %v382
        %v384 = vshll.u32 2102212464, %v372
        %v385 = vshrl.u32 920167782, %v373
        %v386 = vor.u32 %v384, %v385
        %v387 = vshll.u32 920167782, %v372
        %v388 = vshrl.u32 1326507024, %v373
        %v389 = vor.u32 %v387, %v388
        %vm390 = vcmp.lt.s32.totalorder %v371, 1
        %vm391 = vcmp.lt.s32.totalorder %v371, 2
        %vm392 = vcmp.lt.s32.totalorder %v371, 3
        %vm393 = vcmp.lt.s32.totalorder %v371, 4
        %v394 = vsel %vm390, %v374, %v377
        %v395 = vsel %vm393, %v383, 2102212464
        %v396 = vsel %vm392, %v380, %v395
        %v397 = vsel %vm391, %v394, %v396
        %v398 = vsel %vm390, %v377, %v380
        %v399 = vsel %vm393, %v386, 920167782
        %v400 = vsel %vm392, %v383, %v399
        %v401 = vsel %vm391, %v398, %v400
        %v402 = vsel %vm390, %v380, %v383
        %v403 = vsel %vm393, %v389, 1326507024
        %v404 = vsel %vm392, %v386, %v403
        %v405 = vsel %vm391, %v402, %v404
        %v406 = vshll.u32 %v366, 8
        %v407 = vand.u32 %v406, 65535
        %v408 = vshrl.u32 %v406, 16
        %v409 = vand.u32 %v405, 65535
        %v410 = vshrl.u32 %v405, 16
        %v411 = vmul.u32 %v407, %v409
        %v412 = vmul.u32 %v407, %v410
        %v413 = vmul.u32 %v408, %v409
        %v414 = vmul.u32 %v408, %v410
        %v415 = vshll.u32 %v412, 16
        %v416 = vshrl.u32 %v412, 16
        %v417 = vshll.u32 %v413, 16
        %v418 = vshrl.u32 %v413, 16
        %vm419 = vc.u32 %v411, %v415
        %v420 = vsel %vm419, 1, 0
        %v421 = vadd.s32 %v411, %v415
        %v422 = vadd.s32 %v414, %v420
        %vm423 = vc.u32 %v421, %v417
        %v424 = vsel %vm423, 1, 0
        %v425 = vadd.s32 %v421, %v417
        %v426 = vadd.s32 %v422, %v424
        %v427 = vadd.s32 %v426, %v416
        %v428 = vadd.s32 %v427, %v418
        %v429 = vand.u32 %v406, 65535
        %v430 = vshrl.u32 %v406, 16
        %v431 = vand.u32 %v401, 65535
        %v432 = vshrl.u32 %v401, 16
        %v433 = vmul.u32 %v429, %v431
        %v434 = vmul.u32 %v429, %v432
        %v435 = vmul.u32 %v430, %v431
        %v436 = vmul.u32 %v430, %v432
        %v437 = vshll.u32 %v434, 16
        %v438 = vshrl.u32 %v434, 16
        %v439 = vshll.u32 %v435, 16
        %v440 = vshrl.u32 %v435, 16
        %vm441 = vc.u32 %v433, %v437
        %v442 = vsel %vm441, 1, 0
        %v443 = vadd.s32 %v433, %v437
        %v444 = vadd.s32 %v436, %v442
        %vm445 = vc.u32 %v443, %v439
        %v446 = vsel %vm445, 1, 0
        %v447 = vadd.s32 %v443, %v439
        %v448 = vadd.s32 %v444, %v446
        %v449 = vadd.s32 %v448, %v438
        %v450 = vadd.s32 %v449, %v440
        %v451 = vmul.u32 %v406, %v397
        %v452 = vadd.s32 %v428, %v447
        %vm453 = vc.u32 %v428, %v447
        %v454 = vadd.s32 %v450, 1
        %v455 = vsel %vm453, %v454, %v450
        %v456 = vadd.s32 %v451, %v455
        %v457 = vadd.s32 %v456, 536870912
        %v458 = vshrl.u32 %v457, 30
        %v459 = vshll.u32 %v458, 30
        %v460 = vsub.s32 %v456, %v459
        %vm461 = vcmp.lt.s32.totalorder %v460, 0
        %v462 = vsub.s32 0, %v460
        %v463 = vsel %vm461, %v462, %v460
        %v464 = vclz %v463
        %v465 = vsub.s32 %v464, 2
        %vm466 = vcmp.gt.s32.totalorder 0, %v465
        %v467 = vsel %vm466, 0, %v465
        %v468 = vsub.s32 32, %v467
        %v469 = vshll.u32 %v460, %v467
        %v470 = vshrl.u32 %v452, %v468
        %v471 = vor.u32 %v469, %v470
        %v472 = vsub.s32 4294967266, %v467
        %v473 = vadd.s32 %v472, 127
        %v474 = vshll.u32 %v473, 23
        %v475 = vor.u32 4788187, %v474
        %v476 = vand.u32 2147483647, %v475
        %v478 = vcvt.s32.f32 %v471
        %v479 = vmul.f32 %v478, %v476
        %v480 = vxor.u32 %v479, 2147483648
        %v481 = vsel %vm360, %v480, %v479
        %v482 = vsub.s32 4, %v458
        %v483 = vsel %vm360, %v482, %v458
        %v484 = vsel %vm359, %v140, %v481
        %v485 = vsel %vm359, 0, %v483
        %v486 = vmul.f32 %v484, %v484
        %v487 = vmul.f32 %v486, -0.001358992
        %v488 = vadd.f32 %v487, 0.041655596
        %v489 = vmul.f32 %v486, %v488
        %v490 = vadd.f32 %v489, -0.4999988
        %v491 = vmul.f32 %v486, %v490
        %v492 = vadd.f32 1.0, %v491
        %v493 = vmul.f32 %v484, %v484
        %v494 = vmul.f32 %v493, -0.00019511016
        %v495 = vadd.f32 %v494, 0.008332121
        %v496 = vmul.f32 %v493, %v495
        %v497 = vadd.f32 %v496, -0.16666654
        %v498 = vmul.f32 %v493, %v497
        %v499 = vadd.f32 %v498, 1.0
        %v500 = vmul.f32 %v499, %v484
        %vm501 = vweird.f32 %v140
        %v502 = vadd.s32 %v485, 3
        %v503 = vand.u32 %v502, 3
        %vm504 = vcmp.lt.s32.totalorder %v503, 2
        %vm505 = vcmp.eq.s32.totalorder %v503, 0
        %v506 = vxor.u32 %v500, 2147483648
        %v507 = vsel %vm505, %v492, %v506
        %vm508 = vcmp.eq.s32.totalorder %v503, 2
        %v509 = vxor.u32 %v492, 2147483648
        %v510 = vsel %vm508, %v509, %v500
        %v511 = vsel %vm504, %v507, %v510
        %v512 = vsel %vm501, nan, %v511
        %v513 = vand.u32 2147483647, %v141
        %vm514 = vcmp.le.f32.partialorder %v513, 0.7853982
        %vm515 = vcmp.lt.s32.totalorder %v141, 0
        %v516 = vand.u32 %v141, 2139095040
        %v517 = vshrl.u32 %v516, 23
        %v518 = vsub.s32 %v517, 127
        %v519 = vand.u32 2147483647, %v141
        %v520 = vand.u32 %v519, 8388607
        %v521 = vor.u32 %v520, 8388608
        %v522 = vsub.s32 0, %v521
        %v523 = vadd.s32 %v518, 1
        %vm524 = vcmp.gt.s32.totalorder %v523, 0
        %v525 = vsel %vm524, %v523, 0
        %v526 = vshrl.u32 %v525, 5
        %v527 = vand.u32 %v525, 31
        %v528 = vsub.s32 32, %v527
        %v529 = vshrl.u32 683565275, %v528
        %v530 = vshll.u32 683565275, %v527
        %v531 = vshrl.u32 2475754826, %v528
        %v532 = vor.u32 %v530, %v531
        %v533 = vshll.u32 2475754826, %v527
        %v534 = vshrl.u32 2131351028, %v528
        %v535 = vor.u32 %v533, %v534
        %v536 = vshll.u32 2131351028, %v527
        %v537 = vshrl.u32 2102212464, %v528
        %v538 = vor.u32 %v536, %v537
        %v539 = vshll.u32 2102212464, %v527
        %v540 = vshrl.u32 920167782, %v528
        %v541 = vor.u32 %v539, %v540
        %v542 = vshll.u32 920167782, %v527
        %v543 = vshrl.u32 1326507024, %v528
        %v544 = vor.u32 %v542, %v543
        %vm545 = vcmp.lt.s32.totalorder %v526, 1
        %vm546 = vcmp.lt.s32.totalorder %v526, 2
        %vm547 = vcmp.lt.s32.totalorder %v526, 3
        %vm548 = vcmp.lt.s32.totalorder %v526, 4
        %v549 = vsel %vm545, %v529, %v532
        %v550 = vsel %vm548, %v538, 2102212464
        %v551 = vsel %vm547, %v535, %v550
        %v552 = vsel %vm546, %v549, %v551
        %v553 = vsel %vm545, %v532, %v535
        %v554 = vsel %vm548, %v541, 920167782
        %v555 = vsel %vm547, %v538, %v554
        %v556 = vsel %vm546, %v553, %v555
        %v557 = vsel %vm545, %v535, %v538
        %v558 = vsel %vm548, %v544, 1326507024
        %v559 = vsel %vm547, %v541, %v558
        %v560 = vsel %vm546, %v557, %v559
        %v561 = vshll.u32 %v521, 8
        %v562 = vand.u32 %v561, 65535
        %v563 = vshrl.u32 %v561, 16
        %v564 = vand.u32 %v560, 65535
        %v565 = vshrl.u32 %v560, 16
        %v566 = vmul.u32 %v562, %v564
        %v567 = vmul.u32 %v562, %v565
        %v568 = vmul.u32 %v563, %v564
        %v569 = vmul.u32 %v563, %v565
        %v570 = vshll.u32 %v567, 16
        %v571 = vshrl.u32 %v567, 16
        %v572 = vshll.u32 %v568, 16
        %v573 = vshrl.u32 %v568, 16
        %vm574 = vc.u32 %v566, %v570
        %v575 = vsel %vm574, 1, 0
        %v576 = vadd.s32 %v566, %v570
        %v577 = vadd.s32 %v569, %v575
        %vm578 = vc.u32 %v576, %v572
        %v579 = vsel %vm578, 1, 0
        %v580 = vadd.s32 %v576, %v572
        %v581 = vadd.s32 %v577, %v579
        %v582 = vadd.s32 %v581, %v571
        %v583 = vadd.s32 %v582, %v573
        %v584 = vand.u32 %v561, 65535
        %v585 = vshrl.u32 %v561, 16
        %v586 = vand.u32 %v556, 65535
        %v587 = vshrl.u32 %v556, 16
        %v588 = vmul.u32 %v584, %v586
        %v589 = vmul.u32 %v584, %v587
        %v590 = vmul.u32 %v585, %v586
        %v591 = vmul.u32 %v585, %v587
        %v592 = vshll.u32 %v589, 16
        %v593 = vshrl.u32 %v589, 16
        %v594 = vshll.u32 %v590, 16
        %v595 = vshrl.u32 %v590, 16
        %vm596 = vc.u32 %v588, %v592
        %v597 = vsel %vm596, 1, 0
        %v598 = vadd.s32 %v588, %v592
        %v599 = vadd.s32 %v591, %v597
        %vm600 = vc.u32 %v598, %v594
        %v601 = vsel %vm600, 1, 0
        %v602 = vadd.s32 %v598, %v594
        %v603 = vadd.s32 %v599, %v601
        %v604 = vadd.s32 %v603, %v593
        %v605 = vadd.s32 %v604, %v595
        %v606 = vmul.u32 %v561, %v552
        %v607 = vadd.s32 %v583, %v602
        %vm608 = vc.u32 %v583, %v602
        %v609 = vadd.s32 %v605, 1
        %v610 = vsel %vm608, %v609, %v605
        %v611 = vadd.s32 %v606, %v610
        %v612 = vadd.s32 %v611, 536870912
        %v613 = vshrl.u32 %v612, 30
        %v614 = vshll.u32 %v613, 30
        %v615 = vsub.s32 %v611, %v614
        %vm616 = vcmp.lt.s32.totalorder %v615, 0
        %v617 = vsub.s32 0, %v615
        %v618 = vsel %vm616, %v617, %v615
        %v619 = vclz %v618
        %v620 = vsub.s32 %v619, 2
        %vm621 = vcmp.gt.s32.totalorder 0, %v620
        %v622 = vsel %vm621, 0, %v620
        %v623 = vsub.s32 32, %v622
        %v624 = vshll.u32 %v615, %v622
        %v625 = vshrl.u32 %v607, %v623
        %v626 = vor.u32 %v624, %v625
        %v627 = vsub.s32 4294967266, %v622
        %v628 = vadd.s32 %v627, 127
        %v629 = vshll.u32 %v628, 23
        %v630 = vor.u32 4788187, %v629
        %v631 = vand.u32 2147483647, %v630
        %v633 = vcvt.s32.f32 %v626
        %v634 = vmul.f32 %v633, %v631
        %v635 = vxor.u32 %v634, 2147483648
        %v636 = vsel %vm515, %v635, %v634
        %v637 = vsub.s32 4, %v613
        %v638 = vsel %vm515, %v637, %v613
        %v639 = vsel %vm514, %v141, %v636
        %v640 = vsel %vm514, 0, %v638
        %v641 = vmul.f32 %v639, %v639
        %v642 = vmul.f32 %v641, -0.001358992
        %v643 = vadd.f32 %v642, 0.041655596
        %v644 = vmul.f32 %v641, %v643
        %v645 = vadd.f32 %v644, -0.4999988
        %v646 = vmul.f32 %v641, %v645
        %v647 = vadd.f32 1.0, %v646
        %v648 = vmul.f32 %v639, %v639
        %v649 = vmul.f32 %v648, -0.00019511016
        %v650 = vadd.f32 %v649, 0.008332121
        %v651 = vmul.f32 %v648, %v650
        %v652 = vadd.f32 %v651, -0.16666654
        %v653 = vmul.f32 %v648, %v652
        %v654 = vadd.f32 %v653, 1.0
        %v655 = vmul.f32 %v654, %v639
        %vm656 = vweird.f32 %v141
        %v657 = vadd.s32 %v640, 3
        %v658 = vand.u32 %v657, 3
        %vm659 = vcmp.lt.s32.totalorder %v658, 2
        %vm660 = vcmp.eq.s32.totalorder %v658, 0
        %v661 = vxor.u32 %v655, 2147483648
        %v662 = vsel %vm660, %v647, %v661
        %vm663 = vcmp.eq.s32.totalorder %v658, 2
        %v664 = vxor.u32 %v647, 2147483648
        %v665 = vsel %vm663, %v664, %v655
        %v666 = vsel %vm659, %v662, %v665
        %v667 = vsel %vm656, nan, %v666
        %v668 = vand.u32 2147483647, %v142
        %vm669 = vcmp.le.f32.partialorder %v668, 0.7853982
        %vm670 = vcmp.lt.s32.totalorder %v142, 0
        %v671 = vand.u32 %v142, 2139095040
        %v672 = vshrl.u32 %v671, 23
        %v673 = vsub.s32 %v672, 127
        %v674 = vand.u32 2147483647, %v142
        %v675 = vand.u32 %v674, 8388607
        %v676 = vor.u32 %v675, 8388608
        %v677 = vsub.s32 0, %v676
        %v678 = vadd.s32 %v673, 1
        %vm679 = vcmp.gt.s32.totalorder %v678, 0
        %v680 = vsel %vm679, %v678, 0
        %v681 = vshrl.u32 %v680, 5
        %v682 = vand.u32 %v680, 31
        %v683 = vsub.s32 32, %v682
        %v684 = vshrl.u32 683565275, %v683
        %v685 = vshll.u32 683565275, %v682
        %v686 = vshrl.u32 2475754826, %v683
        %v687 = vor.u32 %v685, %v686
        %v688 = vshll.u32 2475754826, %v682
        %v689 = vshrl.u32 2131351028, %v683
        %v690 = vor.u32 %v688, %v689
        %v691 = vshll.u32 2131351028, %v682
        %v692 = vshrl.u32 2102212464, %v683
        %v693 = vor.u32 %v691, %v692
        %v694 = vshll.u32 2102212464, %v682
        %v695 = vshrl.u32 920167782, %v683
        %v696 = vor.u32 %v694, %v695
        %v697 = vshll.u32 920167782, %v682
        %v698 = vshrl.u32 1326507024, %v683
        %v699 = vor.u32 %v697, %v698
        %vm700 = vcmp.lt.s32.totalorder %v681, 1
        %vm701 = vcmp.lt.s32.totalorder %v681, 2
        %vm702 = vcmp.lt.s32.totalorder %v681, 3
        %vm703 = vcmp.lt.s32.totalorder %v681, 4
        %v704 = vsel %vm700, %v684, %v687
        %v705 = vsel %vm703, %v693, 2102212464
        %v706 = vsel %vm702, %v690, %v705
        %v707 = vsel %vm701, %v704, %v706
        %v708 = vsel %vm700, %v687, %v690
        %v709 = vsel %vm703, %v696, 920167782
        %v710 = vsel %vm702, %v693, %v709
        %v711 = vsel %vm701, %v708, %v710
        %v712 = vsel %vm700, %v690, %v693
        %v713 = vsel %vm703, %v699, 1326507024
        %v714 = vsel %vm702, %v696, %v713
        %v715 = vsel %vm701, %v712, %v714
        %v716 = vshll.u32 %v676, 8
        %v717 = vand.u32 %v716, 65535
        %v718 = vshrl.u32 %v716, 16
        %v719 = vand.u32 %v715, 65535
        %v720 = vshrl.u32 %v715, 16
        %v721 = vmul.u32 %v717, %v719
        %v722 = vmul.u32 %v717, %v720
        %v723 = vmul.u32 %v718, %v719
        %v724 = vmul.u32 %v718, %v720
        %v725 = vshll.u32 %v722, 16
        %v726 = vshrl.u32 %v722, 16
        %v727 = vshll.u32 %v723, 16
        %v728 = vshrl.u32 %v723, 16
        %vm729 = vc.u32 %v721, %v725
        %v730 = vsel %vm729, 1, 0
        %v731 = vadd.s32 %v721, %v725
        %v732 = vadd.s32 %v724, %v730
        %vm733 = vc.u32 %v731, %v727
        %v734 = vsel %vm733, 1, 0
        %v735 = vadd.s32 %v731, %v727
        %v736 = vadd.s32 %v732, %v734
        %v737 = vadd.s32 %v736, %v726
        %v738 = vadd.s32 %v737, %v728
        %v739 = vand.u32 %v716, 65535
        %v740 = vshrl.u32 %v716, 16
        %v741 = vand.u32 %v711, 65535
        %v742 = vshrl.u32 %v711, 16
        %v743 = vmul.u32 %v739, %v741
        %v744 = vmul.u32 %v739, %v742
        %v745 = vmul.u32 %v740, %v741
        %v746 = vmul.u32 %v740, %v742
        %v747 = vshll.u32 %v744, 16
        %v748 = vshrl.u32 %v744, 16
        %v749 = vshll.u32 %v745, 16
        %v750 = vshrl.u32 %v745, 16
        %vm751 = vc.u32 %v743, %v747
        %v752 = vsel %vm751, 1, 0
        %v753 = vadd.s32 %v743, %v747
        %v754 = vadd.s32 %v746, %v752
        %vm755 = vc.u32 %v753, %v749
        %v756 = vsel %vm755, 1, 0
        %v757 = vadd.s32 %v753, %v749
        %v758 = vadd.s32 %v754, %v756
        %v759 = vadd.s32 %v758, %v748
        %v760 = vadd.s32 %v759, %v750
        %v761 = vmul.u32 %v716, %v707
        %v762 = vadd.s32 %v738, %v757
        %vm763 = vc.u32 %v738, %v757
        %v764 = vadd.s32 %v760, 1
        %v765 = vsel %vm763, %v764, %v760
        %v766 = vadd.s32 %v761, %v765
        %v767 = vadd.s32 %v766, 536870912
        %v768 = vshrl.u32 %v767, 30
        %v769 = vshll.u32 %v768, 30
        %v770 = vsub.s32 %v766, %v769
        %vm771 = vcmp.lt.s32.totalorder %v770, 0
        %v772 = vsub.s32 0, %v770
        %v773 = vsel %vm771, %v772, %v770
        %v774 = vclz %v773
        %v775 = vsub.s32 %v774, 2
        %vm776 = vcmp.gt.s32.totalorder 0, %v775
        %v777 = vsel %vm776, 0, %v775
        %v778 = vsub.s32 32, %v777
        %v779 = vshll.u32 %v770, %v777
        %v780 = vshrl.u32 %v762, %v778
        %v781 = vor.u32 %v779, %v780
        %v782 = vsub.s32 4294967266, %v777
        %v783 = vadd.s32 %v782, 127
        %v784 = vshll.u32 %v783, 23
        %v785 = vor.u32 4788187, %v784
        %v786 = vand.u32 2147483647, %v785
        %v788 = vcvt.s32.f32 %v781
        %v789 = vmul.f32 %v788, %v786
        %v790 = vxor.u32 %v789, 2147483648
        %v791 = vsel %vm670, %v790, %v789
        %v792 = vsub.s32 4, %v768
        %v793 = vsel %vm670, %v792, %v768
        %v794 = vsel %vm669, %v142, %v791
        %v795 = vsel %vm669, 0, %v793
        %v796 = vmul.f32 %v794, %v794
        %v797 = vmul.f32 %v796, -0.001358992
        %v798 = vadd.f32 %v797, 0.041655596
        %v799 = vmul.f32 %v796, %v798
        %v800 = vadd.f32 %v799, -0.4999988
        %v801 = vmul.f32 %v796, %v800
        %v802 = vadd.f32 1.0, %v801
        %v803 = vmul.f32 %v794, %v794
        %v804 = vmul.f32 %v803, -0.00019511016
        %v805 = vadd.f32 %v804, 0.008332121
        %v806 = vmul.f32 %v803, %v805
        %v807 = vadd.f32 %v806, -0.16666654
        %v808 = vmul.f32 %v803, %v807
        %v809 = vadd.f32 %v808, 1.0
        %v810 = vmul.f32 %v809, %v794
        %vm811 = vweird.f32 %v142
        %v812 = vadd.s32 %v795, 3
        %v813 = vand.u32 %v812, 3
        %vm814 = vcmp.lt.s32.totalorder %v813, 2
        %vm815 = vcmp.eq.s32.totalorder %v813, 0
        %v816 = vxor.u32 %v810, 2147483648
        %v817 = vsel %vm815, %v802, %v816
        %vm818 = vcmp.eq.s32.totalorder %v813, 2
        %v819 = vxor.u32 %v802, 2147483648
        %v820 = vsel %vm818, %v819, %v810
        %v821 = vsel %vm814, %v817, %v820
        %v822 = vsel %vm811, nan, %v821
        %v823 = vand.u32 2147483647, %v143
        %vm824 = vcmp.le.f32.partialorder %v823, 0.7853982
        %vm825 = vcmp.lt.s32.totalorder %v143, 0
        %v826 = vand.u32 %v143, 2139095040
        %v827 = vshrl.u32 %v826, 23
        %v828 = vsub.s32 %v827, 127
        %v829 = vand.u32 2147483647, %v143
        %v830 = vand.u32 %v829, 8388607
        %v831 = vor.u32 %v830, 8388608
        %v832 = vsub.s32 0, %v831
        %v833 = vadd.s32 %v828, 1
        %vm834 = vcmp.gt.s32.totalorder %v833, 0
        %v835 = vsel %vm834, %v833, 0
        %v836 = vshrl.u32 %v835, 5
        %v837 = vand.u32 %v835, 31
        %v838 = vsub.s32 32, %v837
        %v839 = vshrl.u32 683565275, %v838
        %v840 = vshll.u32 683565275, %v837
        %v841 = vshrl.u32 2475754826, %v838
        %v842 = vor.u32 %v840, %v841
        %v843 = vshll.u32 2475754826, %v837
        %v844 = vshrl.u32 2131351028, %v838
        %v845 = vor.u32 %v843, %v844
        %v846 = vshll.u32 2131351028, %v837
        %v847 = vshrl.u32 2102212464, %v838
        %v848 = vor.u32 %v846, %v847
        %v849 = vshll.u32 2102212464, %v837
        %v850 = vshrl.u32 920167782, %v838
        %v851 = vor.u32 %v849, %v850
        %v852 = vshll.u32 920167782, %v837
        %v853 = vshrl.u32 1326507024, %v838
        %v854 = vor.u32 %v852, %v853
        %vm855 = vcmp.lt.s32.totalorder %v836, 1
        %vm856 = vcmp.lt.s32.totalorder %v836, 2
        %vm857 = vcmp.lt.s32.totalorder %v836, 3
        %vm858 = vcmp.lt.s32.totalorder %v836, 4
        %v859 = vsel %vm855, %v839, %v842
        %v860 = vsel %vm858, %v848, 2102212464
        %v861 = vsel %vm857, %v845, %v860
        %v862 = vsel %vm856, %v859, %v861
        %v863 = vsel %vm855, %v842, %v845
        %v864 = vsel %vm858, %v851, 920167782
        %v865 = vsel %vm857, %v848, %v864
        %v866 = vsel %vm856, %v863, %v865
        %v867 = vsel %vm855, %v845, %v848
        %v868 = vsel %vm858, %v854, 1326507024
        %v869 = vsel %vm857, %v851, %v868
        %v870 = vsel %vm856, %v867, %v869
        %v871 = vshll.u32 %v831, 8
        %v872 = vand.u32 %v871, 65535
        %v873 = vshrl.u32 %v871, 16
        %v874 = vand.u32 %v870, 65535
        %v875 = vshrl.u32 %v870, 16
        %v876 = vmul.u32 %v872, %v874
        %v877 = vmul.u32 %v872, %v875
        %v878 = vmul.u32 %v873, %v874
        %v879 = vmul.u32 %v873, %v875
        %v880 = vshll.u32 %v877, 16
        %v881 = vshrl.u32 %v877, 16
        %v882 = vshll.u32 %v878, 16
        %v883 = vshrl.u32 %v878, 16
        %vm884 = vc.u32 %v876, %v880
        %v885 = vsel %vm884, 1, 0
        %v886 = vadd.s32 %v876, %v880
        %v887 = vadd.s32 %v879, %v885
        %vm888 = vc.u32 %v886, %v882
        %v889 = vsel %vm888, 1, 0
        %v890 = vadd.s32 %v886, %v882
        %v891 = vadd.s32 %v887, %v889
        %v892 = vadd.s32 %v891, %v881
        %v893 = vadd.s32 %v892, %v883
        %v894 = vand.u32 %v871, 65535
        %v895 = vshrl.u32 %v871, 16
        %v896 = vand.u32 %v866, 65535
        %v897 = vshrl.u32 %v866, 16
        %v898 = vmul.u32 %v894, %v896
        %v899 = vmul.u32 %v894, %v897
        %v900 = vmul.u32 %v895, %v896
        %v901 = vmul.u32 %v895, %v897
        %v902 = vshll.u32 %v899, 16
        %v903 = vshrl.u32 %v899, 16
        %v904 = vshll.u32 %v900, 16
        %v905 = vshrl.u32 %v900, 16
        %vm906 = vc.u32 %v898, %v902
        %v907 = vsel %vm906, 1, 0
        %v908 = vadd.s32 %v898, %v902
        %v909 = vadd.s32 %v901, %v907
        %vm910 = vc.u32 %v908, %v904
        %v911 = vsel %vm910, 1, 0
        %v912 = vadd.s32 %v908, %v904
        %v913 = vadd.s32 %v909, %v911
        %v914 = vadd.s32 %v913, %v903
        %v915 = vadd.s32 %v914, %v905
        %v916 = vmul.u32 %v871, %v862
        %v917 = vadd.s32 %v893, %v912
        %vm918 = vc.u32 %v893, %v912
        %v919 = vadd.s32 %v915, 1
        %v920 = vsel %vm918, %v919, %v915
        %v921 = vadd.s32 %v916, %v920
        %v922 = vadd.s32 %v921, 536870912
        %v923 = vshrl.u32 %v922, 30
        %v924 = vshll.u32 %v923, 30
        %v925 = vsub.s32 %v921, %v924
        %vm926 = vcmp.lt.s32.totalorder %v925, 0
        %v927 = vsub.s32 0, %v925
        %v928 = vsel %vm926, %v927, %v925
        %v929 = vclz %v928
        %v930 = vsub.s32 %v929, 2
        %vm931 = vcmp.gt.s32.totalorder 0, %v930
        %v932 = vsel %vm931, 0, %v930
        %v933 = vsub.s32 32, %v932
        %v934 = vshll.u32 %v925, %v932
        %v935 = vshrl.u32 %v917, %v933
        %v936 = vor.u32 %v934, %v935
        %v937 = vsub.s32 4294967266, %v932
        %v938 = vadd.s32 %v937, 127
        %v939 = vshll.u32 %v938, 23
        %v940 = vor.u32 4788187, %v939
        %v941 = vand.u32 2147483647, %v940
        %v943 = vcvt.s32.f32 %v936
        %v944 = vmul.f32 %v943, %v941
        %v945 = vxor.u32 %v944, 2147483648
        %v946 = vsel %vm825, %v945, %v944
        %v947 = vsub.s32 4, %v923
        %v948 = vsel %vm825, %v947, %v923
        %v949 = vsel %vm824, %v143, %v946
        %v950 = vsel %vm824, 0, %v948
        %v951 = vmul.f32 %v949, %v949
        %v952 = vmul.f32 %v951, -0.001358992
        %v953 = vadd.f32 %v952, 0.041655596
        %v954 = vmul.f32 %v951, %v953
        %v955 = vadd.f32 %v954, -0.4999988
        %v956 = vmul.f32 %v951, %v955
        %v957 = vadd.f32 1.0, %v956
        %v958 = vmul.f32 %v949, %v949
        %v959 = vmul.f32 %v958, -0.00019511016
        %v960 = vadd.f32 %v959, 0.008332121
        %v961 = vmul.f32 %v958, %v960
        %v962 = vadd.f32 %v961, -0.16666654
        %v963 = vmul.f32 %v958, %v962
        %v964 = vadd.f32 %v963, 1.0
        %v965 = vmul.f32 %v964, %v949
        %vm966 = vweird.f32 %v143
        %v967 = vadd.s32 %v950, 3
        %v968 = vand.u32 %v967, 3
        %vm969 = vcmp.lt.s32.totalorder %v968, 2
        %vm970 = vcmp.eq.s32.totalorder %v968, 0
        %v971 = vxor.u32 %v965, 2147483648
        %v972 = vsel %vm970, %v957, %v971
        %vm973 = vcmp.eq.s32.totalorder %v968, 2
        %v974 = vxor.u32 %v957, 2147483648
        %v975 = vsel %vm973, %v974, %v965
        %v976 = vsel %vm969, %v972, %v975
        %v977 = vsel %vm966, nan, %v976
        %v978 = vand.u32 2147483647, %v144
        %vm979 = vcmp.le.f32.partialorder %v978, 0.7853982
        %vm980 = vcmp.lt.s32.totalorder %v144, 0
        %v981 = vand.u32 %v144, 2139095040
        %v982 = vshrl.u32 %v981, 23
        %v983 = vsub.s32 %v982, 127
        %v984 = vand.u32 2147483647, %v144
        %v985 = vand.u32 %v984, 8388607
        %v986 = vor.u32 %v985, 8388608
        %v987 = vsub.s32 0, %v986
        %v988 = vadd.s32 %v983, 1
        %vm989 = vcmp.gt.s32.totalorder %v988, 0
        %v990 = vsel %vm989, %v988, 0
        %v991 = vshrl.u32 %v990, 5
        %v992 = vand.u32 %v990, 31
        %v993 = vsub.s32 32, %v992
        %v994 = vshrl.u32 683565275, %v993
        %v995 = vshll.u32 683565275, %v992
        %v996 = vshrl.u32 2475754826, %v993
        %v997 = vor.u32 %v995, %v996
        %v998 = vshll.u32 2475754826, %v992
        %v999 = vshrl.u32 2131351028, %v993
        %v1000 = vor.u32 %v998, %v999
        %v1001 = vshll.u32 2131351028, %v992
        %v1002 = vshrl.u32 2102212464, %v993
        %v1003 = vor.u32 %v1001, %v1002
        %v1004 = vshll.u32 2102212464, %v992
        %v1005 = vshrl.u32 920167782, %v993
        %v1006 = vor.u32 %v1004, %v1005
        %v1007 = vshll.u32 920167782, %v992
        %v1008 = vshrl.u32 1326507024, %v993
        %v1009 = vor.u32 %v1007, %v1008
        %vm1010 = vcmp.lt.s32.totalorder %v991, 1
        %vm1011 = vcmp.lt.s32.totalorder %v991, 2
        %vm1012 = vcmp.lt.s32.totalorder %v991, 3
        %vm1013 = vcmp.lt.s32.totalorder %v991, 4
        %v1014 = vsel %vm1010, %v994, %v997
        %v1015 = vsel %vm1013, %v1003, 2102212464
        %v1016 = vsel %vm1012, %v1000, %v1015
        %v1017 = vsel %vm1011, %v1014, %v1016
        %v1018 = vsel %vm1010, %v997, %v1000
        %v1019 = vsel %vm1013, %v1006, 920167782
        %v1020 = vsel %vm1012, %v1003, %v1019
        %v1021 = vsel %vm1011, %v1018, %v1020
        %v1022 = vsel %vm1010, %v1000, %v1003
        %v1023 = vsel %vm1013, %v1009, 1326507024
        %v1024 = vsel %vm1012, %v1006, %v1023
        %v1025 = vsel %vm1011, %v1022, %v1024
        %v1026 = vshll.u32 %v986, 8
        %v1027 = vand.u32 %v1026, 65535
        %v1028 = vshrl.u32 %v1026, 16
        %v1029 = vand.u32 %v1025, 65535
        %v1030 = vshrl.u32 %v1025, 16
        %v1031 = vmul.u32 %v1027, %v1029
        %v1032 = vmul.u32 %v1027, %v1030
        %v1033 = vmul.u32 %v1028, %v1029
        %v1034 = vmul.u32 %v1028, %v1030
        %v1035 = vshll.u32 %v1032, 16
        %v1036 = vshrl.u32 %v1032, 16
        %v1037 = vshll.u32 %v1033, 16
        %v1038 = vshrl.u32 %v1033, 16
        %vm1039 = vc.u32 %v1031, %v1035
        %v1040 = vsel %vm1039, 1, 0
        %v1041 = vadd.s32 %v1031, %v1035
        %v1042 = vadd.s32 %v1034, %v1040
        %vm1043 = vc.u32 %v1041, %v1037
        %v1044 = vsel %vm1043, 1, 0
        %v1045 = vadd.s32 %v1041, %v1037
        %v1046 = vadd.s32 %v1042, %v1044
        %v1047 = vadd.s32 %v1046, %v1036
        %v1048 = vadd.s32 %v1047, %v1038
        %v1049 = vand.u32 %v1026, 65535
        %v1050 = vshrl.u32 %v1026, 16
        %v1051 = vand.u32 %v1021, 65535
        %v1052 = vshrl.u32 %v1021, 16
        %v1053 = vmul.u32 %v1049, %v1051
        %v1054 = vmul.u32 %v1049, %v1052
        %v1055 = vmul.u32 %v1050, %v1051
        %v1056 = vmul.u32 %v1050, %v1052
        %v1057 = vshll.u32 %v1054, 16
        %v1058 = vshrl.u32 %v1054, 16
        %v1059 = vshll.u32 %v1055, 16
        %v1060 = vshrl.u32 %v1055, 16
        %vm1061 = vc.u32 %v1053, %v1057
        %v1062 = vsel %vm1061, 1, 0
        %v1063 = vadd.s32 %v1053, %v1057
        %v1064 = vadd.s32 %v1056, %v1062
        %vm1065 = vc.u32 %v1063, %v1059
        %v1066 = vsel %vm1065, 1, 0
        %v1067 = vadd.s32 %v1063, %v1059
        %v1068 = vadd.s32 %v1064, %v1066
        %v1069 = vadd.s32 %v1068, %v1058
        %v1070 = vadd.s32 %v1069, %v1060
        %v1071 = vmul.u32 %v1026, %v1017
        %v1072 = vadd.s32 %v1048, %v1067
        %vm1073 = vc.u32 %v1048, %v1067
        %v1074 = vadd.s32 %v1070, 1
        %v1075 = vsel %vm1073, %v1074, %v1070
        %v1076 = vadd.s32 %v1071, %v1075
        %v1077 = vadd.s32 %v1076, 536870912
        %v1078 = vshrl.u32 %v1077, 30
        %v1079 = vshll.u32 %v1078, 30
        %v1080 = vsub.s32 %v1076, %v1079
        %vm1081 = vcmp.lt.s32.totalorder %v1080, 0
        %v1082 = vsub.s32 0, %v1080
        %v1083 = vsel %vm1081, %v1082, %v1080
        %v1084 = vclz %v1083
        %v1085 = vsub.s32 %v1084, 2
        %vm1086 = vcmp.gt.s32.totalorder 0, %v1085
        %v1087 = vsel %vm1086, 0, %v1085
        %v1088 = vsub.s32 32, %v1087
        %v1089 = vshll.u32 %v1080, %v1087
        %v1090 = vshrl.u32 %v1072, %v1088
        %v1091 = vor.u32 %v1089, %v1090
        %v1092 = vsub.s32 4294967266, %v1087
        %v1093 = vadd.s32 %v1092, 127
        %v1094 = vshll.u32 %v1093, 23
        %v1095 = vor.u32 4788187, %v1094
        %v1096 = vand.u32 2147483647, %v1095
        %v1098 = vcvt.s32.f32 %v1091
        %v1099 = vmul.f32 %v1098, %v1096
        %v1100 = vxor.u32 %v1099, 2147483648
        %v1101 = vsel %vm980, %v1100, %v1099
        %v1102 = vsub.s32 4, %v1078
        %v1103 = vsel %vm980, %v1102, %v1078
        %v1104 = vsel %vm979, %v144, %v1101
        %v1105 = vsel %vm979, 0, %v1103
        %v1106 = vmul.f32 %v1104, %v1104
        %v1107 = vmul.f32 %v1106, -0.001358992
        %v1108 = vadd.f32 %v1107, 0.041655596
        %v1109 = vmul.f32 %v1106, %v1108
        %v1110 = vadd.f32 %v1109, -0.4999988
        %v1111 = vmul.f32 %v1106, %v1110
        %v1112 = vadd.f32 1.0, %v1111
        %v1113 = vmul.f32 %v1104, %v1104
        %v1114 = vmul.f32 %v1113, -0.00019511016
        %v1115 = vadd.f32 %v1114, 0.008332121
        %v1116 = vmul.f32 %v1113, %v1115
        %v1117 = vadd.f32 %v1116, -0.16666654
        %v1118 = vmul.f32 %v1113, %v1117
        %v1119 = vadd.f32 %v1118, 1.0
        %v1120 = vmul.f32 %v1119, %v1104
        %vm1121 = vweird.f32 %v144
        %v1122 = vadd.s32 %v1105, 3
        %v1123 = vand.u32 %v1122, 3
        %vm1124 = vcmp.lt.s32.totalorder %v1123, 2
        %vm1125 = vcmp.eq.s32.totalorder %v1123, 0
        %v1126 = vxor.u32 %v1120, 2147483648
        %v1127 = vsel %vm1125, %v1112, %v1126
        %vm1128 = vcmp.eq.s32.totalorder %v1123, 2
        %v1129 = vxor.u32 %v1112, 2147483648
        %v1130 = vsel %vm1128, %v1129, %v1120
        %v1131 = vsel %vm1124, %v1127, %v1130
        %v1132 = vsel %vm1121, nan, %v1131
        %v1133 = vand.u32 2147483647, %v145
        %vm1134 = vcmp.le.f32.partialorder %v1133, 0.7853982
        %vm1135 = vcmp.lt.s32.totalorder %v145, 0
        %v1136 = vand.u32 %v145, 2139095040
        %v1137 = vshrl.u32 %v1136, 23
        %v1138 = vsub.s32 %v1137, 127
        %v1139 = vand.u32 2147483647, %v145
        %v1140 = vand.u32 %v1139, 8388607
        %v1141 = vor.u32 %v1140, 8388608
        %v1142 = vsub.s32 0, %v1141
        %v1143 = vadd.s32 %v1138, 1
        %vm1144 = vcmp.gt.s32.totalorder %v1143, 0
        %v1145 = vsel %vm1144, %v1143, 0
        %v1146 = vshrl.u32 %v1145, 5
        %v1147 = vand.u32 %v1145, 31
        %v1148 = vsub.s32 32, %v1147
        %v1149 = vshrl.u32 683565275, %v1148
        %v1150 = vshll.u32 683565275, %v1147
        %v1151 = vshrl.u32 2475754826, %v1148
        %v1152 = vor.u32 %v1150, %v1151
        %v1153 = vshll.u32 2475754826, %v1147
        %v1154 = vshrl.u32 2131351028, %v1148
        %v1155 = vor.u32 %v1153, %v1154
        %v1156 = vshll.u32 2131351028, %v1147
        %v1157 = vshrl.u32 2102212464, %v1148
        %v1158 = vor.u32 %v1156, %v1157
        %v1159 = vshll.u32 2102212464, %v1147
        %v1160 = vshrl.u32 920167782, %v1148
        %v1161 = vor.u32 %v1159, %v1160
        %v1162 = vshll.u32 920167782, %v1147
        %v1163 = vshrl.u32 1326507024, %v1148
        %v1164 = vor.u32 %v1162, %v1163
        %vm1165 = vcmp.lt.s32.totalorder %v1146, 1
        %vm1166 = vcmp.lt.s32.totalorder %v1146, 2
        %vm1167 = vcmp.lt.s32.totalorder %v1146, 3
        %vm1168 = vcmp.lt.s32.totalorder %v1146, 4
        %v1169 = vsel %vm1165, %v1149, %v1152
        %v1170 = vsel %vm1168, %v1158, 2102212464
        %v1171 = vsel %vm1167, %v1155, %v1170
        %v1172 = vsel %vm1166, %v1169, %v1171
        %v1173 = vsel %vm1165, %v1152, %v1155
        %v1174 = vsel %vm1168, %v1161, 920167782
        %v1175 = vsel %vm1167, %v1158, %v1174
        %v1176 = vsel %vm1166, %v1173, %v1175
        %v1177 = vsel %vm1165, %v1155, %v1158
        %v1178 = vsel %vm1168, %v1164, 1326507024
        %v1179 = vsel %vm1167, %v1161, %v1178
        %v1180 = vsel %vm1166, %v1177, %v1179
        %v1181 = vshll.u32 %v1141, 8
        %v1182 = vand.u32 %v1181, 65535
        %v1183 = vshrl.u32 %v1181, 16
        %v1184 = vand.u32 %v1180, 65535
        %v1185 = vshrl.u32 %v1180, 16
        %v1186 = vmul.u32 %v1182, %v1184
        %v1187 = vmul.u32 %v1182, %v1185
        %v1188 = vmul.u32 %v1183, %v1184
        %v1189 = vmul.u32 %v1183, %v1185
        %v1190 = vshll.u32 %v1187, 16
        %v1191 = vshrl.u32 %v1187, 16
        %v1192 = vshll.u32 %v1188, 16
        %v1193 = vshrl.u32 %v1188, 16
        %vm1194 = vc.u32 %v1186, %v1190
        %v1195 = vsel %vm1194, 1, 0
        %v1196 = vadd.s32 %v1186, %v1190
        %v1197 = vadd.s32 %v1189, %v1195
        %vm1198 = vc.u32 %v1196, %v1192
        %v1199 = vsel %vm1198, 1, 0
        %v1200 = vadd.s32 %v1196, %v1192
        %v1201 = vadd.s32 %v1197, %v1199
        %v1202 = vadd.s32 %v1201, %v1191
        %v1203 = vadd.s32 %v1202, %v1193
        %v1204 = vand.u32 %v1181, 65535
        %v1205 = vshrl.u32 %v1181, 16
        %v1206 = vand.u32 %v1176, 65535
        %v1207 = vshrl.u32 %v1176, 16
        %v1208 = vmul.u32 %v1204, %v1206
        %v1209 = vmul.u32 %v1204, %v1207
        %v1210 = vmul.u32 %v1205, %v1206
        %v1211 = vmul.u32 %v1205, %v1207
        %v1212 = vshll.u32 %v1209, 16
        %v1213 = vshrl.u32 %v1209, 16
        %v1214 = vshll.u32 %v1210, 16
        %v1215 = vshrl.u32 %v1210, 16
        %vm1216 = vc.u32 %v1208, %v1212
        %v1217 = vsel %vm1216, 1, 0
        %v1218 = vadd.s32 %v1208, %v1212
        %v1219 = vadd.s32 %v1211, %v1217
        %vm1220 = vc.u32 %v1218, %v1214
        %v1221 = vsel %vm1220, 1, 0
        %v1222 = vadd.s32 %v1218, %v1214
        %v1223 = vadd.s32 %v1219, %v1221
        %v1224 = vadd.s32 %v1223, %v1213
        %v1225 = vadd.s32 %v1224, %v1215
        %v1226 = vmul.u32 %v1181, %v1172
        %v1227 = vadd.s32 %v1203, %v1222
        %vm1228 = vc.u32 %v1203, %v1222
        %v1229 = vadd.s32 %v1225, 1
        %v1230 = vsel %vm1228, %v1229, %v1225
        %v1231 = vadd.s32 %v1226, %v1230
        %v1232 = vadd.s32 %v1231, 536870912
        %v1233 = vshrl.u32 %v1232, 30
        %v1234 = vshll.u32 %v1233, 30
        %v1235 = vsub.s32 %v1231, %v1234
        %vm1236 = vcmp.lt.s32.totalorder %v1235, 0
        %v1237 = vsub.s32 0, %v1235
        %v1238 = vsel %vm1236, %v1237, %v1235
        %v1239 = vclz %v1238
        %v1240 = vsub.s32 %v1239, 2
        %vm1241 = vcmp.gt.s32.totalorder 0, %v1240
        %v1242 = vsel %vm1241, 0, %v1240
        %v1243 = vsub.s32 32, %v1242
        %v1244 = vshll.u32 %v1235, %v1242
        %v1245 = vshrl.u32 %v1227, %v1243
        %v1246 = vor.u32 %v1244, %v1245
        %v1247 = vsub.s32 4294967266, %v1242
        %v1248 = vadd.s32 %v1247, 127
        %v1249 = vshll.u32 %v1248, 23
        %v1250 = vor.u32 4788187, %v1249
        %v1251 = vand.u32 2147483647, %v1250
        %v1253 = vcvt.s32.f32 %v1246
        %v1254 = vmul.f32 %v1253, %v1251
        %v1255 = vxor.u32 %v1254, 2147483648
        %v1256 = vsel %vm1135, %v1255, %v1254
        %v1257 = vsub.s32 4, %v1233
        %v1258 = vsel %vm1135, %v1257, %v1233
        %v1259 = vsel %vm1134, %v145, %v1256
        %v1260 = vsel %vm1134, 0, %v1258
        %v1261 = vmul.f32 %v1259, %v1259
        %v1262 = vmul.f32 %v1261, -0.001358992
        %v1263 = vadd.f32 %v1262, 0.041655596
        %v1264 = vmul.f32 %v1261, %v1263
        %v1265 = vadd.f32 %v1264, -0.4999988
        %v1266 = vmul.f32 %v1261, %v1265
        %v1267 = vadd.f32 1.0, %v1266
        %v1268 = vmul.f32 %v1259, %v1259
        %v1269 = vmul.f32 %v1268, -0.00019511016
        %v1270 = vadd.f32 %v1269, 0.008332121
        %v1271 = vmul.f32 %v1268, %v1270
        %v1272 = vadd.f32 %v1271, -0.16666654
        %v1273 = vmul.f32 %v1268, %v1272
        %v1274 = vadd.f32 %v1273, 1.0
        %v1275 = vmul.f32 %v1274, %v1259
        %vm1276 = vweird.f32 %v145
        %v1277 = vadd.s32 %v1260, 3
        %v1278 = vand.u32 %v1277, 3
        %vm1279 = vcmp.lt.s32.totalorder %v1278, 2
        %vm1280 = vcmp.eq.s32.totalorder %v1278, 0
        %v1281 = vxor.u32 %v1275, 2147483648
        %v1282 = vsel %vm1280, %v1267, %v1281
        %vm1283 = vcmp.eq.s32.totalorder %v1278, 2
        %v1284 = vxor.u32 %v1267, 2147483648
        %v1285 = vsel %vm1283, %v1284, %v1275
        %v1286 = vsel %vm1279, %v1282, %v1285
        %v1287 = vsel %vm1276, nan, %v1286
        %v1288 = vand.u32 2147483647, %v146
        %vm1289 = vcmp.le.f32.partialorder %v1288, 0.7853982
        %vm1290 = vcmp.lt.s32.totalorder %v146, 0
        %v1291 = vand.u32 %v146, 2139095040
        %v1292 = vshrl.u32 %v1291, 23
        %v1293 = vsub.s32 %v1292, 127
        %v1294 = vand.u32 2147483647, %v146
        %v1295 = vand.u32 %v1294, 8388607
        %v1296 = vor.u32 %v1295, 8388608
        %v1297 = vsub.s32 0, %v1296
        %v1298 = vadd.s32 %v1293, 1
        %vm1299 = vcmp.gt.s32.totalorder %v1298, 0
        %v1300 = vsel %vm1299, %v1298, 0
        %v1301 = vshrl.u32 %v1300, 5
        %v1302 = vand.u32 %v1300, 31
        %v1303 = vsub.s32 32, %v1302
        %v1304 = vshrl.u32 683565275, %v1303
        %v1305 = vshll.u32 683565275, %v1302
        %v1306 = vshrl.u32 2475754826, %v1303
        %v1307 = vor.u32 %v1305, %v1306
        %v1308 = vshll.u32 2475754826, %v1302
        %v1309 = vshrl.u32 2131351028, %v1303
        %v1310 = vor.u32 %v1308, %v1309
        %v1311 = vshll.u32 2131351028, %v1302
        %v1312 = vshrl.u32 2102212464, %v1303
        %v1313 = vor.u32 %v1311, %v1312
        %v1314 = vshll.u32 2102212464, %v1302
        %v1315 = vshrl.u32 920167782, %v1303
        %v1316 = vor.u32 %v1314, %v1315
        %v1317 = vshll.u32 920167782, %v1302
        %v1318 = vshrl.u32 1326507024, %v1303
        %v1319 = vor.u32 %v1317, %v1318
        %vm1320 = vcmp.lt.s32.totalorder %v1301, 1
        %vm1321 = vcmp.lt.s32.totalorder %v1301, 2
        %vm1322 = vcmp.lt.s32.totalorder %v1301, 3
        %vm1323 = vcmp.lt.s32.totalorder %v1301, 4
        %v1324 = vsel %vm1320, %v1304, %v1307
        %v1325 = vsel %vm1323, %v1313, 2102212464
        %v1326 = vsel %vm1322, %v1310, %v1325
        %v1327 = vsel %vm1321, %v1324, %v1326
        %v1328 = vsel %vm1320, %v1307, %v1310
        %v1329 = vsel %vm1323, %v1316, 920167782
        %v1330 = vsel %vm1322, %v1313, %v1329
        %v1331 = vsel %vm1321, %v1328, %v1330
        %v1332 = vsel %vm1320, %v1310, %v1313
        %v1333 = vsel %vm1323, %v1319, 1326507024
        %v1334 = vsel %vm1322, %v1316, %v1333
        %v1335 = vsel %vm1321, %v1332, %v1334
        %v1336 = vshll.u32 %v1296, 8
        %v1337 = vand.u32 %v1336, 65535
        %v1338 = vshrl.u32 %v1336, 16
        %v1339 = vand.u32 %v1335, 65535
        %v1340 = vshrl.u32 %v1335, 16
        %v1341 = vmul.u32 %v1337, %v1339
        %v1342 = vmul.u32 %v1337, %v1340
        %v1343 = vmul.u32 %v1338, %v1339
        %v1344 = vmul.u32 %v1338, %v1340
        %v1345 = vshll.u32 %v1342, 16
        %v1346 = vshrl.u32 %v1342, 16
        %v1347 = vshll.u32 %v1343, 16
        %v1348 = vshrl.u32 %v1343, 16
        %vm1349 = vc.u32 %v1341, %v1345
        %v1350 = vsel %vm1349, 1, 0
        %v1351 = vadd.s32 %v1341, %v1345
        %v1352 = vadd.s32 %v1344, %v1350
        %vm1353 = vc.u32 %v1351, %v1347
        %v1354 = vsel %vm1353, 1, 0
        %v1355 = vadd.s32 %v1351, %v1347
        %v1356 = vadd.s32 %v1352, %v1354
        %v1357 = vadd.s32 %v1356, %v1346
        %v1358 = vadd.s32 %v1357, %v1348
        %v1359 = vand.u32 %v1336, 65535
        %v1360 = vshrl.u32 %v1336, 16
        %v1361 = vand.u32 %v1331, 65535
        %v1362 = vshrl.u32 %v1331, 16
        %v1363 = vmul.u32 %v1359, %v1361
        %v1364 = vmul.u32 %v1359, %v1362
        %v1365 = vmul.u32 %v1360, %v1361
        %v1366 = vmul.u32 %v1360, %v1362
        %v1367 = vshll.u32 %v1364, 16
        %v1368 = vshrl.u32 %v1364, 16
        %v1369 = vshll.u32 %v1365, 16
        %v1370 = vshrl.u32 %v1365, 16
        %vm1371 = vc.u32 %v1363, %v1367
        %v1372 = vsel %vm1371, 1, 0
        %v1373 = vadd.s32 %v1363, %v1367
        %v1374 = vadd.s32 %v1366, %v1372
        %vm1375 = vc.u32 %v1373, %v1369
        %v1376 = vsel %vm1375, 1, 0
        %v1377 = vadd.s32 %v1373, %v1369
        %v1378 = vadd.s32 %v1374, %v1376
        %v1379 = vadd.s32 %v1378, %v1368
        %v1380 = vadd.s32 %v1379, %v1370
        %v1381 = vmul.u32 %v1336, %v1327
        %v1382 = vadd.s32 %v1358, %v1377
        %vm1383 = vc.u32 %v1358, %v1377
        %v1384 = vadd.s32 %v1380, 1
        %v1385 = vsel %vm1383, %v1384, %v1380
        %v1386 = vadd.s32 %v1381, %v1385
        %v1387 = vadd.s32 %v1386, 536870912
        %v1388 = vshrl.u32 %v1387, 30
        %v1389 = vshll.u32 %v1388, 30
        %v1390 = vsub.s32 %v1386, %v1389
        %vm1391 = vcmp.lt.s32.totalorder %v1390, 0
        %v1392 = vsub.s32 0, %v1390
        %v1393 = vsel %vm1391, %v1392, %v1390
        %v1394 = vclz %v1393
        %v1395 = vsub.s32 %v1394, 2
        %vm1396 = vcmp.gt.s32.totalorder 0, %v1395
        %v1397 = vsel %vm1396, 0, %v1395
        %v1398 = vsub.s32 32, %v1397
        %v1399 = vshll.u32 %v1390, %v1397
        %v1400 = vshrl.u32 %v1382, %v1398
        %v1401 = vor.u32 %v1399, %v1400
        %v1402 = vsub.s32 4294967266, %v1397
        %v1403 = vadd.s32 %v1402, 127
        %v1404 = vshll.u32 %v1403, 23
        %v1405 = vor.u32 4788187, %v1404
        %v1406 = vand.u32 2147483647, %v1405
        %v1408 = vcvt.s32.f32 %v1401
        %v1409 = vmul.f32 %v1408, %v1406
        %v1410 = vxor.u32 %v1409, 2147483648
        %v1411 = vsel %vm1290, %v1410, %v1409
        %v1412 = vsub.s32 4, %v1388
        %v1413 = vsel %vm1290, %v1412, %v1388
        %v1414 = vsel %vm1289, %v146, %v1411
        %v1415 = vsel %vm1289, 0, %v1413
        %v1416 = vmul.f32 %v1414, %v1414
        %v1417 = vmul.f32 %v1416, -0.001358992
        %v1418 = vadd.f32 %v1417, 0.041655596
        %v1419 = vmul.f32 %v1416, %v1418
        %v1420 = vadd.f32 %v1419, -0.4999988
        %v1421 = vmul.f32 %v1416, %v1420
        %v1422 = vadd.f32 1.0, %v1421
        %v1423 = vmul.f32 %v1414, %v1414
        %v1424 = vmul.f32 %v1423, -0.00019511016
        %v1425 = vadd.f32 %v1424, 0.008332121
        %v1426 = vmul.f32 %v1423, %v1425
        %v1427 = vadd.f32 %v1426, -0.16666654
        %v1428 = vmul.f32 %v1423, %v1427
        %v1429 = vadd.f32 %v1428, 1.0
        %v1430 = vmul.f32 %v1429, %v1414
        %vm1431 = vweird.f32 %v146
        %v1432 = vadd.s32 %v1415, 3
        %v1433 = vand.u32 %v1432, 3
        %vm1434 = vcmp.lt.s32.totalorder %v1433, 2
        %vm1435 = vcmp.eq.s32.totalorder %v1433, 0
        %v1436 = vxor.u32 %v1430, 2147483648
        %v1437 = vsel %vm1435, %v1422, %v1436
        %vm1438 = vcmp.eq.s32.totalorder %v1433, 2
        %v1439 = vxor.u32 %v1422, 2147483648
        %v1440 = vsel %vm1438, %v1439, %v1430
        %v1441 = vsel %vm1434, %v1437, %v1440
        %v1442 = vsel %vm1431, nan, %v1441
        %v1443 = vand.u32 2147483647, %v147
        %vm1444 = vcmp.le.f32.partialorder %v1443, 0.7853982
        %vm1445 = vcmp.lt.s32.totalorder %v147, 0
        %v1446 = vand.u32 %v147, 2139095040
        %v1447 = vshrl.u32 %v1446, 23
        %v1448 = vsub.s32 %v1447, 127
        %v1449 = vand.u32 2147483647, %v147
        %v1450 = vand.u32 %v1449, 8388607
        %v1451 = vor.u32 %v1450, 8388608
        %v1452 = vsub.s32 0, %v1451
        %v1453 = vadd.s32 %v1448, 1
        %vm1454 = vcmp.gt.s32.totalorder %v1453, 0
        %v1455 = vsel %vm1454, %v1453, 0
        %v1456 = vshrl.u32 %v1455, 5
        %v1457 = vand.u32 %v1455, 31
        %v1458 = vsub.s32 32, %v1457
        %v1459 = vshrl.u32 683565275, %v1458
        %v1460 = vshll.u32 683565275, %v1457
        %v1461 = vshrl.u32 2475754826, %v1458
        %v1462 = vor.u32 %v1460, %v1461
        %v1463 = vshll.u32 2475754826, %v1457
        %v1464 = vshrl.u32 2131351028, %v1458
        %v1465 = vor.u32 %v1463, %v1464
        %v1466 = vshll.u32 2131351028, %v1457
        %v1467 = vshrl.u32 2102212464, %v1458
        %v1468 = vor.u32 %v1466, %v1467
        %v1469 = vshll.u32 2102212464, %v1457
        %v1470 = vshrl.u32 920167782, %v1458
        %v1471 = vor.u32 %v1469, %v1470
        %v1472 = vshll.u32 920167782, %v1457
        %v1473 = vshrl.u32 1326507024, %v1458
        %v1474 = vor.u32 %v1472, %v1473
        %vm1475 = vcmp.lt.s32.totalorder %v1456, 1
        %vm1476 = vcmp.lt.s32.totalorder %v1456, 2
        %vm1477 = vcmp.lt.s32.totalorder %v1456, 3
        %vm1478 = vcmp.lt.s32.totalorder %v1456, 4
        %v1479 = vsel %vm1475, %v1459, %v1462
        %v1480 = vsel %vm1478, %v1468, 2102212464
        %v1481 = vsel %vm1477, %v1465, %v1480
        %v1482 = vsel %vm1476, %v1479, %v1481
        %v1483 = vsel %vm1475, %v1462, %v1465
        %v1484 = vsel %vm1478, %v1471, 920167782
        %v1485 = vsel %vm1477, %v1468, %v1484
        %v1486 = vsel %vm1476, %v1483, %v1485
        %v1487 = vsel %vm1475, %v1465, %v1468
        %v1488 = vsel %vm1478, %v1474, 1326507024
        %v1489 = vsel %vm1477, %v1471, %v1488
        %v1490 = vsel %vm1476, %v1487, %v1489
        %v1491 = vshll.u32 %v1451, 8
        %v1492 = vand.u32 %v1491, 65535
        %v1493 = vshrl.u32 %v1491, 16
        %v1494 = vand.u32 %v1490, 65535
        %v1495 = vshrl.u32 %v1490, 16
        %v1496 = vmul.u32 %v1492, %v1494
        %v1497 = vmul.u32 %v1492, %v1495
        %v1498 = vmul.u32 %v1493, %v1494
        %v1499 = vmul.u32 %v1493, %v1495
        %v1500 = vshll.u32 %v1497, 16
        %v1501 = vshrl.u32 %v1497, 16
        %v1502 = vshll.u32 %v1498, 16
        %v1503 = vshrl.u32 %v1498, 16
        %vm1504 = vc.u32 %v1496, %v1500
        %v1505 = vsel %vm1504, 1, 0
        %v1506 = vadd.s32 %v1496, %v1500
        %v1507 = vadd.s32 %v1499, %v1505
        %vm1508 = vc.u32 %v1506, %v1502
        %v1509 = vsel %vm1508, 1, 0
        %v1510 = vadd.s32 %v1506, %v1502
        %v1511 = vadd.s32 %v1507, %v1509
        %v1512 = vadd.s32 %v1511, %v1501
        %v1513 = vadd.s32 %v1512, %v1503
        %v1514 = vand.u32 %v1491, 65535
        %v1515 = vshrl.u32 %v1491, 16
        %v1516 = vand.u32 %v1486, 65535
        %v1517 = vshrl.u32 %v1486, 16
        %v1518 = vmul.u32 %v1514, %v1516
        %v1519 = vmul.u32 %v1514, %v1517
        %v1520 = vmul.u32 %v1515, %v1516
        %v1521 = vmul.u32 %v1515, %v1517
        %v1522 = vshll.u32 %v1519, 16
        %v1523 = vshrl.u32 %v1519, 16
        %v1524 = vshll.u32 %v1520, 16
        %v1525 = vshrl.u32 %v1520, 16
        %vm1526 = vc.u32 %v1518, %v1522
        %v1527 = vsel %vm1526, 1, 0
        %v1528 = vadd.s32 %v1518, %v1522
        %v1529 = vadd.s32 %v1521, %v1527
        %vm1530 = vc.u32 %v1528, %v1524
        %v1531 = vsel %vm1530, 1, 0
        %v1532 = vadd.s32 %v1528, %v1524
        %v1533 = vadd.s32 %v1529, %v1531
        %v1534 = vadd.s32 %v1533, %v1523
        %v1535 = vadd.s32 %v1534, %v1525
        %v1536 = vmul.u32 %v1491, %v1482
        %v1537 = vadd.s32 %v1513, %v1532
        %vm1538 = vc.u32 %v1513, %v1532
        %v1539 = vadd.s32 %v1535, 1
        %v1540 = vsel %vm1538, %v1539, %v1535
        %v1541 = vadd.s32 %v1536, %v1540
        %v1542 = vadd.s32 %v1541, 536870912
        %v1543 = vshrl.u32 %v1542, 30
        %v1544 = vshll.u32 %v1543, 30
        %v1545 = vsub.s32 %v1541, %v1544
        %vm1546 = vcmp.lt.s32.totalorder %v1545, 0
        %v1547 = vsub.s32 0, %v1545
        %v1548 = vsel %vm1546, %v1547, %v1545
        %v1549 = vclz %v1548
        %v1550 = vsub.s32 %v1549, 2
        %vm1551 = vcmp.gt.s32.totalorder 0, %v1550
        %v1552 = vsel %vm1551, 0, %v1550
        %v1553 = vsub.s32 32, %v1552
        %v1554 = vshll.u32 %v1545, %v1552
        %v1555 = vshrl.u32 %v1537, %v1553
        %v1556 = vor.u32 %v1554, %v1555
        %v1557 = vsub.s32 4294967266, %v1552
        %v1558 = vadd.s32 %v1557, 127
        %v1559 = vshll.u32 %v1558, 23
        %v1560 = vor.u32 4788187, %v1559
        %v1561 = vand.u32 2147483647, %v1560
        %v1563 = vcvt.s32.f32 %v1556
        %v1564 = vmul.f32 %v1563, %v1561
        %v1565 = vxor.u32 %v1564, 2147483648
        %v1566 = vsel %vm1445, %v1565, %v1564
        %v1567 = vsub.s32 4, %v1543
        %v1568 = vsel %vm1445, %v1567, %v1543
        %v1569 = vsel %vm1444, %v147, %v1566
        %v1570 = vsel %vm1444, 0, %v1568
        %v1571 = vmul.f32 %v1569, %v1569
        %v1572 = vmul.f32 %v1571, -0.001358992
        %v1573 = vadd.f32 %v1572, 0.041655596
        %v1574 = vmul.f32 %v1571, %v1573
        %v1575 = vadd.f32 %v1574, -0.4999988
        %v1576 = vmul.f32 %v1571, %v1575
        %v1577 = vadd.f32 1.0, %v1576
        %v1578 = vmul.f32 %v1569, %v1569
        %v1579 = vmul.f32 %v1578, -0.00019511016
        %v1580 = vadd.f32 %v1579, 0.008332121
        %v1581 = vmul.f32 %v1578, %v1580
        %v1582 = vadd.f32 %v1581, -0.16666654
        %v1583 = vmul.f32 %v1578, %v1582
        %v1584 = vadd.f32 %v1583, 1.0
        %v1585 = vmul.f32 %v1584, %v1569
        %vm1586 = vweird.f32 %v147
        %v1587 = vadd.s32 %v1570, 3
        %v1588 = vand.u32 %v1587, 3
        %vm1589 = vcmp.lt.s32.totalorder %v1588, 2
        %vm1590 = vcmp.eq.s32.totalorder %v1588, 0
        %v1591 = vxor.u32 %v1585, 2147483648
        %v1592 = vsel %vm1590, %v1577, %v1591
        %vm1593 = vcmp.eq.s32.totalorder %v1588, 2
        %v1594 = vxor.u32 %v1577, 2147483648
        %v1595 = vsel %vm1593, %v1594, %v1585
        %v1596 = vsel %vm1589, %v1592, %v1595
        %v1597 = vsel %vm1586, nan, %v1596
        %v1598 = vand.u32 2147483647, %v148
        %vm1599 = vcmp.le.f32.partialorder %v1598, 0.7853982
        %vm1600 = vcmp.lt.s32.totalorder %v148, 0
        %v1601 = vand.u32 %v148, 2139095040
        %v1602 = vshrl.u32 %v1601, 23
        %v1603 = vsub.s32 %v1602, 127
        %v1604 = vand.u32 2147483647, %v148
        %v1605 = vand.u32 %v1604, 8388607
        %v1606 = vor.u32 %v1605, 8388608
        %v1607 = vsub.s32 0, %v1606
        %v1608 = vadd.s32 %v1603, 1
        %vm1609 = vcmp.gt.s32.totalorder %v1608, 0
        %v1610 = vsel %vm1609, %v1608, 0
        %v1611 = vshrl.u32 %v1610, 5
        %v1612 = vand.u32 %v1610, 31
        %v1613 = vsub.s32 32, %v1612
        %v1614 = vshrl.u32 683565275, %v1613
        %v1615 = vshll.u32 683565275, %v1612
        %v1616 = vshrl.u32 2475754826, %v1613
        %v1617 = vor.u32 %v1615, %v1616
        %v1618 = vshll.u32 2475754826, %v1612
        %v1619 = vshrl.u32 2131351028, %v1613
        %v1620 = vor.u32 %v1618, %v1619
        %v1621 = vshll.u32 2131351028, %v1612
        %v1622 = vshrl.u32 2102212464, %v1613
        %v1623 = vor.u32 %v1621, %v1622
        %v1624 = vshll.u32 2102212464, %v1612
        %v1625 = vshrl.u32 920167782, %v1613
        %v1626 = vor.u32 %v1624, %v1625
        %v1627 = vshll.u32 920167782, %v1612
        %v1628 = vshrl.u32 1326507024, %v1613
        %v1629 = vor.u32 %v1627, %v1628
        %vm1630 = vcmp.lt.s32.totalorder %v1611, 1
        %vm1631 = vcmp.lt.s32.totalorder %v1611, 2
        %vm1632 = vcmp.lt.s32.totalorder %v1611, 3
        %vm1633 = vcmp.lt.s32.totalorder %v1611, 4
        %v1634 = vsel %vm1630, %v1614, %v1617
        %v1635 = vsel %vm1633, %v1623, 2102212464
        %v1636 = vsel %vm1632, %v1620, %v1635
        %v1637 = vsel %vm1631, %v1634, %v1636
        %v1638 = vsel %vm1630, %v1617, %v1620
        %v1639 = vsel %vm1633, %v1626, 920167782
        %v1640 = vsel %vm1632, %v1623, %v1639
        %v1641 = vsel %vm1631, %v1638, %v1640
        %v1642 = vsel %vm1630, %v1620, %v1623
        %v1643 = vsel %vm1633, %v1629, 1326507024
        %v1644 = vsel %vm1632, %v1626, %v1643
        %v1645 = vsel %vm1631, %v1642, %v1644
        %v1646 = vshll.u32 %v1606, 8
        %v1647 = vand.u32 %v1646, 65535
        %v1648 = vshrl.u32 %v1646, 16
        %v1649 = vand.u32 %v1645, 65535
        %v1650 = vshrl.u32 %v1645, 16
        %v1651 = vmul.u32 %v1647, %v1649
        %v1652 = vmul.u32 %v1647, %v1650
        %v1653 = vmul.u32 %v1648, %v1649
        %v1654 = vmul.u32 %v1648, %v1650
        %v1655 = vshll.u32 %v1652, 16
        %v1656 = vshrl.u32 %v1652, 16
        %v1657 = vshll.u32 %v1653, 16
        %v1658 = vshrl.u32 %v1653, 16
        %vm1659 = vc.u32 %v1651, %v1655
        %v1660 = vsel %vm1659, 1, 0
        %v1661 = vadd.s32 %v1651, %v1655
        %v1662 = vadd.s32 %v1654, %v1660
        %vm1663 = vc.u32 %v1661, %v1657
        %v1664 = vsel %vm1663, 1, 0
        %v1665 = vadd.s32 %v1661, %v1657
        %v1666 = vadd.s32 %v1662, %v1664
        %v1667 = vadd.s32 %v1666, %v1656
        %v1668 = vadd.s32 %v1667, %v1658
        %v1669 = vand.u32 %v1646, 65535
        %v1670 = vshrl.u32 %v1646, 16
        %v1671 = vand.u32 %v1641, 65535
        %v1672 = vshrl.u32 %v1641, 16
        %v1673 = vmul.u32 %v1669, %v1671
        %v1674 = vmul.u32 %v1669, %v1672
        %v1675 = vmul.u32 %v1670, %v1671
        %v1676 = vmul.u32 %v1670, %v1672
        %v1677 = vshll.u32 %v1674, 16
        %v1678 = vshrl.u32 %v1674, 16
        %v1679 = vshll.u32 %v1675, 16
        %v1680 = vshrl.u32 %v1675, 16
        %vm1681 = vc.u32 %v1673, %v1677
        %v1682 = vsel %vm1681, 1, 0
        %v1683 = vadd.s32 %v1673, %v1677
        %v1684 = vadd.s32 %v1676, %v1682
        %vm1685 = vc.u32 %v1683, %v1679
        %v1686 = vsel %vm1685, 1, 0
        %v1687 = vadd.s32 %v1683, %v1679
        %v1688 = vadd.s32 %v1684, %v1686
        %v1689 = vadd.s32 %v1688, %v1678
        %v1690 = vadd.s32 %v1689, %v1680
        %v1691 = vmul.u32 %v1646, %v1637
        %v1692 = vadd.s32 %v1668, %v1687
        %vm1693 = vc.u32 %v1668, %v1687
        %v1694 = vadd.s32 %v1690, 1
        %v1695 = vsel %vm1693, %v1694, %v1690
        %v1696 = vadd.s32 %v1691, %v1695
        %v1697 = vadd.s32 %v1696, 536870912
        %v1698 = vshrl.u32 %v1697, 30
        %v1699 = vshll.u32 %v1698, 30
        %v1700 = vsub.s32 %v1696, %v1699
        %vm1701 = vcmp.lt.s32.totalorder %v1700, 0
        %v1702 = vsub.s32 0, %v1700
        %v1703 = vsel %vm1701, %v1702, %v1700
        %v1704 = vclz %v1703
        %v1705 = vsub.s32 %v1704, 2
        %vm1706 = vcmp.gt.s32.totalorder 0, %v1705
        %v1707 = vsel %vm1706, 0, %v1705
        %v1708 = vsub.s32 32, %v1707
        %v1709 = vshll.u32 %v1700, %v1707
        %v1710 = vshrl.u32 %v1692, %v1708
        %v1711 = vor.u32 %v1709, %v1710
        %v1712 = vsub.s32 4294967266, %v1707
        %v1713 = vadd.s32 %v1712, 127
        %v1714 = vshll.u32 %v1713, 23
        %v1715 = vor.u32 4788187, %v1714
        %v1716 = vand.u32 2147483647, %v1715
        %v1718 = vcvt.s32.f32 %v1711
        %v1719 = vmul.f32 %v1718, %v1716
        %v1720 = vxor.u32 %v1719, 2147483648
        %v1721 = vsel %vm1600, %v1720, %v1719
        %v1722 = vsub.s32 4, %v1698
        %v1723 = vsel %vm1600, %v1722, %v1698
        %v1724 = vsel %vm1599, %v148, %v1721
        %v1725 = vsel %vm1599, 0, %v1723
        %v1726 = vmul.f32 %v1724, %v1724
        %v1727 = vmul.f32 %v1726, -0.001358992
        %v1728 = vadd.f32 %v1727, 0.041655596
        %v1729 = vmul.f32 %v1726, %v1728
        %v1730 = vadd.f32 %v1729, -0.4999988
        %v1731 = vmul.f32 %v1726, %v1730
        %v1732 = vadd.f32 1.0, %v1731
        %v1733 = vmul.f32 %v1724, %v1724
        %v1734 = vmul.f32 %v1733, -0.00019511016
        %v1735 = vadd.f32 %v1734, 0.008332121
        %v1736 = vmul.f32 %v1733, %v1735
        %v1737 = vadd.f32 %v1736, -0.16666654
        %v1738 = vmul.f32 %v1733, %v1737
        %v1739 = vadd.f32 %v1738, 1.0
        %v1740 = vmul.f32 %v1739, %v1724
        %vm1741 = vweird.f32 %v148
        %v1742 = vadd.s32 %v1725, 3
        %v1743 = vand.u32 %v1742, 3
        %vm1744 = vcmp.lt.s32.totalorder %v1743, 2
        %vm1745 = vcmp.eq.s32.totalorder %v1743, 0
        %v1746 = vxor.u32 %v1740, 2147483648
        %v1747 = vsel %vm1745, %v1732, %v1746
        %vm1748 = vcmp.eq.s32.totalorder %v1743, 2
        %v1749 = vxor.u32 %v1732, 2147483648
        %v1750 = vsel %vm1748, %v1749, %v1740
        %v1751 = vsel %vm1744, %v1747, %v1750
        %v1752 = vsel %vm1741, nan, %v1751
        %v1753 = vand.u32 2147483647, %v149
        %vm1754 = vcmp.le.f32.partialorder %v1753, 0.7853982
        %vm1755 = vcmp.lt.s32.totalorder %v149, 0
        %v1756 = vand.u32 %v149, 2139095040
        %v1757 = vshrl.u32 %v1756, 23
        %v1758 = vsub.s32 %v1757, 127
        %v1759 = vand.u32 2147483647, %v149
        %v1760 = vand.u32 %v1759, 8388607
        %v1761 = vor.u32 %v1760, 8388608
        %v1762 = vsub.s32 0, %v1761
        %v1763 = vadd.s32 %v1758, 1
        %vm1764 = vcmp.gt.s32.totalorder %v1763, 0
        %v1765 = vsel %vm1764, %v1763, 0
        %v1766 = vshrl.u32 %v1765, 5
        %v1767 = vand.u32 %v1765, 31
        %v1768 = vsub.s32 32, %v1767
        %v1769 = vshrl.u32 683565275, %v1768
        %v1770 = vshll.u32 683565275, %v1767
        %v1771 = vshrl.u32 2475754826, %v1768
        %v1772 = vor.u32 %v1770, %v1771
        %v1773 = vshll.u32 2475754826, %v1767
        %v1774 = vshrl.u32 2131351028, %v1768
        %v1775 = vor.u32 %v1773, %v1774
        %v1776 = vshll.u32 2131351028, %v1767
        %v1777 = vshrl.u32 2102212464, %v1768
        %v1778 = vor.u32 %v1776, %v1777
        %v1779 = vshll.u32 2102212464, %v1767
        %v1780 = vshrl.u32 920167782, %v1768
        %v1781 = vor.u32 %v1779, %v1780
        %v1782 = vshll.u32 920167782, %v1767
        %v1783 = vshrl.u32 1326507024, %v1768
        %v1784 = vor.u32 %v1782, %v1783
        %vm1785 = vcmp.lt.s32.totalorder %v1766, 1
        %vm1786 = vcmp.lt.s32.totalorder %v1766, 2
        %vm1787 = vcmp.lt.s32.totalorder %v1766, 3
        %vm1788 = vcmp.lt.s32.totalorder %v1766, 4
        %v1789 = vsel %vm1785, %v1769, %v1772
        %v1790 = vsel %vm1788, %v1778, 2102212464
        %v1791 = vsel %vm1787, %v1775, %v1790
        %v1792 = vsel %vm1786, %v1789, %v1791
        %v1793 = vsel %vm1785, %v1772, %v1775
        %v1794 = vsel %vm1788, %v1781, 920167782
        %v1795 = vsel %vm1787, %v1778, %v1794
        %v1796 = vsel %vm1786, %v1793, %v1795
        %v1797 = vsel %vm1785, %v1775, %v1778
        %v1798 = vsel %vm1788, %v1784, 1326507024
        %v1799 = vsel %vm1787, %v1781, %v1798
        %v1800 = vsel %vm1786, %v1797, %v1799
        %v1801 = vshll.u32 %v1761, 8
        %v1802 = vand.u32 %v1801, 65535
        %v1803 = vshrl.u32 %v1801, 16
        %v1804 = vand.u32 %v1800, 65535
        %v1805 = vshrl.u32 %v1800, 16
        %v1806 = vmul.u32 %v1802, %v1804
        %v1807 = vmul.u32 %v1802, %v1805
        %v1808 = vmul.u32 %v1803, %v1804
        %v1809 = vmul.u32 %v1803, %v1805
        %v1810 = vshll.u32 %v1807, 16
        %v1811 = vshrl.u32 %v1807, 16
        %v1812 = vshll.u32 %v1808, 16
        %v1813 = vshrl.u32 %v1808, 16
        %vm1814 = vc.u32 %v1806, %v1810
        %v1815 = vsel %vm1814, 1, 0
        %v1816 = vadd.s32 %v1806, %v1810
        %v1817 = vadd.s32 %v1809, %v1815
        %vm1818 = vc.u32 %v1816, %v1812
        %v1819 = vsel %vm1818, 1, 0
        %v1820 = vadd.s32 %v1816, %v1812
        %v1821 = vadd.s32 %v1817, %v1819
        %v1822 = vadd.s32 %v1821, %v1811
        %v1823 = vadd.s32 %v1822, %v1813
        %v1824 = vand.u32 %v1801, 65535
        %v1825 = vshrl.u32 %v1801, 16
        %v1826 = vand.u32 %v1796, 65535
        %v1827 = vshrl.u32 %v1796, 16
        %v1828 = vmul.u32 %v1824, %v1826
        %v1829 = vmul.u32 %v1824, %v1827
        %v1830 = vmul.u32 %v1825, %v1826
        %v1831 = vmul.u32 %v1825, %v1827
        %v1832 = vshll.u32 %v1829, 16
        %v1833 = vshrl.u32 %v1829, 16
        %v1834 = vshll.u32 %v1830, 16
        %v1835 = vshrl.u32 %v1830, 16
        %vm1836 = vc.u32 %v1828, %v1832
        %v1837 = vsel %vm1836, 1, 0
        %v1838 = vadd.s32 %v1828, %v1832
        %v1839 = vadd.s32 %v1831, %v1837
        %vm1840 = vc.u32 %v1838, %v1834
        %v1841 = vsel %vm1840, 1, 0
        %v1842 = vadd.s32 %v1838, %v1834
        %v1843 = vadd.s32 %v1839, %v1841
        %v1844 = vadd.s32 %v1843, %v1833
        %v1845 = vadd.s32 %v1844, %v1835
        %v1846 = vmul.u32 %v1801, %v1792
        %v1847 = vadd.s32 %v1823, %v1842
        %vm1848 = vc.u32 %v1823, %v1842
        %v1849 = vadd.s32 %v1845, 1
        %v1850 = vsel %vm1848, %v1849, %v1845
        %v1851 = vadd.s32 %v1846, %v1850
        %v1852 = vadd.s32 %v1851, 536870912
        %v1853 = vshrl.u32 %v1852, 30
        %v1854 = vshll.u32 %v1853, 30
        %v1855 = vsub.s32 %v1851, %v1854
        %vm1856 = vcmp.lt.s32.totalorder %v1855, 0
        %v1857 = vsub.s32 0, %v1855
        %v1858 = vsel %vm1856, %v1857, %v1855
        %v1859 = vclz %v1858
        %v1860 = vsub.s32 %v1859, 2
        %vm1861 = vcmp.gt.s32.totalorder 0, %v1860
        %v1862 = vsel %vm1861, 0, %v1860
        %v1863 = vsub.s32 32, %v1862
        %v1864 = vshll.u32 %v1855, %v1862
        %v1865 = vshrl.u32 %v1847, %v1863
        %v1866 = vor.u32 %v1864, %v1865
        %v1867 = vsub.s32 4294967266, %v1862
        %v1868 = vadd.s32 %v1867, 127
        %v1869 = vshll.u32 %v1868, 23
        %v1870 = vor.u32 4788187, %v1869
        %v1871 = vand.u32 2147483647, %v1870
        %v1873 = vcvt.s32.f32 %v1866
        %v1874 = vmul.f32 %v1873, %v1871
        %v1875 = vxor.u32 %v1874, 2147483648
        %v1876 = vsel %vm1755, %v1875, %v1874
        %v1877 = vsub.s32 4, %v1853
        %v1878 = vsel %vm1755, %v1877, %v1853
        %v1879 = vsel %vm1754, %v149, %v1876
        %v1880 = vsel %vm1754, 0, %v1878
        %v1881 = vmul.f32 %v1879, %v1879
        %v1882 = vmul.f32 %v1881, -0.001358992
        %v1883 = vadd.f32 %v1882, 0.041655596
        %v1884 = vmul.f32 %v1881, %v1883
        %v1885 = vadd.f32 %v1884, -0.4999988
        %v1886 = vmul.f32 %v1881, %v1885
        %v1887 = vadd.f32 1.0, %v1886
        %v1888 = vmul.f32 %v1879, %v1879
        %v1889 = vmul.f32 %v1888, -0.00019511016
        %v1890 = vadd.f32 %v1889, 0.008332121
        %v1891 = vmul.f32 %v1888, %v1890
        %v1892 = vadd.f32 %v1891, -0.16666654
        %v1893 = vmul.f32 %v1888, %v1892
        %v1894 = vadd.f32 %v1893, 1.0
        %v1895 = vmul.f32 %v1894, %v1879
        %vm1896 = vweird.f32 %v149
        %v1897 = vadd.s32 %v1880, 3
        %v1898 = vand.u32 %v1897, 3
        %vm1899 = vcmp.lt.s32.totalorder %v1898, 2
        %vm1900 = vcmp.eq.s32.totalorder %v1898, 0
        %v1901 = vxor.u32 %v1895, 2147483648
        %v1902 = vsel %vm1900, %v1887, %v1901
        %vm1903 = vcmp.eq.s32.totalorder %v1898, 2
        %v1904 = vxor.u32 %v1887, 2147483648
        %v1905 = vsel %vm1903, %v1904, %v1895
        %v1906 = vsel %vm1899, %v1902, %v1905
        %v1907 = vsel %vm1896, nan, %v1906
        %v1908 = vand.u32 2147483647, %v150
        %vm1909 = vcmp.le.f32.partialorder %v1908, 0.7853982
        %vm1910 = vcmp.lt.s32.totalorder %v150, 0
        %v1911 = vand.u32 %v150, 2139095040
        %v1912 = vshrl.u32 %v1911, 23
        %v1913 = vsub.s32 %v1912, 127
        %v1914 = vand.u32 2147483647, %v150
        %v1915 = vand.u32 %v1914, 8388607
        %v1916 = vor.u32 %v1915, 8388608
        %v1917 = vsub.s32 0, %v1916
        %v1918 = vadd.s32 %v1913, 1
        %vm1919 = vcmp.gt.s32.totalorder %v1918, 0
        %v1920 = vsel %vm1919, %v1918, 0
        %v1921 = vshrl.u32 %v1920, 5
        %v1922 = vand.u32 %v1920, 31
        %v1923 = vsub.s32 32, %v1922
        %v1924 = vshrl.u32 683565275, %v1923
        %v1925 = vshll.u32 683565275, %v1922
        %v1926 = vshrl.u32 2475754826, %v1923
        %v1927 = vor.u32 %v1925, %v1926
        %v1928 = vshll.u32 2475754826, %v1922
        %v1929 = vshrl.u32 2131351028, %v1923
        %v1930 = vor.u32 %v1928, %v1929
        %v1931 = vshll.u32 2131351028, %v1922
        %v1932 = vshrl.u32 2102212464, %v1923
        %v1933 = vor.u32 %v1931, %v1932
        %v1934 = vshll.u32 2102212464, %v1922
        %v1935 = vshrl.u32 920167782, %v1923
        %v1936 = vor.u32 %v1934, %v1935
        %v1937 = vshll.u32 920167782, %v1922
        %v1938 = vshrl.u32 1326507024, %v1923
        %v1939 = vor.u32 %v1937, %v1938
        %vm1940 = vcmp.lt.s32.totalorder %v1921, 1
        %vm1941 = vcmp.lt.s32.totalorder %v1921, 2
        %vm1942 = vcmp.lt.s32.totalorder %v1921, 3
        %vm1943 = vcmp.lt.s32.totalorder %v1921, 4
        %v1944 = vsel %vm1940, %v1924, %v1927
        %v1945 = vsel %vm1943, %v1933, 2102212464
        %v1946 = vsel %vm1942, %v1930, %v1945
        %v1947 = vsel %vm1941, %v1944, %v1946
        %v1948 = vsel %vm1940, %v1927, %v1930
        %v1949 = vsel %vm1943, %v1936, 920167782
        %v1950 = vsel %vm1942, %v1933, %v1949
        %v1951 = vsel %vm1941, %v1948, %v1950
        %v1952 = vsel %vm1940, %v1930, %v1933
        %v1953 = vsel %vm1943, %v1939, 1326507024
        %v1954 = vsel %vm1942, %v1936, %v1953
        %v1955 = vsel %vm1941, %v1952, %v1954
        %v1956 = vshll.u32 %v1916, 8
        %v1957 = vand.u32 %v1956, 65535
        %v1958 = vshrl.u32 %v1956, 16
        %v1959 = vand.u32 %v1955, 65535
        %v1960 = vshrl.u32 %v1955, 16
        %v1961 = vmul.u32 %v1957, %v1959
        %v1962 = vmul.u32 %v1957, %v1960
        %v1963 = vmul.u32 %v1958, %v1959
        %v1964 = vmul.u32 %v1958, %v1960
        %v1965 = vshll.u32 %v1962, 16
        %v1966 = vshrl.u32 %v1962, 16
        %v1967 = vshll.u32 %v1963, 16
        %v1968 = vshrl.u32 %v1963, 16
        %vm1969 = vc.u32 %v1961, %v1965
        %v1970 = vsel %vm1969, 1, 0
        %v1971 = vadd.s32 %v1961, %v1965
        %v1972 = vadd.s32 %v1964, %v1970
        %vm1973 = vc.u32 %v1971, %v1967
        %v1974 = vsel %vm1973, 1, 0
        %v1975 = vadd.s32 %v1971, %v1967
        %v1976 = vadd.s32 %v1972, %v1974
        %v1977 = vadd.s32 %v1976, %v1966
        %v1978 = vadd.s32 %v1977, %v1968
        %v1979 = vand.u32 %v1956, 65535
        %v1980 = vshrl.u32 %v1956, 16
        %v1981 = vand.u32 %v1951, 65535
        %v1982 = vshrl.u32 %v1951, 16
        %v1983 = vmul.u32 %v1979, %v1981
        %v1984 = vmul.u32 %v1979, %v1982
        %v1985 = vmul.u32 %v1980, %v1981
        %v1986 = vmul.u32 %v1980, %v1982
        %v1987 = vshll.u32 %v1984, 16
        %v1988 = vshrl.u32 %v1984, 16
        %v1989 = vshll.u32 %v1985, 16
        %v1990 = vshrl.u32 %v1985, 16
        %vm1991 = vc.u32 %v1983, %v1987
        %v1992 = vsel %vm1991, 1, 0
        %v1993 = vadd.s32 %v1983, %v1987
        %v1994 = vadd.s32 %v1986, %v1992
        %vm1995 = vc.u32 %v1993, %v1989
        %v1996 = vsel %vm1995, 1, 0
        %v1997 = vadd.s32 %v1993, %v1989
        %v1998 = vadd.s32 %v1994, %v1996
        %v1999 = vadd.s32 %v1998, %v1988
        %v2000 = vadd.s32 %v1999, %v1990
        %v2001 = vmul.u32 %v1956, %v1947
        %v2002 = vadd.s32 %v1978, %v1997
        %vm2003 = vc.u32 %v1978, %v1997
        %v2004 = vadd.s32 %v2000, 1
        %v2005 = vsel %vm2003, %v2004, %v2000
        %v2006 = vadd.s32 %v2001, %v2005
        %v2007 = vadd.s32 %v2006, 536870912
        %v2008 = vshrl.u32 %v2007, 30
        %v2009 = vshll.u32 %v2008, 30
        %v2010 = vsub.s32 %v2006, %v2009
        %vm2011 = vcmp.lt.s32.totalorder %v2010, 0
        %v2012 = vsub.s32 0, %v2010
        %v2013 = vsel %vm2011, %v2012, %v2010
        %v2014 = vclz %v2013
        %v2015 = vsub.s32 %v2014, 2
        %vm2016 = vcmp.gt.s32.totalorder 0, %v2015
        %v2017 = vsel %vm2016, 0, %v2015
        %v2018 = vsub.s32 32, %v2017
        %v2019 = vshll.u32 %v2010, %v2017
        %v2020 = vshrl.u32 %v2002, %v2018
        %v2021 = vor.u32 %v2019, %v2020
        %v2022 = vsub.s32 4294967266, %v2017
        %v2023 = vadd.s32 %v2022, 127
        %v2024 = vshll.u32 %v2023, 23
        %v2025 = vor.u32 4788187, %v2024
        %v2026 = vand.u32 2147483647, %v2025
        %v2028 = vcvt.s32.f32 %v2021
        %v2029 = vmul.f32 %v2028, %v2026
        %v2030 = vxor.u32 %v2029, 2147483648
        %v2031 = vsel %vm1910, %v2030, %v2029
        %v2032 = vsub.s32 4, %v2008
        %v2033 = vsel %vm1910, %v2032, %v2008
        %v2034 = vsel %vm1909, %v150, %v2031
        %v2035 = vsel %vm1909, 0, %v2033
        %v2036 = vmul.f32 %v2034, %v2034
        %v2037 = vmul.f32 %v2036, -0.001358992
        %v2038 = vadd.f32 %v2037, 0.041655596
        %v2039 = vmul.f32 %v2036, %v2038
        %v2040 = vadd.f32 %v2039, -0.4999988
        %v2041 = vmul.f32 %v2036, %v2040
        %v2042 = vadd.f32 1.0, %v2041
        %v2043 = vmul.f32 %v2034, %v2034
        %v2044 = vmul.f32 %v2043, -0.00019511016
        %v2045 = vadd.f32 %v2044, 0.008332121
        %v2046 = vmul.f32 %v2043, %v2045
        %v2047 = vadd.f32 %v2046, -0.16666654
        %v2048 = vmul.f32 %v2043, %v2047
        %v2049 = vadd.f32 %v2048, 1.0
        %v2050 = vmul.f32 %v2049, %v2034
        %vm2051 = vweird.f32 %v150
        %v2052 = vadd.s32 %v2035, 3
        %v2053 = vand.u32 %v2052, 3
        %vm2054 = vcmp.lt.s32.totalorder %v2053, 2
        %vm2055 = vcmp.eq.s32.totalorder %v2053, 0
        %v2056 = vxor.u32 %v2050, 2147483648
        %v2057 = vsel %vm2055, %v2042, %v2056
        %vm2058 = vcmp.eq.s32.totalorder %v2053, 2
        %v2059 = vxor.u32 %v2042, 2147483648
        %v2060 = vsel %vm2058, %v2059, %v2050
        %v2061 = vsel %vm2054, %v2057, %v2060
        %v2062 = vsel %vm2051, nan, %v2061
        %v2063 = vand.u32 2147483647, %v151
        %vm2064 = vcmp.le.f32.partialorder %v2063, 0.7853982
        %vm2065 = vcmp.lt.s32.totalorder %v151, 0
        %v2066 = vand.u32 %v151, 2139095040
        %v2067 = vshrl.u32 %v2066, 23
        %v2068 = vsub.s32 %v2067, 127
        %v2069 = vand.u32 2147483647, %v151
        %v2070 = vand.u32 %v2069, 8388607
        %v2071 = vor.u32 %v2070, 8388608
        %v2072 = vsub.s32 0, %v2071
        %v2073 = vadd.s32 %v2068, 1
        %vm2074 = vcmp.gt.s32.totalorder %v2073, 0
        %v2075 = vsel %vm2074, %v2073, 0
        %v2076 = vshrl.u32 %v2075, 5
        %v2077 = vand.u32 %v2075, 31
        %v2078 = vsub.s32 32, %v2077
        %v2079 = vshrl.u32 683565275, %v2078
        %v2080 = vshll.u32 683565275, %v2077
        %v2081 = vshrl.u32 2475754826, %v2078
        %v2082 = vor.u32 %v2080, %v2081
        %v2083 = vshll.u32 2475754826, %v2077
        %v2084 = vshrl.u32 2131351028, %v2078
        %v2085 = vor.u32 %v2083, %v2084
        %v2086 = vshll.u32 2131351028, %v2077
        %v2087 = vshrl.u32 2102212464, %v2078
        %v2088 = vor.u32 %v2086, %v2087
        %v2089 = vshll.u32 2102212464, %v2077
        %v2090 = vshrl.u32 920167782, %v2078
        %v2091 = vor.u32 %v2089, %v2090
        %v2092 = vshll.u32 920167782, %v2077
        %v2093 = vshrl.u32 1326507024, %v2078
        %v2094 = vor.u32 %v2092, %v2093
        %vm2095 = vcmp.lt.s32.totalorder %v2076, 1
        %vm2096 = vcmp.lt.s32.totalorder %v2076, 2
        %vm2097 = vcmp.lt.s32.totalorder %v2076, 3
        %vm2098 = vcmp.lt.s32.totalorder %v2076, 4
        %v2099 = vsel %vm2095, %v2079, %v2082
        %v2100 = vsel %vm2098, %v2088, 2102212464
        %v2101 = vsel %vm2097, %v2085, %v2100
        %v2102 = vsel %vm2096, %v2099, %v2101
        %v2103 = vsel %vm2095, %v2082, %v2085
        %v2104 = vsel %vm2098, %v2091, 920167782
        %v2105 = vsel %vm2097, %v2088, %v2104
        %v2106 = vsel %vm2096, %v2103, %v2105
        %v2107 = vsel %vm2095, %v2085, %v2088
        %v2108 = vsel %vm2098, %v2094, 1326507024
        %v2109 = vsel %vm2097, %v2091, %v2108
        %v2110 = vsel %vm2096, %v2107, %v2109
        %v2111 = vshll.u32 %v2071, 8
        %v2112 = vand.u32 %v2111, 65535
        %v2113 = vshrl.u32 %v2111, 16
        %v2114 = vand.u32 %v2110, 65535
        %v2115 = vshrl.u32 %v2110, 16
        %v2116 = vmul.u32 %v2112, %v2114
        %v2117 = vmul.u32 %v2112, %v2115
        %v2118 = vmul.u32 %v2113, %v2114
        %v2119 = vmul.u32 %v2113, %v2115
        %v2120 = vshll.u32 %v2117, 16
        %v2121 = vshrl.u32 %v2117, 16
        %v2122 = vshll.u32 %v2118, 16
        %v2123 = vshrl.u32 %v2118, 16
        %vm2124 = vc.u32 %v2116, %v2120
        %v2125 = vsel %vm2124, 1, 0
        %v2126 = vadd.s32 %v2116, %v2120
        %v2127 = vadd.s32 %v2119, %v2125
        %vm2128 = vc.u32 %v2126, %v2122
        %v2129 = vsel %vm2128, 1, 0
        %v2130 = vadd.s32 %v2126, %v2122
        %v2131 = vadd.s32 %v2127, %v2129
        %v2132 = vadd.s32 %v2131, %v2121
        %v2133 = vadd.s32 %v2132, %v2123
        %v2134 = vand.u32 %v2111, 65535
        %v2135 = vshrl.u32 %v2111, 16
        %v2136 = vand.u32 %v2106, 65535
        %v2137 = vshrl.u32 %v2106, 16
        %v2138 = vmul.u32 %v2134, %v2136
        %v2139 = vmul.u32 %v2134, %v2137
        %v2140 = vmul.u32 %v2135, %v2136
        %v2141 = vmul.u32 %v2135, %v2137
        %v2142 = vshll.u32 %v2139, 16
        %v2143 = vshrl.u32 %v2139, 16
        %v2144 = vshll.u32 %v2140, 16
        %v2145 = vshrl.u32 %v2140, 16
        %vm2146 = vc.u32 %v2138, %v2142
        %v2147 = vsel %vm2146, 1, 0
        %v2148 = vadd.s32 %v2138, %v2142
        %v2149 = vadd.s32 %v2141, %v2147
        %vm2150 = vc.u32 %v2148, %v2144
        %v2151 = vsel %vm2150, 1, 0
        %v2152 = vadd.s32 %v2148, %v2144
        %v2153 = vadd.s32 %v2149, %v2151
        %v2154 = vadd.s32 %v2153, %v2143
        %v2155 = vadd.s32 %v2154, %v2145
        %v2156 = vmul.u32 %v2111, %v2102
        %v2157 = vadd.s32 %v2133, %v2152
        %vm2158 = vc.u32 %v2133, %v2152
        %v2159 = vadd.s32 %v2155, 1
        %v2160 = vsel %vm2158, %v2159, %v2155
        %v2161 = vadd.s32 %v2156, %v2160
        %v2162 = vadd.s32 %v2161, 536870912
        %v2163 = vshrl.u32 %v2162, 30
        %v2164 = vshll.u32 %v2163, 30
        %v2165 = vsub.s32 %v2161, %v2164
        %vm2166 = vcmp.lt.s32.totalorder %v2165, 0
        %v2167 = vsub.s32 0, %v2165
        %v2168 = vsel %vm2166, %v2167, %v2165
        %v2169 = vclz %v2168
        %v2170 = vsub.s32 %v2169, 2
        %vm2171 = vcmp.gt.s32.totalorder 0, %v2170
        %v2172 = vsel %vm2171, 0, %v2170
        %v2173 = vsub.s32 32, %v2172
        %v2174 = vshll.u32 %v2165, %v2172
        %v2175 = vshrl.u32 %v2157, %v2173
        %v2176 = vor.u32 %v2174, %v2175
        %v2177 = vsub.s32 4294967266, %v2172
        %v2178 = vadd.s32 %v2177, 127
        %v2179 = vshll.u32 %v2178, 23
        %v2180 = vor.u32 4788187, %v2179
        %v2181 = vand.u32 2147483647, %v2180
        %v2183 = vcvt.s32.f32 %v2176
        %v2184 = vmul.f32 %v2183, %v2181
        %v2185 = vxor.u32 %v2184, 2147483648
        %v2186 = vsel %vm2065, %v2185, %v2184
        %v2187 = vsub.s32 4, %v2163
        %v2188 = vsel %vm2065, %v2187, %v2163
        %v2189 = vsel %vm2064, %v151, %v2186
        %v2190 = vsel %vm2064, 0, %v2188
        %v2191 = vmul.f32 %v2189, %v2189
        %v2192 = vmul.f32 %v2191, -0.001358992
        %v2193 = vadd.f32 %v2192, 0.041655596
        %v2194 = vmul.f32 %v2191, %v2193
        %v2195 = vadd.f32 %v2194, -0.4999988
        %v2196 = vmul.f32 %v2191, %v2195
        %v2197 = vadd.f32 1.0, %v2196
        %v2198 = vmul.f32 %v2189, %v2189
        %v2199 = vmul.f32 %v2198, -0.00019511016
        %v2200 = vadd.f32 %v2199, 0.008332121
        %v2201 = vmul.f32 %v2198, %v2200
        %v2202 = vadd.f32 %v2201, -0.16666654
        %v2203 = vmul.f32 %v2198, %v2202
        %v2204 = vadd.f32 %v2203, 1.0
        %v2205 = vmul.f32 %v2204, %v2189
        %vm2206 = vweird.f32 %v151
        %v2207 = vadd.s32 %v2190, 3
        %v2208 = vand.u32 %v2207, 3
        %vm2209 = vcmp.lt.s32.totalorder %v2208, 2
        %vm2210 = vcmp.eq.s32.totalorder %v2208, 0
        %v2211 = vxor.u32 %v2205, 2147483648
        %v2212 = vsel %vm2210, %v2197, %v2211
        %vm2213 = vcmp.eq.s32.totalorder %v2208, 2
        %v2214 = vxor.u32 %v2197, 2147483648
        %v2215 = vsel %vm2213, %v2214, %v2205
        %v2216 = vsel %vm2209, %v2212, %v2215
        %v2217 = vsel %vm2206, nan, %v2216
        %v2218 = vand.u32 2147483647, %v152
        %vm2219 = vcmp.le.f32.partialorder %v2218, 0.7853982
        %vm2220 = vcmp.lt.s32.totalorder %v152, 0
        %v2221 = vand.u32 %v152, 2139095040
        %v2222 = vshrl.u32 %v2221, 23
        %v2223 = vsub.s32 %v2222, 127
        %v2224 = vand.u32 2147483647, %v152
        %v2225 = vand.u32 %v2224, 8388607
        %v2226 = vor.u32 %v2225, 8388608
        %v2227 = vsub.s32 0, %v2226
        %v2228 = vadd.s32 %v2223, 1
        %vm2229 = vcmp.gt.s32.totalorder %v2228, 0
        %v2230 = vsel %vm2229, %v2228, 0
        %v2231 = vshrl.u32 %v2230, 5
        %v2232 = vand.u32 %v2230, 31
        %v2233 = vsub.s32 32, %v2232
        %v2234 = vshrl.u32 683565275, %v2233
        %v2235 = vshll.u32 683565275, %v2232
        %v2236 = vshrl.u32 2475754826, %v2233
        %v2237 = vor.u32 %v2235, %v2236
        %v2238 = vshll.u32 2475754826, %v2232
        %v2239 = vshrl.u32 2131351028, %v2233
        %v2240 = vor.u32 %v2238, %v2239
        %v2241 = vshll.u32 2131351028, %v2232
        %v2242 = vshrl.u32 2102212464, %v2233
        %v2243 = vor.u32 %v2241, %v2242
        %v2244 = vshll.u32 2102212464, %v2232
        %v2245 = vshrl.u32 920167782, %v2233
        %v2246 = vor.u32 %v2244, %v2245
        %v2247 = vshll.u32 920167782, %v2232
        %v2248 = vshrl.u32 1326507024, %v2233
        %v2249 = vor.u32 %v2247, %v2248
        %vm2250 = vcmp.lt.s32.totalorder %v2231, 1
        %vm2251 = vcmp.lt.s32.totalorder %v2231, 2
        %vm2252 = vcmp.lt.s32.totalorder %v2231, 3
        %vm2253 = vcmp.lt.s32.totalorder %v2231, 4
        %v2254 = vsel %vm2250, %v2234, %v2237
        %v2255 = vsel %vm2253, %v2243, 2102212464
        %v2256 = vsel %vm2252, %v2240, %v2255
        %v2257 = vsel %vm2251, %v2254, %v2256
        %v2258 = vsel %vm2250, %v2237, %v2240
        %v2259 = vsel %vm2253, %v2246, 920167782
        %v2260 = vsel %vm2252, %v2243, %v2259
        %v2261 = vsel %vm2251, %v2258, %v2260
        %v2262 = vsel %vm2250, %v2240, %v2243
        %v2263 = vsel %vm2253, %v2249, 1326507024
        %v2264 = vsel %vm2252, %v2246, %v2263
        %v2265 = vsel %vm2251, %v2262, %v2264
        %v2266 = vshll.u32 %v2226, 8
        %v2267 = vand.u32 %v2266, 65535
        %v2268 = vshrl.u32 %v2266, 16
        %v2269 = vand.u32 %v2265, 65535
        %v2270 = vshrl.u32 %v2265, 16
        %v2271 = vmul.u32 %v2267, %v2269
        %v2272 = vmul.u32 %v2267, %v2270
        %v2273 = vmul.u32 %v2268, %v2269
        %v2274 = vmul.u32 %v2268, %v2270
        %v2275 = vshll.u32 %v2272, 16
        %v2276 = vshrl.u32 %v2272, 16
        %v2277 = vshll.u32 %v2273, 16
        %v2278 = vshrl.u32 %v2273, 16
        %vm2279 = vc.u32 %v2271, %v2275
        %v2280 = vsel %vm2279, 1, 0
        %v2281 = vadd.s32 %v2271, %v2275
        %v2282 = vadd.s32 %v2274, %v2280
        %vm2283 = vc.u32 %v2281, %v2277
        %v2284 = vsel %vm2283, 1, 0
        %v2285 = vadd.s32 %v2281, %v2277
        %v2286 = vadd.s32 %v2282, %v2284
        %v2287 = vadd.s32 %v2286, %v2276
        %v2288 = vadd.s32 %v2287, %v2278
        %v2289 = vand.u32 %v2266, 65535
        %v2290 = vshrl.u32 %v2266, 16
        %v2291 = vand.u32 %v2261, 65535
        %v2292 = vshrl.u32 %v2261, 16
        %v2293 = vmul.u32 %v2289, %v2291
        %v2294 = vmul.u32 %v2289, %v2292
        %v2295 = vmul.u32 %v2290, %v2291
        %v2296 = vmul.u32 %v2290, %v2292
        %v2297 = vshll.u32 %v2294, 16
        %v2298 = vshrl.u32 %v2294, 16
        %v2299 = vshll.u32 %v2295, 16
        %v2300 = vshrl.u32 %v2295, 16
        %vm2301 = vc.u32 %v2293, %v2297
        %v2302 = vsel %vm2301, 1, 0
        %v2303 = vadd.s32 %v2293, %v2297
        %v2304 = vadd.s32 %v2296, %v2302
        %vm2305 = vc.u32 %v2303, %v2299
        %v2306 = vsel %vm2305, 1, 0
        %v2307 = vadd.s32 %v2303, %v2299
        %v2308 = vadd.s32 %v2304, %v2306
        %v2309 = vadd.s32 %v2308, %v2298
        %v2310 = vadd.s32 %v2309, %v2300
        %v2311 = vmul.u32 %v2266, %v2257
        %v2312 = vadd.s32 %v2288, %v2307
        %vm2313 = vc.u32 %v2288, %v2307
        %v2314 = vadd.s32 %v2310, 1
        %v2315 = vsel %vm2313, %v2314, %v2310
        %v2316 = vadd.s32 %v2311, %v2315
        %v2317 = vadd.s32 %v2316, 536870912
        %v2318 = vshrl.u32 %v2317, 30
        %v2319 = vshll.u32 %v2318, 30
        %v2320 = vsub.s32 %v2316, %v2319
        %vm2321 = vcmp.lt.s32.totalorder %v2320, 0
        %v2322 = vsub.s32 0, %v2320
        %v2323 = vsel %vm2321, %v2322, %v2320
        %v2324 = vclz %v2323
        %v2325 = vsub.s32 %v2324, 2
        %vm2326 = vcmp.gt.s32.totalorder 0, %v2325
        %v2327 = vsel %vm2326, 0, %v2325
        %v2328 = vsub.s32 32, %v2327
        %v2329 = vshll.u32 %v2320, %v2327
        %v2330 = vshrl.u32 %v2312, %v2328
        %v2331 = vor.u32 %v2329, %v2330
        %v2332 = vsub.s32 4294967266, %v2327
        %v2333 = vadd.s32 %v2332, 127
        %v2334 = vshll.u32 %v2333, 23
        %v2335 = vor.u32 4788187, %v2334
        %v2336 = vand.u32 2147483647, %v2335
        %v2338 = vcvt.s32.f32 %v2331
        %v2339 = vmul.f32 %v2338, %v2336
        %v2340 = vxor.u32 %v2339, 2147483648
        %v2341 = vsel %vm2220, %v2340, %v2339
        %v2342 = vsub.s32 4, %v2318
        %v2343 = vsel %vm2220, %v2342, %v2318
        %v2344 = vsel %vm2219, %v152, %v2341
        %v2345 = vsel %vm2219, 0, %v2343
        %v2346 = vmul.f32 %v2344, %v2344
        %v2347 = vmul.f32 %v2346, -0.001358992
        %v2348 = vadd.f32 %v2347, 0.041655596
        %v2349 = vmul.f32 %v2346, %v2348
        %v2350 = vadd.f32 %v2349, -0.4999988
        %v2351 = vmul.f32 %v2346, %v2350
        %v2352 = vadd.f32 1.0, %v2351
        %v2353 = vmul.f32 %v2344, %v2344
        %v2354 = vmul.f32 %v2353, -0.00019511016
        %v2355 = vadd.f32 %v2354, 0.008332121
        %v2356 = vmul.f32 %v2353, %v2355
        %v2357 = vadd.f32 %v2356, -0.16666654
        %v2358 = vmul.f32 %v2353, %v2357
        %v2359 = vadd.f32 %v2358, 1.0
        %v2360 = vmul.f32 %v2359, %v2344
        %vm2361 = vweird.f32 %v152
        %v2362 = vadd.s32 %v2345, 3
        %v2363 = vand.u32 %v2362, 3
        %vm2364 = vcmp.lt.s32.totalorder %v2363, 2
        %vm2365 = vcmp.eq.s32.totalorder %v2363, 0
        %v2366 = vxor.u32 %v2360, 2147483648
        %v2367 = vsel %vm2365, %v2352, %v2366
        %vm2368 = vcmp.eq.s32.totalorder %v2363, 2
        %v2369 = vxor.u32 %v2352, 2147483648
        %v2370 = vsel %vm2368, %v2369, %v2360
        %v2371 = vsel %vm2364, %v2367, %v2370
        %v2372 = vsel %vm2361, nan, %v2371
        %v2373 = vand.u32 2147483647, %v153
        %vm2374 = vcmp.le.f32.partialorder %v2373, 0.7853982
        %vm2375 = vcmp.lt.s32.totalorder %v153, 0
        %v2376 = vand.u32 %v153, 2139095040
        %v2377 = vshrl.u32 %v2376, 23
        %v2378 = vsub.s32 %v2377, 127
        %v2379 = vand.u32 2147483647, %v153
        %v2380 = vand.u32 %v2379, 8388607
        %v2381 = vor.u32 %v2380, 8388608
        %v2382 = vsub.s32 0, %v2381
        %v2383 = vadd.s32 %v2378, 1
        %vm2384 = vcmp.gt.s32.totalorder %v2383, 0
        %v2385 = vsel %vm2384, %v2383, 0
        %v2386 = vshrl.u32 %v2385, 5
        %v2387 = vand.u32 %v2385, 31
        %v2388 = vsub.s32 32, %v2387
        %v2389 = vshrl.u32 683565275, %v2388
        %v2390 = vshll.u32 683565275, %v2387
        %v2391 = vshrl.u32 2475754826, %v2388
        %v2392 = vor.u32 %v2390, %v2391
        %v2393 = vshll.u32 2475754826, %v2387
        %v2394 = vshrl.u32 2131351028, %v2388
        %v2395 = vor.u32 %v2393, %v2394
        %v2396 = vshll.u32 2131351028, %v2387
        %v2397 = vshrl.u32 2102212464, %v2388
        %v2398 = vor.u32 %v2396, %v2397
        %v2399 = vshll.u32 2102212464, %v2387
        %v2400 = vshrl.u32 920167782, %v2388
        %v2401 = vor.u32 %v2399, %v2400
        %v2402 = vshll.u32 920167782, %v2387
        %v2403 = vshrl.u32 1326507024, %v2388
        %v2404 = vor.u32 %v2402, %v2403
        %vm2405 = vcmp.lt.s32.totalorder %v2386, 1
        %vm2406 = vcmp.lt.s32.totalorder %v2386, 2
        %vm2407 = vcmp.lt.s32.totalorder %v2386, 3
        %vm2408 = vcmp.lt.s32.totalorder %v2386, 4
        %v2409 = vsel %vm2405, %v2389, %v2392
        %v2410 = vsel %vm2408, %v2398, 2102212464
        %v2411 = vsel %vm2407, %v2395, %v2410
        %v2412 = vsel %vm2406, %v2409, %v2411
        %v2413 = vsel %vm2405, %v2392, %v2395
        %v2414 = vsel %vm2408, %v2401, 920167782
        %v2415 = vsel %vm2407, %v2398, %v2414
        %v2416 = vsel %vm2406, %v2413, %v2415
        %v2417 = vsel %vm2405, %v2395, %v2398
        %v2418 = vsel %vm2408, %v2404, 1326507024
        %v2419 = vsel %vm2407, %v2401, %v2418
        %v2420 = vsel %vm2406, %v2417, %v2419
        %v2421 = vshll.u32 %v2381, 8
        %v2422 = vand.u32 %v2421, 65535
        %v2423 = vshrl.u32 %v2421, 16
        %v2424 = vand.u32 %v2420, 65535
        %v2425 = vshrl.u32 %v2420, 16
        %v2426 = vmul.u32 %v2422, %v2424
        %v2427 = vmul.u32 %v2422, %v2425
        %v2428 = vmul.u32 %v2423, %v2424
        %v2429 = vmul.u32 %v2423, %v2425
        %v2430 = vshll.u32 %v2427, 16
        %v2431 = vshrl.u32 %v2427, 16
        %v2432 = vshll.u32 %v2428, 16
        %v2433 = vshrl.u32 %v2428, 16
        %vm2434 = vc.u32 %v2426, %v2430
        %v2435 = vsel %vm2434, 1, 0
        %v2436 = vadd.s32 %v2426, %v2430
        %v2437 = vadd.s32 %v2429, %v2435
        %vm2438 = vc.u32 %v2436, %v2432
        %v2439 = vsel %vm2438, 1, 0
        %v2440 = vadd.s32 %v2436, %v2432
        %v2441 = vadd.s32 %v2437, %v2439
        %v2442 = vadd.s32 %v2441, %v2431
        %v2443 = vadd.s32 %v2442, %v2433
        %v2444 = vand.u32 %v2421, 65535
        %v2445 = vshrl.u32 %v2421, 16
        %v2446 = vand.u32 %v2416, 65535
        %v2447 = vshrl.u32 %v2416, 16
        %v2448 = vmul.u32 %v2444, %v2446
        %v2449 = vmul.u32 %v2444, %v2447
        %v2450 = vmul.u32 %v2445, %v2446
        %v2451 = vmul.u32 %v2445, %v2447
        %v2452 = vshll.u32 %v2449, 16
        %v2453 = vshrl.u32 %v2449, 16
        %v2454 = vshll.u32 %v2450, 16
        %v2455 = vshrl.u32 %v2450, 16
        %vm2456 = vc.u32 %v2448, %v2452
        %v2457 = vsel %vm2456, 1, 0
        %v2458 = vadd.s32 %v2448, %v2452
        %v2459 = vadd.s32 %v2451, %v2457
        %vm2460 = vc.u32 %v2458, %v2454
        %v2461 = vsel %vm2460, 1, 0
        %v2462 = vadd.s32 %v2458, %v2454
        %v2463 = vadd.s32 %v2459, %v2461
        %v2464 = vadd.s32 %v2463, %v2453
        %v2465 = vadd.s32 %v2464, %v2455
        %v2466 = vmul.u32 %v2421, %v2412
        %v2467 = vadd.s32 %v2443, %v2462
        %vm2468 = vc.u32 %v2443, %v2462
        %v2469 = vadd.s32 %v2465, 1
        %v2470 = vsel %vm2468, %v2469, %v2465
        %v2471 = vadd.s32 %v2466, %v2470
        %v2472 = vadd.s32 %v2471, 536870912
        %v2473 = vshrl.u32 %v2472, 30
        %v2474 = vshll.u32 %v2473, 30
        %v2475 = vsub.s32 %v2471, %v2474
        %vm2476 = vcmp.lt.s32.totalorder %v2475, 0
        %v2477 = vsub.s32 0, %v2475
        %v2478 = vsel %vm2476, %v2477, %v2475
        %v2479 = vclz %v2478
        %v2480 = vsub.s32 %v2479, 2
        %vm2481 = vcmp.gt.s32.totalorder 0, %v2480
        %v2482 = vsel %vm2481, 0, %v2480
        %v2483 = vsub.s32 32, %v2482
        %v2484 = vshll.u32 %v2475, %v2482
        %v2485 = vshrl.u32 %v2467, %v2483
        %v2486 = vor.u32 %v2484, %v2485
        %v2487 = vsub.s32 4294967266, %v2482
        %v2488 = vadd.s32 %v2487, 127
        %v2489 = vshll.u32 %v2488, 23
        %v2490 = vor.u32 4788187, %v2489
        %v2491 = vand.u32 2147483647, %v2490
        %v2493 = vcvt.s32.f32 %v2486
        %v2494 = vmul.f32 %v2493, %v2491
        %v2495 = vxor.u32 %v2494, 2147483648
        %v2496 = vsel %vm2375, %v2495, %v2494
        %v2497 = vsub.s32 4, %v2473
        %v2498 = vsel %vm2375, %v2497, %v2473
        %v2499 = vsel %vm2374, %v153, %v2496
        %v2500 = vsel %vm2374, 0, %v2498
        %v2501 = vmul.f32 %v2499, %v2499
        %v2502 = vmul.f32 %v2501, -0.001358992
        %v2503 = vadd.f32 %v2502, 0.041655596
        %v2504 = vmul.f32 %v2501, %v2503
        %v2505 = vadd.f32 %v2504, -0.4999988
        %v2506 = vmul.f32 %v2501, %v2505
        %v2507 = vadd.f32 1.0, %v2506
        %v2508 = vmul.f32 %v2499, %v2499
        %v2509 = vmul.f32 %v2508, -0.00019511016
        %v2510 = vadd.f32 %v2509, 0.008332121
        %v2511 = vmul.f32 %v2508, %v2510
        %v2512 = vadd.f32 %v2511, -0.16666654
        %v2513 = vmul.f32 %v2508, %v2512
        %v2514 = vadd.f32 %v2513, 1.0
        %v2515 = vmul.f32 %v2514, %v2499
        %vm2516 = vweird.f32 %v153
        %v2517 = vadd.s32 %v2500, 3
        %v2518 = vand.u32 %v2517, 3
        %vm2519 = vcmp.lt.s32.totalorder %v2518, 2
        %vm2520 = vcmp.eq.s32.totalorder %v2518, 0
        %v2521 = vxor.u32 %v2515, 2147483648
        %v2522 = vsel %vm2520, %v2507, %v2521
        %vm2523 = vcmp.eq.s32.totalorder %v2518, 2
        %v2524 = vxor.u32 %v2507, 2147483648
        %v2525 = vsel %vm2523, %v2524, %v2515
        %v2526 = vsel %vm2519, %v2522, %v2525
        %v2527 = vsel %vm2516, nan, %v2526
        %v2528 = vand.u32 2147483647, %v154
        %vm2529 = vcmp.le.f32.partialorder %v2528, 0.7853982
        %vm2530 = vcmp.lt.s32.totalorder %v154, 0
        %v2531 = vand.u32 %v154, 2139095040
        %v2532 = vshrl.u32 %v2531, 23
        %v2533 = vsub.s32 %v2532, 127
        %v2534 = vand.u32 2147483647, %v154
        %v2535 = vand.u32 %v2534, 8388607
        %v2536 = vor.u32 %v2535, 8388608
        %v2537 = vsub.s32 0, %v2536
        %v2538 = vadd.s32 %v2533, 1
        %vm2539 = vcmp.gt.s32.totalorder %v2538, 0
        %v2540 = vsel %vm2539, %v2538, 0
        %v2541 = vshrl.u32 %v2540, 5
        %v2542 = vand.u32 %v2540, 31
        %v2543 = vsub.s32 32, %v2542
        %v2544 = vshrl.u32 683565275, %v2543
        %v2545 = vshll.u32 683565275, %v2542
        %v2546 = vshrl.u32 2475754826, %v2543
        %v2547 = vor.u32 %v2545, %v2546
        %v2548 = vshll.u32 2475754826, %v2542
        %v2549 = vshrl.u32 2131351028, %v2543
        %v2550 = vor.u32 %v2548, %v2549
        %v2551 = vshll.u32 2131351028, %v2542
        %v2552 = vshrl.u32 2102212464, %v2543
        %v2553 = vor.u32 %v2551, %v2552
        %v2554 = vshll.u32 2102212464, %v2542
        %v2555 = vshrl.u32 920167782, %v2543
        %v2556 = vor.u32 %v2554, %v2555
        %v2557 = vshll.u32 920167782, %v2542
        %v2558 = vshrl.u32 1326507024, %v2543
        %v2559 = vor.u32 %v2557, %v2558
        %vm2560 = vcmp.lt.s32.totalorder %v2541, 1
        %vm2561 = vcmp.lt.s32.totalorder %v2541, 2
        %vm2562 = vcmp.lt.s32.totalorder %v2541, 3
        %vm2563 = vcmp.lt.s32.totalorder %v2541, 4
        %v2564 = vsel %vm2560, %v2544, %v2547
        %v2565 = vsel %vm2563, %v2553, 2102212464
        %v2566 = vsel %vm2562, %v2550, %v2565
        %v2567 = vsel %vm2561, %v2564, %v2566
        %v2568 = vsel %vm2560, %v2547, %v2550
        %v2569 = vsel %vm2563, %v2556, 920167782
        %v2570 = vsel %vm2562, %v2553, %v2569
        %v2571 = vsel %vm2561, %v2568, %v2570
        %v2572 = vsel %vm2560, %v2550, %v2553
        %v2573 = vsel %vm2563, %v2559, 1326507024
        %v2574 = vsel %vm2562, %v2556, %v2573
        %v2575 = vsel %vm2561, %v2572, %v2574
        %v2576 = vshll.u32 %v2536, 8
        %v2577 = vand.u32 %v2576, 65535
        %v2578 = vshrl.u32 %v2576, 16
        %v2579 = vand.u32 %v2575, 65535
        %v2580 = vshrl.u32 %v2575, 16
        %v2581 = vmul.u32 %v2577, %v2579
        %v2582 = vmul.u32 %v2577, %v2580
        %v2583 = vmul.u32 %v2578, %v2579
        %v2584 = vmul.u32 %v2578, %v2580
        %v2585 = vshll.u32 %v2582, 16
        %v2586 = vshrl.u32 %v2582, 16
        %v2587 = vshll.u32 %v2583, 16
        %v2588 = vshrl.u32 %v2583, 16
        %vm2589 = vc.u32 %v2581, %v2585
        %v2590 = vsel %vm2589, 1, 0
        %v2591 = vadd.s32 %v2581, %v2585
        %v2592 = vadd.s32 %v2584, %v2590
        %vm2593 = vc.u32 %v2591, %v2587
        %v2594 = vsel %vm2593, 1, 0
        %v2595 = vadd.s32 %v2591, %v2587
        %v2596 = vadd.s32 %v2592, %v2594
        %v2597 = vadd.s32 %v2596, %v2586
        %v2598 = vadd.s32 %v2597, %v2588
        %v2599 = vand.u32 %v2576, 65535
        %v2600 = vshrl.u32 %v2576, 16
        %v2601 = vand.u32 %v2571, 65535
        %v2602 = vshrl.u32 %v2571, 16
        %v2603 = vmul.u32 %v2599, %v2601
        %v2604 = vmul.u32 %v2599, %v2602
        %v2605 = vmul.u32 %v2600, %v2601
        %v2606 = vmul.u32 %v2600, %v2602
        %v2607 = vshll.u32 %v2604, 16
        %v2608 = vshrl.u32 %v2604, 16
        %v2609 = vshll.u32 %v2605, 16
        %v2610 = vshrl.u32 %v2605, 16
        %vm2611 = vc.u32 %v2603, %v2607
        %v2612 = vsel %vm2611, 1, 0
        %v2613 = vadd.s32 %v2603, %v2607
        %v2614 = vadd.s32 %v2606, %v2612
        %vm2615 = vc.u32 %v2613, %v2609
        %v2616 = vsel %vm2615, 1, 0
        %v2617 = vadd.s32 %v2613, %v2609
        %v2618 = vadd.s32 %v2614, %v2616
        %v2619 = vadd.s32 %v2618, %v2608
        %v2620 = vadd.s32 %v2619, %v2610
        %v2621 = vmul.u32 %v2576, %v2567
        %v2622 = vadd.s32 %v2598, %v2617
        %vm2623 = vc.u32 %v2598, %v2617
        %v2624 = vadd.s32 %v2620, 1
        %v2625 = vsel %vm2623, %v2624, %v2620
        %v2626 = vadd.s32 %v2621, %v2625
        %v2627 = vadd.s32 %v2626, 536870912
        %v2628 = vshrl.u32 %v2627, 30
        %v2629 = vshll.u32 %v2628, 30
        %v2630 = vsub.s32 %v2626, %v2629
        %vm2631 = vcmp.lt.s32.totalorder %v2630, 0
        %v2632 = vsub.s32 0, %v2630
        %v2633 = vsel %vm2631, %v2632, %v2630
        %v2634 = vclz %v2633
        %v2635 = vsub.s32 %v2634, 2
        %vm2636 = vcmp.gt.s32.totalorder 0, %v2635
        %v2637 = vsel %vm2636, 0, %v2635
        %v2638 = vsub.s32 32, %v2637
        %v2639 = vshll.u32 %v2630, %v2637
        %v2640 = vshrl.u32 %v2622, %v2638
        %v2641 = vor.u32 %v2639, %v2640
        %v2642 = vsub.s32 4294967266, %v2637
        %v2643 = vadd.s32 %v2642, 127
        %v2644 = vshll.u32 %v2643, 23
        %v2645 = vor.u32 4788187, %v2644
        %v2646 = vand.u32 2147483647, %v2645
        %v2648 = vcvt.s32.f32 %v2641
        %v2649 = vmul.f32 %v2648, %v2646
        %v2650 = vxor.u32 %v2649, 2147483648
        %v2651 = vsel %vm2530, %v2650, %v2649
        %v2652 = vsub.s32 4, %v2628
        %v2653 = vsel %vm2530, %v2652, %v2628
        %v2654 = vsel %vm2529, %v154, %v2651
        %v2655 = vsel %vm2529, 0, %v2653
        %v2656 = vmul.f32 %v2654, %v2654
        %v2657 = vmul.f32 %v2656, -0.001358992
        %v2658 = vadd.f32 %v2657, 0.041655596
        %v2659 = vmul.f32 %v2656, %v2658
        %v2660 = vadd.f32 %v2659, -0.4999988
        %v2661 = vmul.f32 %v2656, %v2660
        %v2662 = vadd.f32 1.0, %v2661
        %v2663 = vmul.f32 %v2654, %v2654
        %v2664 = vmul.f32 %v2663, -0.00019511016
        %v2665 = vadd.f32 %v2664, 0.008332121
        %v2666 = vmul.f32 %v2663, %v2665
        %v2667 = vadd.f32 %v2666, -0.16666654
        %v2668 = vmul.f32 %v2663, %v2667
        %v2669 = vadd.f32 %v2668, 1.0
        %v2670 = vmul.f32 %v2669, %v2654
        %vm2671 = vweird.f32 %v154
        %v2672 = vadd.s32 %v2655, 3
        %v2673 = vand.u32 %v2672, 3
        %vm2674 = vcmp.lt.s32.totalorder %v2673, 2
        %vm2675 = vcmp.eq.s32.totalorder %v2673, 0
        %v2676 = vxor.u32 %v2670, 2147483648
        %v2677 = vsel %vm2675, %v2662, %v2676
        %vm2678 = vcmp.eq.s32.totalorder %v2673, 2
        %v2679 = vxor.u32 %v2662, 2147483648
        %v2680 = vsel %vm2678, %v2679, %v2670
        %v2681 = vsel %vm2674, %v2677, %v2680
        %v2682 = vsel %vm2671, nan, %v2681
        %v2683 = vand.u32 2147483647, %v155
        %vm2684 = vcmp.le.f32.partialorder %v2683, 0.7853982
        %vm2685 = vcmp.lt.s32.totalorder %v155, 0
        %v2686 = vand.u32 %v155, 2139095040
        %v2687 = vshrl.u32 %v2686, 23
        %v2688 = vsub.s32 %v2687, 127
        %v2689 = vand.u32 2147483647, %v155
        %v2690 = vand.u32 %v2689, 8388607
        %v2691 = vor.u32 %v2690, 8388608
        %v2692 = vsub.s32 0, %v2691
        %v2693 = vadd.s32 %v2688, 1
        %vm2694 = vcmp.gt.s32.totalorder %v2693, 0
        %v2695 = vsel %vm2694, %v2693, 0
        %v2696 = vshrl.u32 %v2695, 5
        %v2697 = vand.u32 %v2695, 31
        %v2698 = vsub.s32 32, %v2697
        %v2699 = vshrl.u32 683565275, %v2698
        %v2700 = vshll.u32 683565275, %v2697
        %v2701 = vshrl.u32 2475754826, %v2698
        %v2702 = vor.u32 %v2700, %v2701
        %v2703 = vshll.u32 2475754826, %v2697
        %v2704 = vshrl.u32 2131351028, %v2698
        %v2705 = vor.u32 %v2703, %v2704
        %v2706 = vshll.u32 2131351028, %v2697
        %v2707 = vshrl.u32 2102212464, %v2698
        %v2708 = vor.u32 %v2706, %v2707
        %v2709 = vshll.u32 2102212464, %v2697
        %v2710 = vshrl.u32 920167782, %v2698
        %v2711 = vor.u32 %v2709, %v2710
        %v2712 = vshll.u32 920167782, %v2697
        %v2713 = vshrl.u32 1326507024, %v2698
        %v2714 = vor.u32 %v2712, %v2713
        %vm2715 = vcmp.lt.s32.totalorder %v2696, 1
        %vm2716 = vcmp.lt.s32.totalorder %v2696, 2
        %vm2717 = vcmp.lt.s32.totalorder %v2696, 3
        %vm2718 = vcmp.lt.s32.totalorder %v2696, 4
        %v2719 = vsel %vm2715, %v2699, %v2702
        %v2720 = vsel %vm2718, %v2708, 2102212464
        %v2721 = vsel %vm2717, %v2705, %v2720
        %v2722 = vsel %vm2716, %v2719, %v2721
        %v2723 = vsel %vm2715, %v2702, %v2705
        %v2724 = vsel %vm2718, %v2711, 920167782
        %v2725 = vsel %vm2717, %v2708, %v2724
        %v2726 = vsel %vm2716, %v2723, %v2725
        %v2727 = vsel %vm2715, %v2705, %v2708
        %v2728 = vsel %vm2718, %v2714, 1326507024
        %v2729 = vsel %vm2717, %v2711, %v2728
        %v2730 = vsel %vm2716, %v2727, %v2729
        %v2731 = vshll.u32 %v2691, 8
        %v2732 = vand.u32 %v2731, 65535
        %v2733 = vshrl.u32 %v2731, 16
        %v2734 = vand.u32 %v2730, 65535
        %v2735 = vshrl.u32 %v2730, 16
        %v2736 = vmul.u32 %v2732, %v2734
        %v2737 = vmul.u32 %v2732, %v2735
        %v2738 = vmul.u32 %v2733, %v2734
        %v2739 = vmul.u32 %v2733, %v2735
        %v2740 = vshll.u32 %v2737, 16
        %v2741 = vshrl.u32 %v2737, 16
        %v2742 = vshll.u32 %v2738, 16
        %v2743 = vshrl.u32 %v2738, 16
        %vm2744 = vc.u32 %v2736, %v2740
        %v2745 = vsel %vm2744, 1, 0
        %v2746 = vadd.s32 %v2736, %v2740
        %v2747 = vadd.s32 %v2739, %v2745
        %vm2748 = vc.u32 %v2746, %v2742
        %v2749 = vsel %vm2748, 1, 0
        %v2750 = vadd.s32 %v2746, %v2742
        %v2751 = vadd.s32 %v2747, %v2749
        %v2752 = vadd.s32 %v2751, %v2741
        %v2753 = vadd.s32 %v2752, %v2743
        %v2754 = vand.u32 %v2731, 65535
        %v2755 = vshrl.u32 %v2731, 16
        %v2756 = vand.u32 %v2726, 65535
        %v2757 = vshrl.u32 %v2726, 16
        %v2758 = vmul.u32 %v2754, %v2756
        %v2759 = vmul.u32 %v2754, %v2757
        %v2760 = vmul.u32 %v2755, %v2756
        %v2761 = vmul.u32 %v2755, %v2757
        %v2762 = vshll.u32 %v2759, 16
        %v2763 = vshrl.u32 %v2759, 16
        %v2764 = vshll.u32 %v2760, 16
        %v2765 = vshrl.u32 %v2760, 16
        %vm2766 = vc.u32 %v2758, %v2762
        %v2767 = vsel %vm2766, 1, 0
        %v2768 = vadd.s32 %v2758, %v2762
        %v2769 = vadd.s32 %v2761, %v2767
        %vm2770 = vc.u32 %v2768, %v2764
        %v2771 = vsel %vm2770, 1, 0
        %v2772 = vadd.s32 %v2768, %v2764
        %v2773 = vadd.s32 %v2769, %v2771
        %v2774 = vadd.s32 %v2773, %v2763
        %v2775 = vadd.s32 %v2774, %v2765
        %v2776 = vmul.u32 %v2731, %v2722
        %v2777 = vadd.s32 %v2753, %v2772
        %vm2778 = vc.u32 %v2753, %v2772
        %v2779 = vadd.s32 %v2775, 1
        %v2780 = vsel %vm2778, %v2779, %v2775
        %v2781 = vadd.s32 %v2776, %v2780
        %v2782 = vadd.s32 %v2781, 536870912
        %v2783 = vshrl.u32 %v2782, 30
        %v2784 = vshll.u32 %v2783, 30
        %v2785 = vsub.s32 %v2781, %v2784
        %vm2786 = vcmp.lt.s32.totalorder %v2785, 0
        %v2787 = vsub.s32 0, %v2785
        %v2788 = vsel %vm2786, %v2787, %v2785
        %v2789 = vclz %v2788
        %v2790 = vsub.s32 %v2789, 2
        %vm2791 = vcmp.gt.s32.totalorder 0, %v2790
        %v2792 = vsel %vm2791, 0, %v2790
        %v2793 = vsub.s32 32, %v2792
        %v2794 = vshll.u32 %v2785, %v2792
        %v2795 = vshrl.u32 %v2777, %v2793
        %v2796 = vor.u32 %v2794, %v2795
        %v2797 = vsub.s32 4294967266, %v2792
        %v2798 = vadd.s32 %v2797, 127
        %v2799 = vshll.u32 %v2798, 23
        %v2800 = vor.u32 4788187, %v2799
        %v2801 = vand.u32 2147483647, %v2800
        %v2803 = vcvt.s32.f32 %v2796
        %v2804 = vmul.f32 %v2803, %v2801
        %v2805 = vxor.u32 %v2804, 2147483648
        %v2806 = vsel %vm2685, %v2805, %v2804
        %v2807 = vsub.s32 4, %v2783
        %v2808 = vsel %vm2685, %v2807, %v2783
        %v2809 = vsel %vm2684, %v155, %v2806
        %v2810 = vsel %vm2684, 0, %v2808
        %v2811 = vmul.f32 %v2809, %v2809
        %v2812 = vmul.f32 %v2811, -0.001358992
        %v2813 = vadd.f32 %v2812, 0.041655596
        %v2814 = vmul.f32 %v2811, %v2813
        %v2815 = vadd.f32 %v2814, -0.4999988
        %v2816 = vmul.f32 %v2811, %v2815
        %v2817 = vadd.f32 1.0, %v2816
        %v2818 = vmul.f32 %v2809, %v2809
        %v2819 = vmul.f32 %v2818, -0.00019511016
        %v2820 = vadd.f32 %v2819, 0.008332121
        %v2821 = vmul.f32 %v2818, %v2820
        %v2822 = vadd.f32 %v2821, -0.16666654
        %v2823 = vmul.f32 %v2818, %v2822
        %v2824 = vadd.f32 %v2823, 1.0
        %v2825 = vmul.f32 %v2824, %v2809
        %vm2826 = vweird.f32 %v155
        %v2827 = vadd.s32 %v2810, 3
        %v2828 = vand.u32 %v2827, 3
        %vm2829 = vcmp.lt.s32.totalorder %v2828, 2
        %vm2830 = vcmp.eq.s32.totalorder %v2828, 0
        %v2831 = vxor.u32 %v2825, 2147483648
        %v2832 = vsel %vm2830, %v2817, %v2831
        %vm2833 = vcmp.eq.s32.totalorder %v2828, 2
        %v2834 = vxor.u32 %v2817, 2147483648
        %v2835 = vsel %vm2833, %v2834, %v2825
        %v2836 = vsel %vm2829, %v2832, %v2835
        %v2837 = vsel %vm2826, nan, %v2836
        %v2838 = vand.u32 2147483647, %v156
        %vm2839 = vcmp.le.f32.partialorder %v2838, 0.7853982
        %vm2840 = vcmp.lt.s32.totalorder %v156, 0
        %v2841 = vand.u32 %v156, 2139095040
        %v2842 = vshrl.u32 %v2841, 23
        %v2843 = vsub.s32 %v2842, 127
        %v2844 = vand.u32 2147483647, %v156
        %v2845 = vand.u32 %v2844, 8388607
        %v2846 = vor.u32 %v2845, 8388608
        %v2847 = vsub.s32 0, %v2846
        %v2848 = vadd.s32 %v2843, 1
        %vm2849 = vcmp.gt.s32.totalorder %v2848, 0
        %v2850 = vsel %vm2849, %v2848, 0
        %v2851 = vshrl.u32 %v2850, 5
        %v2852 = vand.u32 %v2850, 31
        %v2853 = vsub.s32 32, %v2852
        %v2854 = vshrl.u32 683565275, %v2853
        %v2855 = vshll.u32 683565275, %v2852
        %v2856 = vshrl.u32 2475754826, %v2853
        %v2857 = vor.u32 %v2855, %v2856
        %v2858 = vshll.u32 2475754826, %v2852
        %v2859 = vshrl.u32 2131351028, %v2853
        %v2860 = vor.u32 %v2858, %v2859
        %v2861 = vshll.u32 2131351028, %v2852
        %v2862 = vshrl.u32 2102212464, %v2853
        %v2863 = vor.u32 %v2861, %v2862
        %v2864 = vshll.u32 2102212464, %v2852
        %v2865 = vshrl.u32 920167782, %v2853
        %v2866 = vor.u32 %v2864, %v2865
        %v2867 = vshll.u32 920167782, %v2852
        %v2868 = vshrl.u32 1326507024, %v2853
        %v2869 = vor.u32 %v2867, %v2868
        %vm2870 = vcmp.lt.s32.totalorder %v2851, 1
        %vm2871 = vcmp.lt.s32.totalorder %v2851, 2
        %vm2872 = vcmp.lt.s32.totalorder %v2851, 3
        %vm2873 = vcmp.lt.s32.totalorder %v2851, 4
        %v2874 = vsel %vm2870, %v2854, %v2857
        %v2875 = vsel %vm2873, %v2863, 2102212464
        %v2876 = vsel %vm2872, %v2860, %v2875
        %v2877 = vsel %vm2871, %v2874, %v2876
        %v2878 = vsel %vm2870, %v2857, %v2860
        %v2879 = vsel %vm2873, %v2866, 920167782
        %v2880 = vsel %vm2872, %v2863, %v2879
        %v2881 = vsel %vm2871, %v2878, %v2880
        %v2882 = vsel %vm2870, %v2860, %v2863
        %v2883 = vsel %vm2873, %v2869, 1326507024
        %v2884 = vsel %vm2872, %v2866, %v2883
        %v2885 = vsel %vm2871, %v2882, %v2884
        %v2886 = vshll.u32 %v2846, 8
        %v2887 = vand.u32 %v2886, 65535
        %v2888 = vshrl.u32 %v2886, 16
        %v2889 = vand.u32 %v2885, 65535
        %v2890 = vshrl.u32 %v2885, 16
        %v2891 = vmul.u32 %v2887, %v2889
        %v2892 = vmul.u32 %v2887, %v2890
        %v2893 = vmul.u32 %v2888, %v2889
        %v2894 = vmul.u32 %v2888, %v2890
        %v2895 = vshll.u32 %v2892, 16
        %v2896 = vshrl.u32 %v2892, 16
        %v2897 = vshll.u32 %v2893, 16
        %v2898 = vshrl.u32 %v2893, 16
        %vm2899 = vc.u32 %v2891, %v2895
        %v2900 = vsel %vm2899, 1, 0
        %v2901 = vadd.s32 %v2891, %v2895
        %v2902 = vadd.s32 %v2894, %v2900
        %vm2903 = vc.u32 %v2901, %v2897
        %v2904 = vsel %vm2903, 1, 0
        %v2905 = vadd.s32 %v2901, %v2897
        %v2906 = vadd.s32 %v2902, %v2904
        %v2907 = vadd.s32 %v2906, %v2896
        %v2908 = vadd.s32 %v2907, %v2898
        %v2909 = vand.u32 %v2886, 65535
        %v2910 = vshrl.u32 %v2886, 16
        %v2911 = vand.u32 %v2881, 65535
        %v2912 = vshrl.u32 %v2881, 16
        %v2913 = vmul.u32 %v2909, %v2911
        %v2914 = vmul.u32 %v2909, %v2912
        %v2915 = vmul.u32 %v2910, %v2911
        %v2916 = vmul.u32 %v2910, %v2912
        %v2917 = vshll.u32 %v2914, 16
        %v2918 = vshrl.u32 %v2914, 16
        %v2919 = vshll.u32 %v2915, 16
        %v2920 = vshrl.u32 %v2915, 16
        %vm2921 = vc.u32 %v2913, %v2917
        %v2922 = vsel %vm2921, 1, 0
        %v2923 = vadd.s32 %v2913, %v2917
        %v2924 = vadd.s32 %v2916, %v2922
        %vm2925 = vc.u32 %v2923, %v2919
        %v2926 = vsel %vm2925, 1, 0
        %v2927 = vadd.s32 %v2923, %v2919
        %v2928 = vadd.s32 %v2924, %v2926
        %v2929 = vadd.s32 %v2928, %v2918
        %v2930 = vadd.s32 %v2929, %v2920
        %v2931 = vmul.u32 %v2886, %v2877
        %v2932 = vadd.s32 %v2908, %v2927
        %vm2933 = vc.u32 %v2908, %v2927
        %v2934 = vadd.s32 %v2930, 1
        %v2935 = vsel %vm2933, %v2934, %v2930
        %v2936 = vadd.s32 %v2931, %v2935
        %v2937 = vadd.s32 %v2936, 536870912
        %v2938 = vshrl.u32 %v2937, 30
        %v2939 = vshll.u32 %v2938, 30
        %v2940 = vsub.s32 %v2936, %v2939
        %vm2941 = vcmp.lt.s32.totalorder %v2940, 0
        %v2942 = vsub.s32 0, %v2940
        %v2943 = vsel %vm2941, %v2942, %v2940
        %v2944 = vclz %v2943
        %v2945 = vsub.s32 %v2944, 2
        %vm2946 = vcmp.gt.s32.totalorder 0, %v2945
        %v2947 = vsel %vm2946, 0, %v2945
        %v2948 = vsub.s32 32, %v2947
        %v2949 = vshll.u32 %v2940, %v2947
        %v2950 = vshrl.u32 %v2932, %v2948
        %v2951 = vor.u32 %v2949, %v2950
        %v2952 = vsub.s32 4294967266, %v2947
        %v2953 = vadd.s32 %v2952, 127
        %v2954 = vshll.u32 %v2953, 23
        %v2955 = vor.u32 4788187, %v2954
        %v2956 = vand.u32 2147483647, %v2955
        %v2958 = vcvt.s32.f32 %v2951
        %v2959 = vmul.f32 %v2958, %v2956
        %v2960 = vxor.u32 %v2959, 2147483648
        %v2961 = vsel %vm2840, %v2960, %v2959
        %v2962 = vsub.s32 4, %v2938
        %v2963 = vsel %vm2840, %v2962, %v2938
        %v2964 = vsel %vm2839, %v156, %v2961
        %v2965 = vsel %vm2839, 0, %v2963
        %v2966 = vmul.f32 %v2964, %v2964
        %v2967 = vmul.f32 %v2966, -0.001358992
        %v2968 = vadd.f32 %v2967, 0.041655596
        %v2969 = vmul.f32 %v2966, %v2968
        %v2970 = vadd.f32 %v2969, -0.4999988
        %v2971 = vmul.f32 %v2966, %v2970
        %v2972 = vadd.f32 1.0, %v2971
        %v2973 = vmul.f32 %v2964, %v2964
        %v2974 = vmul.f32 %v2973, -0.00019511016
        %v2975 = vadd.f32 %v2974, 0.008332121
        %v2976 = vmul.f32 %v2973, %v2975
        %v2977 = vadd.f32 %v2976, -0.16666654
        %v2978 = vmul.f32 %v2973, %v2977
        %v2979 = vadd.f32 %v2978, 1.0
        %v2980 = vmul.f32 %v2979, %v2964
        %vm2981 = vweird.f32 %v156
        %v2982 = vadd.s32 %v2965, 3
        %v2983 = vand.u32 %v2982, 3
        %vm2984 = vcmp.lt.s32.totalorder %v2983, 2
        %vm2985 = vcmp.eq.s32.totalorder %v2983, 0
        %v2986 = vxor.u32 %v2980, 2147483648
        %v2987 = vsel %vm2985, %v2972, %v2986
        %vm2988 = vcmp.eq.s32.totalorder %v2983, 2
        %v2989 = vxor.u32 %v2972, 2147483648
        %v2990 = vsel %vm2988, %v2989, %v2980
        %v2991 = vsel %vm2984, %v2987, %v2990
        %v2992 = vsel %vm2981, nan, %v2991
        %v2993 = vand.u32 2147483647, %v157
        %vm2994 = vcmp.le.f32.partialorder %v2993, 0.7853982
        %vm2995 = vcmp.lt.s32.totalorder %v157, 0
        %v2996 = vand.u32 %v157, 2139095040
        %v2997 = vshrl.u32 %v2996, 23
        %v2998 = vsub.s32 %v2997, 127
        %v2999 = vand.u32 2147483647, %v157
        %v3000 = vand.u32 %v2999, 8388607
        %v3001 = vor.u32 %v3000, 8388608
        %v3002 = vsub.s32 0, %v3001
        %v3003 = vadd.s32 %v2998, 1
        %vm3004 = vcmp.gt.s32.totalorder %v3003, 0
        %v3005 = vsel %vm3004, %v3003, 0
        %v3006 = vshrl.u32 %v3005, 5
        %v3007 = vand.u32 %v3005, 31
        %v3008 = vsub.s32 32, %v3007
        %v3009 = vshrl.u32 683565275, %v3008
        %v3010 = vshll.u32 683565275, %v3007
        %v3011 = vshrl.u32 2475754826, %v3008
        %v3012 = vor.u32 %v3010, %v3011
        %v3013 = vshll.u32 2475754826, %v3007
        %v3014 = vshrl.u32 2131351028, %v3008
        %v3015 = vor.u32 %v3013, %v3014
        %v3016 = vshll.u32 2131351028, %v3007
        %v3017 = vshrl.u32 2102212464, %v3008
        %v3018 = vor.u32 %v3016, %v3017
        %v3019 = vshll.u32 2102212464, %v3007
        %v3020 = vshrl.u32 920167782, %v3008
        %v3021 = vor.u32 %v3019, %v3020
        %v3022 = vshll.u32 920167782, %v3007
        %v3023 = vshrl.u32 1326507024, %v3008
        %v3024 = vor.u32 %v3022, %v3023
        %vm3025 = vcmp.lt.s32.totalorder %v3006, 1
        %vm3026 = vcmp.lt.s32.totalorder %v3006, 2
        %vm3027 = vcmp.lt.s32.totalorder %v3006, 3
        %vm3028 = vcmp.lt.s32.totalorder %v3006, 4
        %v3029 = vsel %vm3025, %v3009, %v3012
        %v3030 = vsel %vm3028, %v3018, 2102212464
        %v3031 = vsel %vm3027, %v3015, %v3030
        %v3032 = vsel %vm3026, %v3029, %v3031
        %v3033 = vsel %vm3025, %v3012, %v3015
        %v3034 = vsel %vm3028, %v3021, 920167782
        %v3035 = vsel %vm3027, %v3018, %v3034
        %v3036 = vsel %vm3026, %v3033, %v3035
        %v3037 = vsel %vm3025, %v3015, %v3018
        %v3038 = vsel %vm3028, %v3024, 1326507024
        %v3039 = vsel %vm3027, %v3021, %v3038
        %v3040 = vsel %vm3026, %v3037, %v3039
        %v3041 = vshll.u32 %v3001, 8
        %v3042 = vand.u32 %v3041, 65535
        %v3043 = vshrl.u32 %v3041, 16
        %v3044 = vand.u32 %v3040, 65535
        %v3045 = vshrl.u32 %v3040, 16
        %v3046 = vmul.u32 %v3042, %v3044
        %v3047 = vmul.u32 %v3042, %v3045
        %v3048 = vmul.u32 %v3043, %v3044
        %v3049 = vmul.u32 %v3043, %v3045
        %v3050 = vshll.u32 %v3047, 16
        %v3051 = vshrl.u32 %v3047, 16
        %v3052 = vshll.u32 %v3048, 16
        %v3053 = vshrl.u32 %v3048, 16
        %vm3054 = vc.u32 %v3046, %v3050
        %v3055 = vsel %vm3054, 1, 0
        %v3056 = vadd.s32 %v3046, %v3050
        %v3057 = vadd.s32 %v3049, %v3055
        %vm3058 = vc.u32 %v3056, %v3052
        %v3059 = vsel %vm3058, 1, 0
        %v3060 = vadd.s32 %v3056, %v3052
        %v3061 = vadd.s32 %v3057, %v3059
        %v3062 = vadd.s32 %v3061, %v3051
        %v3063 = vadd.s32 %v3062, %v3053
        %v3064 = vand.u32 %v3041, 65535
        %v3065 = vshrl.u32 %v3041, 16
        %v3066 = vand.u32 %v3036, 65535
        %v3067 = vshrl.u32 %v3036, 16
        %v3068 = vmul.u32 %v3064, %v3066
        %v3069 = vmul.u32 %v3064, %v3067
        %v3070 = vmul.u32 %v3065, %v3066
        %v3071 = vmul.u32 %v3065, %v3067
        %v3072 = vshll.u32 %v3069, 16
        %v3073 = vshrl.u32 %v3069, 16
        %v3074 = vshll.u32 %v3070, 16
        %v3075 = vshrl.u32 %v3070, 16
        %vm3076 = vc.u32 %v3068, %v3072
        %v3077 = vsel %vm3076, 1, 0
        %v3078 = vadd.s32 %v3068, %v3072
        %v3079 = vadd.s32 %v3071, %v3077
        %vm3080 = vc.u32 %v3078, %v3074
        %v3081 = vsel %vm3080, 1, 0
        %v3082 = vadd.s32 %v3078, %v3074
        %v3083 = vadd.s32 %v3079, %v3081
        %v3084 = vadd.s32 %v3083, %v3073
        %v3085 = vadd.s32 %v3084, %v3075
        %v3086 = vmul.u32 %v3041, %v3032
        %v3087 = vadd.s32 %v3063, %v3082
        %vm3088 = vc.u32 %v3063, %v3082
        %v3089 = vadd.s32 %v3085, 1
        %v3090 = vsel %vm3088, %v3089, %v3085
        %v3091 = vadd.s32 %v3086, %v3090
        %v3092 = vadd.s32 %v3091, 536870912
        %v3093 = vshrl.u32 %v3092, 30
        %v3094 = vshll.u32 %v3093, 30
        %v3095 = vsub.s32 %v3091, %v3094
        %vm3096 = vcmp.lt.s32.totalorder %v3095, 0
        %v3097 = vsub.s32 0, %v3095
        %v3098 = vsel %vm3096, %v3097, %v3095
        %v3099 = vclz %v3098
        %v3100 = vsub.s32 %v3099, 2
        %vm3101 = vcmp.gt.s32.totalorder 0, %v3100
        %v3102 = vsel %vm3101, 0, %v3100
        %v3103 = vsub.s32 32, %v3102
        %v3104 = vshll.u32 %v3095, %v3102
        %v3105 = vshrl.u32 %v3087, %v3103
        %v3106 = vor.u32 %v3104, %v3105
        %v3107 = vsub.s32 4294967266, %v3102
        %v3108 = vadd.s32 %v3107, 127
        %v3109 = vshll.u32 %v3108, 23
        %v3110 = vor.u32 4788187, %v3109
        %v3111 = vand.u32 2147483647, %v3110
        %v3113 = vcvt.s32.f32 %v3106
        %v3114 = vmul.f32 %v3113, %v3111
        %v3115 = vxor.u32 %v3114, 2147483648
        %v3116 = vsel %vm2995, %v3115, %v3114
        %v3117 = vsub.s32 4, %v3093
        %v3118 = vsel %vm2995, %v3117, %v3093
        %v3119 = vsel %vm2994, %v157, %v3116
        %v3120 = vsel %vm2994, 0, %v3118
        %v3121 = vmul.f32 %v3119, %v3119
        %v3122 = vmul.f32 %v3121, -0.001358992
        %v3123 = vadd.f32 %v3122, 0.041655596
        %v3124 = vmul.f32 %v3121, %v3123
        %v3125 = vadd.f32 %v3124, -0.4999988
        %v3126 = vmul.f32 %v3121, %v3125
        %v3127 = vadd.f32 1.0, %v3126
        %v3128 = vmul.f32 %v3119, %v3119
        %v3129 = vmul.f32 %v3128, -0.00019511016
        %v3130 = vadd.f32 %v3129, 0.008332121
        %v3131 = vmul.f32 %v3128, %v3130
        %v3132 = vadd.f32 %v3131, -0.16666654
        %v3133 = vmul.f32 %v3128, %v3132
        %v3134 = vadd.f32 %v3133, 1.0
        %v3135 = vmul.f32 %v3134, %v3119
        %vm3136 = vweird.f32 %v157
        %v3137 = vadd.s32 %v3120, 3
        %v3138 = vand.u32 %v3137, 3
        %vm3139 = vcmp.lt.s32.totalorder %v3138, 2
        %vm3140 = vcmp.eq.s32.totalorder %v3138, 0
        %v3141 = vxor.u32 %v3135, 2147483648
        %v3142 = vsel %vm3140, %v3127, %v3141
        %vm3143 = vcmp.eq.s32.totalorder %v3138, 2
        %v3144 = vxor.u32 %v3127, 2147483648
        %v3145 = vsel %vm3143, %v3144, %v3135
        %v3146 = vsel %vm3139, %v3142, %v3145
        %v3147 = vsel %vm3136, nan, %v3146
        %v3148 = vand.u32 2147483647, %v158
        %vm3149 = vcmp.le.f32.partialorder %v3148, 0.7853982
        %vm3150 = vcmp.lt.s32.totalorder %v158, 0
        %v3151 = vand.u32 %v158, 2139095040
        %v3152 = vshrl.u32 %v3151, 23
        %v3153 = vsub.s32 %v3152, 127
        %v3154 = vand.u32 2147483647, %v158
        %v3155 = vand.u32 %v3154, 8388607
        %v3156 = vor.u32 %v3155, 8388608
        %v3157 = vsub.s32 0, %v3156
        %v3158 = vadd.s32 %v3153, 1
        %vm3159 = vcmp.gt.s32.totalorder %v3158, 0
        %v3160 = vsel %vm3159, %v3158, 0
        %v3161 = vshrl.u32 %v3160, 5
        %v3162 = vand.u32 %v3160, 31
        %v3163 = vsub.s32 32, %v3162
        %v3164 = vshrl.u32 683565275, %v3163
        %v3165 = vshll.u32 683565275, %v3162
        %v3166 = vshrl.u32 2475754826, %v3163
        %v3167 = vor.u32 %v3165, %v3166
        %v3168 = vshll.u32 2475754826, %v3162
        %v3169 = vshrl.u32 2131351028, %v3163
        %v3170 = vor.u32 %v3168, %v3169
        %v3171 = vshll.u32 2131351028, %v3162
        %v3172 = vshrl.u32 2102212464, %v3163
        %v3173 = vor.u32 %v3171, %v3172
        %v3174 = vshll.u32 2102212464, %v3162
        %v3175 = vshrl.u32 920167782, %v3163
        %v3176 = vor.u32 %v3174, %v3175
        %v3177 = vshll.u32 920167782, %v3162
        %v3178 = vshrl.u32 1326507024, %v3163
        %v3179 = vor.u32 %v3177, %v3178
        %vm3180 = vcmp.lt.s32.totalorder %v3161, 1
        %vm3181 = vcmp.lt.s32.totalorder %v3161, 2
        %vm3182 = vcmp.lt.s32.totalorder %v3161, 3
        %vm3183 = vcmp.lt.s32.totalorder %v3161, 4
        %v3184 = vsel %vm3180, %v3164, %v3167
        %v3185 = vsel %vm3183, %v3173, 2102212464
        %v3186 = vsel %vm3182, %v3170, %v3185
        %v3187 = vsel %vm3181, %v3184, %v3186
        %v3188 = vsel %vm3180, %v3167, %v3170
        %v3189 = vsel %vm3183, %v3176, 920167782
        %v3190 = vsel %vm3182, %v3173, %v3189
        %v3191 = vsel %vm3181, %v3188, %v3190
        %v3192 = vsel %vm3180, %v3170, %v3173
        %v3193 = vsel %vm3183, %v3179, 1326507024
        %v3194 = vsel %vm3182, %v3176, %v3193
        %v3195 = vsel %vm3181, %v3192, %v3194
        %v3196 = vshll.u32 %v3156, 8
        %v3197 = vand.u32 %v3196, 65535
        %v3198 = vshrl.u32 %v3196, 16
        %v3199 = vand.u32 %v3195, 65535
        %v3200 = vshrl.u32 %v3195, 16
        %v3201 = vmul.u32 %v3197, %v3199
        %v3202 = vmul.u32 %v3197, %v3200
        %v3203 = vmul.u32 %v3198, %v3199
        %v3204 = vmul.u32 %v3198, %v3200
        %v3205 = vshll.u32 %v3202, 16
        %v3206 = vshrl.u32 %v3202, 16
        %v3207 = vshll.u32 %v3203, 16
        %v3208 = vshrl.u32 %v3203, 16
        %vm3209 = vc.u32 %v3201, %v3205
        %v3210 = vsel %vm3209, 1, 0
        %v3211 = vadd.s32 %v3201, %v3205
        %v3212 = vadd.s32 %v3204, %v3210
        %vm3213 = vc.u32 %v3211, %v3207
        %v3214 = vsel %vm3213, 1, 0
        %v3215 = vadd.s32 %v3211, %v3207
        %v3216 = vadd.s32 %v3212, %v3214
        %v3217 = vadd.s32 %v3216, %v3206
        %v3218 = vadd.s32 %v3217, %v3208
        %v3219 = vand.u32 %v3196, 65535
        %v3220 = vshrl.u32 %v3196, 16
        %v3221 = vand.u32 %v3191, 65535
        %v3222 = vshrl.u32 %v3191, 16
        %v3223 = vmul.u32 %v3219, %v3221
        %v3224 = vmul.u32 %v3219, %v3222
        %v3225 = vmul.u32 %v3220, %v3221
        %v3226 = vmul.u32 %v3220, %v3222
        %v3227 = vshll.u32 %v3224, 16
        %v3228 = vshrl.u32 %v3224, 16
        %v3229 = vshll.u32 %v3225, 16
        %v3230 = vshrl.u32 %v3225, 16
        %vm3231 = vc.u32 %v3223, %v3227
        %v3232 = vsel %vm3231, 1, 0
        %v3233 = vadd.s32 %v3223, %v3227
        %v3234 = vadd.s32 %v3226, %v3232
        %vm3235 = vc.u32 %v3233, %v3229
        %v3236 = vsel %vm3235, 1, 0
        %v3237 = vadd.s32 %v3233, %v3229
        %v3238 = vadd.s32 %v3234, %v3236
        %v3239 = vadd.s32 %v3238, %v3228
        %v3240 = vadd.s32 %v3239, %v3230
        %v3241 = vmul.u32 %v3196, %v3187
        %v3242 = vadd.s32 %v3218, %v3237
        %vm3243 = vc.u32 %v3218, %v3237
        %v3244 = vadd.s32 %v3240, 1
        %v3245 = vsel %vm3243, %v3244, %v3240
        %v3246 = vadd.s32 %v3241, %v3245
        %v3247 = vadd.s32 %v3246, 536870912
        %v3248 = vshrl.u32 %v3247, 30
        %v3249 = vshll.u32 %v3248, 30
        %v3250 = vsub.s32 %v3246, %v3249
        %vm3251 = vcmp.lt.s32.totalorder %v3250, 0
        %v3252 = vsub.s32 0, %v3250
        %v3253 = vsel %vm3251, %v3252, %v3250
        %v3254 = vclz %v3253
        %v3255 = vsub.s32 %v3254, 2
        %vm3256 = vcmp.gt.s32.totalorder 0, %v3255
        %v3257 = vsel %vm3256, 0, %v3255
        %v3258 = vsub.s32 32, %v3257
        %v3259 = vshll.u32 %v3250, %v3257
        %v3260 = vshrl.u32 %v3242, %v3258
        %v3261 = vor.u32 %v3259, %v3260
        %v3262 = vsub.s32 4294967266, %v3257
        %v3263 = vadd.s32 %v3262, 127
        %v3264 = vshll.u32 %v3263, 23
        %v3265 = vor.u32 4788187, %v3264
        %v3266 = vand.u32 2147483647, %v3265
        %v3268 = vcvt.s32.f32 %v3261
        %v3269 = vmul.f32 %v3268, %v3266
        %v3270 = vxor.u32 %v3269, 2147483648
        %v3271 = vsel %vm3150, %v3270, %v3269
        %v3272 = vsub.s32 4, %v3248
        %v3273 = vsel %vm3150, %v3272, %v3248
        %v3274 = vsel %vm3149, %v158, %v3271
        %v3275 = vsel %vm3149, 0, %v3273
        %v3276 = vmul.f32 %v3274, %v3274
        %v3277 = vmul.f32 %v3276, -0.001358992
        %v3278 = vadd.f32 %v3277, 0.041655596
        %v3279 = vmul.f32 %v3276, %v3278
        %v3280 = vadd.f32 %v3279, -0.4999988
        %v3281 = vmul.f32 %v3276, %v3280
        %v3282 = vadd.f32 1.0, %v3281
        %v3283 = vmul.f32 %v3274, %v3274
        %v3284 = vmul.f32 %v3283, -0.00019511016
        %v3285 = vadd.f32 %v3284, 0.008332121
        %v3286 = vmul.f32 %v3283, %v3285
        %v3287 = vadd.f32 %v3286, -0.16666654
        %v3288 = vmul.f32 %v3283, %v3287
        %v3289 = vadd.f32 %v3288, 1.0
        %v3290 = vmul.f32 %v3289, %v3274
        %vm3291 = vweird.f32 %v158
        %v3292 = vadd.s32 %v3275, 3
        %v3293 = vand.u32 %v3292, 3
        %vm3294 = vcmp.lt.s32.totalorder %v3293, 2
        %vm3295 = vcmp.eq.s32.totalorder %v3293, 0
        %v3296 = vxor.u32 %v3290, 2147483648
        %v3297 = vsel %vm3295, %v3282, %v3296
        %vm3298 = vcmp.eq.s32.totalorder %v3293, 2
        %v3299 = vxor.u32 %v3282, 2147483648
        %v3300 = vsel %vm3298, %v3299, %v3290
        %v3301 = vsel %vm3294, %v3297, %v3300
        %v3302 = vsel %vm3291, nan, %v3301
        %v3303 = vand.u32 2147483647, %v159
        %vm3304 = vcmp.le.f32.partialorder %v3303, 0.7853982
        %vm3305 = vcmp.lt.s32.totalorder %v159, 0
        %v3306 = vand.u32 %v159, 2139095040
        %v3307 = vshrl.u32 %v3306, 23
        %v3308 = vsub.s32 %v3307, 127
        %v3309 = vand.u32 2147483647, %v159
        %v3310 = vand.u32 %v3309, 8388607
        %v3311 = vor.u32 %v3310, 8388608
        %v3312 = vsub.s32 0, %v3311
        %v3313 = vadd.s32 %v3308, 1
        %vm3314 = vcmp.gt.s32.totalorder %v3313, 0
        %v3315 = vsel %vm3314, %v3313, 0
        %v3316 = vshrl.u32 %v3315, 5
        %v3317 = vand.u32 %v3315, 31
        %v3318 = vsub.s32 32, %v3317
        %v3319 = vshrl.u32 683565275, %v3318
        %v3320 = vshll.u32 683565275, %v3317
        %v3321 = vshrl.u32 2475754826, %v3318
        %v3322 = vor.u32 %v3320, %v3321
        %v3323 = vshll.u32 2475754826, %v3317
        %v3324 = vshrl.u32 2131351028, %v3318
        %v3325 = vor.u32 %v3323, %v3324
        %v3326 = vshll.u32 2131351028, %v3317
        %v3327 = vshrl.u32 2102212464, %v3318
        %v3328 = vor.u32 %v3326, %v3327
        %v3329 = vshll.u32 2102212464, %v3317
        %v3330 = vshrl.u32 920167782, %v3318
        %v3331 = vor.u32 %v3329, %v3330
        %v3332 = vshll.u32 920167782, %v3317
        %v3333 = vshrl.u32 1326507024, %v3318
        %v3334 = vor.u32 %v3332, %v3333
        %vm3335 = vcmp.lt.s32.totalorder %v3316, 1
        %vm3336 = vcmp.lt.s32.totalorder %v3316, 2
        %vm3337 = vcmp.lt.s32.totalorder %v3316, 3
        %vm3338 = vcmp.lt.s32.totalorder %v3316, 4
        %v3339 = vsel %vm3335, %v3319, %v3322
        %v3340 = vsel %vm3338, %v3328, 2102212464
        %v3341 = vsel %vm3337, %v3325, %v3340
        %v3342 = vsel %vm3336, %v3339, %v3341
        %v3343 = vsel %vm3335, %v3322, %v3325
        %v3344 = vsel %vm3338, %v3331, 920167782
        %v3345 = vsel %vm3337, %v3328, %v3344
        %v3346 = vsel %vm3336, %v3343, %v3345
        %v3347 = vsel %vm3335, %v3325, %v3328
        %v3348 = vsel %vm3338, %v3334, 1326507024
        %v3349 = vsel %vm3337, %v3331, %v3348
        %v3350 = vsel %vm3336, %v3347, %v3349
        %v3351 = vshll.u32 %v3311, 8
        %v3352 = vand.u32 %v3351, 65535
        %v3353 = vshrl.u32 %v3351, 16
        %v3354 = vand.u32 %v3350, 65535
        %v3355 = vshrl.u32 %v3350, 16
        %v3356 = vmul.u32 %v3352, %v3354
        %v3357 = vmul.u32 %v3352, %v3355
        %v3358 = vmul.u32 %v3353, %v3354
        %v3359 = vmul.u32 %v3353, %v3355
        %v3360 = vshll.u32 %v3357, 16
        %v3361 = vshrl.u32 %v3357, 16
        %v3362 = vshll.u32 %v3358, 16
        %v3363 = vshrl.u32 %v3358, 16
        %vm3364 = vc.u32 %v3356, %v3360
        %v3365 = vsel %vm3364, 1, 0
        %v3366 = vadd.s32 %v3356, %v3360
        %v3367 = vadd.s32 %v3359, %v3365
        %vm3368 = vc.u32 %v3366, %v3362
        %v3369 = vsel %vm3368, 1, 0
        %v3370 = vadd.s32 %v3366, %v3362
        %v3371 = vadd.s32 %v3367, %v3369
        %v3372 = vadd.s32 %v3371, %v3361
        %v3373 = vadd.s32 %v3372, %v3363
        %v3374 = vand.u32 %v3351, 65535
        %v3375 = vshrl.u32 %v3351, 16
        %v3376 = vand.u32 %v3346, 65535
        %v3377 = vshrl.u32 %v3346, 16
        %v3378 = vmul.u32 %v3374, %v3376
        %v3379 = vmul.u32 %v3374, %v3377
        %v3380 = vmul.u32 %v3375, %v3376
        %v3381 = vmul.u32 %v3375, %v3377
        %v3382 = vshll.u32 %v3379, 16
        %v3383 = vshrl.u32 %v3379, 16
        %v3384 = vshll.u32 %v3380, 16
        %v3385 = vshrl.u32 %v3380, 16
        %vm3386 = vc.u32 %v3378, %v3382
        %v3387 = vsel %vm3386, 1, 0
        %v3388 = vadd.s32 %v3378, %v3382
        %v3389 = vadd.s32 %v3381, %v3387
        %vm3390 = vc.u32 %v3388, %v3384
        %v3391 = vsel %vm3390, 1, 0
        %v3392 = vadd.s32 %v3388, %v3384
        %v3393 = vadd.s32 %v3389, %v3391
        %v3394 = vadd.s32 %v3393, %v3383
        %v3395 = vadd.s32 %v3394, %v3385
        %v3396 = vmul.u32 %v3351, %v3342
        %v3397 = vadd.s32 %v3373, %v3392
        %vm3398 = vc.u32 %v3373, %v3392
        %v3399 = vadd.s32 %v3395, 1
        %v3400 = vsel %vm3398, %v3399, %v3395
        %v3401 = vadd.s32 %v3396, %v3400
        %v3402 = vadd.s32 %v3401, 536870912
        %v3403 = vshrl.u32 %v3402, 30
        %v3404 = vshll.u32 %v3403, 30
        %v3405 = vsub.s32 %v3401, %v3404
        %vm3406 = vcmp.lt.s32.totalorder %v3405, 0
        %v3407 = vsub.s32 0, %v3405
        %v3408 = vsel %vm3406, %v3407, %v3405
        %v3409 = vclz %v3408
        %v3410 = vsub.s32 %v3409, 2
        %vm3411 = vcmp.gt.s32.totalorder 0, %v3410
        %v3412 = vsel %vm3411, 0, %v3410
        %v3413 = vsub.s32 32, %v3412
        %v3414 = vshll.u32 %v3405, %v3412
        %v3415 = vshrl.u32 %v3397, %v3413
        %v3416 = vor.u32 %v3414, %v3415
        %v3417 = vsub.s32 4294967266, %v3412
        %v3418 = vadd.s32 %v3417, 127
        %v3419 = vshll.u32 %v3418, 23
        %v3420 = vor.u32 4788187, %v3419
        %v3421 = vand.u32 2147483647, %v3420
        %v3423 = vcvt.s32.f32 %v3416
        %v3424 = vmul.f32 %v3423, %v3421
        %v3425 = vxor.u32 %v3424, 2147483648
        %v3426 = vsel %vm3305, %v3425, %v3424
        %v3427 = vsub.s32 4, %v3403
        %v3428 = vsel %vm3305, %v3427, %v3403
        %v3429 = vsel %vm3304, %v159, %v3426
        %v3430 = vsel %vm3304, 0, %v3428
        %v3431 = vmul.f32 %v3429, %v3429
        %v3432 = vmul.f32 %v3431, -0.001358992
        %v3433 = vadd.f32 %v3432, 0.041655596
        %v3434 = vmul.f32 %v3431, %v3433
        %v3435 = vadd.f32 %v3434, -0.4999988
        %v3436 = vmul.f32 %v3431, %v3435
        %v3437 = vadd.f32 1.0, %v3436
        %v3438 = vmul.f32 %v3429, %v3429
        %v3439 = vmul.f32 %v3438, -0.00019511016
        %v3440 = vadd.f32 %v3439, 0.008332121
        %v3441 = vmul.f32 %v3438, %v3440
        %v3442 = vadd.f32 %v3441, -0.16666654
        %v3443 = vmul.f32 %v3438, %v3442
        %v3444 = vadd.f32 %v3443, 1.0
        %v3445 = vmul.f32 %v3444, %v3429
        %vm3446 = vweird.f32 %v159
        %v3447 = vadd.s32 %v3430, 3
        %v3448 = vand.u32 %v3447, 3
        %vm3449 = vcmp.lt.s32.totalorder %v3448, 2
        %vm3450 = vcmp.eq.s32.totalorder %v3448, 0
        %v3451 = vxor.u32 %v3445, 2147483648
        %v3452 = vsel %vm3450, %v3437, %v3451
        %vm3453 = vcmp.eq.s32.totalorder %v3448, 2
        %v3454 = vxor.u32 %v3437, 2147483648
        %v3455 = vsel %vm3453, %v3454, %v3445
        %v3456 = vsel %vm3449, %v3452, %v3455
        %v3457 = vsel %vm3446, nan, %v3456
        %v3458 = vand.u32 2147483647, %v160
        %vm3459 = vcmp.le.f32.partialorder %v3458, 0.7853982
        %vm3460 = vcmp.lt.s32.totalorder %v160, 0
        %v3461 = vand.u32 %v160, 2139095040
        %v3462 = vshrl.u32 %v3461, 23
        %v3463 = vsub.s32 %v3462, 127
        %v3464 = vand.u32 2147483647, %v160
        %v3465 = vand.u32 %v3464, 8388607
        %v3466 = vor.u32 %v3465, 8388608
        %v3467 = vsub.s32 0, %v3466
        %v3468 = vadd.s32 %v3463, 1
        %vm3469 = vcmp.gt.s32.totalorder %v3468, 0
        %v3470 = vsel %vm3469, %v3468, 0
        %v3471 = vshrl.u32 %v3470, 5
        %v3472 = vand.u32 %v3470, 31
        %v3473 = vsub.s32 32, %v3472
        %v3474 = vshrl.u32 683565275, %v3473
        %v3475 = vshll.u32 683565275, %v3472
        %v3476 = vshrl.u32 2475754826, %v3473
        %v3477 = vor.u32 %v3475, %v3476
        %v3478 = vshll.u32 2475754826, %v3472
        %v3479 = vshrl.u32 2131351028, %v3473
        %v3480 = vor.u32 %v3478, %v3479
        %v3481 = vshll.u32 2131351028, %v3472
        %v3482 = vshrl.u32 2102212464, %v3473
        %v3483 = vor.u32 %v3481, %v3482
        %v3484 = vshll.u32 2102212464, %v3472
        %v3485 = vshrl.u32 920167782, %v3473
        %v3486 = vor.u32 %v3484, %v3485
        %v3487 = vshll.u32 920167782, %v3472
        %v3488 = vshrl.u32 1326507024, %v3473
        %v3489 = vor.u32 %v3487, %v3488
        %vm3490 = vcmp.lt.s32.totalorder %v3471, 1
        %vm3491 = vcmp.lt.s32.totalorder %v3471, 2
        %vm3492 = vcmp.lt.s32.totalorder %v3471, 3
        %vm3493 = vcmp.lt.s32.totalorder %v3471, 4
        %v3494 = vsel %vm3490, %v3474, %v3477
        %v3495 = vsel %vm3493, %v3483, 2102212464
        %v3496 = vsel %vm3492, %v3480, %v3495
        %v3497 = vsel %vm3491, %v3494, %v3496
        %v3498 = vsel %vm3490, %v3477, %v3480
        %v3499 = vsel %vm3493, %v3486, 920167782
        %v3500 = vsel %vm3492, %v3483, %v3499
        %v3501 = vsel %vm3491, %v3498, %v3500
        %v3502 = vsel %vm3490, %v3480, %v3483
        %v3503 = vsel %vm3493, %v3489, 1326507024
        %v3504 = vsel %vm3492, %v3486, %v3503
        %v3505 = vsel %vm3491, %v3502, %v3504
        %v3506 = vshll.u32 %v3466, 8
        %v3507 = vand.u32 %v3506, 65535
        %v3508 = vshrl.u32 %v3506, 16
        %v3509 = vand.u32 %v3505, 65535
        %v3510 = vshrl.u32 %v3505, 16
        %v3511 = vmul.u32 %v3507, %v3509
        %v3512 = vmul.u32 %v3507, %v3510
        %v3513 = vmul.u32 %v3508, %v3509
        %v3514 = vmul.u32 %v3508, %v3510
        %v3515 = vshll.u32 %v3512, 16
        %v3516 = vshrl.u32 %v3512, 16
        %v3517 = vshll.u32 %v3513, 16
        %v3518 = vshrl.u32 %v3513, 16
        %vm3519 = vc.u32 %v3511, %v3515
        %v3520 = vsel %vm3519, 1, 0
        %v3521 = vadd.s32 %v3511, %v3515
        %v3522 = vadd.s32 %v3514, %v3520
        %vm3523 = vc.u32 %v3521, %v3517
        %v3524 = vsel %vm3523, 1, 0
        %v3525 = vadd.s32 %v3521, %v3517
        %v3526 = vadd.s32 %v3522, %v3524
        %v3527 = vadd.s32 %v3526, %v3516
        %v3528 = vadd.s32 %v3527, %v3518
        %v3529 = vand.u32 %v3506, 65535
        %v3530 = vshrl.u32 %v3506, 16
        %v3531 = vand.u32 %v3501, 65535
        %v3532 = vshrl.u32 %v3501, 16
        %v3533 = vmul.u32 %v3529, %v3531
        %v3534 = vmul.u32 %v3529, %v3532
        %v3535 = vmul.u32 %v3530, %v3531
        %v3536 = vmul.u32 %v3530, %v3532
        %v3537 = vshll.u32 %v3534, 16
        %v3538 = vshrl.u32 %v3534, 16
        %v3539 = vshll.u32 %v3535, 16
        %v3540 = vshrl.u32 %v3535, 16
        %vm3541 = vc.u32 %v3533, %v3537
        %v3542 = vsel %vm3541, 1, 0
        %v3543 = vadd.s32 %v3533, %v3537
        %v3544 = vadd.s32 %v3536, %v3542
        %vm3545 = vc.u32 %v3543, %v3539
        %v3546 = vsel %vm3545, 1, 0
        %v3547 = vadd.s32 %v3543, %v3539
        %v3548 = vadd.s32 %v3544, %v3546
        %v3549 = vadd.s32 %v3548, %v3538
        %v3550 = vadd.s32 %v3549, %v3540
        %v3551 = vmul.u32 %v3506, %v3497
        %v3552 = vadd.s32 %v3528, %v3547
        %vm3553 = vc.u32 %v3528, %v3547
        %v3554 = vadd.s32 %v3550, 1
        %v3555 = vsel %vm3553, %v3554, %v3550
        %v3556 = vadd.s32 %v3551, %v3555
        %v3557 = vadd.s32 %v3556, 536870912
        %v3558 = vshrl.u32 %v3557, 30
        %v3559 = vshll.u32 %v3558, 30
        %v3560 = vsub.s32 %v3556, %v3559
        %vm3561 = vcmp.lt.s32.totalorder %v3560, 0
        %v3562 = vsub.s32 0, %v3560
        %v3563 = vsel %vm3561, %v3562, %v3560
        %v3564 = vclz %v3563
        %v3565 = vsub.s32 %v3564, 2
        %vm3566 = vcmp.gt.s32.totalorder 0, %v3565
        %v3567 = vsel %vm3566, 0, %v3565
        %v3568 = vsub.s32 32, %v3567
        %v3569 = vshll.u32 %v3560, %v3567
        %v3570 = vshrl.u32 %v3552, %v3568
        %v3571 = vor.u32 %v3569, %v3570
        %v3572 = vsub.s32 4294967266, %v3567
        %v3573 = vadd.s32 %v3572, 127
        %v3574 = vshll.u32 %v3573, 23
        %v3575 = vor.u32 4788187, %v3574
        %v3576 = vand.u32 2147483647, %v3575
        %v3578 = vcvt.s32.f32 %v3571
        %v3579 = vmul.f32 %v3578, %v3576
        %v3580 = vxor.u32 %v3579, 2147483648
        %v3581 = vsel %vm3460, %v3580, %v3579
        %v3582 = vsub.s32 4, %v3558
        %v3583 = vsel %vm3460, %v3582, %v3558
        %v3584 = vsel %vm3459, %v160, %v3581
        %v3585 = vsel %vm3459, 0, %v3583
        %v3586 = vmul.f32 %v3584, %v3584
        %v3587 = vmul.f32 %v3586, -0.001358992
        %v3588 = vadd.f32 %v3587, 0.041655596
        %v3589 = vmul.f32 %v3586, %v3588
        %v3590 = vadd.f32 %v3589, -0.4999988
        %v3591 = vmul.f32 %v3586, %v3590
        %v3592 = vadd.f32 1.0, %v3591
        %v3593 = vmul.f32 %v3584, %v3584
        %v3594 = vmul.f32 %v3593, -0.00019511016
        %v3595 = vadd.f32 %v3594, 0.008332121
        %v3596 = vmul.f32 %v3593, %v3595
        %v3597 = vadd.f32 %v3596, -0.16666654
        %v3598 = vmul.f32 %v3593, %v3597
        %v3599 = vadd.f32 %v3598, 1.0
        %v3600 = vmul.f32 %v3599, %v3584
        %vm3601 = vweird.f32 %v160
        %v3602 = vadd.s32 %v3585, 3
        %v3603 = vand.u32 %v3602, 3
        %vm3604 = vcmp.lt.s32.totalorder %v3603, 2
        %vm3605 = vcmp.eq.s32.totalorder %v3603, 0
        %v3606 = vxor.u32 %v3600, 2147483648
        %v3607 = vsel %vm3605, %v3592, %v3606
        %vm3608 = vcmp.eq.s32.totalorder %v3603, 2
        %v3609 = vxor.u32 %v3592, 2147483648
        %v3610 = vsel %vm3608, %v3609, %v3600
        %v3611 = vsel %vm3604, %v3607, %v3610
        %v3612 = vsel %vm3601, nan, %v3611
        %v3613 = vand.u32 2147483647, %v161
        %vm3614 = vcmp.le.f32.partialorder %v3613, 0.7853982
        %vm3615 = vcmp.lt.s32.totalorder %v161, 0
        %v3616 = vand.u32 %v161, 2139095040
        %v3617 = vshrl.u32 %v3616, 23
        %v3618 = vsub.s32 %v3617, 127
        %v3619 = vand.u32 2147483647, %v161
        %v3620 = vand.u32 %v3619, 8388607
        %v3621 = vor.u32 %v3620, 8388608
        %v3622 = vsub.s32 0, %v3621
        %v3623 = vadd.s32 %v3618, 1
        %vm3624 = vcmp.gt.s32.totalorder %v3623, 0
        %v3625 = vsel %vm3624, %v3623, 0
        %v3626 = vshrl.u32 %v3625, 5
        %v3627 = vand.u32 %v3625, 31
        %v3628 = vsub.s32 32, %v3627
        %v3629 = vshrl.u32 683565275, %v3628
        %v3630 = vshll.u32 683565275, %v3627
        %v3631 = vshrl.u32 2475754826, %v3628
        %v3632 = vor.u32 %v3630, %v3631
        %v3633 = vshll.u32 2475754826, %v3627
        %v3634 = vshrl.u32 2131351028, %v3628
        %v3635 = vor.u32 %v3633, %v3634
        %v3636 = vshll.u32 2131351028, %v3627
        %v3637 = vshrl.u32 2102212464, %v3628
        %v3638 = vor.u32 %v3636, %v3637
        %v3639 = vshll.u32 2102212464, %v3627
        %v3640 = vshrl.u32 920167782, %v3628
        %v3641 = vor.u32 %v3639, %v3640
        %v3642 = vshll.u32 920167782, %v3627
        %v3643 = vshrl.u32 1326507024, %v3628
        %v3644 = vor.u32 %v3642, %v3643
        %vm3645 = vcmp.lt.s32.totalorder %v3626, 1
        %vm3646 = vcmp.lt.s32.totalorder %v3626, 2
        %vm3647 = vcmp.lt.s32.totalorder %v3626, 3
        %vm3648 = vcmp.lt.s32.totalorder %v3626, 4
        %v3649 = vsel %vm3645, %v3629, %v3632
        %v3650 = vsel %vm3648, %v3638, 2102212464
        %v3651 = vsel %vm3647, %v3635, %v3650
        %v3652 = vsel %vm3646, %v3649, %v3651
        %v3653 = vsel %vm3645, %v3632, %v3635
        %v3654 = vsel %vm3648, %v3641, 920167782
        %v3655 = vsel %vm3647, %v3638, %v3654
        %v3656 = vsel %vm3646, %v3653, %v3655
        %v3657 = vsel %vm3645, %v3635, %v3638
        %v3658 = vsel %vm3648, %v3644, 1326507024
        %v3659 = vsel %vm3647, %v3641, %v3658
        %v3660 = vsel %vm3646, %v3657, %v3659
        %v3661 = vshll.u32 %v3621, 8
        %v3662 = vand.u32 %v3661, 65535
        %v3663 = vshrl.u32 %v3661, 16
        %v3664 = vand.u32 %v3660, 65535
        %v3665 = vshrl.u32 %v3660, 16
        %v3666 = vmul.u32 %v3662, %v3664
        %v3667 = vmul.u32 %v3662, %v3665
        %v3668 = vmul.u32 %v3663, %v3664
        %v3669 = vmul.u32 %v3663, %v3665
        %v3670 = vshll.u32 %v3667, 16
        %v3671 = vshrl.u32 %v3667, 16
        %v3672 = vshll.u32 %v3668, 16
        %v3673 = vshrl.u32 %v3668, 16
        %vm3674 = vc.u32 %v3666, %v3670
        %v3675 = vsel %vm3674, 1, 0
        %v3676 = vadd.s32 %v3666, %v3670
        %v3677 = vadd.s32 %v3669, %v3675
        %vm3678 = vc.u32 %v3676, %v3672
        %v3679 = vsel %vm3678, 1, 0
        %v3680 = vadd.s32 %v3676, %v3672
        %v3681 = vadd.s32 %v3677, %v3679
        %v3682 = vadd.s32 %v3681, %v3671
        %v3683 = vadd.s32 %v3682, %v3673
        %v3684 = vand.u32 %v3661, 65535
        %v3685 = vshrl.u32 %v3661, 16
        %v3686 = vand.u32 %v3656, 65535
        %v3687 = vshrl.u32 %v3656, 16
        %v3688 = vmul.u32 %v3684, %v3686
        %v3689 = vmul.u32 %v3684, %v3687
        %v3690 = vmul.u32 %v3685, %v3686
        %v3691 = vmul.u32 %v3685, %v3687
        %v3692 = vshll.u32 %v3689, 16
        %v3693 = vshrl.u32 %v3689, 16
        %v3694 = vshll.u32 %v3690, 16
        %v3695 = vshrl.u32 %v3690, 16
        %vm3696 = vc.u32 %v3688, %v3692
        %v3697 = vsel %vm3696, 1, 0
        %v3698 = vadd.s32 %v3688, %v3692
        %v3699 = vadd.s32 %v3691, %v3697
        %vm3700 = vc.u32 %v3698, %v3694
        %v3701 = vsel %vm3700, 1, 0
        %v3702 = vadd.s32 %v3698, %v3694
        %v3703 = vadd.s32 %v3699, %v3701
        %v3704 = vadd.s32 %v3703, %v3693
        %v3705 = vadd.s32 %v3704, %v3695
        %v3706 = vmul.u32 %v3661, %v3652
        %v3707 = vadd.s32 %v3683, %v3702
        %vm3708 = vc.u32 %v3683, %v3702
        %v3709 = vadd.s32 %v3705, 1
        %v3710 = vsel %vm3708, %v3709, %v3705
        %v3711 = vadd.s32 %v3706, %v3710
        %v3712 = vadd.s32 %v3711, 536870912
        %v3713 = vshrl.u32 %v3712, 30
        %v3714 = vshll.u32 %v3713, 30
        %v3715 = vsub.s32 %v3711, %v3714
        %vm3716 = vcmp.lt.s32.totalorder %v3715, 0
        %v3717 = vsub.s32 0, %v3715
        %v3718 = vsel %vm3716, %v3717, %v3715
        %v3719 = vclz %v3718
        %v3720 = vsub.s32 %v3719, 2
        %vm3721 = vcmp.gt.s32.totalorder 0, %v3720
        %v3722 = vsel %vm3721, 0, %v3720
        %v3723 = vsub.s32 32, %v3722
        %v3724 = vshll.u32 %v3715, %v3722
        %v3725 = vshrl.u32 %v3707, %v3723
        %v3726 = vor.u32 %v3724, %v3725
        %v3727 = vsub.s32 4294967266, %v3722
        %v3728 = vadd.s32 %v3727, 127
        %v3729 = vshll.u32 %v3728, 23
        %v3730 = vor.u32 4788187, %v3729
        %v3731 = vand.u32 2147483647, %v3730
        %v3733 = vcvt.s32.f32 %v3726
        %v3734 = vmul.f32 %v3733, %v3731
        %v3735 = vxor.u32 %v3734, 2147483648
        %v3736 = vsel %vm3615, %v3735, %v3734
        %v3737 = vsub.s32 4, %v3713
        %v3738 = vsel %vm3615, %v3737, %v3713
        %v3739 = vsel %vm3614, %v161, %v3736
        %v3740 = vsel %vm3614, 0, %v3738
        %v3741 = vmul.f32 %v3739, %v3739
        %v3742 = vmul.f32 %v3741, -0.001358992
        %v3743 = vadd.f32 %v3742, 0.041655596
        %v3744 = vmul.f32 %v3741, %v3743
        %v3745 = vadd.f32 %v3744, -0.4999988
        %v3746 = vmul.f32 %v3741, %v3745
        %v3747 = vadd.f32 1.0, %v3746
        %v3748 = vmul.f32 %v3739, %v3739
        %v3749 = vmul.f32 %v3748, -0.00019511016
        %v3750 = vadd.f32 %v3749, 0.008332121
        %v3751 = vmul.f32 %v3748, %v3750
        %v3752 = vadd.f32 %v3751, -0.16666654
        %v3753 = vmul.f32 %v3748, %v3752
        %v3754 = vadd.f32 %v3753, 1.0
        %v3755 = vmul.f32 %v3754, %v3739
        %vm3756 = vweird.f32 %v161
        %v3757 = vadd.s32 %v3740, 3
        %v3758 = vand.u32 %v3757, 3
        %vm3759 = vcmp.lt.s32.totalorder %v3758, 2
        %vm3760 = vcmp.eq.s32.totalorder %v3758, 0
        %v3761 = vxor.u32 %v3755, 2147483648
        %v3762 = vsel %vm3760, %v3747, %v3761
        %vm3763 = vcmp.eq.s32.totalorder %v3758, 2
        %v3764 = vxor.u32 %v3747, 2147483648
        %v3765 = vsel %vm3763, %v3764, %v3755
        %v3766 = vsel %vm3759, %v3762, %v3765
        %v3767 = vsel %vm3756, nan, %v3766
        %v3768 = vand.u32 2147483647, %v162
        %vm3769 = vcmp.le.f32.partialorder %v3768, 0.7853982
        %vm3770 = vcmp.lt.s32.totalorder %v162, 0
        %v3771 = vand.u32 %v162, 2139095040
        %v3772 = vshrl.u32 %v3771, 23
        %v3773 = vsub.s32 %v3772, 127
        %v3774 = vand.u32 2147483647, %v162
        %v3775 = vand.u32 %v3774, 8388607
        %v3776 = vor.u32 %v3775, 8388608
        %v3777 = vsub.s32 0, %v3776
        %v3778 = vadd.s32 %v3773, 1
        %vm3779 = vcmp.gt.s32.totalorder %v3778, 0
        %v3780 = vsel %vm3779, %v3778, 0
        %v3781 = vshrl.u32 %v3780, 5
        %v3782 = vand.u32 %v3780, 31
        %v3783 = vsub.s32 32, %v3782
        %v3784 = vshrl.u32 683565275, %v3783
        %v3785 = vshll.u32 683565275, %v3782
        %v3786 = vshrl.u32 2475754826, %v3783
        %v3787 = vor.u32 %v3785, %v3786
        %v3788 = vshll.u32 2475754826, %v3782
        %v3789 = vshrl.u32 2131351028, %v3783
        %v3790 = vor.u32 %v3788, %v3789
        %v3791 = vshll.u32 2131351028, %v3782
        %v3792 = vshrl.u32 2102212464, %v3783
        %v3793 = vor.u32 %v3791, %v3792
        %v3794 = vshll.u32 2102212464, %v3782
        %v3795 = vshrl.u32 920167782, %v3783
        %v3796 = vor.u32 %v3794, %v3795
        %v3797 = vshll.u32 920167782, %v3782
        %v3798 = vshrl.u32 1326507024, %v3783
        %v3799 = vor.u32 %v3797, %v3798
        %vm3800 = vcmp.lt.s32.totalorder %v3781, 1
        %vm3801 = vcmp.lt.s32.totalorder %v3781, 2
        %vm3802 = vcmp.lt.s32.totalorder %v3781, 3
        %vm3803 = vcmp.lt.s32.totalorder %v3781, 4
        %v3804 = vsel %vm3800, %v3784, %v3787
        %v3805 = vsel %vm3803, %v3793, 2102212464
        %v3806 = vsel %vm3802, %v3790, %v3805
        %v3807 = vsel %vm3801, %v3804, %v3806
        %v3808 = vsel %vm3800, %v3787, %v3790
        %v3809 = vsel %vm3803, %v3796, 920167782
        %v3810 = vsel %vm3802, %v3793, %v3809
        %v3811 = vsel %vm3801, %v3808, %v3810
        %v3812 = vsel %vm3800, %v3790, %v3793
        %v3813 = vsel %vm3803, %v3799, 1326507024
        %v3814 = vsel %vm3802, %v3796, %v3813
        %v3815 = vsel %vm3801, %v3812, %v3814
        %v3816 = vshll.u32 %v3776, 8
        %v3817 = vand.u32 %v3816, 65535
        %v3818 = vshrl.u32 %v3816, 16
        %v3819 = vand.u32 %v3815, 65535
        %v3820 = vshrl.u32 %v3815, 16
        %v3821 = vmul.u32 %v3817, %v3819
        %v3822 = vmul.u32 %v3817, %v3820
        %v3823 = vmul.u32 %v3818, %v3819
        %v3824 = vmul.u32 %v3818, %v3820
        %v3825 = vshll.u32 %v3822, 16
        %v3826 = vshrl.u32 %v3822, 16
        %v3827 = vshll.u32 %v3823, 16
        %v3828 = vshrl.u32 %v3823, 16
        %vm3829 = vc.u32 %v3821, %v3825
        %v3830 = vsel %vm3829, 1, 0
        %v3831 = vadd.s32 %v3821, %v3825
        %v3832 = vadd.s32 %v3824, %v3830
        %vm3833 = vc.u32 %v3831, %v3827
        %v3834 = vsel %vm3833, 1, 0
        %v3835 = vadd.s32 %v3831, %v3827
        %v3836 = vadd.s32 %v3832, %v3834
        %v3837 = vadd.s32 %v3836, %v3826
        %v3838 = vadd.s32 %v3837, %v3828
        %v3839 = vand.u32 %v3816, 65535
        %v3840 = vshrl.u32 %v3816, 16
        %v3841 = vand.u32 %v3811, 65535
        %v3842 = vshrl.u32 %v3811, 16
        %v3843 = vmul.u32 %v3839, %v3841
        %v3844 = vmul.u32 %v3839, %v3842
        %v3845 = vmul.u32 %v3840, %v3841
        %v3846 = vmul.u32 %v3840, %v3842
        %v3847 = vshll.u32 %v3844, 16
        %v3848 = vshrl.u32 %v3844, 16
        %v3849 = vshll.u32 %v3845, 16
        %v3850 = vshrl.u32 %v3845, 16
        %vm3851 = vc.u32 %v3843, %v3847
        %v3852 = vsel %vm3851, 1, 0
        %v3853 = vadd.s32 %v3843, %v3847
        %v3854 = vadd.s32 %v3846, %v3852
        %vm3855 = vc.u32 %v3853, %v3849
        %v3856 = vsel %vm3855, 1, 0
        %v3857 = vadd.s32 %v3853, %v3849
        %v3858 = vadd.s32 %v3854, %v3856
        %v3859 = vadd.s32 %v3858, %v3848
        %v3860 = vadd.s32 %v3859, %v3850
        %v3861 = vmul.u32 %v3816, %v3807
        %v3862 = vadd.s32 %v3838, %v3857
        %vm3863 = vc.u32 %v3838, %v3857
        %v3864 = vadd.s32 %v3860, 1
        %v3865 = vsel %vm3863, %v3864, %v3860
        %v3866 = vadd.s32 %v3861, %v3865
        %v3867 = vadd.s32 %v3866, 536870912
        %v3868 = vshrl.u32 %v3867, 30
        %v3869 = vshll.u32 %v3868, 30
        %v3870 = vsub.s32 %v3866, %v3869
        %vm3871 = vcmp.lt.s32.totalorder %v3870, 0
        %v3872 = vsub.s32 0, %v3870
        %v3873 = vsel %vm3871, %v3872, %v3870
        %v3874 = vclz %v3873
        %v3875 = vsub.s32 %v3874, 2
        %vm3876 = vcmp.gt.s32.totalorder 0, %v3875
        %v3877 = vsel %vm3876, 0, %v3875
        %v3878 = vsub.s32 32, %v3877
        %v3879 = vshll.u32 %v3870, %v3877
        %v3880 = vshrl.u32 %v3862, %v3878
        %v3881 = vor.u32 %v3879, %v3880
        %v3882 = vsub.s32 4294967266, %v3877
        %v3883 = vadd.s32 %v3882, 127
        %v3884 = vshll.u32 %v3883, 23
        %v3885 = vor.u32 4788187, %v3884
        %v3886 = vand.u32 2147483647, %v3885
        %v3888 = vcvt.s32.f32 %v3881
        %v3889 = vmul.f32 %v3888, %v3886
        %v3890 = vxor.u32 %v3889, 2147483648
        %v3891 = vsel %vm3770, %v3890, %v3889
        %v3892 = vsub.s32 4, %v3868
        %v3893 = vsel %vm3770, %v3892, %v3868
        %v3894 = vsel %vm3769, %v162, %v3891
        %v3895 = vsel %vm3769, 0, %v3893
        %v3896 = vmul.f32 %v3894, %v3894
        %v3897 = vmul.f32 %v3896, -0.001358992
        %v3898 = vadd.f32 %v3897, 0.041655596
        %v3899 = vmul.f32 %v3896, %v3898
        %v3900 = vadd.f32 %v3899, -0.4999988
        %v3901 = vmul.f32 %v3896, %v3900
        %v3902 = vadd.f32 1.0, %v3901
        %v3903 = vmul.f32 %v3894, %v3894
        %v3904 = vmul.f32 %v3903, -0.00019511016
        %v3905 = vadd.f32 %v3904, 0.008332121
        %v3906 = vmul.f32 %v3903, %v3905
        %v3907 = vadd.f32 %v3906, -0.16666654
        %v3908 = vmul.f32 %v3903, %v3907
        %v3909 = vadd.f32 %v3908, 1.0
        %v3910 = vmul.f32 %v3909, %v3894
        %vm3911 = vweird.f32 %v162
        %v3912 = vadd.s32 %v3895, 3
        %v3913 = vand.u32 %v3912, 3
        %vm3914 = vcmp.lt.s32.totalorder %v3913, 2
        %vm3915 = vcmp.eq.s32.totalorder %v3913, 0
        %v3916 = vxor.u32 %v3910, 2147483648
        %v3917 = vsel %vm3915, %v3902, %v3916
        %vm3918 = vcmp.eq.s32.totalorder %v3913, 2
        %v3919 = vxor.u32 %v3902, 2147483648
        %v3920 = vsel %vm3918, %v3919, %v3910
        %v3921 = vsel %vm3914, %v3917, %v3920
        %v3922 = vsel %vm3911, nan, %v3921
        %v3923 = vand.u32 2147483647, %v163
        %vm3924 = vcmp.le.f32.partialorder %v3923, 0.7853982
        %vm3925 = vcmp.lt.s32.totalorder %v163, 0
        %v3926 = vand.u32 %v163, 2139095040
        %v3927 = vshrl.u32 %v3926, 23
        %v3928 = vsub.s32 %v3927, 127
        %v3929 = vand.u32 2147483647, %v163
        %v3930 = vand.u32 %v3929, 8388607
        %v3931 = vor.u32 %v3930, 8388608
        %v3932 = vsub.s32 0, %v3931
        %v3933 = vadd.s32 %v3928, 1
        %vm3934 = vcmp.gt.s32.totalorder %v3933, 0
        %v3935 = vsel %vm3934, %v3933, 0
        %v3936 = vshrl.u32 %v3935, 5
        %v3937 = vand.u32 %v3935, 31
        %v3938 = vsub.s32 32, %v3937
        %v3939 = vshrl.u32 683565275, %v3938
        %v3940 = vshll.u32 683565275, %v3937
        %v3941 = vshrl.u32 2475754826, %v3938
        %v3942 = vor.u32 %v3940, %v3941
        %v3943 = vshll.u32 2475754826, %v3937
        %v3944 = vshrl.u32 2131351028, %v3938
        %v3945 = vor.u32 %v3943, %v3944
        %v3946 = vshll.u32 2131351028, %v3937
        %v3947 = vshrl.u32 2102212464, %v3938
        %v3948 = vor.u32 %v3946, %v3947
        %v3949 = vshll.u32 2102212464, %v3937
        %v3950 = vshrl.u32 920167782, %v3938
        %v3951 = vor.u32 %v3949, %v3950
        %v3952 = vshll.u32 920167782, %v3937
        %v3953 = vshrl.u32 1326507024, %v3938
        %v3954 = vor.u32 %v3952, %v3953
        %vm3955 = vcmp.lt.s32.totalorder %v3936, 1
        %vm3956 = vcmp.lt.s32.totalorder %v3936, 2
        %vm3957 = vcmp.lt.s32.totalorder %v3936, 3
        %vm3958 = vcmp.lt.s32.totalorder %v3936, 4
        %v3959 = vsel %vm3955, %v3939, %v3942
        %v3960 = vsel %vm3958, %v3948, 2102212464
        %v3961 = vsel %vm3957, %v3945, %v3960
        %v3962 = vsel %vm3956, %v3959, %v3961
        %v3963 = vsel %vm3955, %v3942, %v3945
        %v3964 = vsel %vm3958, %v3951, 920167782
        %v3965 = vsel %vm3957, %v3948, %v3964
        %v3966 = vsel %vm3956, %v3963, %v3965
        %v3967 = vsel %vm3955, %v3945, %v3948
        %v3968 = vsel %vm3958, %v3954, 1326507024
        %v3969 = vsel %vm3957, %v3951, %v3968
        %v3970 = vsel %vm3956, %v3967, %v3969
        %v3971 = vshll.u32 %v3931, 8
        %v3972 = vand.u32 %v3971, 65535
        %v3973 = vshrl.u32 %v3971, 16
        %v3974 = vand.u32 %v3970, 65535
        %v3975 = vshrl.u32 %v3970, 16
        %v3976 = vmul.u32 %v3972, %v3974
        %v3977 = vmul.u32 %v3972, %v3975
        %v3978 = vmul.u32 %v3973, %v3974
        %v3979 = vmul.u32 %v3973, %v3975
        %v3980 = vshll.u32 %v3977, 16
        %v3981 = vshrl.u32 %v3977, 16
        %v3982 = vshll.u32 %v3978, 16
        %v3983 = vshrl.u32 %v3978, 16
        %vm3984 = vc.u32 %v3976, %v3980
        %v3985 = vsel %vm3984, 1, 0
        %v3986 = vadd.s32 %v3976, %v3980
        %v3987 = vadd.s32 %v3979, %v3985
        %vm3988 = vc.u32 %v3986, %v3982
        %v3989 = vsel %vm3988, 1, 0
        %v3990 = vadd.s32 %v3986, %v3982
        %v3991 = vadd.s32 %v3987, %v3989
        %v3992 = vadd.s32 %v3991, %v3981
        %v3993 = vadd.s32 %v3992, %v3983
        %v3994 = vand.u32 %v3971, 65535
        %v3995 = vshrl.u32 %v3971, 16
        %v3996 = vand.u32 %v3966, 65535
        %v3997 = vshrl.u32 %v3966, 16
        %v3998 = vmul.u32 %v3994, %v3996
        %v3999 = vmul.u32 %v3994, %v3997
        %v4000 = vmul.u32 %v3995, %v3996
        %v4001 = vmul.u32 %v3995, %v3997
        %v4002 = vshll.u32 %v3999, 16
        %v4003 = vshrl.u32 %v3999, 16
        %v4004 = vshll.u32 %v4000, 16
        %v4005 = vshrl.u32 %v4000, 16
        %vm4006 = vc.u32 %v3998, %v4002
        %v4007 = vsel %vm4006, 1, 0
        %v4008 = vadd.s32 %v3998, %v4002
        %v4009 = vadd.s32 %v4001, %v4007
        %vm4010 = vc.u32 %v4008, %v4004
        %v4011 = vsel %vm4010, 1, 0
        %v4012 = vadd.s32 %v4008, %v4004
        %v4013 = vadd.s32 %v4009, %v4011
        %v4014 = vadd.s32 %v4013, %v4003
        %v4015 = vadd.s32 %v4014, %v4005
        %v4016 = vmul.u32 %v3971, %v3962
        %v4017 = vadd.s32 %v3993, %v4012
        %vm4018 = vc.u32 %v3993, %v4012
        %v4019 = vadd.s32 %v4015, 1
        %v4020 = vsel %vm4018, %v4019, %v4015
        %v4021 = vadd.s32 %v4016, %v4020
        %v4022 = vadd.s32 %v4021, 536870912
        %v4023 = vshrl.u32 %v4022, 30
        %v4024 = vshll.u32 %v4023, 30
        %v4025 = vsub.s32 %v4021, %v4024
        %vm4026 = vcmp.lt.s32.totalorder %v4025, 0
        %v4027 = vsub.s32 0, %v4025
        %v4028 = vsel %vm4026, %v4027, %v4025
        %v4029 = vclz %v4028
        %v4030 = vsub.s32 %v4029, 2
        %vm4031 = vcmp.gt.s32.totalorder 0, %v4030
        %v4032 = vsel %vm4031, 0, %v4030
        %v4033 = vsub.s32 32, %v4032
        %v4034 = vshll.u32 %v4025, %v4032
        %v4035 = vshrl.u32 %v4017, %v4033
        %v4036 = vor.u32 %v4034, %v4035
        %v4037 = vsub.s32 4294967266, %v4032
        %v4038 = vadd.s32 %v4037, 127
        %v4039 = vshll.u32 %v4038, 23
        %v4040 = vor.u32 4788187, %v4039
        %v4041 = vand.u32 2147483647, %v4040
        %v4043 = vcvt.s32.f32 %v4036
        %v4044 = vmul.f32 %v4043, %v4041
        %v4045 = vxor.u32 %v4044, 2147483648
        %v4046 = vsel %vm3925, %v4045, %v4044
        %v4047 = vsub.s32 4, %v4023
        %v4048 = vsel %vm3925, %v4047, %v4023
        %v4049 = vsel %vm3924, %v163, %v4046
        %v4050 = vsel %vm3924, 0, %v4048
        %v4051 = vmul.f32 %v4049, %v4049
        %v4052 = vmul.f32 %v4051, -0.001358992
        %v4053 = vadd.f32 %v4052, 0.041655596
        %v4054 = vmul.f32 %v4051, %v4053
        %v4055 = vadd.f32 %v4054, -0.4999988
        %v4056 = vmul.f32 %v4051, %v4055
        %v4057 = vadd.f32 1.0, %v4056
        %v4058 = vmul.f32 %v4049, %v4049
        %v4059 = vmul.f32 %v4058, -0.00019511016
        %v4060 = vadd.f32 %v4059, 0.008332121
        %v4061 = vmul.f32 %v4058, %v4060
        %v4062 = vadd.f32 %v4061, -0.16666654
        %v4063 = vmul.f32 %v4058, %v4062
        %v4064 = vadd.f32 %v4063, 1.0
        %v4065 = vmul.f32 %v4064, %v4049
        %vm4066 = vweird.f32 %v163
        %v4067 = vadd.s32 %v4050, 3
        %v4068 = vand.u32 %v4067, 3
        %vm4069 = vcmp.lt.s32.totalorder %v4068, 2
        %vm4070 = vcmp.eq.s32.totalorder %v4068, 0
        %v4071 = vxor.u32 %v4065, 2147483648
        %v4072 = vsel %vm4070, %v4057, %v4071
        %vm4073 = vcmp.eq.s32.totalorder %v4068, 2
        %v4074 = vxor.u32 %v4057, 2147483648
        %v4075 = vsel %vm4073, %v4074, %v4065
        %v4076 = vsel %vm4069, %v4072, %v4075
        %v4077 = vsel %vm4066, nan, %v4076
        %v4078 = vand.u32 2147483647, %v164
        %vm4079 = vcmp.le.f32.partialorder %v4078, 0.7853982
        %vm4080 = vcmp.lt.s32.totalorder %v164, 0
        %v4081 = vand.u32 %v164, 2139095040
        %v4082 = vshrl.u32 %v4081, 23
        %v4083 = vsub.s32 %v4082, 127
        %v4084 = vand.u32 2147483647, %v164
        %v4085 = vand.u32 %v4084, 8388607
        %v4086 = vor.u32 %v4085, 8388608
        %v4087 = vsub.s32 0, %v4086
        %v4088 = vadd.s32 %v4083, 1
        %vm4089 = vcmp.gt.s32.totalorder %v4088, 0
        %v4090 = vsel %vm4089, %v4088, 0
        %v4091 = vshrl.u32 %v4090, 5
        %v4092 = vand.u32 %v4090, 31
        %v4093 = vsub.s32 32, %v4092
        %v4094 = vshrl.u32 683565275, %v4093
        %v4095 = vshll.u32 683565275, %v4092
        %v4096 = vshrl.u32 2475754826, %v4093
        %v4097 = vor.u32 %v4095, %v4096
        %v4098 = vshll.u32 2475754826, %v4092
        %v4099 = vshrl.u32 2131351028, %v4093
        %v4100 = vor.u32 %v4098, %v4099
        %v4101 = vshll.u32 2131351028, %v4092
        %v4102 = vshrl.u32 2102212464, %v4093
        %v4103 = vor.u32 %v4101, %v4102
        %v4104 = vshll.u32 2102212464, %v4092
        %v4105 = vshrl.u32 920167782, %v4093
        %v4106 = vor.u32 %v4104, %v4105
        %v4107 = vshll.u32 920167782, %v4092
        %v4108 = vshrl.u32 1326507024, %v4093
        %v4109 = vor.u32 %v4107, %v4108
        %vm4110 = vcmp.lt.s32.totalorder %v4091, 1
        %vm4111 = vcmp.lt.s32.totalorder %v4091, 2
        %vm4112 = vcmp.lt.s32.totalorder %v4091, 3
        %vm4113 = vcmp.lt.s32.totalorder %v4091, 4
        %v4114 = vsel %vm4110, %v4094, %v4097
        %v4115 = vsel %vm4113, %v4103, 2102212464
        %v4116 = vsel %vm4112, %v4100, %v4115
        %v4117 = vsel %vm4111, %v4114, %v4116
        %v4118 = vsel %vm4110, %v4097, %v4100
        %v4119 = vsel %vm4113, %v4106, 920167782
        %v4120 = vsel %vm4112, %v4103, %v4119
        %v4121 = vsel %vm4111, %v4118, %v4120
        %v4122 = vsel %vm4110, %v4100, %v4103
        %v4123 = vsel %vm4113, %v4109, 1326507024
        %v4124 = vsel %vm4112, %v4106, %v4123
        %v4125 = vsel %vm4111, %v4122, %v4124
        %v4126 = vshll.u32 %v4086, 8
        %v4127 = vand.u32 %v4126, 65535
        %v4128 = vshrl.u32 %v4126, 16
        %v4129 = vand.u32 %v4125, 65535
        %v4130 = vshrl.u32 %v4125, 16
        %v4131 = vmul.u32 %v4127, %v4129
        %v4132 = vmul.u32 %v4127, %v4130
        %v4133 = vmul.u32 %v4128, %v4129
        %v4134 = vmul.u32 %v4128, %v4130
        %v4135 = vshll.u32 %v4132, 16
        %v4136 = vshrl.u32 %v4132, 16
        %v4137 = vshll.u32 %v4133, 16
        %v4138 = vshrl.u32 %v4133, 16
        %vm4139 = vc.u32 %v4131, %v4135
        %v4140 = vsel %vm4139, 1, 0
        %v4141 = vadd.s32 %v4131, %v4135
        %v4142 = vadd.s32 %v4134, %v4140
        %vm4143 = vc.u32 %v4141, %v4137
        %v4144 = vsel %vm4143, 1, 0
        %v4145 = vadd.s32 %v4141, %v4137
        %v4146 = vadd.s32 %v4142, %v4144
        %v4147 = vadd.s32 %v4146, %v4136
        %v4148 = vadd.s32 %v4147, %v4138
        %v4149 = vand.u32 %v4126, 65535
        %v4150 = vshrl.u32 %v4126, 16
        %v4151 = vand.u32 %v4121, 65535
        %v4152 = vshrl.u32 %v4121, 16
        %v4153 = vmul.u32 %v4149, %v4151
        %v4154 = vmul.u32 %v4149, %v4152
        %v4155 = vmul.u32 %v4150, %v4151
        %v4156 = vmul.u32 %v4150, %v4152
        %v4157 = vshll.u32 %v4154, 16
        %v4158 = vshrl.u32 %v4154, 16
        %v4159 = vshll.u32 %v4155, 16
        %v4160 = vshrl.u32 %v4155, 16
        %vm4161 = vc.u32 %v4153, %v4157
        %v4162 = vsel %vm4161, 1, 0
        %v4163 = vadd.s32 %v4153, %v4157
        %v4164 = vadd.s32 %v4156, %v4162
        %vm4165 = vc.u32 %v4163, %v4159
        %v4166 = vsel %vm4165, 1, 0
        %v4167 = vadd.s32 %v4163, %v4159
        %v4168 = vadd.s32 %v4164, %v4166
        %v4169 = vadd.s32 %v4168, %v4158
        %v4170 = vadd.s32 %v4169, %v4160
        %v4171 = vmul.u32 %v4126, %v4117
        %v4172 = vadd.s32 %v4148, %v4167
        %vm4173 = vc.u32 %v4148, %v4167
        %v4174 = vadd.s32 %v4170, 1
        %v4175 = vsel %vm4173, %v4174, %v4170
        %v4176 = vadd.s32 %v4171, %v4175
        %v4177 = vadd.s32 %v4176, 536870912
        %v4178 = vshrl.u32 %v4177, 30
        %v4179 = vshll.u32 %v4178, 30
        %v4180 = vsub.s32 %v4176, %v4179
        %vm4181 = vcmp.lt.s32.totalorder %v4180, 0
        %v4182 = vsub.s32 0, %v4180
        %v4183 = vsel %vm4181, %v4182, %v4180
        %v4184 = vclz %v4183
        %v4185 = vsub.s32 %v4184, 2
        %vm4186 = vcmp.gt.s32.totalorder 0, %v4185
        %v4187 = vsel %vm4186, 0, %v4185
        %v4188 = vsub.s32 32, %v4187
        %v4189 = vshll.u32 %v4180, %v4187
        %v4190 = vshrl.u32 %v4172, %v4188
        %v4191 = vor.u32 %v4189, %v4190
        %v4192 = vsub.s32 4294967266, %v4187
        %v4193 = vadd.s32 %v4192, 127
        %v4194 = vshll.u32 %v4193, 23
        %v4195 = vor.u32 4788187, %v4194
        %v4196 = vand.u32 2147483647, %v4195
        %v4198 = vcvt.s32.f32 %v4191
        %v4199 = vmul.f32 %v4198, %v4196
        %v4200 = vxor.u32 %v4199, 2147483648
        %v4201 = vsel %vm4080, %v4200, %v4199
        %v4202 = vsub.s32 4, %v4178
        %v4203 = vsel %vm4080, %v4202, %v4178
        %v4204 = vsel %vm4079, %v164, %v4201
        %v4205 = vsel %vm4079, 0, %v4203
        %v4206 = vmul.f32 %v4204, %v4204
        %v4207 = vmul.f32 %v4206, -0.001358992
        %v4208 = vadd.f32 %v4207, 0.041655596
        %v4209 = vmul.f32 %v4206, %v4208
        %v4210 = vadd.f32 %v4209, -0.4999988
        %v4211 = vmul.f32 %v4206, %v4210
        %v4212 = vadd.f32 1.0, %v4211
        %v4213 = vmul.f32 %v4204, %v4204
        %v4214 = vmul.f32 %v4213, -0.00019511016
        %v4215 = vadd.f32 %v4214, 0.008332121
        %v4216 = vmul.f32 %v4213, %v4215
        %v4217 = vadd.f32 %v4216, -0.16666654
        %v4218 = vmul.f32 %v4213, %v4217
        %v4219 = vadd.f32 %v4218, 1.0
        %v4220 = vmul.f32 %v4219, %v4204
        %vm4221 = vweird.f32 %v164
        %v4222 = vadd.s32 %v4205, 3
        %v4223 = vand.u32 %v4222, 3
        %vm4224 = vcmp.lt.s32.totalorder %v4223, 2
        %vm4225 = vcmp.eq.s32.totalorder %v4223, 0
        %v4226 = vxor.u32 %v4220, 2147483648
        %v4227 = vsel %vm4225, %v4212, %v4226
        %vm4228 = vcmp.eq.s32.totalorder %v4223, 2
        %v4229 = vxor.u32 %v4212, 2147483648
        %v4230 = vsel %vm4228, %v4229, %v4220
        %v4231 = vsel %vm4224, %v4227, %v4230
        %v4232 = vsel %vm4221, nan, %v4231
        %v4233 = vand.u32 2147483647, %v165
        %vm4234 = vcmp.le.f32.partialorder %v4233, 0.7853982
        %vm4235 = vcmp.lt.s32.totalorder %v165, 0
        %v4236 = vand.u32 %v165, 2139095040
        %v4237 = vshrl.u32 %v4236, 23
        %v4238 = vsub.s32 %v4237, 127
        %v4239 = vand.u32 2147483647, %v165
        %v4240 = vand.u32 %v4239, 8388607
        %v4241 = vor.u32 %v4240, 8388608
        %v4242 = vsub.s32 0, %v4241
        %v4243 = vadd.s32 %v4238, 1
        %vm4244 = vcmp.gt.s32.totalorder %v4243, 0
        %v4245 = vsel %vm4244, %v4243, 0
        %v4246 = vshrl.u32 %v4245, 5
        %v4247 = vand.u32 %v4245, 31
        %v4248 = vsub.s32 32, %v4247
        %v4249 = vshrl.u32 683565275, %v4248
        %v4250 = vshll.u32 683565275, %v4247
        %v4251 = vshrl.u32 2475754826, %v4248
        %v4252 = vor.u32 %v4250, %v4251
        %v4253 = vshll.u32 2475754826, %v4247
        %v4254 = vshrl.u32 2131351028, %v4248
        %v4255 = vor.u32 %v4253, %v4254
        %v4256 = vshll.u32 2131351028, %v4247
        %v4257 = vshrl.u32 2102212464, %v4248
        %v4258 = vor.u32 %v4256, %v4257
        %v4259 = vshll.u32 2102212464, %v4247
        %v4260 = vshrl.u32 920167782, %v4248
        %v4261 = vor.u32 %v4259, %v4260
        %v4262 = vshll.u32 920167782, %v4247
        %v4263 = vshrl.u32 1326507024, %v4248
        %v4264 = vor.u32 %v4262, %v4263
        %vm4265 = vcmp.lt.s32.totalorder %v4246, 1
        %vm4266 = vcmp.lt.s32.totalorder %v4246, 2
        %vm4267 = vcmp.lt.s32.totalorder %v4246, 3
        %vm4268 = vcmp.lt.s32.totalorder %v4246, 4
        %v4269 = vsel %vm4265, %v4249, %v4252
        %v4270 = vsel %vm4268, %v4258, 2102212464
        %v4271 = vsel %vm4267, %v4255, %v4270
        %v4272 = vsel %vm4266, %v4269, %v4271
        %v4273 = vsel %vm4265, %v4252, %v4255
        %v4274 = vsel %vm4268, %v4261, 920167782
        %v4275 = vsel %vm4267, %v4258, %v4274
        %v4276 = vsel %vm4266, %v4273, %v4275
        %v4277 = vsel %vm4265, %v4255, %v4258
        %v4278 = vsel %vm4268, %v4264, 1326507024
        %v4279 = vsel %vm4267, %v4261, %v4278
        %v4280 = vsel %vm4266, %v4277, %v4279
        %v4281 = vshll.u32 %v4241, 8
        %v4282 = vand.u32 %v4281, 65535
        %v4283 = vshrl.u32 %v4281, 16
        %v4284 = vand.u32 %v4280, 65535
        %v4285 = vshrl.u32 %v4280, 16
        %v4286 = vmul.u32 %v4282, %v4284
        %v4287 = vmul.u32 %v4282, %v4285
        %v4288 = vmul.u32 %v4283, %v4284
        %v4289 = vmul.u32 %v4283, %v4285
        %v4290 = vshll.u32 %v4287, 16
        %v4291 = vshrl.u32 %v4287, 16
        %v4292 = vshll.u32 %v4288, 16
        %v4293 = vshrl.u32 %v4288, 16
        %vm4294 = vc.u32 %v4286, %v4290
        %v4295 = vsel %vm4294, 1, 0
        %v4296 = vadd.s32 %v4286, %v4290
        %v4297 = vadd.s32 %v4289, %v4295
        %vm4298 = vc.u32 %v4296, %v4292
        %v4299 = vsel %vm4298, 1, 0
        %v4300 = vadd.s32 %v4296, %v4292
        %v4301 = vadd.s32 %v4297, %v4299
        %v4302 = vadd.s32 %v4301, %v4291
        %v4303 = vadd.s32 %v4302, %v4293
        %v4304 = vand.u32 %v4281, 65535
        %v4305 = vshrl.u32 %v4281, 16
        %v4306 = vand.u32 %v4276, 65535
        %v4307 = vshrl.u32 %v4276, 16
        %v4308 = vmul.u32 %v4304, %v4306
        %v4309 = vmul.u32 %v4304, %v4307
        %v4310 = vmul.u32 %v4305, %v4306
        %v4311 = vmul.u32 %v4305, %v4307
        %v4312 = vshll.u32 %v4309, 16
        %v4313 = vshrl.u32 %v4309, 16
        %v4314 = vshll.u32 %v4310, 16
        %v4315 = vshrl.u32 %v4310, 16
        %vm4316 = vc.u32 %v4308, %v4312
        %v4317 = vsel %vm4316, 1, 0
        %v4318 = vadd.s32 %v4308, %v4312
        %v4319 = vadd.s32 %v4311, %v4317
        %vm4320 = vc.u32 %v4318, %v4314
        %v4321 = vsel %vm4320, 1, 0
        %v4322 = vadd.s32 %v4318, %v4314
        %v4323 = vadd.s32 %v4319, %v4321
        %v4324 = vadd.s32 %v4323, %v4313
        %v4325 = vadd.s32 %v4324, %v4315
        %v4326 = vmul.u32 %v4281, %v4272
        %v4327 = vadd.s32 %v4303, %v4322
        %vm4328 = vc.u32 %v4303, %v4322
        %v4329 = vadd.s32 %v4325, 1
        %v4330 = vsel %vm4328, %v4329, %v4325
        %v4331 = vadd.s32 %v4326, %v4330
        %v4332 = vadd.s32 %v4331, 536870912
        %v4333 = vshrl.u32 %v4332, 30
        %v4334 = vshll.u32 %v4333, 30
        %v4335 = vsub.s32 %v4331, %v4334
        %vm4336 = vcmp.lt.s32.totalorder %v4335, 0
        %v4337 = vsub.s32 0, %v4335
        %v4338 = vsel %vm4336, %v4337, %v4335
        %v4339 = vclz %v4338
        %v4340 = vsub.s32 %v4339, 2
        %vm4341 = vcmp.gt.s32.totalorder 0, %v4340
        %v4342 = vsel %vm4341, 0, %v4340
        %v4343 = vsub.s32 32, %v4342
        %v4344 = vshll.u32 %v4335, %v4342
        %v4345 = vshrl.u32 %v4327, %v4343
        %v4346 = vor.u32 %v4344, %v4345
        %v4347 = vsub.s32 4294967266, %v4342
        %v4348 = vadd.s32 %v4347, 127
        %v4349 = vshll.u32 %v4348, 23
        %v4350 = vor.u32 4788187, %v4349
        %v4351 = vand.u32 2147483647, %v4350
        %v4353 = vcvt.s32.f32 %v4346
        %v4354 = vmul.f32 %v4353, %v4351
        %v4355 = vxor.u32 %v4354, 2147483648
        %v4356 = vsel %vm4235, %v4355, %v4354
        %v4357 = vsub.s32 4, %v4333
        %v4358 = vsel %vm4235, %v4357, %v4333
        %v4359 = vsel %vm4234, %v165, %v4356
        %v4360 = vsel %vm4234, 0, %v4358
        %v4361 = vmul.f32 %v4359, %v4359
        %v4362 = vmul.f32 %v4361, -0.001358992
        %v4363 = vadd.f32 %v4362, 0.041655596
        %v4364 = vmul.f32 %v4361, %v4363
        %v4365 = vadd.f32 %v4364, -0.4999988
        %v4366 = vmul.f32 %v4361, %v4365
        %v4367 = vadd.f32 1.0, %v4366
        %v4368 = vmul.f32 %v4359, %v4359
        %v4369 = vmul.f32 %v4368, -0.00019511016
        %v4370 = vadd.f32 %v4369, 0.008332121
        %v4371 = vmul.f32 %v4368, %v4370
        %v4372 = vadd.f32 %v4371, -0.16666654
        %v4373 = vmul.f32 %v4368, %v4372
        %v4374 = vadd.f32 %v4373, 1.0
        %v4375 = vmul.f32 %v4374, %v4359
        %vm4376 = vweird.f32 %v165
        %v4377 = vadd.s32 %v4360, 3
        %v4378 = vand.u32 %v4377, 3
        %vm4379 = vcmp.lt.s32.totalorder %v4378, 2
        %vm4380 = vcmp.eq.s32.totalorder %v4378, 0
        %v4381 = vxor.u32 %v4375, 2147483648
        %v4382 = vsel %vm4380, %v4367, %v4381
        %vm4383 = vcmp.eq.s32.totalorder %v4378, 2
        %v4384 = vxor.u32 %v4367, 2147483648
        %v4385 = vsel %vm4383, %v4384, %v4375
        %v4386 = vsel %vm4379, %v4382, %v4385
        %v4387 = vsel %vm4376, nan, %v4386
        %v4388 = vand.u32 2147483647, %v166
        %vm4389 = vcmp.le.f32.partialorder %v4388, 0.7853982
        %vm4390 = vcmp.lt.s32.totalorder %v166, 0
        %v4391 = vand.u32 %v166, 2139095040
        %v4392 = vshrl.u32 %v4391, 23
        %v4393 = vsub.s32 %v4392, 127
        %v4394 = vand.u32 2147483647, %v166
        %v4395 = vand.u32 %v4394, 8388607
        %v4396 = vor.u32 %v4395, 8388608
        %v4397 = vsub.s32 0, %v4396
        %v4398 = vadd.s32 %v4393, 1
        %vm4399 = vcmp.gt.s32.totalorder %v4398, 0
        %v4400 = vsel %vm4399, %v4398, 0
        %v4401 = vshrl.u32 %v4400, 5
        %v4402 = vand.u32 %v4400, 31
        %v4403 = vsub.s32 32, %v4402
        %v4404 = vshrl.u32 683565275, %v4403
        %v4405 = vshll.u32 683565275, %v4402
        %v4406 = vshrl.u32 2475754826, %v4403
        %v4407 = vor.u32 %v4405, %v4406
        %v4408 = vshll.u32 2475754826, %v4402
        %v4409 = vshrl.u32 2131351028, %v4403
        %v4410 = vor.u32 %v4408, %v4409
        %v4411 = vshll.u32 2131351028, %v4402
        %v4412 = vshrl.u32 2102212464, %v4403
        %v4413 = vor.u32 %v4411, %v4412
        %v4414 = vshll.u32 2102212464, %v4402
        %v4415 = vshrl.u32 920167782, %v4403
        %v4416 = vor.u32 %v4414, %v4415
        %v4417 = vshll.u32 920167782, %v4402
        %v4418 = vshrl.u32 1326507024, %v4403
        %v4419 = vor.u32 %v4417, %v4418
        %vm4420 = vcmp.lt.s32.totalorder %v4401, 1
        %vm4421 = vcmp.lt.s32.totalorder %v4401, 2
        %vm4422 = vcmp.lt.s32.totalorder %v4401, 3
        %vm4423 = vcmp.lt.s32.totalorder %v4401, 4
        %v4424 = vsel %vm4420, %v4404, %v4407
        %v4425 = vsel %vm4423, %v4413, 2102212464
        %v4426 = vsel %vm4422, %v4410, %v4425
        %v4427 = vsel %vm4421, %v4424, %v4426
        %v4428 = vsel %vm4420, %v4407, %v4410
        %v4429 = vsel %vm4423, %v4416, 920167782
        %v4430 = vsel %vm4422, %v4413, %v4429
        %v4431 = vsel %vm4421, %v4428, %v4430
        %v4432 = vsel %vm4420, %v4410, %v4413
        %v4433 = vsel %vm4423, %v4419, 1326507024
        %v4434 = vsel %vm4422, %v4416, %v4433
        %v4435 = vsel %vm4421, %v4432, %v4434
        %v4436 = vshll.u32 %v4396, 8
        %v4437 = vand.u32 %v4436, 65535
        %v4438 = vshrl.u32 %v4436, 16
        %v4439 = vand.u32 %v4435, 65535
        %v4440 = vshrl.u32 %v4435, 16
        %v4441 = vmul.u32 %v4437, %v4439
        %v4442 = vmul.u32 %v4437, %v4440
        %v4443 = vmul.u32 %v4438, %v4439
        %v4444 = vmul.u32 %v4438, %v4440
        %v4445 = vshll.u32 %v4442, 16
        %v4446 = vshrl.u32 %v4442, 16
        %v4447 = vshll.u32 %v4443, 16
        %v4448 = vshrl.u32 %v4443, 16
        %vm4449 = vc.u32 %v4441, %v4445
        %v4450 = vsel %vm4449, 1, 0
        %v4451 = vadd.s32 %v4441, %v4445
        %v4452 = vadd.s32 %v4444, %v4450
        %vm4453 = vc.u32 %v4451, %v4447
        %v4454 = vsel %vm4453, 1, 0
        %v4455 = vadd.s32 %v4451, %v4447
        %v4456 = vadd.s32 %v4452, %v4454
        %v4457 = vadd.s32 %v4456, %v4446
        %v4458 = vadd.s32 %v4457, %v4448
        %v4459 = vand.u32 %v4436, 65535
        %v4460 = vshrl.u32 %v4436, 16
        %v4461 = vand.u32 %v4431, 65535
        %v4462 = vshrl.u32 %v4431, 16
        %v4463 = vmul.u32 %v4459, %v4461
        %v4464 = vmul.u32 %v4459, %v4462
        %v4465 = vmul.u32 %v4460, %v4461
        %v4466 = vmul.u32 %v4460, %v4462
        %v4467 = vshll.u32 %v4464, 16
        %v4468 = vshrl.u32 %v4464, 16
        %v4469 = vshll.u32 %v4465, 16
        %v4470 = vshrl.u32 %v4465, 16
        %vm4471 = vc.u32 %v4463, %v4467
        %v4472 = vsel %vm4471, 1, 0
        %v4473 = vadd.s32 %v4463, %v4467
        %v4474 = vadd.s32 %v4466, %v4472
        %vm4475 = vc.u32 %v4473, %v4469
        %v4476 = vsel %vm4475, 1, 0
        %v4477 = vadd.s32 %v4473, %v4469
        %v4478 = vadd.s32 %v4474, %v4476
        %v4479 = vadd.s32 %v4478, %v4468
        %v4480 = vadd.s32 %v4479, %v4470
        %v4481 = vmul.u32 %v4436, %v4427
        %v4482 = vadd.s32 %v4458, %v4477
        %vm4483 = vc.u32 %v4458, %v4477
        %v4484 = vadd.s32 %v4480, 1
        %v4485 = vsel %vm4483, %v4484, %v4480
        %v4486 = vadd.s32 %v4481, %v4485
        %v4487 = vadd.s32 %v4486, 536870912
        %v4488 = vshrl.u32 %v4487, 30
        %v4489 = vshll.u32 %v4488, 30
        %v4490 = vsub.s32 %v4486, %v4489
        %vm4491 = vcmp.lt.s32.totalorder %v4490, 0
        %v4492 = vsub.s32 0, %v4490
        %v4493 = vsel %vm4491, %v4492, %v4490
        %v4494 = vclz %v4493
        %v4495 = vsub.s32 %v4494, 2
        %vm4496 = vcmp.gt.s32.totalorder 0, %v4495
        %v4497 = vsel %vm4496, 0, %v4495
        %v4498 = vsub.s32 32, %v4497
        %v4499 = vshll.u32 %v4490, %v4497
        %v4500 = vshrl.u32 %v4482, %v4498
        %v4501 = vor.u32 %v4499, %v4500
        %v4502 = vsub.s32 4294967266, %v4497
        %v4503 = vadd.s32 %v4502, 127
        %v4504 = vshll.u32 %v4503, 23
        %v4505 = vor.u32 4788187, %v4504
        %v4506 = vand.u32 2147483647, %v4505
        %v4508 = vcvt.s32.f32 %v4501
        %v4509 = vmul.f32 %v4508, %v4506
        %v4510 = vxor.u32 %v4509, 2147483648
        %v4511 = vsel %vm4390, %v4510, %v4509
        %v4512 = vsub.s32 4, %v4488
        %v4513 = vsel %vm4390, %v4512, %v4488
        %v4514 = vsel %vm4389, %v166, %v4511
        %v4515 = vsel %vm4389, 0, %v4513
        %v4516 = vmul.f32 %v4514, %v4514
        %v4517 = vmul.f32 %v4516, -0.001358992
        %v4518 = vadd.f32 %v4517, 0.041655596
        %v4519 = vmul.f32 %v4516, %v4518
        %v4520 = vadd.f32 %v4519, -0.4999988
        %v4521 = vmul.f32 %v4516, %v4520
        %v4522 = vadd.f32 1.0, %v4521
        %v4523 = vmul.f32 %v4514, %v4514
        %v4524 = vmul.f32 %v4523, -0.00019511016
        %v4525 = vadd.f32 %v4524, 0.008332121
        %v4526 = vmul.f32 %v4523, %v4525
        %v4527 = vadd.f32 %v4526, -0.16666654
        %v4528 = vmul.f32 %v4523, %v4527
        %v4529 = vadd.f32 %v4528, 1.0
        %v4530 = vmul.f32 %v4529, %v4514
        %vm4531 = vweird.f32 %v166
        %v4532 = vadd.s32 %v4515, 3
        %v4533 = vand.u32 %v4532, 3
        %vm4534 = vcmp.lt.s32.totalorder %v4533, 2
        %vm4535 = vcmp.eq.s32.totalorder %v4533, 0
        %v4536 = vxor.u32 %v4530, 2147483648
        %v4537 = vsel %vm4535, %v4522, %v4536
        %vm4538 = vcmp.eq.s32.totalorder %v4533, 2
        %v4539 = vxor.u32 %v4522, 2147483648
        %v4540 = vsel %vm4538, %v4539, %v4530
        %v4541 = vsel %vm4534, %v4537, %v4540
        %v4542 = vsel %vm4531, nan, %v4541
        %v4543 = vand.u32 2147483647, %v167
        %vm4544 = vcmp.le.f32.partialorder %v4543, 0.7853982
        %vm4545 = vcmp.lt.s32.totalorder %v167, 0
        %v4546 = vand.u32 %v167, 2139095040
        %v4547 = vshrl.u32 %v4546, 23
        %v4548 = vsub.s32 %v4547, 127
        %v4549 = vand.u32 2147483647, %v167
        %v4550 = vand.u32 %v4549, 8388607
        %v4551 = vor.u32 %v4550, 8388608
        %v4552 = vsub.s32 0, %v4551
        %v4553 = vadd.s32 %v4548, 1
        %vm4554 = vcmp.gt.s32.totalorder %v4553, 0
        %v4555 = vsel %vm4554, %v4553, 0
        %v4556 = vshrl.u32 %v4555, 5
        %v4557 = vand.u32 %v4555, 31
        %v4558 = vsub.s32 32, %v4557
        %v4559 = vshrl.u32 683565275, %v4558
        %v4560 = vshll.u32 683565275, %v4557
        %v4561 = vshrl.u32 2475754826, %v4558
        %v4562 = vor.u32 %v4560, %v4561
        %v4563 = vshll.u32 2475754826, %v4557
        %v4564 = vshrl.u32 2131351028, %v4558
        %v4565 = vor.u32 %v4563, %v4564
        %v4566 = vshll.u32 2131351028, %v4557
        %v4567 = vshrl.u32 2102212464, %v4558
        %v4568 = vor.u32 %v4566, %v4567
        %v4569 = vshll.u32 2102212464, %v4557
        %v4570 = vshrl.u32 920167782, %v4558
        %v4571 = vor.u32 %v4569, %v4570
        %v4572 = vshll.u32 920167782, %v4557
        %v4573 = vshrl.u32 1326507024, %v4558
        %v4574 = vor.u32 %v4572, %v4573
        %vm4575 = vcmp.lt.s32.totalorder %v4556, 1
        %vm4576 = vcmp.lt.s32.totalorder %v4556, 2
        %vm4577 = vcmp.lt.s32.totalorder %v4556, 3
        %vm4578 = vcmp.lt.s32.totalorder %v4556, 4
        %v4579 = vsel %vm4575, %v4559, %v4562
        %v4580 = vsel %vm4578, %v4568, 2102212464
        %v4581 = vsel %vm4577, %v4565, %v4580
        %v4582 = vsel %vm4576, %v4579, %v4581
        %v4583 = vsel %vm4575, %v4562, %v4565
        %v4584 = vsel %vm4578, %v4571, 920167782
        %v4585 = vsel %vm4577, %v4568, %v4584
        %v4586 = vsel %vm4576, %v4583, %v4585
        %v4587 = vsel %vm4575, %v4565, %v4568
        %v4588 = vsel %vm4578, %v4574, 1326507024
        %v4589 = vsel %vm4577, %v4571, %v4588
        %v4590 = vsel %vm4576, %v4587, %v4589
        %v4591 = vshll.u32 %v4551, 8
        %v4592 = vand.u32 %v4591, 65535
        %v4593 = vshrl.u32 %v4591, 16
        %v4594 = vand.u32 %v4590, 65535
        %v4595 = vshrl.u32 %v4590, 16
        %v4596 = vmul.u32 %v4592, %v4594
        %v4597 = vmul.u32 %v4592, %v4595
        %v4598 = vmul.u32 %v4593, %v4594
        %v4599 = vmul.u32 %v4593, %v4595
        %v4600 = vshll.u32 %v4597, 16
        %v4601 = vshrl.u32 %v4597, 16
        %v4602 = vshll.u32 %v4598, 16
        %v4603 = vshrl.u32 %v4598, 16
        %vm4604 = vc.u32 %v4596, %v4600
        %v4605 = vsel %vm4604, 1, 0
        %v4606 = vadd.s32 %v4596, %v4600
        %v4607 = vadd.s32 %v4599, %v4605
        %vm4608 = vc.u32 %v4606, %v4602
        %v4609 = vsel %vm4608, 1, 0
        %v4610 = vadd.s32 %v4606, %v4602
        %v4611 = vadd.s32 %v4607, %v4609
        %v4612 = vadd.s32 %v4611, %v4601
        %v4613 = vadd.s32 %v4612, %v4603
        %v4614 = vand.u32 %v4591, 65535
        %v4615 = vshrl.u32 %v4591, 16
        %v4616 = vand.u32 %v4586, 65535
        %v4617 = vshrl.u32 %v4586, 16
        %v4618 = vmul.u32 %v4614, %v4616
        %v4619 = vmul.u32 %v4614, %v4617
        %v4620 = vmul.u32 %v4615, %v4616
        %v4621 = vmul.u32 %v4615, %v4617
        %v4622 = vshll.u32 %v4619, 16
        %v4623 = vshrl.u32 %v4619, 16
        %v4624 = vshll.u32 %v4620, 16
        %v4625 = vshrl.u32 %v4620, 16
        %vm4626 = vc.u32 %v4618, %v4622
        %v4627 = vsel %vm4626, 1, 0
        %v4628 = vadd.s32 %v4618, %v4622
        %v4629 = vadd.s32 %v4621, %v4627
        %vm4630 = vc.u32 %v4628, %v4624
        %v4631 = vsel %vm4630, 1, 0
        %v4632 = vadd.s32 %v4628, %v4624
        %v4633 = vadd.s32 %v4629, %v4631
        %v4634 = vadd.s32 %v4633, %v4623
        %v4635 = vadd.s32 %v4634, %v4625
        %v4636 = vmul.u32 %v4591, %v4582
        %v4637 = vadd.s32 %v4613, %v4632
        %vm4638 = vc.u32 %v4613, %v4632
        %v4639 = vadd.s32 %v4635, 1
        %v4640 = vsel %vm4638, %v4639, %v4635
        %v4641 = vadd.s32 %v4636, %v4640
        %v4642 = vadd.s32 %v4641, 536870912
        %v4643 = vshrl.u32 %v4642, 30
        %v4644 = vshll.u32 %v4643, 30
        %v4645 = vsub.s32 %v4641, %v4644
        %vm4646 = vcmp.lt.s32.totalorder %v4645, 0
        %v4647 = vsub.s32 0, %v4645
        %v4648 = vsel %vm4646, %v4647, %v4645
        %v4649 = vclz %v4648
        %v4650 = vsub.s32 %v4649, 2
        %vm4651 = vcmp.gt.s32.totalorder 0, %v4650
        %v4652 = vsel %vm4651, 0, %v4650
        %v4653 = vsub.s32 32, %v4652
        %v4654 = vshll.u32 %v4645, %v4652
        %v4655 = vshrl.u32 %v4637, %v4653
        %v4656 = vor.u32 %v4654, %v4655
        %v4657 = vsub.s32 4294967266, %v4652
        %v4658 = vadd.s32 %v4657, 127
        %v4659 = vshll.u32 %v4658, 23
        %v4660 = vor.u32 4788187, %v4659
        %v4661 = vand.u32 2147483647, %v4660
        %v4663 = vcvt.s32.f32 %v4656
        %v4664 = vmul.f32 %v4663, %v4661
        %v4665 = vxor.u32 %v4664, 2147483648
        %v4666 = vsel %vm4545, %v4665, %v4664
        %v4667 = vsub.s32 4, %v4643
        %v4668 = vsel %vm4545, %v4667, %v4643
        %v4669 = vsel %vm4544, %v167, %v4666
        %v4670 = vsel %vm4544, 0, %v4668
        %v4671 = vmul.f32 %v4669, %v4669
        %v4672 = vmul.f32 %v4671, -0.001358992
        %v4673 = vadd.f32 %v4672, 0.041655596
        %v4674 = vmul.f32 %v4671, %v4673
        %v4675 = vadd.f32 %v4674, -0.4999988
        %v4676 = vmul.f32 %v4671, %v4675
        %v4677 = vadd.f32 1.0, %v4676
        %v4678 = vmul.f32 %v4669, %v4669
        %v4679 = vmul.f32 %v4678, -0.00019511016
        %v4680 = vadd.f32 %v4679, 0.008332121
        %v4681 = vmul.f32 %v4678, %v4680
        %v4682 = vadd.f32 %v4681, -0.16666654
        %v4683 = vmul.f32 %v4678, %v4682
        %v4684 = vadd.f32 %v4683, 1.0
        %v4685 = vmul.f32 %v4684, %v4669
        %vm4686 = vweird.f32 %v167
        %v4687 = vadd.s32 %v4670, 3
        %v4688 = vand.u32 %v4687, 3
        %vm4689 = vcmp.lt.s32.totalorder %v4688, 2
        %vm4690 = vcmp.eq.s32.totalorder %v4688, 0
        %v4691 = vxor.u32 %v4685, 2147483648
        %v4692 = vsel %vm4690, %v4677, %v4691
        %vm4693 = vcmp.eq.s32.totalorder %v4688, 2
        %v4694 = vxor.u32 %v4677, 2147483648
        %v4695 = vsel %vm4693, %v4694, %v4685
        %v4696 = vsel %vm4689, %v4692, %v4695
        %v4697 = vsel %vm4686, nan, %v4696
        %v4698 = vand.u32 2147483647, %v168
        %vm4699 = vcmp.le.f32.partialorder %v4698, 0.7853982
        %vm4700 = vcmp.lt.s32.totalorder %v168, 0
        %v4701 = vand.u32 %v168, 2139095040
        %v4702 = vshrl.u32 %v4701, 23
        %v4703 = vsub.s32 %v4702, 127
        %v4704 = vand.u32 2147483647, %v168
        %v4705 = vand.u32 %v4704, 8388607
        %v4706 = vor.u32 %v4705, 8388608
        %v4707 = vsub.s32 0, %v4706
        %v4708 = vadd.s32 %v4703, 1
        %vm4709 = vcmp.gt.s32.totalorder %v4708, 0
        %v4710 = vsel %vm4709, %v4708, 0
        %v4711 = vshrl.u32 %v4710, 5
        %v4712 = vand.u32 %v4710, 31
        %v4713 = vsub.s32 32, %v4712
        %v4714 = vshrl.u32 683565275, %v4713
        %v4715 = vshll.u32 683565275, %v4712
        %v4716 = vshrl.u32 2475754826, %v4713
        %v4717 = vor.u32 %v4715, %v4716
        %v4718 = vshll.u32 2475754826, %v4712
        %v4719 = vshrl.u32 2131351028, %v4713
        %v4720 = vor.u32 %v4718, %v4719
        %v4721 = vshll.u32 2131351028, %v4712
        %v4722 = vshrl.u32 2102212464, %v4713
        %v4723 = vor.u32 %v4721, %v4722
        %v4724 = vshll.u32 2102212464, %v4712
        %v4725 = vshrl.u32 920167782, %v4713
        %v4726 = vor.u32 %v4724, %v4725
        %v4727 = vshll.u32 920167782, %v4712
        %v4728 = vshrl.u32 1326507024, %v4713
        %v4729 = vor.u32 %v4727, %v4728
        %vm4730 = vcmp.lt.s32.totalorder %v4711, 1
        %vm4731 = vcmp.lt.s32.totalorder %v4711, 2
        %vm4732 = vcmp.lt.s32.totalorder %v4711, 3
        %vm4733 = vcmp.lt.s32.totalorder %v4711, 4
        %v4734 = vsel %vm4730, %v4714, %v4717
        %v4735 = vsel %vm4733, %v4723, 2102212464
        %v4736 = vsel %vm4732, %v4720, %v4735
        %v4737 = vsel %vm4731, %v4734, %v4736
        %v4738 = vsel %vm4730, %v4717, %v4720
        %v4739 = vsel %vm4733, %v4726, 920167782
        %v4740 = vsel %vm4732, %v4723, %v4739
        %v4741 = vsel %vm4731, %v4738, %v4740
        %v4742 = vsel %vm4730, %v4720, %v4723
        %v4743 = vsel %vm4733, %v4729, 1326507024
        %v4744 = vsel %vm4732, %v4726, %v4743
        %v4745 = vsel %vm4731, %v4742, %v4744
        %v4746 = vshll.u32 %v4706, 8
        %v4747 = vand.u32 %v4746, 65535
        %v4748 = vshrl.u32 %v4746, 16
        %v4749 = vand.u32 %v4745, 65535
        %v4750 = vshrl.u32 %v4745, 16
        %v4751 = vmul.u32 %v4747, %v4749
        %v4752 = vmul.u32 %v4747, %v4750
        %v4753 = vmul.u32 %v4748, %v4749
        %v4754 = vmul.u32 %v4748, %v4750
        %v4755 = vshll.u32 %v4752, 16
        %v4756 = vshrl.u32 %v4752, 16
        %v4757 = vshll.u32 %v4753, 16
        %v4758 = vshrl.u32 %v4753, 16
        %vm4759 = vc.u32 %v4751, %v4755
        %v4760 = vsel %vm4759, 1, 0
        %v4761 = vadd.s32 %v4751, %v4755
        %v4762 = vadd.s32 %v4754, %v4760
        %vm4763 = vc.u32 %v4761, %v4757
        %v4764 = vsel %vm4763, 1, 0
        %v4765 = vadd.s32 %v4761, %v4757
        %v4766 = vadd.s32 %v4762, %v4764
        %v4767 = vadd.s32 %v4766, %v4756
        %v4768 = vadd.s32 %v4767, %v4758
        %v4769 = vand.u32 %v4746, 65535
        %v4770 = vshrl.u32 %v4746, 16
        %v4771 = vand.u32 %v4741, 65535
        %v4772 = vshrl.u32 %v4741, 16
        %v4773 = vmul.u32 %v4769, %v4771
        %v4774 = vmul.u32 %v4769, %v4772
        %v4775 = vmul.u32 %v4770, %v4771
        %v4776 = vmul.u32 %v4770, %v4772
        %v4777 = vshll.u32 %v4774, 16
        %v4778 = vshrl.u32 %v4774, 16
        %v4779 = vshll.u32 %v4775, 16
        %v4780 = vshrl.u32 %v4775, 16
        %vm4781 = vc.u32 %v4773, %v4777
        %v4782 = vsel %vm4781, 1, 0
        %v4783 = vadd.s32 %v4773, %v4777
        %v4784 = vadd.s32 %v4776, %v4782
        %vm4785 = vc.u32 %v4783, %v4779
        %v4786 = vsel %vm4785, 1, 0
        %v4787 = vadd.s32 %v4783, %v4779
        %v4788 = vadd.s32 %v4784, %v4786
        %v4789 = vadd.s32 %v4788, %v4778
        %v4790 = vadd.s32 %v4789, %v4780
        %v4791 = vmul.u32 %v4746, %v4737
        %v4792 = vadd.s32 %v4768, %v4787
        %vm4793 = vc.u32 %v4768, %v4787
        %v4794 = vadd.s32 %v4790, 1
        %v4795 = vsel %vm4793, %v4794, %v4790
        %v4796 = vadd.s32 %v4791, %v4795
        %v4797 = vadd.s32 %v4796, 536870912
        %v4798 = vshrl.u32 %v4797, 30
        %v4799 = vshll.u32 %v4798, 30
        %v4800 = vsub.s32 %v4796, %v4799
        %vm4801 = vcmp.lt.s32.totalorder %v4800, 0
        %v4802 = vsub.s32 0, %v4800
        %v4803 = vsel %vm4801, %v4802, %v4800
        %v4804 = vclz %v4803
        %v4805 = vsub.s32 %v4804, 2
        %vm4806 = vcmp.gt.s32.totalorder 0, %v4805
        %v4807 = vsel %vm4806, 0, %v4805
        %v4808 = vsub.s32 32, %v4807
        %v4809 = vshll.u32 %v4800, %v4807
        %v4810 = vshrl.u32 %v4792, %v4808
        %v4811 = vor.u32 %v4809, %v4810
        %v4812 = vsub.s32 4294967266, %v4807
        %v4813 = vadd.s32 %v4812, 127
        %v4814 = vshll.u32 %v4813, 23
        %v4815 = vor.u32 4788187, %v4814
        %v4816 = vand.u32 2147483647, %v4815
        %v4818 = vcvt.s32.f32 %v4811
        %v4819 = vmul.f32 %v4818, %v4816
        %v4820 = vxor.u32 %v4819, 2147483648
        %v4821 = vsel %vm4700, %v4820, %v4819
        %v4822 = vsub.s32 4, %v4798
        %v4823 = vsel %vm4700, %v4822, %v4798
        %v4824 = vsel %vm4699, %v168, %v4821
        %v4825 = vsel %vm4699, 0, %v4823
        %v4826 = vmul.f32 %v4824, %v4824
        %v4827 = vmul.f32 %v4826, -0.001358992
        %v4828 = vadd.f32 %v4827, 0.041655596
        %v4829 = vmul.f32 %v4826, %v4828
        %v4830 = vadd.f32 %v4829, -0.4999988
        %v4831 = vmul.f32 %v4826, %v4830
        %v4832 = vadd.f32 1.0, %v4831
        %v4833 = vmul.f32 %v4824, %v4824
        %v4834 = vmul.f32 %v4833, -0.00019511016
        %v4835 = vadd.f32 %v4834, 0.008332121
        %v4836 = vmul.f32 %v4833, %v4835
        %v4837 = vadd.f32 %v4836, -0.16666654
        %v4838 = vmul.f32 %v4833, %v4837
        %v4839 = vadd.f32 %v4838, 1.0
        %v4840 = vmul.f32 %v4839, %v4824
        %vm4841 = vweird.f32 %v168
        %v4842 = vadd.s32 %v4825, 3
        %v4843 = vand.u32 %v4842, 3
        %vm4844 = vcmp.lt.s32.totalorder %v4843, 2
        %vm4845 = vcmp.eq.s32.totalorder %v4843, 0
        %v4846 = vxor.u32 %v4840, 2147483648
        %v4847 = vsel %vm4845, %v4832, %v4846
        %vm4848 = vcmp.eq.s32.totalorder %v4843, 2
        %v4849 = vxor.u32 %v4832, 2147483648
        %v4850 = vsel %vm4848, %v4849, %v4840
        %v4851 = vsel %vm4844, %v4847, %v4850
        %v4852 = vsel %vm4841, nan, %v4851
        %v4853 = vand.u32 2147483647, %v169
        %vm4854 = vcmp.le.f32.partialorder %v4853, 0.7853982
        %vm4855 = vcmp.lt.s32.totalorder %v169, 0
        %v4856 = vand.u32 %v169, 2139095040
        %v4857 = vshrl.u32 %v4856, 23
        %v4858 = vsub.s32 %v4857, 127
        %v4859 = vand.u32 2147483647, %v169
        %v4860 = vand.u32 %v4859, 8388607
        %v4861 = vor.u32 %v4860, 8388608
        %v4862 = vsub.s32 0, %v4861
        %v4863 = vadd.s32 %v4858, 1
        %vm4864 = vcmp.gt.s32.totalorder %v4863, 0
        %v4865 = vsel %vm4864, %v4863, 0
        %v4866 = vshrl.u32 %v4865, 5
        %v4867 = vand.u32 %v4865, 31
        %v4868 = vsub.s32 32, %v4867
        %v4869 = vshrl.u32 683565275, %v4868
        %v4870 = vshll.u32 683565275, %v4867
        %v4871 = vshrl.u32 2475754826, %v4868
        %v4872 = vor.u32 %v4870, %v4871
        %v4873 = vshll.u32 2475754826, %v4867
        %v4874 = vshrl.u32 2131351028, %v4868
        %v4875 = vor.u32 %v4873, %v4874
        %v4876 = vshll.u32 2131351028, %v4867
        %v4877 = vshrl.u32 2102212464, %v4868
        %v4878 = vor.u32 %v4876, %v4877
        %v4879 = vshll.u32 2102212464, %v4867
        %v4880 = vshrl.u32 920167782, %v4868
        %v4881 = vor.u32 %v4879, %v4880
        %v4882 = vshll.u32 920167782, %v4867
        %v4883 = vshrl.u32 1326507024, %v4868
        %v4884 = vor.u32 %v4882, %v4883
        %vm4885 = vcmp.lt.s32.totalorder %v4866, 1
        %vm4886 = vcmp.lt.s32.totalorder %v4866, 2
        %vm4887 = vcmp.lt.s32.totalorder %v4866, 3
        %vm4888 = vcmp.lt.s32.totalorder %v4866, 4
        %v4889 = vsel %vm4885, %v4869, %v4872
        %v4890 = vsel %vm4888, %v4878, 2102212464
        %v4891 = vsel %vm4887, %v4875, %v4890
        %v4892 = vsel %vm4886, %v4889, %v4891
        %v4893 = vsel %vm4885, %v4872, %v4875
        %v4894 = vsel %vm4888, %v4881, 920167782
        %v4895 = vsel %vm4887, %v4878, %v4894
        %v4896 = vsel %vm4886, %v4893, %v4895
        %v4897 = vsel %vm4885, %v4875, %v4878
        %v4898 = vsel %vm4888, %v4884, 1326507024
        %v4899 = vsel %vm4887, %v4881, %v4898
        %v4900 = vsel %vm4886, %v4897, %v4899
        %v4901 = vshll.u32 %v4861, 8
        %v4902 = vand.u32 %v4901, 65535
        %v4903 = vshrl.u32 %v4901, 16
        %v4904 = vand.u32 %v4900, 65535
        %v4905 = vshrl.u32 %v4900, 16
        %v4906 = vmul.u32 %v4902, %v4904
        %v4907 = vmul.u32 %v4902, %v4905
        %v4908 = vmul.u32 %v4903, %v4904
        %v4909 = vmul.u32 %v4903, %v4905
        %v4910 = vshll.u32 %v4907, 16
        %v4911 = vshrl.u32 %v4907, 16
        %v4912 = vshll.u32 %v4908, 16
        %v4913 = vshrl.u32 %v4908, 16
        %vm4914 = vc.u32 %v4906, %v4910
        %v4915 = vsel %vm4914, 1, 0
        %v4916 = vadd.s32 %v4906, %v4910
        %v4917 = vadd.s32 %v4909, %v4915
        %vm4918 = vc.u32 %v4916, %v4912
        %v4919 = vsel %vm4918, 1, 0
        %v4920 = vadd.s32 %v4916, %v4912
        %v4921 = vadd.s32 %v4917, %v4919
        %v4922 = vadd.s32 %v4921, %v4911
        %v4923 = vadd.s32 %v4922, %v4913
        %v4924 = vand.u32 %v4901, 65535
        %v4925 = vshrl.u32 %v4901, 16
        %v4926 = vand.u32 %v4896, 65535
        %v4927 = vshrl.u32 %v4896, 16
        %v4928 = vmul.u32 %v4924, %v4926
        %v4929 = vmul.u32 %v4924, %v4927
        %v4930 = vmul.u32 %v4925, %v4926
        %v4931 = vmul.u32 %v4925, %v4927
        %v4932 = vshll.u32 %v4929, 16
        %v4933 = vshrl.u32 %v4929, 16
        %v4934 = vshll.u32 %v4930, 16
        %v4935 = vshrl.u32 %v4930, 16
        %vm4936 = vc.u32 %v4928, %v4932
        %v4937 = vsel %vm4936, 1, 0
        %v4938 = vadd.s32 %v4928, %v4932
        %v4939 = vadd.s32 %v4931, %v4937
        %vm4940 = vc.u32 %v4938, %v4934
        %v4941 = vsel %vm4940, 1, 0
        %v4942 = vadd.s32 %v4938, %v4934
        %v4943 = vadd.s32 %v4939, %v4941
        %v4944 = vadd.s32 %v4943, %v4933
        %v4945 = vadd.s32 %v4944, %v4935
        %v4946 = vmul.u32 %v4901, %v4892
        %v4947 = vadd.s32 %v4923, %v4942
        %vm4948 = vc.u32 %v4923, %v4942
        %v4949 = vadd.s32 %v4945, 1
        %v4950 = vsel %vm4948, %v4949, %v4945
        %v4951 = vadd.s32 %v4946, %v4950
        %v4952 = vadd.s32 %v4951, 536870912
        %v4953 = vshrl.u32 %v4952, 30
        %v4954 = vshll.u32 %v4953, 30
        %v4955 = vsub.s32 %v4951, %v4954
        %vm4956 = vcmp.lt.s32.totalorder %v4955, 0
        %v4957 = vsub.s32 0, %v4955
        %v4958 = vsel %vm4956, %v4957, %v4955
        %v4959 = vclz %v4958
        %v4960 = vsub.s32 %v4959, 2
        %vm4961 = vcmp.gt.s32.totalorder 0, %v4960
        %v4962 = vsel %vm4961, 0, %v4960
        %v4963 = vsub.s32 32, %v4962
        %v4964 = vshll.u32 %v4955, %v4962
        %v4965 = vshrl.u32 %v4947, %v4963
        %v4966 = vor.u32 %v4964, %v4965
        %v4967 = vsub.s32 4294967266, %v4962
        %v4968 = vadd.s32 %v4967, 127
        %v4969 = vshll.u32 %v4968, 23
        %v4970 = vor.u32 4788187, %v4969
        %v4971 = vand.u32 2147483647, %v4970
        %v4973 = vcvt.s32.f32 %v4966
        %v4974 = vmul.f32 %v4973, %v4971
        %v4975 = vxor.u32 %v4974, 2147483648
        %v4976 = vsel %vm4855, %v4975, %v4974
        %v4977 = vsub.s32 4, %v4953
        %v4978 = vsel %vm4855, %v4977, %v4953
        %v4979 = vsel %vm4854, %v169, %v4976
        %v4980 = vsel %vm4854, 0, %v4978
        %v4981 = vmul.f32 %v4979, %v4979
        %v4982 = vmul.f32 %v4981, -0.001358992
        %v4983 = vadd.f32 %v4982, 0.041655596
        %v4984 = vmul.f32 %v4981, %v4983
        %v4985 = vadd.f32 %v4984, -0.4999988
        %v4986 = vmul.f32 %v4981, %v4985
        %v4987 = vadd.f32 1.0, %v4986
        %v4988 = vmul.f32 %v4979, %v4979
        %v4989 = vmul.f32 %v4988, -0.00019511016
        %v4990 = vadd.f32 %v4989, 0.008332121
        %v4991 = vmul.f32 %v4988, %v4990
        %v4992 = vadd.f32 %v4991, -0.16666654
        %v4993 = vmul.f32 %v4988, %v4992
        %v4994 = vadd.f32 %v4993, 1.0
        %v4995 = vmul.f32 %v4994, %v4979
        %vm4996 = vweird.f32 %v169
        %v4997 = vadd.s32 %v4980, 3
        %v4998 = vand.u32 %v4997, 3
        %vm4999 = vcmp.lt.s32.totalorder %v4998, 2
        %vm5000 = vcmp.eq.s32.totalorder %v4998, 0
        %v5001 = vxor.u32 %v4995, 2147483648
        %v5002 = vsel %vm5000, %v4987, %v5001
        %vm5003 = vcmp.eq.s32.totalorder %v4998, 2
        %v5004 = vxor.u32 %v4987, 2147483648
        %v5005 = vsel %vm5003, %v5004, %v4995
        %v5006 = vsel %vm4999, %v5002, %v5005
        %v5007 = vsel %vm4996, nan, %v5006
        %v5008 = vand.u32 2147483647, %v170
        %vm5009 = vcmp.le.f32.partialorder %v5008, 0.7853982
        %vm5010 = vcmp.lt.s32.totalorder %v170, 0
        %v5011 = vand.u32 %v170, 2139095040
        %v5012 = vshrl.u32 %v5011, 23
        %v5013 = vsub.s32 %v5012, 127
        %v5014 = vand.u32 2147483647, %v170
        %v5015 = vand.u32 %v5014, 8388607
        %v5016 = vor.u32 %v5015, 8388608
        %v5017 = vsub.s32 0, %v5016
        %v5018 = vadd.s32 %v5013, 1
        %vm5019 = vcmp.gt.s32.totalorder %v5018, 0
        %v5020 = vsel %vm5019, %v5018, 0
        %v5021 = vshrl.u32 %v5020, 5
        %v5022 = vand.u32 %v5020, 31
        %v5023 = vsub.s32 32, %v5022
        %v5024 = vshrl.u32 683565275, %v5023
        %v5025 = vshll.u32 683565275, %v5022
        %v5026 = vshrl.u32 2475754826, %v5023
        %v5027 = vor.u32 %v5025, %v5026
        %v5028 = vshll.u32 2475754826, %v5022
        %v5029 = vshrl.u32 2131351028, %v5023
        %v5030 = vor.u32 %v5028, %v5029
        %v5031 = vshll.u32 2131351028, %v5022
        %v5032 = vshrl.u32 2102212464, %v5023
        %v5033 = vor.u32 %v5031, %v5032
        %v5034 = vshll.u32 2102212464, %v5022
        %v5035 = vshrl.u32 920167782, %v5023
        %v5036 = vor.u32 %v5034, %v5035
        %v5037 = vshll.u32 920167782, %v5022
        %v5038 = vshrl.u32 1326507024, %v5023
        %v5039 = vor.u32 %v5037, %v5038
        %vm5040 = vcmp.lt.s32.totalorder %v5021, 1
        %vm5041 = vcmp.lt.s32.totalorder %v5021, 2
        %vm5042 = vcmp.lt.s32.totalorder %v5021, 3
        %vm5043 = vcmp.lt.s32.totalorder %v5021, 4
        %v5044 = vsel %vm5040, %v5024, %v5027
        %v5045 = vsel %vm5043, %v5033, 2102212464
        %v5046 = vsel %vm5042, %v5030, %v5045
        %v5047 = vsel %vm5041, %v5044, %v5046
        %v5048 = vsel %vm5040, %v5027, %v5030
        %v5049 = vsel %vm5043, %v5036, 920167782
        %v5050 = vsel %vm5042, %v5033, %v5049
        %v5051 = vsel %vm5041, %v5048, %v5050
        %v5052 = vsel %vm5040, %v5030, %v5033
        %v5053 = vsel %vm5043, %v5039, 1326507024
        %v5054 = vsel %vm5042, %v5036, %v5053
        %v5055 = vsel %vm5041, %v5052, %v5054
        %v5056 = vshll.u32 %v5016, 8
        %v5057 = vand.u32 %v5056, 65535
        %v5058 = vshrl.u32 %v5056, 16
        %v5059 = vand.u32 %v5055, 65535
        %v5060 = vshrl.u32 %v5055, 16
        %v5061 = vmul.u32 %v5057, %v5059
        %v5062 = vmul.u32 %v5057, %v5060
        %v5063 = vmul.u32 %v5058, %v5059
        %v5064 = vmul.u32 %v5058, %v5060
        %v5065 = vshll.u32 %v5062, 16
        %v5066 = vshrl.u32 %v5062, 16
        %v5067 = vshll.u32 %v5063, 16
        %v5068 = vshrl.u32 %v5063, 16
        %vm5069 = vc.u32 %v5061, %v5065
        %v5070 = vsel %vm5069, 1, 0
        %v5071 = vadd.s32 %v5061, %v5065
        %v5072 = vadd.s32 %v5064, %v5070
        %vm5073 = vc.u32 %v5071, %v5067
        %v5074 = vsel %vm5073, 1, 0
        %v5075 = vadd.s32 %v5071, %v5067
        %v5076 = vadd.s32 %v5072, %v5074
        %v5077 = vadd.s32 %v5076, %v5066
        %v5078 = vadd.s32 %v5077, %v5068
        %v5079 = vand.u32 %v5056, 65535
        %v5080 = vshrl.u32 %v5056, 16
        %v5081 = vand.u32 %v5051, 65535
        %v5082 = vshrl.u32 %v5051, 16
        %v5083 = vmul.u32 %v5079, %v5081
        %v5084 = vmul.u32 %v5079, %v5082
        %v5085 = vmul.u32 %v5080, %v5081
        %v5086 = vmul.u32 %v5080, %v5082
        %v5087 = vshll.u32 %v5084, 16
        %v5088 = vshrl.u32 %v5084, 16
        %v5089 = vshll.u32 %v5085, 16
        %v5090 = vshrl.u32 %v5085, 16
        %vm5091 = vc.u32 %v5083, %v5087
        %v5092 = vsel %vm5091, 1, 0
        %v5093 = vadd.s32 %v5083, %v5087
        %v5094 = vadd.s32 %v5086, %v5092
        %vm5095 = vc.u32 %v5093, %v5089
        %v5096 = vsel %vm5095, 1, 0
        %v5097 = vadd.s32 %v5093, %v5089
        %v5098 = vadd.s32 %v5094, %v5096
        %v5099 = vadd.s32 %v5098, %v5088
        %v5100 = vadd.s32 %v5099, %v5090
        %v5101 = vmul.u32 %v5056, %v5047
        %v5102 = vadd.s32 %v5078, %v5097
        %vm5103 = vc.u32 %v5078, %v5097
        %v5104 = vadd.s32 %v5100, 1
        %v5105 = vsel %vm5103, %v5104, %v5100
        %v5106 = vadd.s32 %v5101, %v5105
        %v5107 = vadd.s32 %v5106, 536870912
        %v5108 = vshrl.u32 %v5107, 30
        %v5109 = vshll.u32 %v5108, 30
        %v5110 = vsub.s32 %v5106, %v5109
        %vm5111 = vcmp.lt.s32.totalorder %v5110, 0
        %v5112 = vsub.s32 0, %v5110
        %v5113 = vsel %vm5111, %v5112, %v5110
        %v5114 = vclz %v5113
        %v5115 = vsub.s32 %v5114, 2
        %vm5116 = vcmp.gt.s32.totalorder 0, %v5115
        %v5117 = vsel %vm5116, 0, %v5115
        %v5118 = vsub.s32 32, %v5117
        %v5119 = vshll.u32 %v5110, %v5117
        %v5120 = vshrl.u32 %v5102, %v5118
        %v5121 = vor.u32 %v5119, %v5120
        %v5122 = vsub.s32 4294967266, %v5117
        %v5123 = vadd.s32 %v5122, 127
        %v5124 = vshll.u32 %v5123, 23
        %v5125 = vor.u32 4788187, %v5124
        %v5126 = vand.u32 2147483647, %v5125
        %v5128 = vcvt.s32.f32 %v5121
        %v5129 = vmul.f32 %v5128, %v5126
        %v5130 = vxor.u32 %v5129, 2147483648
        %v5131 = vsel %vm5010, %v5130, %v5129
        %v5132 = vsub.s32 4, %v5108
        %v5133 = vsel %vm5010, %v5132, %v5108
        %v5134 = vsel %vm5009, %v170, %v5131
        %v5135 = vsel %vm5009, 0, %v5133
        %v5136 = vmul.f32 %v5134, %v5134
        %v5137 = vmul.f32 %v5136, -0.001358992
        %v5138 = vadd.f32 %v5137, 0.041655596
        %v5139 = vmul.f32 %v5136, %v5138
        %v5140 = vadd.f32 %v5139, -0.4999988
        %v5141 = vmul.f32 %v5136, %v5140
        %v5142 = vadd.f32 1.0, %v5141
        %v5143 = vmul.f32 %v5134, %v5134
        %v5144 = vmul.f32 %v5143, -0.00019511016
        %v5145 = vadd.f32 %v5144, 0.008332121
        %v5146 = vmul.f32 %v5143, %v5145
        %v5147 = vadd.f32 %v5146, -0.16666654
        %v5148 = vmul.f32 %v5143, %v5147
        %v5149 = vadd.f32 %v5148, 1.0
        %v5150 = vmul.f32 %v5149, %v5134
        %vm5151 = vweird.f32 %v170
        %v5152 = vadd.s32 %v5135, 3
        %v5153 = vand.u32 %v5152, 3
        %vm5154 = vcmp.lt.s32.totalorder %v5153, 2
        %vm5155 = vcmp.eq.s32.totalorder %v5153, 0
        %v5156 = vxor.u32 %v5150, 2147483648
        %v5157 = vsel %vm5155, %v5142, %v5156
        %vm5158 = vcmp.eq.s32.totalorder %v5153, 2
        %v5159 = vxor.u32 %v5142, 2147483648
        %v5160 = vsel %vm5158, %v5159, %v5150
        %v5161 = vsel %vm5154, %v5157, %v5160
        %v5162 = vsel %vm5151, nan, %v5161
        %v5163 = vand.u32 2147483647, %v171
        %vm5164 = vcmp.le.f32.partialorder %v5163, 0.7853982
        %vm5165 = vcmp.lt.s32.totalorder %v171, 0
        %v5166 = vand.u32 %v171, 2139095040
        %v5167 = vshrl.u32 %v5166, 23
        %v5168 = vsub.s32 %v5167, 127
        %v5169 = vand.u32 2147483647, %v171
        %v5170 = vand.u32 %v5169, 8388607
        %v5171 = vor.u32 %v5170, 8388608
        %v5172 = vsub.s32 0, %v5171
        %v5173 = vadd.s32 %v5168, 1
        %vm5174 = vcmp.gt.s32.totalorder %v5173, 0
        %v5175 = vsel %vm5174, %v5173, 0
        %v5176 = vshrl.u32 %v5175, 5
        %v5177 = vand.u32 %v5175, 31
        %v5178 = vsub.s32 32, %v5177
        %v5179 = vshrl.u32 683565275, %v5178
        %v5180 = vshll.u32 683565275, %v5177
        %v5181 = vshrl.u32 2475754826, %v5178
        %v5182 = vor.u32 %v5180, %v5181
        %v5183 = vshll.u32 2475754826, %v5177
        %v5184 = vshrl.u32 2131351028, %v5178
        %v5185 = vor.u32 %v5183, %v5184
        %v5186 = vshll.u32 2131351028, %v5177
        %v5187 = vshrl.u32 2102212464, %v5178
        %v5188 = vor.u32 %v5186, %v5187
        %v5189 = vshll.u32 2102212464, %v5177
        %v5190 = vshrl.u32 920167782, %v5178
        %v5191 = vor.u32 %v5189, %v5190
        %v5192 = vshll.u32 920167782, %v5177
        %v5193 = vshrl.u32 1326507024, %v5178
        %v5194 = vor.u32 %v5192, %v5193
        %vm5195 = vcmp.lt.s32.totalorder %v5176, 1
        %vm5196 = vcmp.lt.s32.totalorder %v5176, 2
        %vm5197 = vcmp.lt.s32.totalorder %v5176, 3
        %vm5198 = vcmp.lt.s32.totalorder %v5176, 4
        %v5199 = vsel %vm5195, %v5179, %v5182
        %v5200 = vsel %vm5198, %v5188, 2102212464
        %v5201 = vsel %vm5197, %v5185, %v5200
        %v5202 = vsel %vm5196, %v5199, %v5201
        %v5203 = vsel %vm5195, %v5182, %v5185
        %v5204 = vsel %vm5198, %v5191, 920167782
        %v5205 = vsel %vm5197, %v5188, %v5204
        %v5206 = vsel %vm5196, %v5203, %v5205
        %v5207 = vsel %vm5195, %v5185, %v5188
        %v5208 = vsel %vm5198, %v5194, 1326507024
        %v5209 = vsel %vm5197, %v5191, %v5208
        %v5210 = vsel %vm5196, %v5207, %v5209
        %v5211 = vshll.u32 %v5171, 8
        %v5212 = vand.u32 %v5211, 65535
        %v5213 = vshrl.u32 %v5211, 16
        %v5214 = vand.u32 %v5210, 65535
        %v5215 = vshrl.u32 %v5210, 16
        %v5216 = vmul.u32 %v5212, %v5214
        %v5217 = vmul.u32 %v5212, %v5215
        %v5218 = vmul.u32 %v5213, %v5214
        %v5219 = vmul.u32 %v5213, %v5215
        %v5220 = vshll.u32 %v5217, 16
        %v5221 = vshrl.u32 %v5217, 16
        %v5222 = vshll.u32 %v5218, 16
        %v5223 = vshrl.u32 %v5218, 16
        %vm5224 = vc.u32 %v5216, %v5220
        %v5225 = vsel %vm5224, 1, 0
        %v5226 = vadd.s32 %v5216, %v5220
        %v5227 = vadd.s32 %v5219, %v5225
        %vm5228 = vc.u32 %v5226, %v5222
        %v5229 = vsel %vm5228, 1, 0
        %v5230 = vadd.s32 %v5226, %v5222
        %v5231 = vadd.s32 %v5227, %v5229
        %v5232 = vadd.s32 %v5231, %v5221
        %v5233 = vadd.s32 %v5232, %v5223
        %v5234 = vand.u32 %v5211, 65535
        %v5235 = vshrl.u32 %v5211, 16
        %v5236 = vand.u32 %v5206, 65535
        %v5237 = vshrl.u32 %v5206, 16
        %v5238 = vmul.u32 %v5234, %v5236
        %v5239 = vmul.u32 %v5234, %v5237
        %v5240 = vmul.u32 %v5235, %v5236
        %v5241 = vmul.u32 %v5235, %v5237
        %v5242 = vshll.u32 %v5239, 16
        %v5243 = vshrl.u32 %v5239, 16
        %v5244 = vshll.u32 %v5240, 16
        %v5245 = vshrl.u32 %v5240, 16
        %vm5246 = vc.u32 %v5238, %v5242
        %v5247 = vsel %vm5246, 1, 0
        %v5248 = vadd.s32 %v5238, %v5242
        %v5249 = vadd.s32 %v5241, %v5247
        %vm5250 = vc.u32 %v5248, %v5244
        %v5251 = vsel %vm5250, 1, 0
        %v5252 = vadd.s32 %v5248, %v5244
        %v5253 = vadd.s32 %v5249, %v5251
        %v5254 = vadd.s32 %v5253, %v5243
        %v5255 = vadd.s32 %v5254, %v5245
        %v5256 = vmul.u32 %v5211, %v5202
        %v5257 = vadd.s32 %v5233, %v5252
        %vm5258 = vc.u32 %v5233, %v5252
        %v5259 = vadd.s32 %v5255, 1
        %v5260 = vsel %vm5258, %v5259, %v5255
        %v5261 = vadd.s32 %v5256, %v5260
        %v5262 = vadd.s32 %v5261, 536870912
        %v5263 = vshrl.u32 %v5262, 30
        %v5264 = vshll.u32 %v5263, 30
        %v5265 = vsub.s32 %v5261, %v5264
        %vm5266 = vcmp.lt.s32.totalorder %v5265, 0
        %v5267 = vsub.s32 0, %v5265
        %v5268 = vsel %vm5266, %v5267, %v5265
        %v5269 = vclz %v5268
        %v5270 = vsub.s32 %v5269, 2
        %vm5271 = vcmp.gt.s32.totalorder 0, %v5270
        %v5272 = vsel %vm5271, 0, %v5270
        %v5273 = vsub.s32 32, %v5272
        %v5274 = vshll.u32 %v5265, %v5272
        %v5275 = vshrl.u32 %v5257, %v5273
        %v5276 = vor.u32 %v5274, %v5275
        %v5277 = vsub.s32 4294967266, %v5272
        %v5278 = vadd.s32 %v5277, 127
        %v5279 = vshll.u32 %v5278, 23
        %v5280 = vor.u32 4788187, %v5279
        %v5281 = vand.u32 2147483647, %v5280
        %v5283 = vcvt.s32.f32 %v5276
        %v5284 = vmul.f32 %v5283, %v5281
        %v5285 = vxor.u32 %v5284, 2147483648
        %v5286 = vsel %vm5165, %v5285, %v5284
        %v5287 = vsub.s32 4, %v5263
        %v5288 = vsel %vm5165, %v5287, %v5263
        %v5289 = vsel %vm5164, %v171, %v5286
        %v5290 = vsel %vm5164, 0, %v5288
        %v5291 = vmul.f32 %v5289, %v5289
        %v5292 = vmul.f32 %v5291, -0.001358992
        %v5293 = vadd.f32 %v5292, 0.041655596
        %v5294 = vmul.f32 %v5291, %v5293
        %v5295 = vadd.f32 %v5294, -0.4999988
        %v5296 = vmul.f32 %v5291, %v5295
        %v5297 = vadd.f32 1.0, %v5296
        %v5298 = vmul.f32 %v5289, %v5289
        %v5299 = vmul.f32 %v5298, -0.00019511016
        %v5300 = vadd.f32 %v5299, 0.008332121
        %v5301 = vmul.f32 %v5298, %v5300
        %v5302 = vadd.f32 %v5301, -0.16666654
        %v5303 = vmul.f32 %v5298, %v5302
        %v5304 = vadd.f32 %v5303, 1.0
        %v5305 = vmul.f32 %v5304, %v5289
        %vm5306 = vweird.f32 %v171
        %v5307 = vadd.s32 %v5290, 3
        %v5308 = vand.u32 %v5307, 3
        %vm5309 = vcmp.lt.s32.totalorder %v5308, 2
        %vm5310 = vcmp.eq.s32.totalorder %v5308, 0
        %v5311 = vxor.u32 %v5305, 2147483648
        %v5312 = vsel %vm5310, %v5297, %v5311
        %vm5313 = vcmp.eq.s32.totalorder %v5308, 2
        %v5314 = vxor.u32 %v5297, 2147483648
        %v5315 = vsel %vm5313, %v5314, %v5305
        %v5316 = vsel %vm5309, %v5312, %v5315
        %v5317 = vsel %vm5306, nan, %v5316
        %v5318 = vand.u32 2147483647, %v172
        %vm5319 = vcmp.le.f32.partialorder %v5318, 0.7853982
        %vm5320 = vcmp.lt.s32.totalorder %v172, 0
        %v5321 = vand.u32 %v172, 2139095040
        %v5322 = vshrl.u32 %v5321, 23
        %v5323 = vsub.s32 %v5322, 127
        %v5324 = vand.u32 2147483647, %v172
        %v5325 = vand.u32 %v5324, 8388607
        %v5326 = vor.u32 %v5325, 8388608
        %v5327 = vsub.s32 0, %v5326
        %v5328 = vadd.s32 %v5323, 1
        %vm5329 = vcmp.gt.s32.totalorder %v5328, 0
        %v5330 = vsel %vm5329, %v5328, 0
        %v5331 = vshrl.u32 %v5330, 5
        %v5332 = vand.u32 %v5330, 31
        %v5333 = vsub.s32 32, %v5332
        %v5334 = vshrl.u32 683565275, %v5333
        %v5335 = vshll.u32 683565275, %v5332
        %v5336 = vshrl.u32 2475754826, %v5333
        %v5337 = vor.u32 %v5335, %v5336
        %v5338 = vshll.u32 2475754826, %v5332
        %v5339 = vshrl.u32 2131351028, %v5333
        %v5340 = vor.u32 %v5338, %v5339
        %v5341 = vshll.u32 2131351028, %v5332
        %v5342 = vshrl.u32 2102212464, %v5333
        %v5343 = vor.u32 %v5341, %v5342
        %v5344 = vshll.u32 2102212464, %v5332
        %v5345 = vshrl.u32 920167782, %v5333
        %v5346 = vor.u32 %v5344, %v5345
        %v5347 = vshll.u32 920167782, %v5332
        %v5348 = vshrl.u32 1326507024, %v5333
        %v5349 = vor.u32 %v5347, %v5348
        %vm5350 = vcmp.lt.s32.totalorder %v5331, 1
        %vm5351 = vcmp.lt.s32.totalorder %v5331, 2
        %vm5352 = vcmp.lt.s32.totalorder %v5331, 3
        %vm5353 = vcmp.lt.s32.totalorder %v5331, 4
        %v5354 = vsel %vm5350, %v5334, %v5337
        %v5355 = vsel %vm5353, %v5343, 2102212464
        %v5356 = vsel %vm5352, %v5340, %v5355
        %v5357 = vsel %vm5351, %v5354, %v5356
        %v5358 = vsel %vm5350, %v5337, %v5340
        %v5359 = vsel %vm5353, %v5346, 920167782
        %v5360 = vsel %vm5352, %v5343, %v5359
        %v5361 = vsel %vm5351, %v5358, %v5360
        %v5362 = vsel %vm5350, %v5340, %v5343
        %v5363 = vsel %vm5353, %v5349, 1326507024
        %v5364 = vsel %vm5352, %v5346, %v5363
        %v5365 = vsel %vm5351, %v5362, %v5364
        %v5366 = vshll.u32 %v5326, 8
        %v5367 = vand.u32 %v5366, 65535
        %v5368 = vshrl.u32 %v5366, 16
        %v5369 = vand.u32 %v5365, 65535
        %v5370 = vshrl.u32 %v5365, 16
        %v5371 = vmul.u32 %v5367, %v5369
        %v5372 = vmul.u32 %v5367, %v5370
        %v5373 = vmul.u32 %v5368, %v5369
        %v5374 = vmul.u32 %v5368, %v5370
        %v5375 = vshll.u32 %v5372, 16
        %v5376 = vshrl.u32 %v5372, 16
        %v5377 = vshll.u32 %v5373, 16
        %v5378 = vshrl.u32 %v5373, 16
        %vm5379 = vc.u32 %v5371, %v5375
        %v5380 = vsel %vm5379, 1, 0
        %v5381 = vadd.s32 %v5371, %v5375
        %v5382 = vadd.s32 %v5374, %v5380
        %vm5383 = vc.u32 %v5381, %v5377
        %v5384 = vsel %vm5383, 1, 0
        %v5385 = vadd.s32 %v5381, %v5377
        %v5386 = vadd.s32 %v5382, %v5384
        %v5387 = vadd.s32 %v5386, %v5376
        %v5388 = vadd.s32 %v5387, %v5378
        %v5389 = vand.u32 %v5366, 65535
        %v5390 = vshrl.u32 %v5366, 16
        %v5391 = vand.u32 %v5361, 65535
        %v5392 = vshrl.u32 %v5361, 16
        %v5393 = vmul.u32 %v5389, %v5391
        %v5394 = vmul.u32 %v5389, %v5392
        %v5395 = vmul.u32 %v5390, %v5391
        %v5396 = vmul.u32 %v5390, %v5392
        %v5397 = vshll.u32 %v5394, 16
        %v5398 = vshrl.u32 %v5394, 16
        %v5399 = vshll.u32 %v5395, 16
        %v5400 = vshrl.u32 %v5395, 16
        %vm5401 = vc.u32 %v5393, %v5397
        %v5402 = vsel %vm5401, 1, 0
        %v5403 = vadd.s32 %v5393, %v5397
        %v5404 = vadd.s32 %v5396, %v5402
        %vm5405 = vc.u32 %v5403, %v5399
        %v5406 = vsel %vm5405, 1, 0
        %v5407 = vadd.s32 %v5403, %v5399
        %v5408 = vadd.s32 %v5404, %v5406
        %v5409 = vadd.s32 %v5408, %v5398
        %v5410 = vadd.s32 %v5409, %v5400
        %v5411 = vmul.u32 %v5366, %v5357
        %v5412 = vadd.s32 %v5388, %v5407
        %vm5413 = vc.u32 %v5388, %v5407
        %v5414 = vadd.s32 %v5410, 1
        %v5415 = vsel %vm5413, %v5414, %v5410
        %v5416 = vadd.s32 %v5411, %v5415
        %v5417 = vadd.s32 %v5416, 536870912
        %v5418 = vshrl.u32 %v5417, 30
        %v5419 = vshll.u32 %v5418, 30
        %v5420 = vsub.s32 %v5416, %v5419
        %vm5421 = vcmp.lt.s32.totalorder %v5420, 0
        %v5422 = vsub.s32 0, %v5420
        %v5423 = vsel %vm5421, %v5422, %v5420
        %v5424 = vclz %v5423
        %v5425 = vsub.s32 %v5424, 2
        %vm5426 = vcmp.gt.s32.totalorder 0, %v5425
        %v5427 = vsel %vm5426, 0, %v5425
        %v5428 = vsub.s32 32, %v5427
        %v5429 = vshll.u32 %v5420, %v5427
        %v5430 = vshrl.u32 %v5412, %v5428
        %v5431 = vor.u32 %v5429, %v5430
        %v5432 = vsub.s32 4294967266, %v5427
        %v5433 = vadd.s32 %v5432, 127
        %v5434 = vshll.u32 %v5433, 23
        %v5435 = vor.u32 4788187, %v5434
        %v5436 = vand.u32 2147483647, %v5435
        %v5438 = vcvt.s32.f32 %v5431
        %v5439 = vmul.f32 %v5438, %v5436
        %v5440 = vxor.u32 %v5439, 2147483648
        %v5441 = vsel %vm5320, %v5440, %v5439
        %v5442 = vsub.s32 4, %v5418
        %v5443 = vsel %vm5320, %v5442, %v5418
        %v5444 = vsel %vm5319, %v172, %v5441
        %v5445 = vsel %vm5319, 0, %v5443
        %v5446 = vmul.f32 %v5444, %v5444
        %v5447 = vmul.f32 %v5446, -0.001358992
        %v5448 = vadd.f32 %v5447, 0.041655596
        %v5449 = vmul.f32 %v5446, %v5448
        %v5450 = vadd.f32 %v5449, -0.4999988
        %v5451 = vmul.f32 %v5446, %v5450
        %v5452 = vadd.f32 1.0, %v5451
        %v5453 = vmul.f32 %v5444, %v5444
        %v5454 = vmul.f32 %v5453, -0.00019511016
        %v5455 = vadd.f32 %v5454, 0.008332121
        %v5456 = vmul.f32 %v5453, %v5455
        %v5457 = vadd.f32 %v5456, -0.16666654
        %v5458 = vmul.f32 %v5453, %v5457
        %v5459 = vadd.f32 %v5458, 1.0
        %v5460 = vmul.f32 %v5459, %v5444
        %vm5461 = vweird.f32 %v172
        %v5462 = vadd.s32 %v5445, 3
        %v5463 = vand.u32 %v5462, 3
        %vm5464 = vcmp.lt.s32.totalorder %v5463, 2
        %vm5465 = vcmp.eq.s32.totalorder %v5463, 0
        %v5466 = vxor.u32 %v5460, 2147483648
        %v5467 = vsel %vm5465, %v5452, %v5466
        %vm5468 = vcmp.eq.s32.totalorder %v5463, 2
        %v5469 = vxor.u32 %v5452, 2147483648
        %v5470 = vsel %vm5468, %v5469, %v5460
        %v5471 = vsel %vm5464, %v5467, %v5470
        %v5472 = vsel %vm5461, nan, %v5471
        %v5473 = vand.u32 2147483647, %v173
        %vm5474 = vcmp.le.f32.partialorder %v5473, 0.7853982
        %vm5475 = vcmp.lt.s32.totalorder %v173, 0
        %v5476 = vand.u32 %v173, 2139095040
        %v5477 = vshrl.u32 %v5476, 23
        %v5478 = vsub.s32 %v5477, 127
        %v5479 = vand.u32 2147483647, %v173
        %v5480 = vand.u32 %v5479, 8388607
        %v5481 = vor.u32 %v5480, 8388608
        %v5482 = vsub.s32 0, %v5481
        %v5483 = vadd.s32 %v5478, 1
        %vm5484 = vcmp.gt.s32.totalorder %v5483, 0
        %v5485 = vsel %vm5484, %v5483, 0
        %v5486 = vshrl.u32 %v5485, 5
        %v5487 = vand.u32 %v5485, 31
        %v5488 = vsub.s32 32, %v5487
        %v5489 = vshrl.u32 683565275, %v5488
        %v5490 = vshll.u32 683565275, %v5487
        %v5491 = vshrl.u32 2475754826, %v5488
        %v5492 = vor.u32 %v5490, %v5491
        %v5493 = vshll.u32 2475754826, %v5487
        %v5494 = vshrl.u32 2131351028, %v5488
        %v5495 = vor.u32 %v5493, %v5494
        %v5496 = vshll.u32 2131351028, %v5487
        %v5497 = vshrl.u32 2102212464, %v5488
        %v5498 = vor.u32 %v5496, %v5497
        %v5499 = vshll.u32 2102212464, %v5487
        %v5500 = vshrl.u32 920167782, %v5488
        %v5501 = vor.u32 %v5499, %v5500
        %v5502 = vshll.u32 920167782, %v5487
        %v5503 = vshrl.u32 1326507024, %v5488
        %v5504 = vor.u32 %v5502, %v5503
        %vm5505 = vcmp.lt.s32.totalorder %v5486, 1
        %vm5506 = vcmp.lt.s32.totalorder %v5486, 2
        %vm5507 = vcmp.lt.s32.totalorder %v5486, 3
        %vm5508 = vcmp.lt.s32.totalorder %v5486, 4
        %v5509 = vsel %vm5505, %v5489, %v5492
        %v5510 = vsel %vm5508, %v5498, 2102212464
        %v5511 = vsel %vm5507, %v5495, %v5510
        %v5512 = vsel %vm5506, %v5509, %v5511
        %v5513 = vsel %vm5505, %v5492, %v5495
        %v5514 = vsel %vm5508, %v5501, 920167782
        %v5515 = vsel %vm5507, %v5498, %v5514
        %v5516 = vsel %vm5506, %v5513, %v5515
        %v5517 = vsel %vm5505, %v5495, %v5498
        %v5518 = vsel %vm5508, %v5504, 1326507024
        %v5519 = vsel %vm5507, %v5501, %v5518
        %v5520 = vsel %vm5506, %v5517, %v5519
        %v5521 = vshll.u32 %v5481, 8
        %v5522 = vand.u32 %v5521, 65535
        %v5523 = vshrl.u32 %v5521, 16
        %v5524 = vand.u32 %v5520, 65535
        %v5525 = vshrl.u32 %v5520, 16
        %v5526 = vmul.u32 %v5522, %v5524
        %v5527 = vmul.u32 %v5522, %v5525
        %v5528 = vmul.u32 %v5523, %v5524
        %v5529 = vmul.u32 %v5523, %v5525
        %v5530 = vshll.u32 %v5527, 16
        %v5531 = vshrl.u32 %v5527, 16
        %v5532 = vshll.u32 %v5528, 16
        %v5533 = vshrl.u32 %v5528, 16
        %vm5534 = vc.u32 %v5526, %v5530
        %v5535 = vsel %vm5534, 1, 0
        %v5536 = vadd.s32 %v5526, %v5530
        %v5537 = vadd.s32 %v5529, %v5535
        %vm5538 = vc.u32 %v5536, %v5532
        %v5539 = vsel %vm5538, 1, 0
        %v5540 = vadd.s32 %v5536, %v5532
        %v5541 = vadd.s32 %v5537, %v5539
        %v5542 = vadd.s32 %v5541, %v5531
        %v5543 = vadd.s32 %v5542, %v5533
        %v5544 = vand.u32 %v5521, 65535
        %v5545 = vshrl.u32 %v5521, 16
        %v5546 = vand.u32 %v5516, 65535
        %v5547 = vshrl.u32 %v5516, 16
        %v5548 = vmul.u32 %v5544, %v5546
        %v5549 = vmul.u32 %v5544, %v5547
        %v5550 = vmul.u32 %v5545, %v5546
        %v5551 = vmul.u32 %v5545, %v5547
        %v5552 = vshll.u32 %v5549, 16
        %v5553 = vshrl.u32 %v5549, 16
        %v5554 = vshll.u32 %v5550, 16
        %v5555 = vshrl.u32 %v5550, 16
        %vm5556 = vc.u32 %v5548, %v5552
        %v5557 = vsel %vm5556, 1, 0
        %v5558 = vadd.s32 %v5548, %v5552
        %v5559 = vadd.s32 %v5551, %v5557
        %vm5560 = vc.u32 %v5558, %v5554
        %v5561 = vsel %vm5560, 1, 0
        %v5562 = vadd.s32 %v5558, %v5554
        %v5563 = vadd.s32 %v5559, %v5561
        %v5564 = vadd.s32 %v5563, %v5553
        %v5565 = vadd.s32 %v5564, %v5555
        %v5566 = vmul.u32 %v5521, %v5512
        %v5567 = vadd.s32 %v5543, %v5562
        %vm5568 = vc.u32 %v5543, %v5562
        %v5569 = vadd.s32 %v5565, 1
        %v5570 = vsel %vm5568, %v5569, %v5565
        %v5571 = vadd.s32 %v5566, %v5570
        %v5572 = vadd.s32 %v5571, 536870912
        %v5573 = vshrl.u32 %v5572, 30
        %v5574 = vshll.u32 %v5573, 30
        %v5575 = vsub.s32 %v5571, %v5574
        %vm5576 = vcmp.lt.s32.totalorder %v5575, 0
        %v5577 = vsub.s32 0, %v5575
        %v5578 = vsel %vm5576, %v5577, %v5575
        %v5579 = vclz %v5578
        %v5580 = vsub.s32 %v5579, 2
        %vm5581 = vcmp.gt.s32.totalorder 0, %v5580
        %v5582 = vsel %vm5581, 0, %v5580
        %v5583 = vsub.s32 32, %v5582
        %v5584 = vshll.u32 %v5575, %v5582
        %v5585 = vshrl.u32 %v5567, %v5583
        %v5586 = vor.u32 %v5584, %v5585
        %v5587 = vsub.s32 4294967266, %v5582
        %v5588 = vadd.s32 %v5587, 127
        %v5589 = vshll.u32 %v5588, 23
        %v5590 = vor.u32 4788187, %v5589
        %v5591 = vand.u32 2147483647, %v5590
        %v5593 = vcvt.s32.f32 %v5586
        %v5594 = vmul.f32 %v5593, %v5591
        %v5595 = vxor.u32 %v5594, 2147483648
        %v5596 = vsel %vm5475, %v5595, %v5594
        %v5597 = vsub.s32 4, %v5573
        %v5598 = vsel %vm5475, %v5597, %v5573
        %v5599 = vsel %vm5474, %v173, %v5596
        %v5600 = vsel %vm5474, 0, %v5598
        %v5601 = vmul.f32 %v5599, %v5599
        %v5602 = vmul.f32 %v5601, -0.001358992
        %v5603 = vadd.f32 %v5602, 0.041655596
        %v5604 = vmul.f32 %v5601, %v5603
        %v5605 = vadd.f32 %v5604, -0.4999988
        %v5606 = vmul.f32 %v5601, %v5605
        %v5607 = vadd.f32 1.0, %v5606
        %v5608 = vmul.f32 %v5599, %v5599
        %v5609 = vmul.f32 %v5608, -0.00019511016
        %v5610 = vadd.f32 %v5609, 0.008332121
        %v5611 = vmul.f32 %v5608, %v5610
        %v5612 = vadd.f32 %v5611, -0.16666654
        %v5613 = vmul.f32 %v5608, %v5612
        %v5614 = vadd.f32 %v5613, 1.0
        %v5615 = vmul.f32 %v5614, %v5599
        %vm5616 = vweird.f32 %v173
        %v5617 = vadd.s32 %v5600, 3
        %v5618 = vand.u32 %v5617, 3
        %vm5619 = vcmp.lt.s32.totalorder %v5618, 2
        %vm5620 = vcmp.eq.s32.totalorder %v5618, 0
        %v5621 = vxor.u32 %v5615, 2147483648
        %v5622 = vsel %vm5620, %v5607, %v5621
        %vm5623 = vcmp.eq.s32.totalorder %v5618, 2
        %v5624 = vxor.u32 %v5607, 2147483648
        %v5625 = vsel %vm5623, %v5624, %v5615
        %v5626 = vsel %vm5619, %v5622, %v5625
        %v5627 = vsel %vm5616, nan, %v5626
        %v5628 = vand.u32 2147483647, %v174
        %vm5629 = vcmp.le.f32.partialorder %v5628, 0.7853982
        %vm5630 = vcmp.lt.s32.totalorder %v174, 0
        %v5631 = vand.u32 %v174, 2139095040
        %v5632 = vshrl.u32 %v5631, 23
        %v5633 = vsub.s32 %v5632, 127
        %v5634 = vand.u32 2147483647, %v174
        %v5635 = vand.u32 %v5634, 8388607
        %v5636 = vor.u32 %v5635, 8388608
        %v5637 = vsub.s32 0, %v5636
        %v5638 = vadd.s32 %v5633, 1
        %vm5639 = vcmp.gt.s32.totalorder %v5638, 0
        %v5640 = vsel %vm5639, %v5638, 0
        %v5641 = vshrl.u32 %v5640, 5
        %v5642 = vand.u32 %v5640, 31
        %v5643 = vsub.s32 32, %v5642
        %v5644 = vshrl.u32 683565275, %v5643
        %v5645 = vshll.u32 683565275, %v5642
        %v5646 = vshrl.u32 2475754826, %v5643
        %v5647 = vor.u32 %v5645, %v5646
        %v5648 = vshll.u32 2475754826, %v5642
        %v5649 = vshrl.u32 2131351028, %v5643
        %v5650 = vor.u32 %v5648, %v5649
        %v5651 = vshll.u32 2131351028, %v5642
        %v5652 = vshrl.u32 2102212464, %v5643
        %v5653 = vor.u32 %v5651, %v5652
        %v5654 = vshll.u32 2102212464, %v5642
        %v5655 = vshrl.u32 920167782, %v5643
        %v5656 = vor.u32 %v5654, %v5655
        %v5657 = vshll.u32 920167782, %v5642
        %v5658 = vshrl.u32 1326507024, %v5643
        %v5659 = vor.u32 %v5657, %v5658
        %vm5660 = vcmp.lt.s32.totalorder %v5641, 1
        %vm5661 = vcmp.lt.s32.totalorder %v5641, 2
        %vm5662 = vcmp.lt.s32.totalorder %v5641, 3
        %vm5663 = vcmp.lt.s32.totalorder %v5641, 4
        %v5664 = vsel %vm5660, %v5644, %v5647
        %v5665 = vsel %vm5663, %v5653, 2102212464
        %v5666 = vsel %vm5662, %v5650, %v5665
        %v5667 = vsel %vm5661, %v5664, %v5666
        %v5668 = vsel %vm5660, %v5647, %v5650
        %v5669 = vsel %vm5663, %v5656, 920167782
        %v5670 = vsel %vm5662, %v5653, %v5669
        %v5671 = vsel %vm5661, %v5668, %v5670
        %v5672 = vsel %vm5660, %v5650, %v5653
        %v5673 = vsel %vm5663, %v5659, 1326507024
        %v5674 = vsel %vm5662, %v5656, %v5673
        %v5675 = vsel %vm5661, %v5672, %v5674
        %v5676 = vshll.u32 %v5636, 8
        %v5677 = vand.u32 %v5676, 65535
        %v5678 = vshrl.u32 %v5676, 16
        %v5679 = vand.u32 %v5675, 65535
        %v5680 = vshrl.u32 %v5675, 16
        %v5681 = vmul.u32 %v5677, %v5679
        %v5682 = vmul.u32 %v5677, %v5680
        %v5683 = vmul.u32 %v5678, %v5679
        %v5684 = vmul.u32 %v5678, %v5680
        %v5685 = vshll.u32 %v5682, 16
        %v5686 = vshrl.u32 %v5682, 16
        %v5687 = vshll.u32 %v5683, 16
        %v5688 = vshrl.u32 %v5683, 16
        %vm5689 = vc.u32 %v5681, %v5685
        %v5690 = vsel %vm5689, 1, 0
        %v5691 = vadd.s32 %v5681, %v5685
        %v5692 = vadd.s32 %v5684, %v5690
        %vm5693 = vc.u32 %v5691, %v5687
        %v5694 = vsel %vm5693, 1, 0
        %v5695 = vadd.s32 %v5691, %v5687
        %v5696 = vadd.s32 %v5692, %v5694
        %v5697 = vadd.s32 %v5696, %v5686
        %v5698 = vadd.s32 %v5697, %v5688
        %v5699 = vand.u32 %v5676, 65535
        %v5700 = vshrl.u32 %v5676, 16
        %v5701 = vand.u32 %v5671, 65535
        %v5702 = vshrl.u32 %v5671, 16
        %v5703 = vmul.u32 %v5699, %v5701
        %v5704 = vmul.u32 %v5699, %v5702
        %v5705 = vmul.u32 %v5700, %v5701
        %v5706 = vmul.u32 %v5700, %v5702
        %v5707 = vshll.u32 %v5704, 16
        %v5708 = vshrl.u32 %v5704, 16
        %v5709 = vshll.u32 %v5705, 16
        %v5710 = vshrl.u32 %v5705, 16
        %vm5711 = vc.u32 %v5703, %v5707
        %v5712 = vsel %vm5711, 1, 0
        %v5713 = vadd.s32 %v5703, %v5707
        %v5714 = vadd.s32 %v5706, %v5712
        %vm5715 = vc.u32 %v5713, %v5709
        %v5716 = vsel %vm5715, 1, 0
        %v5717 = vadd.s32 %v5713, %v5709
        %v5718 = vadd.s32 %v5714, %v5716
        %v5719 = vadd.s32 %v5718, %v5708
        %v5720 = vadd.s32 %v5719, %v5710
        %v5721 = vmul.u32 %v5676, %v5667
        %v5722 = vadd.s32 %v5698, %v5717
        %vm5723 = vc.u32 %v5698, %v5717
        %v5724 = vadd.s32 %v5720, 1
        %v5725 = vsel %vm5723, %v5724, %v5720
        %v5726 = vadd.s32 %v5721, %v5725
        %v5727 = vadd.s32 %v5726, 536870912
        %v5728 = vshrl.u32 %v5727, 30
        %v5729 = vshll.u32 %v5728, 30
        %v5730 = vsub.s32 %v5726, %v5729
        %vm5731 = vcmp.lt.s32.totalorder %v5730, 0
        %v5732 = vsub.s32 0, %v5730
        %v5733 = vsel %vm5731, %v5732, %v5730
        %v5734 = vclz %v5733
        %v5735 = vsub.s32 %v5734, 2
        %vm5736 = vcmp.gt.s32.totalorder 0, %v5735
        %v5737 = vsel %vm5736, 0, %v5735
        %v5738 = vsub.s32 32, %v5737
        %v5739 = vshll.u32 %v5730, %v5737
        %v5740 = vshrl.u32 %v5722, %v5738
        %v5741 = vor.u32 %v5739, %v5740
        %v5742 = vsub.s32 4294967266, %v5737
        %v5743 = vadd.s32 %v5742, 127
        %v5744 = vshll.u32 %v5743, 23
        %v5745 = vor.u32 4788187, %v5744
        %v5746 = vand.u32 2147483647, %v5745
        %v5748 = vcvt.s32.f32 %v5741
        %v5749 = vmul.f32 %v5748, %v5746
        %v5750 = vxor.u32 %v5749, 2147483648
        %v5751 = vsel %vm5630, %v5750, %v5749
        %v5752 = vsub.s32 4, %v5728
        %v5753 = vsel %vm5630, %v5752, %v5728
        %v5754 = vsel %vm5629, %v174, %v5751
        %v5755 = vsel %vm5629, 0, %v5753
        %v5756 = vmul.f32 %v5754, %v5754
        %v5757 = vmul.f32 %v5756, -0.001358992
        %v5758 = vadd.f32 %v5757, 0.041655596
        %v5759 = vmul.f32 %v5756, %v5758
        %v5760 = vadd.f32 %v5759, -0.4999988
        %v5761 = vmul.f32 %v5756, %v5760
        %v5762 = vadd.f32 1.0, %v5761
        %v5763 = vmul.f32 %v5754, %v5754
        %v5764 = vmul.f32 %v5763, -0.00019511016
        %v5765 = vadd.f32 %v5764, 0.008332121
        %v5766 = vmul.f32 %v5763, %v5765
        %v5767 = vadd.f32 %v5766, -0.16666654
        %v5768 = vmul.f32 %v5763, %v5767
        %v5769 = vadd.f32 %v5768, 1.0
        %v5770 = vmul.f32 %v5769, %v5754
        %vm5771 = vweird.f32 %v174
        %v5772 = vadd.s32 %v5755, 3
        %v5773 = vand.u32 %v5772, 3
        %vm5774 = vcmp.lt.s32.totalorder %v5773, 2
        %vm5775 = vcmp.eq.s32.totalorder %v5773, 0
        %v5776 = vxor.u32 %v5770, 2147483648
        %v5777 = vsel %vm5775, %v5762, %v5776
        %vm5778 = vcmp.eq.s32.totalorder %v5773, 2
        %v5779 = vxor.u32 %v5762, 2147483648
        %v5780 = vsel %vm5778, %v5779, %v5770
        %v5781 = vsel %vm5774, %v5777, %v5780
        %v5782 = vsel %vm5771, nan, %v5781
        %v5783 = vand.u32 2147483647, %v175
        %vm5784 = vcmp.le.f32.partialorder %v5783, 0.7853982
        %vm5785 = vcmp.lt.s32.totalorder %v175, 0
        %v5786 = vand.u32 %v175, 2139095040
        %v5787 = vshrl.u32 %v5786, 23
        %v5788 = vsub.s32 %v5787, 127
        %v5789 = vand.u32 2147483647, %v175
        %v5790 = vand.u32 %v5789, 8388607
        %v5791 = vor.u32 %v5790, 8388608
        %v5792 = vsub.s32 0, %v5791
        %v5793 = vadd.s32 %v5788, 1
        %vm5794 = vcmp.gt.s32.totalorder %v5793, 0
        %v5795 = vsel %vm5794, %v5793, 0
        %v5796 = vshrl.u32 %v5795, 5
        %v5797 = vand.u32 %v5795, 31
        %v5798 = vsub.s32 32, %v5797
        %v5799 = vshrl.u32 683565275, %v5798
        %v5800 = vshll.u32 683565275, %v5797
        %v5801 = vshrl.u32 2475754826, %v5798
        %v5802 = vor.u32 %v5800, %v5801
        %v5803 = vshll.u32 2475754826, %v5797
        %v5804 = vshrl.u32 2131351028, %v5798
        %v5805 = vor.u32 %v5803, %v5804
        %v5806 = vshll.u32 2131351028, %v5797
        %v5807 = vshrl.u32 2102212464, %v5798
        %v5808 = vor.u32 %v5806, %v5807
        %v5809 = vshll.u32 2102212464, %v5797
        %v5810 = vshrl.u32 920167782, %v5798
        %v5811 = vor.u32 %v5809, %v5810
        %v5812 = vshll.u32 920167782, %v5797
        %v5813 = vshrl.u32 1326507024, %v5798
        %v5814 = vor.u32 %v5812, %v5813
        %vm5815 = vcmp.lt.s32.totalorder %v5796, 1
        %vm5816 = vcmp.lt.s32.totalorder %v5796, 2
        %vm5817 = vcmp.lt.s32.totalorder %v5796, 3
        %vm5818 = vcmp.lt.s32.totalorder %v5796, 4
        %v5819 = vsel %vm5815, %v5799, %v5802
        %v5820 = vsel %vm5818, %v5808, 2102212464
        %v5821 = vsel %vm5817, %v5805, %v5820
        %v5822 = vsel %vm5816, %v5819, %v5821
        %v5823 = vsel %vm5815, %v5802, %v5805
        %v5824 = vsel %vm5818, %v5811, 920167782
        %v5825 = vsel %vm5817, %v5808, %v5824
        %v5826 = vsel %vm5816, %v5823, %v5825
        %v5827 = vsel %vm5815, %v5805, %v5808
        %v5828 = vsel %vm5818, %v5814, 1326507024
        %v5829 = vsel %vm5817, %v5811, %v5828
        %v5830 = vsel %vm5816, %v5827, %v5829
        %v5831 = vshll.u32 %v5791, 8
        %v5832 = vand.u32 %v5831, 65535
        %v5833 = vshrl.u32 %v5831, 16
        %v5834 = vand.u32 %v5830, 65535
        %v5835 = vshrl.u32 %v5830, 16
        %v5836 = vmul.u32 %v5832, %v5834
        %v5837 = vmul.u32 %v5832, %v5835
        %v5838 = vmul.u32 %v5833, %v5834
        %v5839 = vmul.u32 %v5833, %v5835
        %v5840 = vshll.u32 %v5837, 16
        %v5841 = vshrl.u32 %v5837, 16
        %v5842 = vshll.u32 %v5838, 16
        %v5843 = vshrl.u32 %v5838, 16
        %vm5844 = vc.u32 %v5836, %v5840
        %v5845 = vsel %vm5844, 1, 0
        %v5846 = vadd.s32 %v5836, %v5840
        %v5847 = vadd.s32 %v5839, %v5845
        %vm5848 = vc.u32 %v5846, %v5842
        %v5849 = vsel %vm5848, 1, 0
        %v5850 = vadd.s32 %v5846, %v5842
        %v5851 = vadd.s32 %v5847, %v5849
        %v5852 = vadd.s32 %v5851, %v5841
        %v5853 = vadd.s32 %v5852, %v5843
        %v5854 = vand.u32 %v5831, 65535
        %v5855 = vshrl.u32 %v5831, 16
        %v5856 = vand.u32 %v5826, 65535
        %v5857 = vshrl.u32 %v5826, 16
        %v5858 = vmul.u32 %v5854, %v5856
        %v5859 = vmul.u32 %v5854, %v5857
        %v5860 = vmul.u32 %v5855, %v5856
        %v5861 = vmul.u32 %v5855, %v5857
        %v5862 = vshll.u32 %v5859, 16
        %v5863 = vshrl.u32 %v5859, 16
        %v5864 = vshll.u32 %v5860, 16
        %v5865 = vshrl.u32 %v5860, 16
        %vm5866 = vc.u32 %v5858, %v5862
        %v5867 = vsel %vm5866, 1, 0
        %v5868 = vadd.s32 %v5858, %v5862
        %v5869 = vadd.s32 %v5861, %v5867
        %vm5870 = vc.u32 %v5868, %v5864
        %v5871 = vsel %vm5870, 1, 0
        %v5872 = vadd.s32 %v5868, %v5864
        %v5873 = vadd.s32 %v5869, %v5871
        %v5874 = vadd.s32 %v5873, %v5863
        %v5875 = vadd.s32 %v5874, %v5865
        %v5876 = vmul.u32 %v5831, %v5822
        %v5877 = vadd.s32 %v5853, %v5872
        %vm5878 = vc.u32 %v5853, %v5872
        %v5879 = vadd.s32 %v5875, 1
        %v5880 = vsel %vm5878, %v5879, %v5875
        %v5881 = vadd.s32 %v5876, %v5880
        %v5882 = vadd.s32 %v5881, 536870912
        %v5883 = vshrl.u32 %v5882, 30
        %v5884 = vshll.u32 %v5883, 30
        %v5885 = vsub.s32 %v5881, %v5884
        %vm5886 = vcmp.lt.s32.totalorder %v5885, 0
        %v5887 = vsub.s32 0, %v5885
        %v5888 = vsel %vm5886, %v5887, %v5885
        %v5889 = vclz %v5888
        %v5890 = vsub.s32 %v5889, 2
        %vm5891 = vcmp.gt.s32.totalorder 0, %v5890
        %v5892 = vsel %vm5891, 0, %v5890
        %v5893 = vsub.s32 32, %v5892
        %v5894 = vshll.u32 %v5885, %v5892
        %v5895 = vshrl.u32 %v5877, %v5893
        %v5896 = vor.u32 %v5894, %v5895
        %v5897 = vsub.s32 4294967266, %v5892
        %v5898 = vadd.s32 %v5897, 127
        %v5899 = vshll.u32 %v5898, 23
        %v5900 = vor.u32 4788187, %v5899
        %v5901 = vand.u32 2147483647, %v5900
        %v5903 = vcvt.s32.f32 %v5896
        %v5904 = vmul.f32 %v5903, %v5901
        %v5905 = vxor.u32 %v5904, 2147483648
        %v5906 = vsel %vm5785, %v5905, %v5904
        %v5907 = vsub.s32 4, %v5883
        %v5908 = vsel %vm5785, %v5907, %v5883
        %v5909 = vsel %vm5784, %v175, %v5906
        %v5910 = vsel %vm5784, 0, %v5908
        %v5911 = vmul.f32 %v5909, %v5909
        %v5912 = vmul.f32 %v5911, -0.001358992
        %v5913 = vadd.f32 %v5912, 0.041655596
        %v5914 = vmul.f32 %v5911, %v5913
        %v5915 = vadd.f32 %v5914, -0.4999988
        %v5916 = vmul.f32 %v5911, %v5915
        %v5917 = vadd.f32 1.0, %v5916
        %v5918 = vmul.f32 %v5909, %v5909
        %v5919 = vmul.f32 %v5918, -0.00019511016
        %v5920 = vadd.f32 %v5919, 0.008332121
        %v5921 = vmul.f32 %v5918, %v5920
        %v5922 = vadd.f32 %v5921, -0.16666654
        %v5923 = vmul.f32 %v5918, %v5922
        %v5924 = vadd.f32 %v5923, 1.0
        %v5925 = vmul.f32 %v5924, %v5909
        %vm5926 = vweird.f32 %v175
        %v5927 = vadd.s32 %v5910, 3
        %v5928 = vand.u32 %v5927, 3
        %vm5929 = vcmp.lt.s32.totalorder %v5928, 2
        %vm5930 = vcmp.eq.s32.totalorder %v5928, 0
        %v5931 = vxor.u32 %v5925, 2147483648
        %v5932 = vsel %vm5930, %v5917, %v5931
        %vm5933 = vcmp.eq.s32.totalorder %v5928, 2
        %v5934 = vxor.u32 %v5917, 2147483648
        %v5935 = vsel %vm5933, %v5934, %v5925
        %v5936 = vsel %vm5929, %v5932, %v5935
        %v5937 = vsel %vm5926, nan, %v5936
        %v5938 = vand.u32 2147483647, %v176
        %vm5939 = vcmp.le.f32.partialorder %v5938, 0.7853982
        %vm5940 = vcmp.lt.s32.totalorder %v176, 0
        %v5941 = vand.u32 %v176, 2139095040
        %v5942 = vshrl.u32 %v5941, 23
        %v5943 = vsub.s32 %v5942, 127
        %v5944 = vand.u32 2147483647, %v176
        %v5945 = vand.u32 %v5944, 8388607
        %v5946 = vor.u32 %v5945, 8388608
        %v5947 = vsub.s32 0, %v5946
        %v5948 = vadd.s32 %v5943, 1
        %vm5949 = vcmp.gt.s32.totalorder %v5948, 0
        %v5950 = vsel %vm5949, %v5948, 0
        %v5951 = vshrl.u32 %v5950, 5
        %v5952 = vand.u32 %v5950, 31
        %v5953 = vsub.s32 32, %v5952
        %v5954 = vshrl.u32 683565275, %v5953
        %v5955 = vshll.u32 683565275, %v5952
        %v5956 = vshrl.u32 2475754826, %v5953
        %v5957 = vor.u32 %v5955, %v5956
        %v5958 = vshll.u32 2475754826, %v5952
        %v5959 = vshrl.u32 2131351028, %v5953
        %v5960 = vor.u32 %v5958, %v5959
        %v5961 = vshll.u32 2131351028, %v5952
        %v5962 = vshrl.u32 2102212464, %v5953
        %v5963 = vor.u32 %v5961, %v5962
        %v5964 = vshll.u32 2102212464, %v5952
        %v5965 = vshrl.u32 920167782, %v5953
        %v5966 = vor.u32 %v5964, %v5965
        %v5967 = vshll.u32 920167782, %v5952
        %v5968 = vshrl.u32 1326507024, %v5953
        %v5969 = vor.u32 %v5967, %v5968
        %vm5970 = vcmp.lt.s32.totalorder %v5951, 1
        %vm5971 = vcmp.lt.s32.totalorder %v5951, 2
        %vm5972 = vcmp.lt.s32.totalorder %v5951, 3
        %vm5973 = vcmp.lt.s32.totalorder %v5951, 4
        %v5974 = vsel %vm5970, %v5954, %v5957
        %v5975 = vsel %vm5973, %v5963, 2102212464
        %v5976 = vsel %vm5972, %v5960, %v5975
        %v5977 = vsel %vm5971, %v5974, %v5976
        %v5978 = vsel %vm5970, %v5957, %v5960
        %v5979 = vsel %vm5973, %v5966, 920167782
        %v5980 = vsel %vm5972, %v5963, %v5979
        %v5981 = vsel %vm5971, %v5978, %v5980
        %v5982 = vsel %vm5970, %v5960, %v5963
        %v5983 = vsel %vm5973, %v5969, 1326507024
        %v5984 = vsel %vm5972, %v5966, %v5983
        %v5985 = vsel %vm5971, %v5982, %v5984
        %v5986 = vshll.u32 %v5946, 8
        %v5987 = vand.u32 %v5986, 65535
        %v5988 = vshrl.u32 %v5986, 16
        %v5989 = vand.u32 %v5985, 65535
        %v5990 = vshrl.u32 %v5985, 16
        %v5991 = vmul.u32 %v5987, %v5989
        %v5992 = vmul.u32 %v5987, %v5990
        %v5993 = vmul.u32 %v5988, %v5989
        %v5994 = vmul.u32 %v5988, %v5990
        %v5995 = vshll.u32 %v5992, 16
        %v5996 = vshrl.u32 %v5992, 16
        %v5997 = vshll.u32 %v5993, 16
        %v5998 = vshrl.u32 %v5993, 16
        %vm5999 = vc.u32 %v5991, %v5995
        %v6000 = vsel %vm5999, 1, 0
        %v6001 = vadd.s32 %v5991, %v5995
        %v6002 = vadd.s32 %v5994, %v6000
        %vm6003 = vc.u32 %v6001, %v5997
        %v6004 = vsel %vm6003, 1, 0
        %v6005 = vadd.s32 %v6001, %v5997
        %v6006 = vadd.s32 %v6002, %v6004
        %v6007 = vadd.s32 %v6006, %v5996
        %v6008 = vadd.s32 %v6007, %v5998
        %v6009 = vand.u32 %v5986, 65535
        %v6010 = vshrl.u32 %v5986, 16
        %v6011 = vand.u32 %v5981, 65535
        %v6012 = vshrl.u32 %v5981, 16
        %v6013 = vmul.u32 %v6009, %v6011
        %v6014 = vmul.u32 %v6009, %v6012
        %v6015 = vmul.u32 %v6010, %v6011
        %v6016 = vmul.u32 %v6010, %v6012
        %v6017 = vshll.u32 %v6014, 16
        %v6018 = vshrl.u32 %v6014, 16
        %v6019 = vshll.u32 %v6015, 16
        %v6020 = vshrl.u32 %v6015, 16
        %vm6021 = vc.u32 %v6013, %v6017
        %v6022 = vsel %vm6021, 1, 0
        %v6023 = vadd.s32 %v6013, %v6017
        %v6024 = vadd.s32 %v6016, %v6022
        %vm6025 = vc.u32 %v6023, %v6019
        %v6026 = vsel %vm6025, 1, 0
        %v6027 = vadd.s32 %v6023, %v6019
        %v6028 = vadd.s32 %v6024, %v6026
        %v6029 = vadd.s32 %v6028, %v6018
        %v6030 = vadd.s32 %v6029, %v6020
        %v6031 = vmul.u32 %v5986, %v5977
        %v6032 = vadd.s32 %v6008, %v6027
        %vm6033 = vc.u32 %v6008, %v6027
        %v6034 = vadd.s32 %v6030, 1
        %v6035 = vsel %vm6033, %v6034, %v6030
        %v6036 = vadd.s32 %v6031, %v6035
        %v6037 = vadd.s32 %v6036, 536870912
        %v6038 = vshrl.u32 %v6037, 30
        %v6039 = vshll.u32 %v6038, 30
        %v6040 = vsub.s32 %v6036, %v6039
        %vm6041 = vcmp.lt.s32.totalorder %v6040, 0
        %v6042 = vsub.s32 0, %v6040
        %v6043 = vsel %vm6041, %v6042, %v6040
        %v6044 = vclz %v6043
        %v6045 = vsub.s32 %v6044, 2
        %vm6046 = vcmp.gt.s32.totalorder 0, %v6045
        %v6047 = vsel %vm6046, 0, %v6045
        %v6048 = vsub.s32 32, %v6047
        %v6049 = vshll.u32 %v6040, %v6047
        %v6050 = vshrl.u32 %v6032, %v6048
        %v6051 = vor.u32 %v6049, %v6050
        %v6052 = vsub.s32 4294967266, %v6047
        %v6053 = vadd.s32 %v6052, 127
        %v6054 = vshll.u32 %v6053, 23
        %v6055 = vor.u32 4788187, %v6054
        %v6056 = vand.u32 2147483647, %v6055
        %v6058 = vcvt.s32.f32 %v6051
        %v6059 = vmul.f32 %v6058, %v6056
        %v6060 = vxor.u32 %v6059, 2147483648
        %v6061 = vsel %vm5940, %v6060, %v6059
        %v6062 = vsub.s32 4, %v6038
        %v6063 = vsel %vm5940, %v6062, %v6038
        %v6064 = vsel %vm5939, %v176, %v6061
        %v6065 = vsel %vm5939, 0, %v6063
        %v6066 = vmul.f32 %v6064, %v6064
        %v6067 = vmul.f32 %v6066, -0.001358992
        %v6068 = vadd.f32 %v6067, 0.041655596
        %v6069 = vmul.f32 %v6066, %v6068
        %v6070 = vadd.f32 %v6069, -0.4999988
        %v6071 = vmul.f32 %v6066, %v6070
        %v6072 = vadd.f32 1.0, %v6071
        %v6073 = vmul.f32 %v6064, %v6064
        %v6074 = vmul.f32 %v6073, -0.00019511016
        %v6075 = vadd.f32 %v6074, 0.008332121
        %v6076 = vmul.f32 %v6073, %v6075
        %v6077 = vadd.f32 %v6076, -0.16666654
        %v6078 = vmul.f32 %v6073, %v6077
        %v6079 = vadd.f32 %v6078, 1.0
        %v6080 = vmul.f32 %v6079, %v6064
        %vm6081 = vweird.f32 %v176
        %v6082 = vadd.s32 %v6065, 3
        %v6083 = vand.u32 %v6082, 3
        %vm6084 = vcmp.lt.s32.totalorder %v6083, 2
        %vm6085 = vcmp.eq.s32.totalorder %v6083, 0
        %v6086 = vxor.u32 %v6080, 2147483648
        %v6087 = vsel %vm6085, %v6072, %v6086
        %vm6088 = vcmp.eq.s32.totalorder %v6083, 2
        %v6089 = vxor.u32 %v6072, 2147483648
        %v6090 = vsel %vm6088, %v6089, %v6080
        %v6091 = vsel %vm6084, %v6087, %v6090
        %v6092 = vsel %vm6081, nan, %v6091
        %v6093 = vand.u32 2147483647, %v177
        %vm6094 = vcmp.le.f32.partialorder %v6093, 0.7853982
        %vm6095 = vcmp.lt.s32.totalorder %v177, 0
        %v6096 = vand.u32 %v177, 2139095040
        %v6097 = vshrl.u32 %v6096, 23
        %v6098 = vsub.s32 %v6097, 127
        %v6099 = vand.u32 2147483647, %v177
        %v6100 = vand.u32 %v6099, 8388607
        %v6101 = vor.u32 %v6100, 8388608
        %v6102 = vsub.s32 0, %v6101
        %v6103 = vadd.s32 %v6098, 1
        %vm6104 = vcmp.gt.s32.totalorder %v6103, 0
        %v6105 = vsel %vm6104, %v6103, 0
        %v6106 = vshrl.u32 %v6105, 5
        %v6107 = vand.u32 %v6105, 31
        %v6108 = vsub.s32 32, %v6107
        %v6109 = vshrl.u32 683565275, %v6108
        %v6110 = vshll.u32 683565275, %v6107
        %v6111 = vshrl.u32 2475754826, %v6108
        %v6112 = vor.u32 %v6110, %v6111
        %v6113 = vshll.u32 2475754826, %v6107
        %v6114 = vshrl.u32 2131351028, %v6108
        %v6115 = vor.u32 %v6113, %v6114
        %v6116 = vshll.u32 2131351028, %v6107
        %v6117 = vshrl.u32 2102212464, %v6108
        %v6118 = vor.u32 %v6116, %v6117
        %v6119 = vshll.u32 2102212464, %v6107
        %v6120 = vshrl.u32 920167782, %v6108
        %v6121 = vor.u32 %v6119, %v6120
        %v6122 = vshll.u32 920167782, %v6107
        %v6123 = vshrl.u32 1326507024, %v6108
        %v6124 = vor.u32 %v6122, %v6123
        %vm6125 = vcmp.lt.s32.totalorder %v6106, 1
        %vm6126 = vcmp.lt.s32.totalorder %v6106, 2
        %vm6127 = vcmp.lt.s32.totalorder %v6106, 3
        %vm6128 = vcmp.lt.s32.totalorder %v6106, 4
        %v6129 = vsel %vm6125, %v6109, %v6112
        %v6130 = vsel %vm6128, %v6118, 2102212464
        %v6131 = vsel %vm6127, %v6115, %v6130
        %v6132 = vsel %vm6126, %v6129, %v6131
        %v6133 = vsel %vm6125, %v6112, %v6115
        %v6134 = vsel %vm6128, %v6121, 920167782
        %v6135 = vsel %vm6127, %v6118, %v6134
        %v6136 = vsel %vm6126, %v6133, %v6135
        %v6137 = vsel %vm6125, %v6115, %v6118
        %v6138 = vsel %vm6128, %v6124, 1326507024
        %v6139 = vsel %vm6127, %v6121, %v6138
        %v6140 = vsel %vm6126, %v6137, %v6139
        %v6141 = vshll.u32 %v6101, 8
        %v6142 = vand.u32 %v6141, 65535
        %v6143 = vshrl.u32 %v6141, 16
        %v6144 = vand.u32 %v6140, 65535
        %v6145 = vshrl.u32 %v6140, 16
        %v6146 = vmul.u32 %v6142, %v6144
        %v6147 = vmul.u32 %v6142, %v6145
        %v6148 = vmul.u32 %v6143, %v6144
        %v6149 = vmul.u32 %v6143, %v6145
        %v6150 = vshll.u32 %v6147, 16
        %v6151 = vshrl.u32 %v6147, 16
        %v6152 = vshll.u32 %v6148, 16
        %v6153 = vshrl.u32 %v6148, 16
        %vm6154 = vc.u32 %v6146, %v6150
        %v6155 = vsel %vm6154, 1, 0
        %v6156 = vadd.s32 %v6146, %v6150
        %v6157 = vadd.s32 %v6149, %v6155
        %vm6158 = vc.u32 %v6156, %v6152
        %v6159 = vsel %vm6158, 1, 0
        %v6160 = vadd.s32 %v6156, %v6152
        %v6161 = vadd.s32 %v6157, %v6159
        %v6162 = vadd.s32 %v6161, %v6151
        %v6163 = vadd.s32 %v6162, %v6153
        %v6164 = vand.u32 %v6141, 65535
        %v6165 = vshrl.u32 %v6141, 16
        %v6166 = vand.u32 %v6136, 65535
        %v6167 = vshrl.u32 %v6136, 16
        %v6168 = vmul.u32 %v6164, %v6166
        %v6169 = vmul.u32 %v6164, %v6167
        %v6170 = vmul.u32 %v6165, %v6166
        %v6171 = vmul.u32 %v6165, %v6167
        %v6172 = vshll.u32 %v6169, 16
        %v6173 = vshrl.u32 %v6169, 16
        %v6174 = vshll.u32 %v6170, 16
        %v6175 = vshrl.u32 %v6170, 16
        %vm6176 = vc.u32 %v6168, %v6172
        %v6177 = vsel %vm6176, 1, 0
        %v6178 = vadd.s32 %v6168, %v6172
        %v6179 = vadd.s32 %v6171, %v6177
        %vm6180 = vc.u32 %v6178, %v6174
        %v6181 = vsel %vm6180, 1, 0
        %v6182 = vadd.s32 %v6178, %v6174
        %v6183 = vadd.s32 %v6179, %v6181
        %v6184 = vadd.s32 %v6183, %v6173
        %v6185 = vadd.s32 %v6184, %v6175
        %v6186 = vmul.u32 %v6141, %v6132
        %v6187 = vadd.s32 %v6163, %v6182
        %vm6188 = vc.u32 %v6163, %v6182
        %v6189 = vadd.s32 %v6185, 1
        %v6190 = vsel %vm6188, %v6189, %v6185
        %v6191 = vadd.s32 %v6186, %v6190
        %v6192 = vadd.s32 %v6191, 536870912
        %v6193 = vshrl.u32 %v6192, 30
        %v6194 = vshll.u32 %v6193, 30
        %v6195 = vsub.s32 %v6191, %v6194
        %vm6196 = vcmp.lt.s32.totalorder %v6195, 0
        %v6197 = vsub.s32 0, %v6195
        %v6198 = vsel %vm6196, %v6197, %v6195
        %v6199 = vclz %v6198
        %v6200 = vsub.s32 %v6199, 2
        %vm6201 = vcmp.gt.s32.totalorder 0, %v6200
        %v6202 = vsel %vm6201, 0, %v6200
        %v6203 = vsub.s32 32, %v6202
        %v6204 = vshll.u32 %v6195, %v6202
        %v6205 = vshrl.u32 %v6187, %v6203
        %v6206 = vor.u32 %v6204, %v6205
        %v6207 = vsub.s32 4294967266, %v6202
        %v6208 = vadd.s32 %v6207, 127
        %v6209 = vshll.u32 %v6208, 23
        %v6210 = vor.u32 4788187, %v6209
        %v6211 = vand.u32 2147483647, %v6210
        %v6213 = vcvt.s32.f32 %v6206
        %v6214 = vmul.f32 %v6213, %v6211
        %v6215 = vxor.u32 %v6214, 2147483648
        %v6216 = vsel %vm6095, %v6215, %v6214
        %v6217 = vsub.s32 4, %v6193
        %v6218 = vsel %vm6095, %v6217, %v6193
        %v6219 = vsel %vm6094, %v177, %v6216
        %v6220 = vsel %vm6094, 0, %v6218
        %v6221 = vmul.f32 %v6219, %v6219
        %v6222 = vmul.f32 %v6221, -0.001358992
        %v6223 = vadd.f32 %v6222, 0.041655596
        %v6224 = vmul.f32 %v6221, %v6223
        %v6225 = vadd.f32 %v6224, -0.4999988
        %v6226 = vmul.f32 %v6221, %v6225
        %v6227 = vadd.f32 1.0, %v6226
        %v6228 = vmul.f32 %v6219, %v6219
        %v6229 = vmul.f32 %v6228, -0.00019511016
        %v6230 = vadd.f32 %v6229, 0.008332121
        %v6231 = vmul.f32 %v6228, %v6230
        %v6232 = vadd.f32 %v6231, -0.16666654
        %v6233 = vmul.f32 %v6228, %v6232
        %v6234 = vadd.f32 %v6233, 1.0
        %v6235 = vmul.f32 %v6234, %v6219
        %vm6236 = vweird.f32 %v177
        %v6237 = vadd.s32 %v6220, 3
        %v6238 = vand.u32 %v6237, 3
        %vm6239 = vcmp.lt.s32.totalorder %v6238, 2
        %vm6240 = vcmp.eq.s32.totalorder %v6238, 0
        %v6241 = vxor.u32 %v6235, 2147483648
        %v6242 = vsel %vm6240, %v6227, %v6241
        %vm6243 = vcmp.eq.s32.totalorder %v6238, 2
        %v6244 = vxor.u32 %v6227, 2147483648
        %v6245 = vsel %vm6243, %v6244, %v6235
        %v6246 = vsel %vm6239, %v6242, %v6245
        %v6247 = vsel %vm6236, nan, %v6246
        %v6248 = vand.u32 2147483647, %v178
        %vm6249 = vcmp.le.f32.partialorder %v6248, 0.7853982
        %vm6250 = vcmp.lt.s32.totalorder %v178, 0
        %v6251 = vand.u32 %v178, 2139095040
        %v6252 = vshrl.u32 %v6251, 23
        %v6253 = vsub.s32 %v6252, 127
        %v6254 = vand.u32 2147483647, %v178
        %v6255 = vand.u32 %v6254, 8388607
        %v6256 = vor.u32 %v6255, 8388608
        %v6257 = vsub.s32 0, %v6256
        %v6258 = vadd.s32 %v6253, 1
        %vm6259 = vcmp.gt.s32.totalorder %v6258, 0
        %v6260 = vsel %vm6259, %v6258, 0
        %v6261 = vshrl.u32 %v6260, 5
        %v6262 = vand.u32 %v6260, 31
        %v6263 = vsub.s32 32, %v6262
        %v6264 = vshrl.u32 683565275, %v6263
        %v6265 = vshll.u32 683565275, %v6262
        %v6266 = vshrl.u32 2475754826, %v6263
        %v6267 = vor.u32 %v6265, %v6266
        %v6268 = vshll.u32 2475754826, %v6262
        %v6269 = vshrl.u32 2131351028, %v6263
        %v6270 = vor.u32 %v6268, %v6269
        %v6271 = vshll.u32 2131351028, %v6262
        %v6272 = vshrl.u32 2102212464, %v6263
        %v6273 = vor.u32 %v6271, %v6272
        %v6274 = vshll.u32 2102212464, %v6262
        %v6275 = vshrl.u32 920167782, %v6263
        %v6276 = vor.u32 %v6274, %v6275
        %v6277 = vshll.u32 920167782, %v6262
        %v6278 = vshrl.u32 1326507024, %v6263
        %v6279 = vor.u32 %v6277, %v6278
        %vm6280 = vcmp.lt.s32.totalorder %v6261, 1
        %vm6281 = vcmp.lt.s32.totalorder %v6261, 2
        %vm6282 = vcmp.lt.s32.totalorder %v6261, 3
        %vm6283 = vcmp.lt.s32.totalorder %v6261, 4
        %v6284 = vsel %vm6280, %v6264, %v6267
        %v6285 = vsel %vm6283, %v6273, 2102212464
        %v6286 = vsel %vm6282, %v6270, %v6285
        %v6287 = vsel %vm6281, %v6284, %v6286
        %v6288 = vsel %vm6280, %v6267, %v6270
        %v6289 = vsel %vm6283, %v6276, 920167782
        %v6290 = vsel %vm6282, %v6273, %v6289
        %v6291 = vsel %vm6281, %v6288, %v6290
        %v6292 = vsel %vm6280, %v6270, %v6273
        %v6293 = vsel %vm6283, %v6279, 1326507024
        %v6294 = vsel %vm6282, %v6276, %v6293
        %v6295 = vsel %vm6281, %v6292, %v6294
        %v6296 = vshll.u32 %v6256, 8
        %v6297 = vand.u32 %v6296, 65535
        %v6298 = vshrl.u32 %v6296, 16
        %v6299 = vand.u32 %v6295, 65535
        %v6300 = vshrl.u32 %v6295, 16
        %v6301 = vmul.u32 %v6297, %v6299
        %v6302 = vmul.u32 %v6297, %v6300
        %v6303 = vmul.u32 %v6298, %v6299
        %v6304 = vmul.u32 %v6298, %v6300
        %v6305 = vshll.u32 %v6302, 16
        %v6306 = vshrl.u32 %v6302, 16
        %v6307 = vshll.u32 %v6303, 16
        %v6308 = vshrl.u32 %v6303, 16
        %vm6309 = vc.u32 %v6301, %v6305
        %v6310 = vsel %vm6309, 1, 0
        %v6311 = vadd.s32 %v6301, %v6305
        %v6312 = vadd.s32 %v6304, %v6310
        %vm6313 = vc.u32 %v6311, %v6307
        %v6314 = vsel %vm6313, 1, 0
        %v6315 = vadd.s32 %v6311, %v6307
        %v6316 = vadd.s32 %v6312, %v6314
        %v6317 = vadd.s32 %v6316, %v6306
        %v6318 = vadd.s32 %v6317, %v6308
        %v6319 = vand.u32 %v6296, 65535
        %v6320 = vshrl.u32 %v6296, 16
        %v6321 = vand.u32 %v6291, 65535
        %v6322 = vshrl.u32 %v6291, 16
        %v6323 = vmul.u32 %v6319, %v6321
        %v6324 = vmul.u32 %v6319, %v6322
        %v6325 = vmul.u32 %v6320, %v6321
        %v6326 = vmul.u32 %v6320, %v6322
        %v6327 = vshll.u32 %v6324, 16
        %v6328 = vshrl.u32 %v6324, 16
        %v6329 = vshll.u32 %v6325, 16
        %v6330 = vshrl.u32 %v6325, 16
        %vm6331 = vc.u32 %v6323, %v6327
        %v6332 = vsel %vm6331, 1, 0
        %v6333 = vadd.s32 %v6323, %v6327
        %v6334 = vadd.s32 %v6326, %v6332
        %vm6335 = vc.u32 %v6333, %v6329
        %v6336 = vsel %vm6335, 1, 0
        %v6337 = vadd.s32 %v6333, %v6329
        %v6338 = vadd.s32 %v6334, %v6336
        %v6339 = vadd.s32 %v6338, %v6328
        %v6340 = vadd.s32 %v6339, %v6330
        %v6341 = vmul.u32 %v6296, %v6287
        %v6342 = vadd.s32 %v6318, %v6337
        %vm6343 = vc.u32 %v6318, %v6337
        %v6344 = vadd.s32 %v6340, 1
        %v6345 = vsel %vm6343, %v6344, %v6340
        %v6346 = vadd.s32 %v6341, %v6345
        %v6347 = vadd.s32 %v6346, 536870912
        %v6348 = vshrl.u32 %v6347, 30
        %v6349 = vshll.u32 %v6348, 30
        %v6350 = vsub.s32 %v6346, %v6349
        %vm6351 = vcmp.lt.s32.totalorder %v6350, 0
        %v6352 = vsub.s32 0, %v6350
        %v6353 = vsel %vm6351, %v6352, %v6350
        %v6354 = vclz %v6353
        %v6355 = vsub.s32 %v6354, 2
        %vm6356 = vcmp.gt.s32.totalorder 0, %v6355
        %v6357 = vsel %vm6356, 0, %v6355
        %v6358 = vsub.s32 32, %v6357
        %v6359 = vshll.u32 %v6350, %v6357
        %v6360 = vshrl.u32 %v6342, %v6358
        %v6361 = vor.u32 %v6359, %v6360
        %v6362 = vsub.s32 4294967266, %v6357
        %v6363 = vadd.s32 %v6362, 127
        %v6364 = vshll.u32 %v6363, 23
        %v6365 = vor.u32 4788187, %v6364
        %v6366 = vand.u32 2147483647, %v6365
        %v6368 = vcvt.s32.f32 %v6361
        %v6369 = vmul.f32 %v6368, %v6366
        %v6370 = vxor.u32 %v6369, 2147483648
        %v6371 = vsel %vm6250, %v6370, %v6369
        %v6372 = vsub.s32 4, %v6348
        %v6373 = vsel %vm6250, %v6372, %v6348
        %v6374 = vsel %vm6249, %v178, %v6371
        %v6375 = vsel %vm6249, 0, %v6373
        %v6376 = vmul.f32 %v6374, %v6374
        %v6377 = vmul.f32 %v6376, -0.001358992
        %v6378 = vadd.f32 %v6377, 0.041655596
        %v6379 = vmul.f32 %v6376, %v6378
        %v6380 = vadd.f32 %v6379, -0.4999988
        %v6381 = vmul.f32 %v6376, %v6380
        %v6382 = vadd.f32 1.0, %v6381
        %v6383 = vmul.f32 %v6374, %v6374
        %v6384 = vmul.f32 %v6383, -0.00019511016
        %v6385 = vadd.f32 %v6384, 0.008332121
        %v6386 = vmul.f32 %v6383, %v6385
        %v6387 = vadd.f32 %v6386, -0.16666654
        %v6388 = vmul.f32 %v6383, %v6387
        %v6389 = vadd.f32 %v6388, 1.0
        %v6390 = vmul.f32 %v6389, %v6374
        %vm6391 = vweird.f32 %v178
        %v6392 = vadd.s32 %v6375, 3
        %v6393 = vand.u32 %v6392, 3
        %vm6394 = vcmp.lt.s32.totalorder %v6393, 2
        %vm6395 = vcmp.eq.s32.totalorder %v6393, 0
        %v6396 = vxor.u32 %v6390, 2147483648
        %v6397 = vsel %vm6395, %v6382, %v6396
        %vm6398 = vcmp.eq.s32.totalorder %v6393, 2
        %v6399 = vxor.u32 %v6382, 2147483648
        %v6400 = vsel %vm6398, %v6399, %v6390
        %v6401 = vsel %vm6394, %v6397, %v6400
        %v6402 = vsel %vm6391, nan, %v6401
        %v6403 = vand.u32 2147483647, %v179
        %vm6404 = vcmp.le.f32.partialorder %v6403, 0.7853982
        %vm6405 = vcmp.lt.s32.totalorder %v179, 0
        %v6406 = vand.u32 %v179, 2139095040
        %v6407 = vshrl.u32 %v6406, 23
        %v6408 = vsub.s32 %v6407, 127
        %v6409 = vand.u32 2147483647, %v179
        %v6410 = vand.u32 %v6409, 8388607
        %v6411 = vor.u32 %v6410, 8388608
        %v6412 = vsub.s32 0, %v6411
        %v6413 = vadd.s32 %v6408, 1
        %vm6414 = vcmp.gt.s32.totalorder %v6413, 0
        %v6415 = vsel %vm6414, %v6413, 0
        %v6416 = vshrl.u32 %v6415, 5
        %v6417 = vand.u32 %v6415, 31
        %v6418 = vsub.s32 32, %v6417
        %v6419 = vshrl.u32 683565275, %v6418
        %v6420 = vshll.u32 683565275, %v6417
        %v6421 = vshrl.u32 2475754826, %v6418
        %v6422 = vor.u32 %v6420, %v6421
        %v6423 = vshll.u32 2475754826, %v6417
        %v6424 = vshrl.u32 2131351028, %v6418
        %v6425 = vor.u32 %v6423, %v6424
        %v6426 = vshll.u32 2131351028, %v6417
        %v6427 = vshrl.u32 2102212464, %v6418
        %v6428 = vor.u32 %v6426, %v6427
        %v6429 = vshll.u32 2102212464, %v6417
        %v6430 = vshrl.u32 920167782, %v6418
        %v6431 = vor.u32 %v6429, %v6430
        %v6432 = vshll.u32 920167782, %v6417
        %v6433 = vshrl.u32 1326507024, %v6418
        %v6434 = vor.u32 %v6432, %v6433
        %vm6435 = vcmp.lt.s32.totalorder %v6416, 1
        %vm6436 = vcmp.lt.s32.totalorder %v6416, 2
        %vm6437 = vcmp.lt.s32.totalorder %v6416, 3
        %vm6438 = vcmp.lt.s32.totalorder %v6416, 4
        %v6439 = vsel %vm6435, %v6419, %v6422
        %v6440 = vsel %vm6438, %v6428, 2102212464
        %v6441 = vsel %vm6437, %v6425, %v6440
        %v6442 = vsel %vm6436, %v6439, %v6441
        %v6443 = vsel %vm6435, %v6422, %v6425
        %v6444 = vsel %vm6438, %v6431, 920167782
        %v6445 = vsel %vm6437, %v6428, %v6444
        %v6446 = vsel %vm6436, %v6443, %v6445
        %v6447 = vsel %vm6435, %v6425, %v6428
        %v6448 = vsel %vm6438, %v6434, 1326507024
        %v6449 = vsel %vm6437, %v6431, %v6448
        %v6450 = vsel %vm6436, %v6447, %v6449
        %v6451 = vshll.u32 %v6411, 8
        %v6452 = vand.u32 %v6451, 65535
        %v6453 = vshrl.u32 %v6451, 16
        %v6454 = vand.u32 %v6450, 65535
        %v6455 = vshrl.u32 %v6450, 16
        %v6456 = vmul.u32 %v6452, %v6454
        %v6457 = vmul.u32 %v6452, %v6455
        %v6458 = vmul.u32 %v6453, %v6454
        %v6459 = vmul.u32 %v6453, %v6455
        %v6460 = vshll.u32 %v6457, 16
        %v6461 = vshrl.u32 %v6457, 16
        %v6462 = vshll.u32 %v6458, 16
        %v6463 = vshrl.u32 %v6458, 16
        %vm6464 = vc.u32 %v6456, %v6460
        %v6465 = vsel %vm6464, 1, 0
        %v6466 = vadd.s32 %v6456, %v6460
        %v6467 = vadd.s32 %v6459, %v6465
        %vm6468 = vc.u32 %v6466, %v6462
        %v6469 = vsel %vm6468, 1, 0
        %v6470 = vadd.s32 %v6466, %v6462
        %v6471 = vadd.s32 %v6467, %v6469
        %v6472 = vadd.s32 %v6471, %v6461
        %v6473 = vadd.s32 %v6472, %v6463
        %v6474 = vand.u32 %v6451, 65535
        %v6475 = vshrl.u32 %v6451, 16
        %v6476 = vand.u32 %v6446, 65535
        %v6477 = vshrl.u32 %v6446, 16
        %v6478 = vmul.u32 %v6474, %v6476
        %v6479 = vmul.u32 %v6474, %v6477
        %v6480 = vmul.u32 %v6475, %v6476
        %v6481 = vmul.u32 %v6475, %v6477
        %v6482 = vshll.u32 %v6479, 16
        %v6483 = vshrl.u32 %v6479, 16
        %v6484 = vshll.u32 %v6480, 16
        %v6485 = vshrl.u32 %v6480, 16
        %vm6486 = vc.u32 %v6478, %v6482
        %v6487 = vsel %vm6486, 1, 0
        %v6488 = vadd.s32 %v6478, %v6482
        %v6489 = vadd.s32 %v6481, %v6487
        %vm6490 = vc.u32 %v6488, %v6484
        %v6491 = vsel %vm6490, 1, 0
        %v6492 = vadd.s32 %v6488, %v6484
        %v6493 = vadd.s32 %v6489, %v6491
        %v6494 = vadd.s32 %v6493, %v6483
        %v6495 = vadd.s32 %v6494, %v6485
        %v6496 = vmul.u32 %v6451, %v6442
        %v6497 = vadd.s32 %v6473, %v6492
        %vm6498 = vc.u32 %v6473, %v6492
        %v6499 = vadd.s32 %v6495, 1
        %v6500 = vsel %vm6498, %v6499, %v6495
        %v6501 = vadd.s32 %v6496, %v6500
        %v6502 = vadd.s32 %v6501, 536870912
        %v6503 = vshrl.u32 %v6502, 30
        %v6504 = vshll.u32 %v6503, 30
        %v6505 = vsub.s32 %v6501, %v6504
        %vm6506 = vcmp.lt.s32.totalorder %v6505, 0
        %v6507 = vsub.s32 0, %v6505
        %v6508 = vsel %vm6506, %v6507, %v6505
        %v6509 = vclz %v6508
        %v6510 = vsub.s32 %v6509, 2
        %vm6511 = vcmp.gt.s32.totalorder 0, %v6510
        %v6512 = vsel %vm6511, 0, %v6510
        %v6513 = vsub.s32 32, %v6512
        %v6514 = vshll.u32 %v6505, %v6512
        %v6515 = vshrl.u32 %v6497, %v6513
        %v6516 = vor.u32 %v6514, %v6515
        %v6517 = vsub.s32 4294967266, %v6512
        %v6518 = vadd.s32 %v6517, 127
        %v6519 = vshll.u32 %v6518, 23
        %v6520 = vor.u32 4788187, %v6519
        %v6521 = vand.u32 2147483647, %v6520
        %v6523 = vcvt.s32.f32 %v6516
        %v6524 = vmul.f32 %v6523, %v6521
        %v6525 = vxor.u32 %v6524, 2147483648
        %v6526 = vsel %vm6405, %v6525, %v6524
        %v6527 = vsub.s32 4, %v6503
        %v6528 = vsel %vm6405, %v6527, %v6503
        %v6529 = vsel %vm6404, %v179, %v6526
        %v6530 = vsel %vm6404, 0, %v6528
        %v6531 = vmul.f32 %v6529, %v6529
        %v6532 = vmul.f32 %v6531, -0.001358992
        %v6533 = vadd.f32 %v6532, 0.041655596
        %v6534 = vmul.f32 %v6531, %v6533
        %v6535 = vadd.f32 %v6534, -0.4999988
        %v6536 = vmul.f32 %v6531, %v6535
        %v6537 = vadd.f32 1.0, %v6536
        %v6538 = vmul.f32 %v6529, %v6529
        %v6539 = vmul.f32 %v6538, -0.00019511016
        %v6540 = vadd.f32 %v6539, 0.008332121
        %v6541 = vmul.f32 %v6538, %v6540
        %v6542 = vadd.f32 %v6541, -0.16666654
        %v6543 = vmul.f32 %v6538, %v6542
        %v6544 = vadd.f32 %v6543, 1.0
        %v6545 = vmul.f32 %v6544, %v6529
        %vm6546 = vweird.f32 %v179
        %v6547 = vadd.s32 %v6530, 3
        %v6548 = vand.u32 %v6547, 3
        %vm6549 = vcmp.lt.s32.totalorder %v6548, 2
        %vm6550 = vcmp.eq.s32.totalorder %v6548, 0
        %v6551 = vxor.u32 %v6545, 2147483648
        %v6552 = vsel %vm6550, %v6537, %v6551
        %vm6553 = vcmp.eq.s32.totalorder %v6548, 2
        %v6554 = vxor.u32 %v6537, 2147483648
        %v6555 = vsel %vm6553, %v6554, %v6545
        %v6556 = vsel %vm6549, %v6552, %v6555
        %v6557 = vsel %vm6546, nan, %v6556
        %v6558 = vand.u32 2147483647, %v180
        %vm6559 = vcmp.le.f32.partialorder %v6558, 0.7853982
        %vm6560 = vcmp.lt.s32.totalorder %v180, 0
        %v6561 = vand.u32 %v180, 2139095040
        %v6562 = vshrl.u32 %v6561, 23
        %v6563 = vsub.s32 %v6562, 127
        %v6564 = vand.u32 2147483647, %v180
        %v6565 = vand.u32 %v6564, 8388607
        %v6566 = vor.u32 %v6565, 8388608
        %v6567 = vsub.s32 0, %v6566
        %v6568 = vadd.s32 %v6563, 1
        %vm6569 = vcmp.gt.s32.totalorder %v6568, 0
        %v6570 = vsel %vm6569, %v6568, 0
        %v6571 = vshrl.u32 %v6570, 5
        %v6572 = vand.u32 %v6570, 31
        %v6573 = vsub.s32 32, %v6572
        %v6574 = vshrl.u32 683565275, %v6573
        %v6575 = vshll.u32 683565275, %v6572
        %v6576 = vshrl.u32 2475754826, %v6573
        %v6577 = vor.u32 %v6575, %v6576
        %v6578 = vshll.u32 2475754826, %v6572
        %v6579 = vshrl.u32 2131351028, %v6573
        %v6580 = vor.u32 %v6578, %v6579
        %v6581 = vshll.u32 2131351028, %v6572
        %v6582 = vshrl.u32 2102212464, %v6573
        %v6583 = vor.u32 %v6581, %v6582
        %v6584 = vshll.u32 2102212464, %v6572
        %v6585 = vshrl.u32 920167782, %v6573
        %v6586 = vor.u32 %v6584, %v6585
        %v6587 = vshll.u32 920167782, %v6572
        %v6588 = vshrl.u32 1326507024, %v6573
        %v6589 = vor.u32 %v6587, %v6588
        %vm6590 = vcmp.lt.s32.totalorder %v6571, 1
        %vm6591 = vcmp.lt.s32.totalorder %v6571, 2
        %vm6592 = vcmp.lt.s32.totalorder %v6571, 3
        %vm6593 = vcmp.lt.s32.totalorder %v6571, 4
        %v6594 = vsel %vm6590, %v6574, %v6577
        %v6595 = vsel %vm6593, %v6583, 2102212464
        %v6596 = vsel %vm6592, %v6580, %v6595
        %v6597 = vsel %vm6591, %v6594, %v6596
        %v6598 = vsel %vm6590, %v6577, %v6580
        %v6599 = vsel %vm6593, %v6586, 920167782
        %v6600 = vsel %vm6592, %v6583, %v6599
        %v6601 = vsel %vm6591, %v6598, %v6600
        %v6602 = vsel %vm6590, %v6580, %v6583
        %v6603 = vsel %vm6593, %v6589, 1326507024
        %v6604 = vsel %vm6592, %v6586, %v6603
        %v6605 = vsel %vm6591, %v6602, %v6604
        %v6606 = vshll.u32 %v6566, 8
        %v6607 = vand.u32 %v6606, 65535
        %v6608 = vshrl.u32 %v6606, 16
        %v6609 = vand.u32 %v6605, 65535
        %v6610 = vshrl.u32 %v6605, 16
        %v6611 = vmul.u32 %v6607, %v6609
        %v6612 = vmul.u32 %v6607, %v6610
        %v6613 = vmul.u32 %v6608, %v6609
        %v6614 = vmul.u32 %v6608, %v6610
        %v6615 = vshll.u32 %v6612, 16
        %v6616 = vshrl.u32 %v6612, 16
        %v6617 = vshll.u32 %v6613, 16
        %v6618 = vshrl.u32 %v6613, 16
        %vm6619 = vc.u32 %v6611, %v6615
        %v6620 = vsel %vm6619, 1, 0
        %v6621 = vadd.s32 %v6611, %v6615
        %v6622 = vadd.s32 %v6614, %v6620
        %vm6623 = vc.u32 %v6621, %v6617
        %v6624 = vsel %vm6623, 1, 0
        %v6625 = vadd.s32 %v6621, %v6617
        %v6626 = vadd.s32 %v6622, %v6624
        %v6627 = vadd.s32 %v6626, %v6616
        %v6628 = vadd.s32 %v6627, %v6618
        %v6629 = vand.u32 %v6606, 65535
        %v6630 = vshrl.u32 %v6606, 16
        %v6631 = vand.u32 %v6601, 65535
        %v6632 = vshrl.u32 %v6601, 16
        %v6633 = vmul.u32 %v6629, %v6631
        %v6634 = vmul.u32 %v6629, %v6632
        %v6635 = vmul.u32 %v6630, %v6631
        %v6636 = vmul.u32 %v6630, %v6632
        %v6637 = vshll.u32 %v6634, 16
        %v6638 = vshrl.u32 %v6634, 16
        %v6639 = vshll.u32 %v6635, 16
        %v6640 = vshrl.u32 %v6635, 16
        %vm6641 = vc.u32 %v6633, %v6637
        %v6642 = vsel %vm6641, 1, 0
        %v6643 = vadd.s32 %v6633, %v6637
        %v6644 = vadd.s32 %v6636, %v6642
        %vm6645 = vc.u32 %v6643, %v6639
        %v6646 = vsel %vm6645, 1, 0
        %v6647 = vadd.s32 %v6643, %v6639
        %v6648 = vadd.s32 %v6644, %v6646
        %v6649 = vadd.s32 %v6648, %v6638
        %v6650 = vadd.s32 %v6649, %v6640
        %v6651 = vmul.u32 %v6606, %v6597
        %v6652 = vadd.s32 %v6628, %v6647
        %vm6653 = vc.u32 %v6628, %v6647
        %v6654 = vadd.s32 %v6650, 1
        %v6655 = vsel %vm6653, %v6654, %v6650
        %v6656 = vadd.s32 %v6651, %v6655
        %v6657 = vadd.s32 %v6656, 536870912
        %v6658 = vshrl.u32 %v6657, 30
        %v6659 = vshll.u32 %v6658, 30
        %v6660 = vsub.s32 %v6656, %v6659
        %vm6661 = vcmp.lt.s32.totalorder %v6660, 0
        %v6662 = vsub.s32 0, %v6660
        %v6663 = vsel %vm6661, %v6662, %v6660
        %v6664 = vclz %v6663
        %v6665 = vsub.s32 %v6664, 2
        %vm6666 = vcmp.gt.s32.totalorder 0, %v6665
        %v6667 = vsel %vm6666, 0, %v6665
        %v6668 = vsub.s32 32, %v6667
        %v6669 = vshll.u32 %v6660, %v6667
        %v6670 = vshrl.u32 %v6652, %v6668
        %v6671 = vor.u32 %v6669, %v6670
        %v6672 = vsub.s32 4294967266, %v6667
        %v6673 = vadd.s32 %v6672, 127
        %v6674 = vshll.u32 %v6673, 23
        %v6675 = vor.u32 4788187, %v6674
        %v6676 = vand.u32 2147483647, %v6675
        %v6678 = vcvt.s32.f32 %v6671
        %v6679 = vmul.f32 %v6678, %v6676
        %v6680 = vxor.u32 %v6679, 2147483648
        %v6681 = vsel %vm6560, %v6680, %v6679
        %v6682 = vsub.s32 4, %v6658
        %v6683 = vsel %vm6560, %v6682, %v6658
        %v6684 = vsel %vm6559, %v180, %v6681
        %v6685 = vsel %vm6559, 0, %v6683
        %v6686 = vmul.f32 %v6684, %v6684
        %v6687 = vmul.f32 %v6686, -0.001358992
        %v6688 = vadd.f32 %v6687, 0.041655596
        %v6689 = vmul.f32 %v6686, %v6688
        %v6690 = vadd.f32 %v6689, -0.4999988
        %v6691 = vmul.f32 %v6686, %v6690
        %v6692 = vadd.f32 1.0, %v6691
        %v6693 = vmul.f32 %v6684, %v6684
        %v6694 = vmul.f32 %v6693, -0.00019511016
        %v6695 = vadd.f32 %v6694, 0.008332121
        %v6696 = vmul.f32 %v6693, %v6695
        %v6697 = vadd.f32 %v6696, -0.16666654
        %v6698 = vmul.f32 %v6693, %v6697
        %v6699 = vadd.f32 %v6698, 1.0
        %v6700 = vmul.f32 %v6699, %v6684
        %vm6701 = vweird.f32 %v180
        %v6702 = vadd.s32 %v6685, 3
        %v6703 = vand.u32 %v6702, 3
        %vm6704 = vcmp.lt.s32.totalorder %v6703, 2
        %vm6705 = vcmp.eq.s32.totalorder %v6703, 0
        %v6706 = vxor.u32 %v6700, 2147483648
        %v6707 = vsel %vm6705, %v6692, %v6706
        %vm6708 = vcmp.eq.s32.totalorder %v6703, 2
        %v6709 = vxor.u32 %v6692, 2147483648
        %v6710 = vsel %vm6708, %v6709, %v6700
        %v6711 = vsel %vm6704, %v6707, %v6710
        %v6712 = vsel %vm6701, nan, %v6711
        %v6713 = vand.u32 2147483647, %v181
        %vm6714 = vcmp.le.f32.partialorder %v6713, 0.7853982
        %vm6715 = vcmp.lt.s32.totalorder %v181, 0
        %v6716 = vand.u32 %v181, 2139095040
        %v6717 = vshrl.u32 %v6716, 23
        %v6718 = vsub.s32 %v6717, 127
        %v6719 = vand.u32 2147483647, %v181
        %v6720 = vand.u32 %v6719, 8388607
        %v6721 = vor.u32 %v6720, 8388608
        %v6722 = vsub.s32 0, %v6721
        %v6723 = vadd.s32 %v6718, 1
        %vm6724 = vcmp.gt.s32.totalorder %v6723, 0
        %v6725 = vsel %vm6724, %v6723, 0
        %v6726 = vshrl.u32 %v6725, 5
        %v6727 = vand.u32 %v6725, 31
        %v6728 = vsub.s32 32, %v6727
        %v6729 = vshrl.u32 683565275, %v6728
        %v6730 = vshll.u32 683565275, %v6727
        %v6731 = vshrl.u32 2475754826, %v6728
        %v6732 = vor.u32 %v6730, %v6731
        %v6733 = vshll.u32 2475754826, %v6727
        %v6734 = vshrl.u32 2131351028, %v6728
        %v6735 = vor.u32 %v6733, %v6734
        %v6736 = vshll.u32 2131351028, %v6727
        %v6737 = vshrl.u32 2102212464, %v6728
        %v6738 = vor.u32 %v6736, %v6737
        %v6739 = vshll.u32 2102212464, %v6727
        %v6740 = vshrl.u32 920167782, %v6728
        %v6741 = vor.u32 %v6739, %v6740
        %v6742 = vshll.u32 920167782, %v6727
        %v6743 = vshrl.u32 1326507024, %v6728
        %v6744 = vor.u32 %v6742, %v6743
        %vm6745 = vcmp.lt.s32.totalorder %v6726, 1
        %vm6746 = vcmp.lt.s32.totalorder %v6726, 2
        %vm6747 = vcmp.lt.s32.totalorder %v6726, 3
        %vm6748 = vcmp.lt.s32.totalorder %v6726, 4
        %v6749 = vsel %vm6745, %v6729, %v6732
        %v6750 = vsel %vm6748, %v6738, 2102212464
        %v6751 = vsel %vm6747, %v6735, %v6750
        %v6752 = vsel %vm6746, %v6749, %v6751
        %v6753 = vsel %vm6745, %v6732, %v6735
        %v6754 = vsel %vm6748, %v6741, 920167782
        %v6755 = vsel %vm6747, %v6738, %v6754
        %v6756 = vsel %vm6746, %v6753, %v6755
        %v6757 = vsel %vm6745, %v6735, %v6738
        %v6758 = vsel %vm6748, %v6744, 1326507024
        %v6759 = vsel %vm6747, %v6741, %v6758
        %v6760 = vsel %vm6746, %v6757, %v6759
        %v6761 = vshll.u32 %v6721, 8
        %v6762 = vand.u32 %v6761, 65535
        %v6763 = vshrl.u32 %v6761, 16
        %v6764 = vand.u32 %v6760, 65535
        %v6765 = vshrl.u32 %v6760, 16
        %v6766 = vmul.u32 %v6762, %v6764
        %v6767 = vmul.u32 %v6762, %v6765
        %v6768 = vmul.u32 %v6763, %v6764
        %v6769 = vmul.u32 %v6763, %v6765
        %v6770 = vshll.u32 %v6767, 16
        %v6771 = vshrl.u32 %v6767, 16
        %v6772 = vshll.u32 %v6768, 16
        %v6773 = vshrl.u32 %v6768, 16
        %vm6774 = vc.u32 %v6766, %v6770
        %v6775 = vsel %vm6774, 1, 0
        %v6776 = vadd.s32 %v6766, %v6770
        %v6777 = vadd.s32 %v6769, %v6775
        %vm6778 = vc.u32 %v6776, %v6772
        %v6779 = vsel %vm6778, 1, 0
        %v6780 = vadd.s32 %v6776, %v6772
        %v6781 = vadd.s32 %v6777, %v6779
        %v6782 = vadd.s32 %v6781, %v6771
        %v6783 = vadd.s32 %v6782, %v6773
        %v6784 = vand.u32 %v6761, 65535
        %v6785 = vshrl.u32 %v6761, 16
        %v6786 = vand.u32 %v6756, 65535
        %v6787 = vshrl.u32 %v6756, 16
        %v6788 = vmul.u32 %v6784, %v6786
        %v6789 = vmul.u32 %v6784, %v6787
        %v6790 = vmul.u32 %v6785, %v6786
        %v6791 = vmul.u32 %v6785, %v6787
        %v6792 = vshll.u32 %v6789, 16
        %v6793 = vshrl.u32 %v6789, 16
        %v6794 = vshll.u32 %v6790, 16
        %v6795 = vshrl.u32 %v6790, 16
        %vm6796 = vc.u32 %v6788, %v6792
        %v6797 = vsel %vm6796, 1, 0
        %v6798 = vadd.s32 %v6788, %v6792
        %v6799 = vadd.s32 %v6791, %v6797
        %vm6800 = vc.u32 %v6798, %v6794
        %v6801 = vsel %vm6800, 1, 0
        %v6802 = vadd.s32 %v6798, %v6794
        %v6803 = vadd.s32 %v6799, %v6801
        %v6804 = vadd.s32 %v6803, %v6793
        %v6805 = vadd.s32 %v6804, %v6795
        %v6806 = vmul.u32 %v6761, %v6752
        %v6807 = vadd.s32 %v6783, %v6802
        %vm6808 = vc.u32 %v6783, %v6802
        %v6809 = vadd.s32 %v6805, 1
        %v6810 = vsel %vm6808, %v6809, %v6805
        %v6811 = vadd.s32 %v6806, %v6810
        %v6812 = vadd.s32 %v6811, 536870912
        %v6813 = vshrl.u32 %v6812, 30
        %v6814 = vshll.u32 %v6813, 30
        %v6815 = vsub.s32 %v6811, %v6814
        %vm6816 = vcmp.lt.s32.totalorder %v6815, 0
        %v6817 = vsub.s32 0, %v6815
        %v6818 = vsel %vm6816, %v6817, %v6815
        %v6819 = vclz %v6818
        %v6820 = vsub.s32 %v6819, 2
        %vm6821 = vcmp.gt.s32.totalorder 0, %v6820
        %v6822 = vsel %vm6821, 0, %v6820
        %v6823 = vsub.s32 32, %v6822
        %v6824 = vshll.u32 %v6815, %v6822
        %v6825 = vshrl.u32 %v6807, %v6823
        %v6826 = vor.u32 %v6824, %v6825
        %v6827 = vsub.s32 4294967266, %v6822
        %v6828 = vadd.s32 %v6827, 127
        %v6829 = vshll.u32 %v6828, 23
        %v6830 = vor.u32 4788187, %v6829
        %v6831 = vand.u32 2147483647, %v6830
        %v6833 = vcvt.s32.f32 %v6826
        %v6834 = vmul.f32 %v6833, %v6831
        %v6835 = vxor.u32 %v6834, 2147483648
        %v6836 = vsel %vm6715, %v6835, %v6834
        %v6837 = vsub.s32 4, %v6813
        %v6838 = vsel %vm6715, %v6837, %v6813
        %v6839 = vsel %vm6714, %v181, %v6836
        %v6840 = vsel %vm6714, 0, %v6838
        %v6841 = vmul.f32 %v6839, %v6839
        %v6842 = vmul.f32 %v6841, -0.001358992
        %v6843 = vadd.f32 %v6842, 0.041655596
        %v6844 = vmul.f32 %v6841, %v6843
        %v6845 = vadd.f32 %v6844, -0.4999988
        %v6846 = vmul.f32 %v6841, %v6845
        %v6847 = vadd.f32 1.0, %v6846
        %v6848 = vmul.f32 %v6839, %v6839
        %v6849 = vmul.f32 %v6848, -0.00019511016
        %v6850 = vadd.f32 %v6849, 0.008332121
        %v6851 = vmul.f32 %v6848, %v6850
        %v6852 = vadd.f32 %v6851, -0.16666654
        %v6853 = vmul.f32 %v6848, %v6852
        %v6854 = vadd.f32 %v6853, 1.0
        %v6855 = vmul.f32 %v6854, %v6839
        %vm6856 = vweird.f32 %v181
        %v6857 = vadd.s32 %v6840, 3
        %v6858 = vand.u32 %v6857, 3
        %vm6859 = vcmp.lt.s32.totalorder %v6858, 2
        %vm6860 = vcmp.eq.s32.totalorder %v6858, 0
        %v6861 = vxor.u32 %v6855, 2147483648
        %v6862 = vsel %vm6860, %v6847, %v6861
        %vm6863 = vcmp.eq.s32.totalorder %v6858, 2
        %v6864 = vxor.u32 %v6847, 2147483648
        %v6865 = vsel %vm6863, %v6864, %v6855
        %v6866 = vsel %vm6859, %v6862, %v6865
        %v6867 = vsel %vm6856, nan, %v6866
        %v6868 = vand.u32 2147483647, %v182
        %vm6869 = vcmp.le.f32.partialorder %v6868, 0.7853982
        %vm6870 = vcmp.lt.s32.totalorder %v182, 0
        %v6871 = vand.u32 %v182, 2139095040
        %v6872 = vshrl.u32 %v6871, 23
        %v6873 = vsub.s32 %v6872, 127
        %v6874 = vand.u32 2147483647, %v182
        %v6875 = vand.u32 %v6874, 8388607
        %v6876 = vor.u32 %v6875, 8388608
        %v6877 = vsub.s32 0, %v6876
        %v6878 = vadd.s32 %v6873, 1
        %vm6879 = vcmp.gt.s32.totalorder %v6878, 0
        %v6880 = vsel %vm6879, %v6878, 0
        %v6881 = vshrl.u32 %v6880, 5
        %v6882 = vand.u32 %v6880, 31
        %v6883 = vsub.s32 32, %v6882
        %v6884 = vshrl.u32 683565275, %v6883
        %v6885 = vshll.u32 683565275, %v6882
        %v6886 = vshrl.u32 2475754826, %v6883
        %v6887 = vor.u32 %v6885, %v6886
        %v6888 = vshll.u32 2475754826, %v6882
        %v6889 = vshrl.u32 2131351028, %v6883
        %v6890 = vor.u32 %v6888, %v6889
        %v6891 = vshll.u32 2131351028, %v6882
        %v6892 = vshrl.u32 2102212464, %v6883
        %v6893 = vor.u32 %v6891, %v6892
        %v6894 = vshll.u32 2102212464, %v6882
        %v6895 = vshrl.u32 920167782, %v6883
        %v6896 = vor.u32 %v6894, %v6895
        %v6897 = vshll.u32 920167782, %v6882
        %v6898 = vshrl.u32 1326507024, %v6883
        %v6899 = vor.u32 %v6897, %v6898
        %vm6900 = vcmp.lt.s32.totalorder %v6881, 1
        %vm6901 = vcmp.lt.s32.totalorder %v6881, 2
        %vm6902 = vcmp.lt.s32.totalorder %v6881, 3
        %vm6903 = vcmp.lt.s32.totalorder %v6881, 4
        %v6904 = vsel %vm6900, %v6884, %v6887
        %v6905 = vsel %vm6903, %v6893, 2102212464
        %v6906 = vsel %vm6902, %v6890, %v6905
        %v6907 = vsel %vm6901, %v6904, %v6906
        %v6908 = vsel %vm6900, %v6887, %v6890
        %v6909 = vsel %vm6903, %v6896, 920167782
        %v6910 = vsel %vm6902, %v6893, %v6909
        %v6911 = vsel %vm6901, %v6908, %v6910
        %v6912 = vsel %vm6900, %v6890, %v6893
        %v6913 = vsel %vm6903, %v6899, 1326507024
        %v6914 = vsel %vm6902, %v6896, %v6913
        %v6915 = vsel %vm6901, %v6912, %v6914
        %v6916 = vshll.u32 %v6876, 8
        %v6917 = vand.u32 %v6916, 65535
        %v6918 = vshrl.u32 %v6916, 16
        %v6919 = vand.u32 %v6915, 65535
        %v6920 = vshrl.u32 %v6915, 16
        %v6921 = vmul.u32 %v6917, %v6919
        %v6922 = vmul.u32 %v6917, %v6920
        %v6923 = vmul.u32 %v6918, %v6919
        %v6924 = vmul.u32 %v6918, %v6920
        %v6925 = vshll.u32 %v6922, 16
        %v6926 = vshrl.u32 %v6922, 16
        %v6927 = vshll.u32 %v6923, 16
        %v6928 = vshrl.u32 %v6923, 16
        %vm6929 = vc.u32 %v6921, %v6925
        %v6930 = vsel %vm6929, 1, 0
        %v6931 = vadd.s32 %v6921, %v6925
        %v6932 = vadd.s32 %v6924, %v6930
        %vm6933 = vc.u32 %v6931, %v6927
        %v6934 = vsel %vm6933, 1, 0
        %v6935 = vadd.s32 %v6931, %v6927
        %v6936 = vadd.s32 %v6932, %v6934
        %v6937 = vadd.s32 %v6936, %v6926
        %v6938 = vadd.s32 %v6937, %v6928
        %v6939 = vand.u32 %v6916, 65535
        %v6940 = vshrl.u32 %v6916, 16
        %v6941 = vand.u32 %v6911, 65535
        %v6942 = vshrl.u32 %v6911, 16
        %v6943 = vmul.u32 %v6939, %v6941
        %v6944 = vmul.u32 %v6939, %v6942
        %v6945 = vmul.u32 %v6940, %v6941
        %v6946 = vmul.u32 %v6940, %v6942
        %v6947 = vshll.u32 %v6944, 16
        %v6948 = vshrl.u32 %v6944, 16
        %v6949 = vshll.u32 %v6945, 16
        %v6950 = vshrl.u32 %v6945, 16
        %vm6951 = vc.u32 %v6943, %v6947
        %v6952 = vsel %vm6951, 1, 0
        %v6953 = vadd.s32 %v6943, %v6947
        %v6954 = vadd.s32 %v6946, %v6952
        %vm6955 = vc.u32 %v6953, %v6949
        %v6956 = vsel %vm6955, 1, 0
        %v6957 = vadd.s32 %v6953, %v6949
        %v6958 = vadd.s32 %v6954, %v6956
        %v6959 = vadd.s32 %v6958, %v6948
        %v6960 = vadd.s32 %v6959, %v6950
        %v6961 = vmul.u32 %v6916, %v6907
        %v6962 = vadd.s32 %v6938, %v6957
        %vm6963 = vc.u32 %v6938, %v6957
        %v6964 = vadd.s32 %v6960, 1
        %v6965 = vsel %vm6963, %v6964, %v6960
        %v6966 = vadd.s32 %v6961, %v6965
        %v6967 = vadd.s32 %v6966, 536870912
        %v6968 = vshrl.u32 %v6967, 30
        %v6969 = vshll.u32 %v6968, 30
        %v6970 = vsub.s32 %v6966, %v6969
        %vm6971 = vcmp.lt.s32.totalorder %v6970, 0
        %v6972 = vsub.s32 0, %v6970
        %v6973 = vsel %vm6971, %v6972, %v6970
        %v6974 = vclz %v6973
        %v6975 = vsub.s32 %v6974, 2
        %vm6976 = vcmp.gt.s32.totalorder 0, %v6975
        %v6977 = vsel %vm6976, 0, %v6975
        %v6978 = vsub.s32 32, %v6977
        %v6979 = vshll.u32 %v6970, %v6977
        %v6980 = vshrl.u32 %v6962, %v6978
        %v6981 = vor.u32 %v6979, %v6980
        %v6982 = vsub.s32 4294967266, %v6977
        %v6983 = vadd.s32 %v6982, 127
        %v6984 = vshll.u32 %v6983, 23
        %v6985 = vor.u32 4788187, %v6984
        %v6986 = vand.u32 2147483647, %v6985
        %v6988 = vcvt.s32.f32 %v6981
        %v6989 = vmul.f32 %v6988, %v6986
        %v6990 = vxor.u32 %v6989, 2147483648
        %v6991 = vsel %vm6870, %v6990, %v6989
        %v6992 = vsub.s32 4, %v6968
        %v6993 = vsel %vm6870, %v6992, %v6968
        %v6994 = vsel %vm6869, %v182, %v6991
        %v6995 = vsel %vm6869, 0, %v6993
        %v6996 = vmul.f32 %v6994, %v6994
        %v6997 = vmul.f32 %v6996, -0.001358992
        %v6998 = vadd.f32 %v6997, 0.041655596
        %v6999 = vmul.f32 %v6996, %v6998
        %v7000 = vadd.f32 %v6999, -0.4999988
        %v7001 = vmul.f32 %v6996, %v7000
        %v7002 = vadd.f32 1.0, %v7001
        %v7003 = vmul.f32 %v6994, %v6994
        %v7004 = vmul.f32 %v7003, -0.00019511016
        %v7005 = vadd.f32 %v7004, 0.008332121
        %v7006 = vmul.f32 %v7003, %v7005
        %v7007 = vadd.f32 %v7006, -0.16666654
        %v7008 = vmul.f32 %v7003, %v7007
        %v7009 = vadd.f32 %v7008, 1.0
        %v7010 = vmul.f32 %v7009, %v6994
        %vm7011 = vweird.f32 %v182
        %v7012 = vadd.s32 %v6995, 3
        %v7013 = vand.u32 %v7012, 3
        %vm7014 = vcmp.lt.s32.totalorder %v7013, 2
        %vm7015 = vcmp.eq.s32.totalorder %v7013, 0
        %v7016 = vxor.u32 %v7010, 2147483648
        %v7017 = vsel %vm7015, %v7002, %v7016
        %vm7018 = vcmp.eq.s32.totalorder %v7013, 2
        %v7019 = vxor.u32 %v7002, 2147483648
        %v7020 = vsel %vm7018, %v7019, %v7010
        %v7021 = vsel %vm7014, %v7017, %v7020
        %v7022 = vsel %vm7011, nan, %v7021
        %v7023 = vand.u32 2147483647, %v183
        %vm7024 = vcmp.le.f32.partialorder %v7023, 0.7853982
        %vm7025 = vcmp.lt.s32.totalorder %v183, 0
        %v7026 = vand.u32 %v183, 2139095040
        %v7027 = vshrl.u32 %v7026, 23
        %v7028 = vsub.s32 %v7027, 127
        %v7029 = vand.u32 2147483647, %v183
        %v7030 = vand.u32 %v7029, 8388607
        %v7031 = vor.u32 %v7030, 8388608
        %v7032 = vsub.s32 0, %v7031
        %v7033 = vadd.s32 %v7028, 1
        %vm7034 = vcmp.gt.s32.totalorder %v7033, 0
        %v7035 = vsel %vm7034, %v7033, 0
        %v7036 = vshrl.u32 %v7035, 5
        %v7037 = vand.u32 %v7035, 31
        %v7038 = vsub.s32 32, %v7037
        %v7039 = vshrl.u32 683565275, %v7038
        %v7040 = vshll.u32 683565275, %v7037
        %v7041 = vshrl.u32 2475754826, %v7038
        %v7042 = vor.u32 %v7040, %v7041
        %v7043 = vshll.u32 2475754826, %v7037
        %v7044 = vshrl.u32 2131351028, %v7038
        %v7045 = vor.u32 %v7043, %v7044
        %v7046 = vshll.u32 2131351028, %v7037
        %v7047 = vshrl.u32 2102212464, %v7038
        %v7048 = vor.u32 %v7046, %v7047
        %v7049 = vshll.u32 2102212464, %v7037
        %v7050 = vshrl.u32 920167782, %v7038
        %v7051 = vor.u32 %v7049, %v7050
        %v7052 = vshll.u32 920167782, %v7037
        %v7053 = vshrl.u32 1326507024, %v7038
        %v7054 = vor.u32 %v7052, %v7053
        %vm7055 = vcmp.lt.s32.totalorder %v7036, 1
        %vm7056 = vcmp.lt.s32.totalorder %v7036, 2
        %vm7057 = vcmp.lt.s32.totalorder %v7036, 3
        %vm7058 = vcmp.lt.s32.totalorder %v7036, 4
        %v7059 = vsel %vm7055, %v7039, %v7042
        %v7060 = vsel %vm7058, %v7048, 2102212464
        %v7061 = vsel %vm7057, %v7045, %v7060
        %v7062 = vsel %vm7056, %v7059, %v7061
        %v7063 = vsel %vm7055, %v7042, %v7045
        %v7064 = vsel %vm7058, %v7051, 920167782
        %v7065 = vsel %vm7057, %v7048, %v7064
        %v7066 = vsel %vm7056, %v7063, %v7065
        %v7067 = vsel %vm7055, %v7045, %v7048
        %v7068 = vsel %vm7058, %v7054, 1326507024
        %v7069 = vsel %vm7057, %v7051, %v7068
        %v7070 = vsel %vm7056, %v7067, %v7069
        %v7071 = vshll.u32 %v7031, 8
        %v7072 = vand.u32 %v7071, 65535
        %v7073 = vshrl.u32 %v7071, 16
        %v7074 = vand.u32 %v7070, 65535
        %v7075 = vshrl.u32 %v7070, 16
        %v7076 = vmul.u32 %v7072, %v7074
        %v7077 = vmul.u32 %v7072, %v7075
        %v7078 = vmul.u32 %v7073, %v7074
        %v7079 = vmul.u32 %v7073, %v7075
        %v7080 = vshll.u32 %v7077, 16
        %v7081 = vshrl.u32 %v7077, 16
        %v7082 = vshll.u32 %v7078, 16
        %v7083 = vshrl.u32 %v7078, 16
        %vm7084 = vc.u32 %v7076, %v7080
        %v7085 = vsel %vm7084, 1, 0
        %v7086 = vadd.s32 %v7076, %v7080
        %v7087 = vadd.s32 %v7079, %v7085
        %vm7088 = vc.u32 %v7086, %v7082
        %v7089 = vsel %vm7088, 1, 0
        %v7090 = vadd.s32 %v7086, %v7082
        %v7091 = vadd.s32 %v7087, %v7089
        %v7092 = vadd.s32 %v7091, %v7081
        %v7093 = vadd.s32 %v7092, %v7083
        %v7094 = vand.u32 %v7071, 65535
        %v7095 = vshrl.u32 %v7071, 16
        %v7096 = vand.u32 %v7066, 65535
        %v7097 = vshrl.u32 %v7066, 16
        %v7098 = vmul.u32 %v7094, %v7096
        %v7099 = vmul.u32 %v7094, %v7097
        %v7100 = vmul.u32 %v7095, %v7096
        %v7101 = vmul.u32 %v7095, %v7097
        %v7102 = vshll.u32 %v7099, 16
        %v7103 = vshrl.u32 %v7099, 16
        %v7104 = vshll.u32 %v7100, 16
        %v7105 = vshrl.u32 %v7100, 16
        %vm7106 = vc.u32 %v7098, %v7102
        %v7107 = vsel %vm7106, 1, 0
        %v7108 = vadd.s32 %v7098, %v7102
        %v7109 = vadd.s32 %v7101, %v7107
        %vm7110 = vc.u32 %v7108, %v7104
        %v7111 = vsel %vm7110, 1, 0
        %v7112 = vadd.s32 %v7108, %v7104
        %v7113 = vadd.s32 %v7109, %v7111
        %v7114 = vadd.s32 %v7113, %v7103
        %v7115 = vadd.s32 %v7114, %v7105
        %v7116 = vmul.u32 %v7071, %v7062
        %v7117 = vadd.s32 %v7093, %v7112
        %vm7118 = vc.u32 %v7093, %v7112
        %v7119 = vadd.s32 %v7115, 1
        %v7120 = vsel %vm7118, %v7119, %v7115
        %v7121 = vadd.s32 %v7116, %v7120
        %v7122 = vadd.s32 %v7121, 536870912
        %v7123 = vshrl.u32 %v7122, 30
        %v7124 = vshll.u32 %v7123, 30
        %v7125 = vsub.s32 %v7121, %v7124
        %vm7126 = vcmp.lt.s32.totalorder %v7125, 0
        %v7127 = vsub.s32 0, %v7125
        %v7128 = vsel %vm7126, %v7127, %v7125
        %v7129 = vclz %v7128
        %v7130 = vsub.s32 %v7129, 2
        %vm7131 = vcmp.gt.s32.totalorder 0, %v7130
        %v7132 = vsel %vm7131, 0, %v7130
        %v7133 = vsub.s32 32, %v7132
        %v7134 = vshll.u32 %v7125, %v7132
        %v7135 = vshrl.u32 %v7117, %v7133
        %v7136 = vor.u32 %v7134, %v7135
        %v7137 = vsub.s32 4294967266, %v7132
        %v7138 = vadd.s32 %v7137, 127
        %v7139 = vshll.u32 %v7138, 23
        %v7140 = vor.u32 4788187, %v7139
        %v7141 = vand.u32 2147483647, %v7140
        %v7143 = vcvt.s32.f32 %v7136
        %v7144 = vmul.f32 %v7143, %v7141
        %v7145 = vxor.u32 %v7144, 2147483648
        %v7146 = vsel %vm7025, %v7145, %v7144
        %v7147 = vsub.s32 4, %v7123
        %v7148 = vsel %vm7025, %v7147, %v7123
        %v7149 = vsel %vm7024, %v183, %v7146
        %v7150 = vsel %vm7024, 0, %v7148
        %v7151 = vmul.f32 %v7149, %v7149
        %v7152 = vmul.f32 %v7151, -0.001358992
        %v7153 = vadd.f32 %v7152, 0.041655596
        %v7154 = vmul.f32 %v7151, %v7153
        %v7155 = vadd.f32 %v7154, -0.4999988
        %v7156 = vmul.f32 %v7151, %v7155
        %v7157 = vadd.f32 1.0, %v7156
        %v7158 = vmul.f32 %v7149, %v7149
        %v7159 = vmul.f32 %v7158, -0.00019511016
        %v7160 = vadd.f32 %v7159, 0.008332121
        %v7161 = vmul.f32 %v7158, %v7160
        %v7162 = vadd.f32 %v7161, -0.16666654
        %v7163 = vmul.f32 %v7158, %v7162
        %v7164 = vadd.f32 %v7163, 1.0
        %v7165 = vmul.f32 %v7164, %v7149
        %vm7166 = vweird.f32 %v183
        %v7167 = vadd.s32 %v7150, 3
        %v7168 = vand.u32 %v7167, 3
        %vm7169 = vcmp.lt.s32.totalorder %v7168, 2
        %vm7170 = vcmp.eq.s32.totalorder %v7168, 0
        %v7171 = vxor.u32 %v7165, 2147483648
        %v7172 = vsel %vm7170, %v7157, %v7171
        %vm7173 = vcmp.eq.s32.totalorder %v7168, 2
        %v7174 = vxor.u32 %v7157, 2147483648
        %v7175 = vsel %vm7173, %v7174, %v7165
        %v7176 = vsel %vm7169, %v7172, %v7175
        %v7177 = vsel %vm7166, nan, %v7176
        %v7178 = vand.u32 2147483647, %v184
        %vm7179 = vcmp.le.f32.partialorder %v7178, 0.7853982
        %vm7180 = vcmp.lt.s32.totalorder %v184, 0
        %v7181 = vand.u32 %v184, 2139095040
        %v7182 = vshrl.u32 %v7181, 23
        %v7183 = vsub.s32 %v7182, 127
        %v7184 = vand.u32 2147483647, %v184
        %v7185 = vand.u32 %v7184, 8388607
        %v7186 = vor.u32 %v7185, 8388608
        %v7187 = vsub.s32 0, %v7186
        %v7188 = vadd.s32 %v7183, 1
        %vm7189 = vcmp.gt.s32.totalorder %v7188, 0
        %v7190 = vsel %vm7189, %v7188, 0
        %v7191 = vshrl.u32 %v7190, 5
        %v7192 = vand.u32 %v7190, 31
        %v7193 = vsub.s32 32, %v7192
        %v7194 = vshrl.u32 683565275, %v7193
        %v7195 = vshll.u32 683565275, %v7192
        %v7196 = vshrl.u32 2475754826, %v7193
        %v7197 = vor.u32 %v7195, %v7196
        %v7198 = vshll.u32 2475754826, %v7192
        %v7199 = vshrl.u32 2131351028, %v7193
        %v7200 = vor.u32 %v7198, %v7199
        %v7201 = vshll.u32 2131351028, %v7192
        %v7202 = vshrl.u32 2102212464, %v7193
        %v7203 = vor.u32 %v7201, %v7202
        %v7204 = vshll.u32 2102212464, %v7192
        %v7205 = vshrl.u32 920167782, %v7193
        %v7206 = vor.u32 %v7204, %v7205
        %v7207 = vshll.u32 920167782, %v7192
        %v7208 = vshrl.u32 1326507024, %v7193
        %v7209 = vor.u32 %v7207, %v7208
        %vm7210 = vcmp.lt.s32.totalorder %v7191, 1
        %vm7211 = vcmp.lt.s32.totalorder %v7191, 2
        %vm7212 = vcmp.lt.s32.totalorder %v7191, 3
        %vm7213 = vcmp.lt.s32.totalorder %v7191, 4
        %v7214 = vsel %vm7210, %v7194, %v7197
        %v7215 = vsel %vm7213, %v7203, 2102212464
        %v7216 = vsel %vm7212, %v7200, %v7215
        %v7217 = vsel %vm7211, %v7214, %v7216
        %v7218 = vsel %vm7210, %v7197, %v7200
        %v7219 = vsel %vm7213, %v7206, 920167782
        %v7220 = vsel %vm7212, %v7203, %v7219
        %v7221 = vsel %vm7211, %v7218, %v7220
        %v7222 = vsel %vm7210, %v7200, %v7203
        %v7223 = vsel %vm7213, %v7209, 1326507024
        %v7224 = vsel %vm7212, %v7206, %v7223
        %v7225 = vsel %vm7211, %v7222, %v7224
        %v7226 = vshll.u32 %v7186, 8
        %v7227 = vand.u32 %v7226, 65535
        %v7228 = vshrl.u32 %v7226, 16
        %v7229 = vand.u32 %v7225, 65535
        %v7230 = vshrl.u32 %v7225, 16
        %v7231 = vmul.u32 %v7227, %v7229
        %v7232 = vmul.u32 %v7227, %v7230
        %v7233 = vmul.u32 %v7228, %v7229
        %v7234 = vmul.u32 %v7228, %v7230
        %v7235 = vshll.u32 %v7232, 16
        %v7236 = vshrl.u32 %v7232, 16
        %v7237 = vshll.u32 %v7233, 16
        %v7238 = vshrl.u32 %v7233, 16
        %vm7239 = vc.u32 %v7231, %v7235
        %v7240 = vsel %vm7239, 1, 0
        %v7241 = vadd.s32 %v7231, %v7235
        %v7242 = vadd.s32 %v7234, %v7240
        %vm7243 = vc.u32 %v7241, %v7237
        %v7244 = vsel %vm7243, 1, 0
        %v7245 = vadd.s32 %v7241, %v7237
        %v7246 = vadd.s32 %v7242, %v7244
        %v7247 = vadd.s32 %v7246, %v7236
        %v7248 = vadd.s32 %v7247, %v7238
        %v7249 = vand.u32 %v7226, 65535
        %v7250 = vshrl.u32 %v7226, 16
        %v7251 = vand.u32 %v7221, 65535
        %v7252 = vshrl.u32 %v7221, 16
        %v7253 = vmul.u32 %v7249, %v7251
        %v7254 = vmul.u32 %v7249, %v7252
        %v7255 = vmul.u32 %v7250, %v7251
        %v7256 = vmul.u32 %v7250, %v7252
        %v7257 = vshll.u32 %v7254, 16
        %v7258 = vshrl.u32 %v7254, 16
        %v7259 = vshll.u32 %v7255, 16
        %v7260 = vshrl.u32 %v7255, 16
        %vm7261 = vc.u32 %v7253, %v7257
        %v7262 = vsel %vm7261, 1, 0
        %v7263 = vadd.s32 %v7253, %v7257
        %v7264 = vadd.s32 %v7256, %v7262
        %vm7265 = vc.u32 %v7263, %v7259
        %v7266 = vsel %vm7265, 1, 0
        %v7267 = vadd.s32 %v7263, %v7259
        %v7268 = vadd.s32 %v7264, %v7266
        %v7269 = vadd.s32 %v7268, %v7258
        %v7270 = vadd.s32 %v7269, %v7260
        %v7271 = vmul.u32 %v7226, %v7217
        %v7272 = vadd.s32 %v7248, %v7267
        %vm7273 = vc.u32 %v7248, %v7267
        %v7274 = vadd.s32 %v7270, 1
        %v7275 = vsel %vm7273, %v7274, %v7270
        %v7276 = vadd.s32 %v7271, %v7275
        %v7277 = vadd.s32 %v7276, 536870912
        %v7278 = vshrl.u32 %v7277, 30
        %v7279 = vshll.u32 %v7278, 30
        %v7280 = vsub.s32 %v7276, %v7279
        %vm7281 = vcmp.lt.s32.totalorder %v7280, 0
        %v7282 = vsub.s32 0, %v7280
        %v7283 = vsel %vm7281, %v7282, %v7280
        %v7284 = vclz %v7283
        %v7285 = vsub.s32 %v7284, 2
        %vm7286 = vcmp.gt.s32.totalorder 0, %v7285
        %v7287 = vsel %vm7286, 0, %v7285
        %v7288 = vsub.s32 32, %v7287
        %v7289 = vshll.u32 %v7280, %v7287
        %v7290 = vshrl.u32 %v7272, %v7288
        %v7291 = vor.u32 %v7289, %v7290
        %v7292 = vsub.s32 4294967266, %v7287
        %v7293 = vadd.s32 %v7292, 127
        %v7294 = vshll.u32 %v7293, 23
        %v7295 = vor.u32 4788187, %v7294
        %v7296 = vand.u32 2147483647, %v7295
        %v7298 = vcvt.s32.f32 %v7291
        %v7299 = vmul.f32 %v7298, %v7296
        %v7300 = vxor.u32 %v7299, 2147483648
        %v7301 = vsel %vm7180, %v7300, %v7299
        %v7302 = vsub.s32 4, %v7278
        %v7303 = vsel %vm7180, %v7302, %v7278
        %v7304 = vsel %vm7179, %v184, %v7301
        %v7305 = vsel %vm7179, 0, %v7303
        %v7306 = vmul.f32 %v7304, %v7304
        %v7307 = vmul.f32 %v7306, -0.001358992
        %v7308 = vadd.f32 %v7307, 0.041655596
        %v7309 = vmul.f32 %v7306, %v7308
        %v7310 = vadd.f32 %v7309, -0.4999988
        %v7311 = vmul.f32 %v7306, %v7310
        %v7312 = vadd.f32 1.0, %v7311
        %v7313 = vmul.f32 %v7304, %v7304
        %v7314 = vmul.f32 %v7313, -0.00019511016
        %v7315 = vadd.f32 %v7314, 0.008332121
        %v7316 = vmul.f32 %v7313, %v7315
        %v7317 = vadd.f32 %v7316, -0.16666654
        %v7318 = vmul.f32 %v7313, %v7317
        %v7319 = vadd.f32 %v7318, 1.0
        %v7320 = vmul.f32 %v7319, %v7304
        %vm7321 = vweird.f32 %v184
        %v7322 = vadd.s32 %v7305, 3
        %v7323 = vand.u32 %v7322, 3
        %vm7324 = vcmp.lt.s32.totalorder %v7323, 2
        %vm7325 = vcmp.eq.s32.totalorder %v7323, 0
        %v7326 = vxor.u32 %v7320, 2147483648
        %v7327 = vsel %vm7325, %v7312, %v7326
        %vm7328 = vcmp.eq.s32.totalorder %v7323, 2
        %v7329 = vxor.u32 %v7312, 2147483648
        %v7330 = vsel %vm7328, %v7329, %v7320
        %v7331 = vsel %vm7324, %v7327, %v7330
        %v7332 = vsel %vm7321, nan, %v7331
        %v7333 = vand.u32 2147483647, %v185
        %vm7334 = vcmp.le.f32.partialorder %v7333, 0.7853982
        %vm7335 = vcmp.lt.s32.totalorder %v185, 0
        %v7336 = vand.u32 %v185, 2139095040
        %v7337 = vshrl.u32 %v7336, 23
        %v7338 = vsub.s32 %v7337, 127
        %v7339 = vand.u32 2147483647, %v185
        %v7340 = vand.u32 %v7339, 8388607
        %v7341 = vor.u32 %v7340, 8388608
        %v7342 = vsub.s32 0, %v7341
        %v7343 = vadd.s32 %v7338, 1
        %vm7344 = vcmp.gt.s32.totalorder %v7343, 0
        %v7345 = vsel %vm7344, %v7343, 0
        %v7346 = vshrl.u32 %v7345, 5
        %v7347 = vand.u32 %v7345, 31
        %v7348 = vsub.s32 32, %v7347
        %v7349 = vshrl.u32 683565275, %v7348
        %v7350 = vshll.u32 683565275, %v7347
        %v7351 = vshrl.u32 2475754826, %v7348
        %v7352 = vor.u32 %v7350, %v7351
        %v7353 = vshll.u32 2475754826, %v7347
        %v7354 = vshrl.u32 2131351028, %v7348
        %v7355 = vor.u32 %v7353, %v7354
        %v7356 = vshll.u32 2131351028, %v7347
        %v7357 = vshrl.u32 2102212464, %v7348
        %v7358 = vor.u32 %v7356, %v7357
        %v7359 = vshll.u32 2102212464, %v7347
        %v7360 = vshrl.u32 920167782, %v7348
        %v7361 = vor.u32 %v7359, %v7360
        %v7362 = vshll.u32 920167782, %v7347
        %v7363 = vshrl.u32 1326507024, %v7348
        %v7364 = vor.u32 %v7362, %v7363
        %vm7365 = vcmp.lt.s32.totalorder %v7346, 1
        %vm7366 = vcmp.lt.s32.totalorder %v7346, 2
        %vm7367 = vcmp.lt.s32.totalorder %v7346, 3
        %vm7368 = vcmp.lt.s32.totalorder %v7346, 4
        %v7369 = vsel %vm7365, %v7349, %v7352
        %v7370 = vsel %vm7368, %v7358, 2102212464
        %v7371 = vsel %vm7367, %v7355, %v7370
        %v7372 = vsel %vm7366, %v7369, %v7371
        %v7373 = vsel %vm7365, %v7352, %v7355
        %v7374 = vsel %vm7368, %v7361, 920167782
        %v7375 = vsel %vm7367, %v7358, %v7374
        %v7376 = vsel %vm7366, %v7373, %v7375
        %v7377 = vsel %vm7365, %v7355, %v7358
        %v7378 = vsel %vm7368, %v7364, 1326507024
        %v7379 = vsel %vm7367, %v7361, %v7378
        %v7380 = vsel %vm7366, %v7377, %v7379
        %v7381 = vshll.u32 %v7341, 8
        %v7382 = vand.u32 %v7381, 65535
        %v7383 = vshrl.u32 %v7381, 16
        %v7384 = vand.u32 %v7380, 65535
        %v7385 = vshrl.u32 %v7380, 16
        %v7386 = vmul.u32 %v7382, %v7384
        %v7387 = vmul.u32 %v7382, %v7385
        %v7388 = vmul.u32 %v7383, %v7384
        %v7389 = vmul.u32 %v7383, %v7385
        %v7390 = vshll.u32 %v7387, 16
        %v7391 = vshrl.u32 %v7387, 16
        %v7392 = vshll.u32 %v7388, 16
        %v7393 = vshrl.u32 %v7388, 16
        %vm7394 = vc.u32 %v7386, %v7390
        %v7395 = vsel %vm7394, 1, 0
        %v7396 = vadd.s32 %v7386, %v7390
        %v7397 = vadd.s32 %v7389, %v7395
        %vm7398 = vc.u32 %v7396, %v7392
        %v7399 = vsel %vm7398, 1, 0
        %v7400 = vadd.s32 %v7396, %v7392
        %v7401 = vadd.s32 %v7397, %v7399
        %v7402 = vadd.s32 %v7401, %v7391
        %v7403 = vadd.s32 %v7402, %v7393
        %v7404 = vand.u32 %v7381, 65535
        %v7405 = vshrl.u32 %v7381, 16
        %v7406 = vand.u32 %v7376, 65535
        %v7407 = vshrl.u32 %v7376, 16
        %v7408 = vmul.u32 %v7404, %v7406
        %v7409 = vmul.u32 %v7404, %v7407
        %v7410 = vmul.u32 %v7405, %v7406
        %v7411 = vmul.u32 %v7405, %v7407
        %v7412 = vshll.u32 %v7409, 16
        %v7413 = vshrl.u32 %v7409, 16
        %v7414 = vshll.u32 %v7410, 16
        %v7415 = vshrl.u32 %v7410, 16
        %vm7416 = vc.u32 %v7408, %v7412
        %v7417 = vsel %vm7416, 1, 0
        %v7418 = vadd.s32 %v7408, %v7412
        %v7419 = vadd.s32 %v7411, %v7417
        %vm7420 = vc.u32 %v7418, %v7414
        %v7421 = vsel %vm7420, 1, 0
        %v7422 = vadd.s32 %v7418, %v7414
        %v7423 = vadd.s32 %v7419, %v7421
        %v7424 = vadd.s32 %v7423, %v7413
        %v7425 = vadd.s32 %v7424, %v7415
        %v7426 = vmul.u32 %v7381, %v7372
        %v7427 = vadd.s32 %v7403, %v7422
        %vm7428 = vc.u32 %v7403, %v7422
        %v7429 = vadd.s32 %v7425, 1
        %v7430 = vsel %vm7428, %v7429, %v7425
        %v7431 = vadd.s32 %v7426, %v7430
        %v7432 = vadd.s32 %v7431, 536870912
        %v7433 = vshrl.u32 %v7432, 30
        %v7434 = vshll.u32 %v7433, 30
        %v7435 = vsub.s32 %v7431, %v7434
        %vm7436 = vcmp.lt.s32.totalorder %v7435, 0
        %v7437 = vsub.s32 0, %v7435
        %v7438 = vsel %vm7436, %v7437, %v7435
        %v7439 = vclz %v7438
        %v7440 = vsub.s32 %v7439, 2
        %vm7441 = vcmp.gt.s32.totalorder 0, %v7440
        %v7442 = vsel %vm7441, 0, %v7440
        %v7443 = vsub.s32 32, %v7442
        %v7444 = vshll.u32 %v7435, %v7442
        %v7445 = vshrl.u32 %v7427, %v7443
        %v7446 = vor.u32 %v7444, %v7445
        %v7447 = vsub.s32 4294967266, %v7442
        %v7448 = vadd.s32 %v7447, 127
        %v7449 = vshll.u32 %v7448, 23
        %v7450 = vor.u32 4788187, %v7449
        %v7451 = vand.u32 2147483647, %v7450
        %v7453 = vcvt.s32.f32 %v7446
        %v7454 = vmul.f32 %v7453, %v7451
        %v7455 = vxor.u32 %v7454, 2147483648
        %v7456 = vsel %vm7335, %v7455, %v7454
        %v7457 = vsub.s32 4, %v7433
        %v7458 = vsel %vm7335, %v7457, %v7433
        %v7459 = vsel %vm7334, %v185, %v7456
        %v7460 = vsel %vm7334, 0, %v7458
        %v7461 = vmul.f32 %v7459, %v7459
        %v7462 = vmul.f32 %v7461, -0.001358992
        %v7463 = vadd.f32 %v7462, 0.041655596
        %v7464 = vmul.f32 %v7461, %v7463
        %v7465 = vadd.f32 %v7464, -0.4999988
        %v7466 = vmul.f32 %v7461, %v7465
        %v7467 = vadd.f32 1.0, %v7466
        %v7468 = vmul.f32 %v7459, %v7459
        %v7469 = vmul.f32 %v7468, -0.00019511016
        %v7470 = vadd.f32 %v7469, 0.008332121
        %v7471 = vmul.f32 %v7468, %v7470
        %v7472 = vadd.f32 %v7471, -0.16666654
        %v7473 = vmul.f32 %v7468, %v7472
        %v7474 = vadd.f32 %v7473, 1.0
        %v7475 = vmul.f32 %v7474, %v7459
        %vm7476 = vweird.f32 %v185
        %v7477 = vadd.s32 %v7460, 3
        %v7478 = vand.u32 %v7477, 3
        %vm7479 = vcmp.lt.s32.totalorder %v7478, 2
        %vm7480 = vcmp.eq.s32.totalorder %v7478, 0
        %v7481 = vxor.u32 %v7475, 2147483648
        %v7482 = vsel %vm7480, %v7467, %v7481
        %vm7483 = vcmp.eq.s32.totalorder %v7478, 2
        %v7484 = vxor.u32 %v7467, 2147483648
        %v7485 = vsel %vm7483, %v7484, %v7475
        %v7486 = vsel %vm7479, %v7482, %v7485
        %v7487 = vsel %vm7476, nan, %v7486
        %v7488 = vand.u32 2147483647, %v186
        %vm7489 = vcmp.le.f32.partialorder %v7488, 0.7853982
        %vm7490 = vcmp.lt.s32.totalorder %v186, 0
        %v7491 = vand.u32 %v186, 2139095040
        %v7492 = vshrl.u32 %v7491, 23
        %v7493 = vsub.s32 %v7492, 127
        %v7494 = vand.u32 2147483647, %v186
        %v7495 = vand.u32 %v7494, 8388607
        %v7496 = vor.u32 %v7495, 8388608
        %v7497 = vsub.s32 0, %v7496
        %v7498 = vadd.s32 %v7493, 1
        %vm7499 = vcmp.gt.s32.totalorder %v7498, 0
        %v7500 = vsel %vm7499, %v7498, 0
        %v7501 = vshrl.u32 %v7500, 5
        %v7502 = vand.u32 %v7500, 31
        %v7503 = vsub.s32 32, %v7502
        %v7504 = vshrl.u32 683565275, %v7503
        %v7505 = vshll.u32 683565275, %v7502
        %v7506 = vshrl.u32 2475754826, %v7503
        %v7507 = vor.u32 %v7505, %v7506
        %v7508 = vshll.u32 2475754826, %v7502
        %v7509 = vshrl.u32 2131351028, %v7503
        %v7510 = vor.u32 %v7508, %v7509
        %v7511 = vshll.u32 2131351028, %v7502
        %v7512 = vshrl.u32 2102212464, %v7503
        %v7513 = vor.u32 %v7511, %v7512
        %v7514 = vshll.u32 2102212464, %v7502
        %v7515 = vshrl.u32 920167782, %v7503
        %v7516 = vor.u32 %v7514, %v7515
        %v7517 = vshll.u32 920167782, %v7502
        %v7518 = vshrl.u32 1326507024, %v7503
        %v7519 = vor.u32 %v7517, %v7518
        %vm7520 = vcmp.lt.s32.totalorder %v7501, 1
        %vm7521 = vcmp.lt.s32.totalorder %v7501, 2
        %vm7522 = vcmp.lt.s32.totalorder %v7501, 3
        %vm7523 = vcmp.lt.s32.totalorder %v7501, 4
        %v7524 = vsel %vm7520, %v7504, %v7507
        %v7525 = vsel %vm7523, %v7513, 2102212464
        %v7526 = vsel %vm7522, %v7510, %v7525
        %v7527 = vsel %vm7521, %v7524, %v7526
        %v7528 = vsel %vm7520, %v7507, %v7510
        %v7529 = vsel %vm7523, %v7516, 920167782
        %v7530 = vsel %vm7522, %v7513, %v7529
        %v7531 = vsel %vm7521, %v7528, %v7530
        %v7532 = vsel %vm7520, %v7510, %v7513
        %v7533 = vsel %vm7523, %v7519, 1326507024
        %v7534 = vsel %vm7522, %v7516, %v7533
        %v7535 = vsel %vm7521, %v7532, %v7534
        %v7536 = vshll.u32 %v7496, 8
        %v7537 = vand.u32 %v7536, 65535
        %v7538 = vshrl.u32 %v7536, 16
        %v7539 = vand.u32 %v7535, 65535
        %v7540 = vshrl.u32 %v7535, 16
        %v7541 = vmul.u32 %v7537, %v7539
        %v7542 = vmul.u32 %v7537, %v7540
        %v7543 = vmul.u32 %v7538, %v7539
        %v7544 = vmul.u32 %v7538, %v7540
        %v7545 = vshll.u32 %v7542, 16
        %v7546 = vshrl.u32 %v7542, 16
        %v7547 = vshll.u32 %v7543, 16
        %v7548 = vshrl.u32 %v7543, 16
        %vm7549 = vc.u32 %v7541, %v7545
        %v7550 = vsel %vm7549, 1, 0
        %v7551 = vadd.s32 %v7541, %v7545
        %v7552 = vadd.s32 %v7544, %v7550
        %vm7553 = vc.u32 %v7551, %v7547
        %v7554 = vsel %vm7553, 1, 0
        %v7555 = vadd.s32 %v7551, %v7547
        %v7556 = vadd.s32 %v7552, %v7554
        %v7557 = vadd.s32 %v7556, %v7546
        %v7558 = vadd.s32 %v7557, %v7548
        %v7559 = vand.u32 %v7536, 65535
        %v7560 = vshrl.u32 %v7536, 16
        %v7561 = vand.u32 %v7531, 65535
        %v7562 = vshrl.u32 %v7531, 16
        %v7563 = vmul.u32 %v7559, %v7561
        %v7564 = vmul.u32 %v7559, %v7562
        %v7565 = vmul.u32 %v7560, %v7561
        %v7566 = vmul.u32 %v7560, %v7562
        %v7567 = vshll.u32 %v7564, 16
        %v7568 = vshrl.u32 %v7564, 16
        %v7569 = vshll.u32 %v7565, 16
        %v7570 = vshrl.u32 %v7565, 16
        %vm7571 = vc.u32 %v7563, %v7567
        %v7572 = vsel %vm7571, 1, 0
        %v7573 = vadd.s32 %v7563, %v7567
        %v7574 = vadd.s32 %v7566, %v7572
        %vm7575 = vc.u32 %v7573, %v7569
        %v7576 = vsel %vm7575, 1, 0
        %v7577 = vadd.s32 %v7573, %v7569
        %v7578 = vadd.s32 %v7574, %v7576
        %v7579 = vadd.s32 %v7578, %v7568
        %v7580 = vadd.s32 %v7579, %v7570
        %v7581 = vmul.u32 %v7536, %v7527
        %v7582 = vadd.s32 %v7558, %v7577
        %vm7583 = vc.u32 %v7558, %v7577
        %v7584 = vadd.s32 %v7580, 1
        %v7585 = vsel %vm7583, %v7584, %v7580
        %v7586 = vadd.s32 %v7581, %v7585
        %v7587 = vadd.s32 %v7586, 536870912
        %v7588 = vshrl.u32 %v7587, 30
        %v7589 = vshll.u32 %v7588, 30
        %v7590 = vsub.s32 %v7586, %v7589
        %vm7591 = vcmp.lt.s32.totalorder %v7590, 0
        %v7592 = vsub.s32 0, %v7590
        %v7593 = vsel %vm7591, %v7592, %v7590
        %v7594 = vclz %v7593
        %v7595 = vsub.s32 %v7594, 2
        %vm7596 = vcmp.gt.s32.totalorder 0, %v7595
        %v7597 = vsel %vm7596, 0, %v7595
        %v7598 = vsub.s32 32, %v7597
        %v7599 = vshll.u32 %v7590, %v7597
        %v7600 = vshrl.u32 %v7582, %v7598
        %v7601 = vor.u32 %v7599, %v7600
        %v7602 = vsub.s32 4294967266, %v7597
        %v7603 = vadd.s32 %v7602, 127
        %v7604 = vshll.u32 %v7603, 23
        %v7605 = vor.u32 4788187, %v7604
        %v7606 = vand.u32 2147483647, %v7605
        %v7608 = vcvt.s32.f32 %v7601
        %v7609 = vmul.f32 %v7608, %v7606
        %v7610 = vxor.u32 %v7609, 2147483648
        %v7611 = vsel %vm7490, %v7610, %v7609
        %v7612 = vsub.s32 4, %v7588
        %v7613 = vsel %vm7490, %v7612, %v7588
        %v7614 = vsel %vm7489, %v186, %v7611
        %v7615 = vsel %vm7489, 0, %v7613
        %v7616 = vmul.f32 %v7614, %v7614
        %v7617 = vmul.f32 %v7616, -0.001358992
        %v7618 = vadd.f32 %v7617, 0.041655596
        %v7619 = vmul.f32 %v7616, %v7618
        %v7620 = vadd.f32 %v7619, -0.4999988
        %v7621 = vmul.f32 %v7616, %v7620
        %v7622 = vadd.f32 1.0, %v7621
        %v7623 = vmul.f32 %v7614, %v7614
        %v7624 = vmul.f32 %v7623, -0.00019511016
        %v7625 = vadd.f32 %v7624, 0.008332121
        %v7626 = vmul.f32 %v7623, %v7625
        %v7627 = vadd.f32 %v7626, -0.16666654
        %v7628 = vmul.f32 %v7623, %v7627
        %v7629 = vadd.f32 %v7628, 1.0
        %v7630 = vmul.f32 %v7629, %v7614
        %vm7631 = vweird.f32 %v186
        %v7632 = vadd.s32 %v7615, 3
        %v7633 = vand.u32 %v7632, 3
        %vm7634 = vcmp.lt.s32.totalorder %v7633, 2
        %vm7635 = vcmp.eq.s32.totalorder %v7633, 0
        %v7636 = vxor.u32 %v7630, 2147483648
        %v7637 = vsel %vm7635, %v7622, %v7636
        %vm7638 = vcmp.eq.s32.totalorder %v7633, 2
        %v7639 = vxor.u32 %v7622, 2147483648
        %v7640 = vsel %vm7638, %v7639, %v7630
        %v7641 = vsel %vm7634, %v7637, %v7640
        %v7642 = vsel %vm7631, nan, %v7641
        %v7643 = vand.u32 2147483647, %v187
        %vm7644 = vcmp.le.f32.partialorder %v7643, 0.7853982
        %vm7645 = vcmp.lt.s32.totalorder %v187, 0
        %v7646 = vand.u32 %v187, 2139095040
        %v7647 = vshrl.u32 %v7646, 23
        %v7648 = vsub.s32 %v7647, 127
        %v7649 = vand.u32 2147483647, %v187
        %v7650 = vand.u32 %v7649, 8388607
        %v7651 = vor.u32 %v7650, 8388608
        %v7652 = vsub.s32 0, %v7651
        %v7653 = vadd.s32 %v7648, 1
        %vm7654 = vcmp.gt.s32.totalorder %v7653, 0
        %v7655 = vsel %vm7654, %v7653, 0
        %v7656 = vshrl.u32 %v7655, 5
        %v7657 = vand.u32 %v7655, 31
        %v7658 = vsub.s32 32, %v7657
        %v7659 = vshrl.u32 683565275, %v7658
        %v7660 = vshll.u32 683565275, %v7657
        %v7661 = vshrl.u32 2475754826, %v7658
        %v7662 = vor.u32 %v7660, %v7661
        %v7663 = vshll.u32 2475754826, %v7657
        %v7664 = vshrl.u32 2131351028, %v7658
        %v7665 = vor.u32 %v7663, %v7664
        %v7666 = vshll.u32 2131351028, %v7657
        %v7667 = vshrl.u32 2102212464, %v7658
        %v7668 = vor.u32 %v7666, %v7667
        %v7669 = vshll.u32 2102212464, %v7657
        %v7670 = vshrl.u32 920167782, %v7658
        %v7671 = vor.u32 %v7669, %v7670
        %v7672 = vshll.u32 920167782, %v7657
        %v7673 = vshrl.u32 1326507024, %v7658
        %v7674 = vor.u32 %v7672, %v7673
        %vm7675 = vcmp.lt.s32.totalorder %v7656, 1
        %vm7676 = vcmp.lt.s32.totalorder %v7656, 2
        %vm7677 = vcmp.lt.s32.totalorder %v7656, 3
        %vm7678 = vcmp.lt.s32.totalorder %v7656, 4
        %v7679 = vsel %vm7675, %v7659, %v7662
        %v7680 = vsel %vm7678, %v7668, 2102212464
        %v7681 = vsel %vm7677, %v7665, %v7680
        %v7682 = vsel %vm7676, %v7679, %v7681
        %v7683 = vsel %vm7675, %v7662, %v7665
        %v7684 = vsel %vm7678, %v7671, 920167782
        %v7685 = vsel %vm7677, %v7668, %v7684
        %v7686 = vsel %vm7676, %v7683, %v7685
        %v7687 = vsel %vm7675, %v7665, %v7668
        %v7688 = vsel %vm7678, %v7674, 1326507024
        %v7689 = vsel %vm7677, %v7671, %v7688
        %v7690 = vsel %vm7676, %v7687, %v7689
        %v7691 = vshll.u32 %v7651, 8
        %v7692 = vand.u32 %v7691, 65535
        %v7693 = vshrl.u32 %v7691, 16
        %v7694 = vand.u32 %v7690, 65535
        %v7695 = vshrl.u32 %v7690, 16
        %v7696 = vmul.u32 %v7692, %v7694
        %v7697 = vmul.u32 %v7692, %v7695
        %v7698 = vmul.u32 %v7693, %v7694
        %v7699 = vmul.u32 %v7693, %v7695
        %v7700 = vshll.u32 %v7697, 16
        %v7701 = vshrl.u32 %v7697, 16
        %v7702 = vshll.u32 %v7698, 16
        %v7703 = vshrl.u32 %v7698, 16
        %vm7704 = vc.u32 %v7696, %v7700
        %v7705 = vsel %vm7704, 1, 0
        %v7706 = vadd.s32 %v7696, %v7700
        %v7707 = vadd.s32 %v7699, %v7705
        %vm7708 = vc.u32 %v7706, %v7702
        %v7709 = vsel %vm7708, 1, 0
        %v7710 = vadd.s32 %v7706, %v7702
        %v7711 = vadd.s32 %v7707, %v7709
        %v7712 = vadd.s32 %v7711, %v7701
        %v7713 = vadd.s32 %v7712, %v7703
        %v7714 = vand.u32 %v7691, 65535
        %v7715 = vshrl.u32 %v7691, 16
        %v7716 = vand.u32 %v7686, 65535
        %v7717 = vshrl.u32 %v7686, 16
        %v7718 = vmul.u32 %v7714, %v7716
        %v7719 = vmul.u32 %v7714, %v7717
        %v7720 = vmul.u32 %v7715, %v7716
        %v7721 = vmul.u32 %v7715, %v7717
        %v7722 = vshll.u32 %v7719, 16
        %v7723 = vshrl.u32 %v7719, 16
        %v7724 = vshll.u32 %v7720, 16
        %v7725 = vshrl.u32 %v7720, 16
        %vm7726 = vc.u32 %v7718, %v7722
        %v7727 = vsel %vm7726, 1, 0
        %v7728 = vadd.s32 %v7718, %v7722
        %v7729 = vadd.s32 %v7721, %v7727
        %vm7730 = vc.u32 %v7728, %v7724
        %v7731 = vsel %vm7730, 1, 0
        %v7732 = vadd.s32 %v7728, %v7724
        %v7733 = vadd.s32 %v7729, %v7731
        %v7734 = vadd.s32 %v7733, %v7723
        %v7735 = vadd.s32 %v7734, %v7725
        %v7736 = vmul.u32 %v7691, %v7682
        %v7737 = vadd.s32 %v7713, %v7732
        %vm7738 = vc.u32 %v7713, %v7732
        %v7739 = vadd.s32 %v7735, 1
        %v7740 = vsel %vm7738, %v7739, %v7735
        %v7741 = vadd.s32 %v7736, %v7740
        %v7742 = vadd.s32 %v7741, 536870912
        %v7743 = vshrl.u32 %v7742, 30
        %v7744 = vshll.u32 %v7743, 30
        %v7745 = vsub.s32 %v7741, %v7744
        %vm7746 = vcmp.lt.s32.totalorder %v7745, 0
        %v7747 = vsub.s32 0, %v7745
        %v7748 = vsel %vm7746, %v7747, %v7745
        %v7749 = vclz %v7748
        %v7750 = vsub.s32 %v7749, 2
        %vm7751 = vcmp.gt.s32.totalorder 0, %v7750
        %v7752 = vsel %vm7751, 0, %v7750
        %v7753 = vsub.s32 32, %v7752
        %v7754 = vshll.u32 %v7745, %v7752
        %v7755 = vshrl.u32 %v7737, %v7753
        %v7756 = vor.u32 %v7754, %v7755
        %v7757 = vsub.s32 4294967266, %v7752
        %v7758 = vadd.s32 %v7757, 127
        %v7759 = vshll.u32 %v7758, 23
        %v7760 = vor.u32 4788187, %v7759
        %v7761 = vand.u32 2147483647, %v7760
        %v7763 = vcvt.s32.f32 %v7756
        %v7764 = vmul.f32 %v7763, %v7761
        %v7765 = vxor.u32 %v7764, 2147483648
        %v7766 = vsel %vm7645, %v7765, %v7764
        %v7767 = vsub.s32 4, %v7743
        %v7768 = vsel %vm7645, %v7767, %v7743
        %v7769 = vsel %vm7644, %v187, %v7766
        %v7770 = vsel %vm7644, 0, %v7768
        %v7771 = vmul.f32 %v7769, %v7769
        %v7772 = vmul.f32 %v7771, -0.001358992
        %v7773 = vadd.f32 %v7772, 0.041655596
        %v7774 = vmul.f32 %v7771, %v7773
        %v7775 = vadd.f32 %v7774, -0.4999988
        %v7776 = vmul.f32 %v7771, %v7775
        %v7777 = vadd.f32 1.0, %v7776
        %v7778 = vmul.f32 %v7769, %v7769
        %v7779 = vmul.f32 %v7778, -0.00019511016
        %v7780 = vadd.f32 %v7779, 0.008332121
        %v7781 = vmul.f32 %v7778, %v7780
        %v7782 = vadd.f32 %v7781, -0.16666654
        %v7783 = vmul.f32 %v7778, %v7782
        %v7784 = vadd.f32 %v7783, 1.0
        %v7785 = vmul.f32 %v7784, %v7769
        %vm7786 = vweird.f32 %v187
        %v7787 = vadd.s32 %v7770, 3
        %v7788 = vand.u32 %v7787, 3
        %vm7789 = vcmp.lt.s32.totalorder %v7788, 2
        %vm7790 = vcmp.eq.s32.totalorder %v7788, 0
        %v7791 = vxor.u32 %v7785, 2147483648
        %v7792 = vsel %vm7790, %v7777, %v7791
        %vm7793 = vcmp.eq.s32.totalorder %v7788, 2
        %v7794 = vxor.u32 %v7777, 2147483648
        %v7795 = vsel %vm7793, %v7794, %v7785
        %v7796 = vsel %vm7789, %v7792, %v7795
        %v7797 = vsel %vm7786, nan, %v7796
        %v7798 = vand.u32 2147483647, %v188
        %vm7799 = vcmp.le.f32.partialorder %v7798, 0.7853982
        %vm7800 = vcmp.lt.s32.totalorder %v188, 0
        %v7801 = vand.u32 %v188, 2139095040
        %v7802 = vshrl.u32 %v7801, 23
        %v7803 = vsub.s32 %v7802, 127
        %v7804 = vand.u32 2147483647, %v188
        %v7805 = vand.u32 %v7804, 8388607
        %v7806 = vor.u32 %v7805, 8388608
        %v7807 = vsub.s32 0, %v7806
        %v7808 = vadd.s32 %v7803, 1
        %vm7809 = vcmp.gt.s32.totalorder %v7808, 0
        %v7810 = vsel %vm7809, %v7808, 0
        %v7811 = vshrl.u32 %v7810, 5
        %v7812 = vand.u32 %v7810, 31
        %v7813 = vsub.s32 32, %v7812
        %v7814 = vshrl.u32 683565275, %v7813
        %v7815 = vshll.u32 683565275, %v7812
        %v7816 = vshrl.u32 2475754826, %v7813
        %v7817 = vor.u32 %v7815, %v7816
        %v7818 = vshll.u32 2475754826, %v7812
        %v7819 = vshrl.u32 2131351028, %v7813
        %v7820 = vor.u32 %v7818, %v7819
        %v7821 = vshll.u32 2131351028, %v7812
        %v7822 = vshrl.u32 2102212464, %v7813
        %v7823 = vor.u32 %v7821, %v7822
        %v7824 = vshll.u32 2102212464, %v7812
        %v7825 = vshrl.u32 920167782, %v7813
        %v7826 = vor.u32 %v7824, %v7825
        %v7827 = vshll.u32 920167782, %v7812
        %v7828 = vshrl.u32 1326507024, %v7813
        %v7829 = vor.u32 %v7827, %v7828
        %vm7830 = vcmp.lt.s32.totalorder %v7811, 1
        %vm7831 = vcmp.lt.s32.totalorder %v7811, 2
        %vm7832 = vcmp.lt.s32.totalorder %v7811, 3
        %vm7833 = vcmp.lt.s32.totalorder %v7811, 4
        %v7834 = vsel %vm7830, %v7814, %v7817
        %v7835 = vsel %vm7833, %v7823, 2102212464
        %v7836 = vsel %vm7832, %v7820, %v7835
        %v7837 = vsel %vm7831, %v7834, %v7836
        %v7838 = vsel %vm7830, %v7817, %v7820
        %v7839 = vsel %vm7833, %v7826, 920167782
        %v7840 = vsel %vm7832, %v7823, %v7839
        %v7841 = vsel %vm7831, %v7838, %v7840
        %v7842 = vsel %vm7830, %v7820, %v7823
        %v7843 = vsel %vm7833, %v7829, 1326507024
        %v7844 = vsel %vm7832, %v7826, %v7843
        %v7845 = vsel %vm7831, %v7842, %v7844
        %v7846 = vshll.u32 %v7806, 8
        %v7847 = vand.u32 %v7846, 65535
        %v7848 = vshrl.u32 %v7846, 16
        %v7849 = vand.u32 %v7845, 65535
        %v7850 = vshrl.u32 %v7845, 16
        %v7851 = vmul.u32 %v7847, %v7849
        %v7852 = vmul.u32 %v7847, %v7850
        %v7853 = vmul.u32 %v7848, %v7849
        %v7854 = vmul.u32 %v7848, %v7850
        %v7855 = vshll.u32 %v7852, 16
        %v7856 = vshrl.u32 %v7852, 16
        %v7857 = vshll.u32 %v7853, 16
        %v7858 = vshrl.u32 %v7853, 16
        %vm7859 = vc.u32 %v7851, %v7855
        %v7860 = vsel %vm7859, 1, 0
        %v7861 = vadd.s32 %v7851, %v7855
        %v7862 = vadd.s32 %v7854, %v7860
        %vm7863 = vc.u32 %v7861, %v7857
        %v7864 = vsel %vm7863, 1, 0
        %v7865 = vadd.s32 %v7861, %v7857
        %v7866 = vadd.s32 %v7862, %v7864
        %v7867 = vadd.s32 %v7866, %v7856
        %v7868 = vadd.s32 %v7867, %v7858
        %v7869 = vand.u32 %v7846, 65535
        %v7870 = vshrl.u32 %v7846, 16
        %v7871 = vand.u32 %v7841, 65535
        %v7872 = vshrl.u32 %v7841, 16
        %v7873 = vmul.u32 %v7869, %v7871
        %v7874 = vmul.u32 %v7869, %v7872
        %v7875 = vmul.u32 %v7870, %v7871
        %v7876 = vmul.u32 %v7870, %v7872
        %v7877 = vshll.u32 %v7874, 16
        %v7878 = vshrl.u32 %v7874, 16
        %v7879 = vshll.u32 %v7875, 16
        %v7880 = vshrl.u32 %v7875, 16
        %vm7881 = vc.u32 %v7873, %v7877
        %v7882 = vsel %vm7881, 1, 0
        %v7883 = vadd.s32 %v7873, %v7877
        %v7884 = vadd.s32 %v7876, %v7882
        %vm7885 = vc.u32 %v7883, %v7879
        %v7886 = vsel %vm7885, 1, 0
        %v7887 = vadd.s32 %v7883, %v7879
        %v7888 = vadd.s32 %v7884, %v7886
        %v7889 = vadd.s32 %v7888, %v7878
        %v7890 = vadd.s32 %v7889, %v7880
        %v7891 = vmul.u32 %v7846, %v7837
        %v7892 = vadd.s32 %v7868, %v7887
        %vm7893 = vc.u32 %v7868, %v7887
        %v7894 = vadd.s32 %v7890, 1
        %v7895 = vsel %vm7893, %v7894, %v7890
        %v7896 = vadd.s32 %v7891, %v7895
        %v7897 = vadd.s32 %v7896, 536870912
        %v7898 = vshrl.u32 %v7897, 30
        %v7899 = vshll.u32 %v7898, 30
        %v7900 = vsub.s32 %v7896, %v7899
        %vm7901 = vcmp.lt.s32.totalorder %v7900, 0
        %v7902 = vsub.s32 0, %v7900
        %v7903 = vsel %vm7901, %v7902, %v7900
        %v7904 = vclz %v7903
        %v7905 = vsub.s32 %v7904, 2
        %vm7906 = vcmp.gt.s32.totalorder 0, %v7905
        %v7907 = vsel %vm7906, 0, %v7905
        %v7908 = vsub.s32 32, %v7907
        %v7909 = vshll.u32 %v7900, %v7907
        %v7910 = vshrl.u32 %v7892, %v7908
        %v7911 = vor.u32 %v7909, %v7910
        %v7912 = vsub.s32 4294967266, %v7907
        %v7913 = vadd.s32 %v7912, 127
        %v7914 = vshll.u32 %v7913, 23
        %v7915 = vor.u32 4788187, %v7914
        %v7916 = vand.u32 2147483647, %v7915
        %v7918 = vcvt.s32.f32 %v7911
        %v7919 = vmul.f32 %v7918, %v7916
        %v7920 = vxor.u32 %v7919, 2147483648
        %v7921 = vsel %vm7800, %v7920, %v7919
        %v7922 = vsub.s32 4, %v7898
        %v7923 = vsel %vm7800, %v7922, %v7898
        %v7924 = vsel %vm7799, %v188, %v7921
        %v7925 = vsel %vm7799, 0, %v7923
        %v7926 = vmul.f32 %v7924, %v7924
        %v7927 = vmul.f32 %v7926, -0.001358992
        %v7928 = vadd.f32 %v7927, 0.041655596
        %v7929 = vmul.f32 %v7926, %v7928
        %v7930 = vadd.f32 %v7929, -0.4999988
        %v7931 = vmul.f32 %v7926, %v7930
        %v7932 = vadd.f32 1.0, %v7931
        %v7933 = vmul.f32 %v7924, %v7924
        %v7934 = vmul.f32 %v7933, -0.00019511016
        %v7935 = vadd.f32 %v7934, 0.008332121
        %v7936 = vmul.f32 %v7933, %v7935
        %v7937 = vadd.f32 %v7936, -0.16666654
        %v7938 = vmul.f32 %v7933, %v7937
        %v7939 = vadd.f32 %v7938, 1.0
        %v7940 = vmul.f32 %v7939, %v7924
        %vm7941 = vweird.f32 %v188
        %v7942 = vadd.s32 %v7925, 3
        %v7943 = vand.u32 %v7942, 3
        %vm7944 = vcmp.lt.s32.totalorder %v7943, 2
        %vm7945 = vcmp.eq.s32.totalorder %v7943, 0
        %v7946 = vxor.u32 %v7940, 2147483648
        %v7947 = vsel %vm7945, %v7932, %v7946
        %vm7948 = vcmp.eq.s32.totalorder %v7943, 2
        %v7949 = vxor.u32 %v7932, 2147483648
        %v7950 = vsel %vm7948, %v7949, %v7940
        %v7951 = vsel %vm7944, %v7947, %v7950
        %v7952 = vsel %vm7941, nan, %v7951
        %v7953 = vand.u32 2147483647, %v189
        %vm7954 = vcmp.le.f32.partialorder %v7953, 0.7853982
        %vm7955 = vcmp.lt.s32.totalorder %v189, 0
        %v7956 = vand.u32 %v189, 2139095040
        %v7957 = vshrl.u32 %v7956, 23
        %v7958 = vsub.s32 %v7957, 127
        %v7959 = vand.u32 2147483647, %v189
        %v7960 = vand.u32 %v7959, 8388607
        %v7961 = vor.u32 %v7960, 8388608
        %v7962 = vsub.s32 0, %v7961
        %v7963 = vadd.s32 %v7958, 1
        %vm7964 = vcmp.gt.s32.totalorder %v7963, 0
        %v7965 = vsel %vm7964, %v7963, 0
        %v7966 = vshrl.u32 %v7965, 5
        %v7967 = vand.u32 %v7965, 31
        %v7968 = vsub.s32 32, %v7967
        %v7969 = vshrl.u32 683565275, %v7968
        %v7970 = vshll.u32 683565275, %v7967
        %v7971 = vshrl.u32 2475754826, %v7968
        %v7972 = vor.u32 %v7970, %v7971
        %v7973 = vshll.u32 2475754826, %v7967
        %v7974 = vshrl.u32 2131351028, %v7968
        %v7975 = vor.u32 %v7973, %v7974
        %v7976 = vshll.u32 2131351028, %v7967
        %v7977 = vshrl.u32 2102212464, %v7968
        %v7978 = vor.u32 %v7976, %v7977
        %v7979 = vshll.u32 2102212464, %v7967
        %v7980 = vshrl.u32 920167782, %v7968
        %v7981 = vor.u32 %v7979, %v7980
        %v7982 = vshll.u32 920167782, %v7967
        %v7983 = vshrl.u32 1326507024, %v7968
        %v7984 = vor.u32 %v7982, %v7983
        %vm7985 = vcmp.lt.s32.totalorder %v7966, 1
        %vm7986 = vcmp.lt.s32.totalorder %v7966, 2
        %vm7987 = vcmp.lt.s32.totalorder %v7966, 3
        %vm7988 = vcmp.lt.s32.totalorder %v7966, 4
        %v7989 = vsel %vm7985, %v7969, %v7972
        %v7990 = vsel %vm7988, %v7978, 2102212464
        %v7991 = vsel %vm7987, %v7975, %v7990
        %v7992 = vsel %vm7986, %v7989, %v7991
        %v7993 = vsel %vm7985, %v7972, %v7975
        %v7994 = vsel %vm7988, %v7981, 920167782
        %v7995 = vsel %vm7987, %v7978, %v7994
        %v7996 = vsel %vm7986, %v7993, %v7995
        %v7997 = vsel %vm7985, %v7975, %v7978
        %v7998 = vsel %vm7988, %v7984, 1326507024
        %v7999 = vsel %vm7987, %v7981, %v7998
        %v8000 = vsel %vm7986, %v7997, %v7999
        %v8001 = vshll.u32 %v7961, 8
        %v8002 = vand.u32 %v8001, 65535
        %v8003 = vshrl.u32 %v8001, 16
        %v8004 = vand.u32 %v8000, 65535
        %v8005 = vshrl.u32 %v8000, 16
        %v8006 = vmul.u32 %v8002, %v8004
        %v8007 = vmul.u32 %v8002, %v8005
        %v8008 = vmul.u32 %v8003, %v8004
        %v8009 = vmul.u32 %v8003, %v8005
        %v8010 = vshll.u32 %v8007, 16
        %v8011 = vshrl.u32 %v8007, 16
        %v8012 = vshll.u32 %v8008, 16
        %v8013 = vshrl.u32 %v8008, 16
        %vm8014 = vc.u32 %v8006, %v8010
        %v8015 = vsel %vm8014, 1, 0
        %v8016 = vadd.s32 %v8006, %v8010
        %v8017 = vadd.s32 %v8009, %v8015
        %vm8018 = vc.u32 %v8016, %v8012
        %v8019 = vsel %vm8018, 1, 0
        %v8020 = vadd.s32 %v8016, %v8012
        %v8021 = vadd.s32 %v8017, %v8019
        %v8022 = vadd.s32 %v8021, %v8011
        %v8023 = vadd.s32 %v8022, %v8013
        %v8024 = vand.u32 %v8001, 65535
        %v8025 = vshrl.u32 %v8001, 16
        %v8026 = vand.u32 %v7996, 65535
        %v8027 = vshrl.u32 %v7996, 16
        %v8028 = vmul.u32 %v8024, %v8026
        %v8029 = vmul.u32 %v8024, %v8027
        %v8030 = vmul.u32 %v8025, %v8026
        %v8031 = vmul.u32 %v8025, %v8027
        %v8032 = vshll.u32 %v8029, 16
        %v8033 = vshrl.u32 %v8029, 16
        %v8034 = vshll.u32 %v8030, 16
        %v8035 = vshrl.u32 %v8030, 16
        %vm8036 = vc.u32 %v8028, %v8032
        %v8037 = vsel %vm8036, 1, 0
        %v8038 = vadd.s32 %v8028, %v8032
        %v8039 = vadd.s32 %v8031, %v8037
        %vm8040 = vc.u32 %v8038, %v8034
        %v8041 = vsel %vm8040, 1, 0
        %v8042 = vadd.s32 %v8038, %v8034
        %v8043 = vadd.s32 %v8039, %v8041
        %v8044 = vadd.s32 %v8043, %v8033
        %v8045 = vadd.s32 %v8044, %v8035
        %v8046 = vmul.u32 %v8001, %v7992
        %v8047 = vadd.s32 %v8023, %v8042
        %vm8048 = vc.u32 %v8023, %v8042
        %v8049 = vadd.s32 %v8045, 1
        %v8050 = vsel %vm8048, %v8049, %v8045
        %v8051 = vadd.s32 %v8046, %v8050
        %v8052 = vadd.s32 %v8051, 536870912
        %v8053 = vshrl.u32 %v8052, 30
        %v8054 = vshll.u32 %v8053, 30
        %v8055 = vsub.s32 %v8051, %v8054
        %vm8056 = vcmp.lt.s32.totalorder %v8055, 0
        %v8057 = vsub.s32 0, %v8055
        %v8058 = vsel %vm8056, %v8057, %v8055
        %v8059 = vclz %v8058
        %v8060 = vsub.s32 %v8059, 2
        %vm8061 = vcmp.gt.s32.totalorder 0, %v8060
        %v8062 = vsel %vm8061, 0, %v8060
        %v8063 = vsub.s32 32, %v8062
        %v8064 = vshll.u32 %v8055, %v8062
        %v8065 = vshrl.u32 %v8047, %v8063
        %v8066 = vor.u32 %v8064, %v8065
        %v8067 = vsub.s32 4294967266, %v8062
        %v8068 = vadd.s32 %v8067, 127
        %v8069 = vshll.u32 %v8068, 23
        %v8070 = vor.u32 4788187, %v8069
        %v8071 = vand.u32 2147483647, %v8070
        %v8073 = vcvt.s32.f32 %v8066
        %v8074 = vmul.f32 %v8073, %v8071
        %v8075 = vxor.u32 %v8074, 2147483648
        %v8076 = vsel %vm7955, %v8075, %v8074
        %v8077 = vsub.s32 4, %v8053
        %v8078 = vsel %vm7955, %v8077, %v8053
        %v8079 = vsel %vm7954, %v189, %v8076
        %v8080 = vsel %vm7954, 0, %v8078
        %v8081 = vmul.f32 %v8079, %v8079
        %v8082 = vmul.f32 %v8081, -0.001358992
        %v8083 = vadd.f32 %v8082, 0.041655596
        %v8084 = vmul.f32 %v8081, %v8083
        %v8085 = vadd.f32 %v8084, -0.4999988
        %v8086 = vmul.f32 %v8081, %v8085
        %v8087 = vadd.f32 1.0, %v8086
        %v8088 = vmul.f32 %v8079, %v8079
        %v8089 = vmul.f32 %v8088, -0.00019511016
        %v8090 = vadd.f32 %v8089, 0.008332121
        %v8091 = vmul.f32 %v8088, %v8090
        %v8092 = vadd.f32 %v8091, -0.16666654
        %v8093 = vmul.f32 %v8088, %v8092
        %v8094 = vadd.f32 %v8093, 1.0
        %v8095 = vmul.f32 %v8094, %v8079
        %vm8096 = vweird.f32 %v189
        %v8097 = vadd.s32 %v8080, 3
        %v8098 = vand.u32 %v8097, 3
        %vm8099 = vcmp.lt.s32.totalorder %v8098, 2
        %vm8100 = vcmp.eq.s32.totalorder %v8098, 0
        %v8101 = vxor.u32 %v8095, 2147483648
        %v8102 = vsel %vm8100, %v8087, %v8101
        %vm8103 = vcmp.eq.s32.totalorder %v8098, 2
        %v8104 = vxor.u32 %v8087, 2147483648
        %v8105 = vsel %vm8103, %v8104, %v8095
        %v8106 = vsel %vm8099, %v8102, %v8105
        %v8107 = vsel %vm8096, nan, %v8106
        %v8108 = vand.u32 2147483647, %v190
        %vm8109 = vcmp.le.f32.partialorder %v8108, 0.7853982
        %vm8110 = vcmp.lt.s32.totalorder %v190, 0
        %v8111 = vand.u32 %v190, 2139095040
        %v8112 = vshrl.u32 %v8111, 23
        %v8113 = vsub.s32 %v8112, 127
        %v8114 = vand.u32 2147483647, %v190
        %v8115 = vand.u32 %v8114, 8388607
        %v8116 = vor.u32 %v8115, 8388608
        %v8117 = vsub.s32 0, %v8116
        %v8118 = vadd.s32 %v8113, 1
        %vm8119 = vcmp.gt.s32.totalorder %v8118, 0
        %v8120 = vsel %vm8119, %v8118, 0
        %v8121 = vshrl.u32 %v8120, 5
        %v8122 = vand.u32 %v8120, 31
        %v8123 = vsub.s32 32, %v8122
        %v8124 = vshrl.u32 683565275, %v8123
        %v8125 = vshll.u32 683565275, %v8122
        %v8126 = vshrl.u32 2475754826, %v8123
        %v8127 = vor.u32 %v8125, %v8126
        %v8128 = vshll.u32 2475754826, %v8122
        %v8129 = vshrl.u32 2131351028, %v8123
        %v8130 = vor.u32 %v8128, %v8129
        %v8131 = vshll.u32 2131351028, %v8122
        %v8132 = vshrl.u32 2102212464, %v8123
        %v8133 = vor.u32 %v8131, %v8132
        %v8134 = vshll.u32 2102212464, %v8122
        %v8135 = vshrl.u32 920167782, %v8123
        %v8136 = vor.u32 %v8134, %v8135
        %v8137 = vshll.u32 920167782, %v8122
        %v8138 = vshrl.u32 1326507024, %v8123
        %v8139 = vor.u32 %v8137, %v8138
        %vm8140 = vcmp.lt.s32.totalorder %v8121, 1
        %vm8141 = vcmp.lt.s32.totalorder %v8121, 2
        %vm8142 = vcmp.lt.s32.totalorder %v8121, 3
        %vm8143 = vcmp.lt.s32.totalorder %v8121, 4
        %v8144 = vsel %vm8140, %v8124, %v8127
        %v8145 = vsel %vm8143, %v8133, 2102212464
        %v8146 = vsel %vm8142, %v8130, %v8145
        %v8147 = vsel %vm8141, %v8144, %v8146
        %v8148 = vsel %vm8140, %v8127, %v8130
        %v8149 = vsel %vm8143, %v8136, 920167782
        %v8150 = vsel %vm8142, %v8133, %v8149
        %v8151 = vsel %vm8141, %v8148, %v8150
        %v8152 = vsel %vm8140, %v8130, %v8133
        %v8153 = vsel %vm8143, %v8139, 1326507024
        %v8154 = vsel %vm8142, %v8136, %v8153
        %v8155 = vsel %vm8141, %v8152, %v8154
        %v8156 = vshll.u32 %v8116, 8
        %v8157 = vand.u32 %v8156, 65535
        %v8158 = vshrl.u32 %v8156, 16
        %v8159 = vand.u32 %v8155, 65535
        %v8160 = vshrl.u32 %v8155, 16
        %v8161 = vmul.u32 %v8157, %v8159
        %v8162 = vmul.u32 %v8157, %v8160
        %v8163 = vmul.u32 %v8158, %v8159
        %v8164 = vmul.u32 %v8158, %v8160
        %v8165 = vshll.u32 %v8162, 16
        %v8166 = vshrl.u32 %v8162, 16
        %v8167 = vshll.u32 %v8163, 16
        %v8168 = vshrl.u32 %v8163, 16
        %vm8169 = vc.u32 %v8161, %v8165
        %v8170 = vsel %vm8169, 1, 0
        %v8171 = vadd.s32 %v8161, %v8165
        %v8172 = vadd.s32 %v8164, %v8170
        %vm8173 = vc.u32 %v8171, %v8167
        %v8174 = vsel %vm8173, 1, 0
        %v8175 = vadd.s32 %v8171, %v8167
        %v8176 = vadd.s32 %v8172, %v8174
        %v8177 = vadd.s32 %v8176, %v8166
        %v8178 = vadd.s32 %v8177, %v8168
        %v8179 = vand.u32 %v8156, 65535
        %v8180 = vshrl.u32 %v8156, 16
        %v8181 = vand.u32 %v8151, 65535
        %v8182 = vshrl.u32 %v8151, 16
        %v8183 = vmul.u32 %v8179, %v8181
        %v8184 = vmul.u32 %v8179, %v8182
        %v8185 = vmul.u32 %v8180, %v8181
        %v8186 = vmul.u32 %v8180, %v8182
        %v8187 = vshll.u32 %v8184, 16
        %v8188 = vshrl.u32 %v8184, 16
        %v8189 = vshll.u32 %v8185, 16
        %v8190 = vshrl.u32 %v8185, 16
        %vm8191 = vc.u32 %v8183, %v8187
        %v8192 = vsel %vm8191, 1, 0
        %v8193 = vadd.s32 %v8183, %v8187
        %v8194 = vadd.s32 %v8186, %v8192
        %vm8195 = vc.u32 %v8193, %v8189
        %v8196 = vsel %vm8195, 1, 0
        %v8197 = vadd.s32 %v8193, %v8189
        %v8198 = vadd.s32 %v8194, %v8196
        %v8199 = vadd.s32 %v8198, %v8188
        %v8200 = vadd.s32 %v8199, %v8190
        %v8201 = vmul.u32 %v8156, %v8147
        %v8202 = vadd.s32 %v8178, %v8197
        %vm8203 = vc.u32 %v8178, %v8197
        %v8204 = vadd.s32 %v8200, 1
        %v8205 = vsel %vm8203, %v8204, %v8200
        %v8206 = vadd.s32 %v8201, %v8205
        %v8207 = vadd.s32 %v8206, 536870912
        %v8208 = vshrl.u32 %v8207, 30
        %v8209 = vshll.u32 %v8208, 30
        %v8210 = vsub.s32 %v8206, %v8209
        %vm8211 = vcmp.lt.s32.totalorder %v8210, 0
        %v8212 = vsub.s32 0, %v8210
        %v8213 = vsel %vm8211, %v8212, %v8210
        %v8214 = vclz %v8213
        %v8215 = vsub.s32 %v8214, 2
        %vm8216 = vcmp.gt.s32.totalorder 0, %v8215
        %v8217 = vsel %vm8216, 0, %v8215
        %v8218 = vsub.s32 32, %v8217
        %v8219 = vshll.u32 %v8210, %v8217
        %v8220 = vshrl.u32 %v8202, %v8218
        %v8221 = vor.u32 %v8219, %v8220
        %v8222 = vsub.s32 4294967266, %v8217
        %v8223 = vadd.s32 %v8222, 127
        %v8224 = vshll.u32 %v8223, 23
        %v8225 = vor.u32 4788187, %v8224
        %v8226 = vand.u32 2147483647, %v8225
        %v8228 = vcvt.s32.f32 %v8221
        %v8229 = vmul.f32 %v8228, %v8226
        %v8230 = vxor.u32 %v8229, 2147483648
        %v8231 = vsel %vm8110, %v8230, %v8229
        %v8232 = vsub.s32 4, %v8208
        %v8233 = vsel %vm8110, %v8232, %v8208
        %v8234 = vsel %vm8109, %v190, %v8231
        %v8235 = vsel %vm8109, 0, %v8233
        %v8236 = vmul.f32 %v8234, %v8234
        %v8237 = vmul.f32 %v8236, -0.001358992
        %v8238 = vadd.f32 %v8237, 0.041655596
        %v8239 = vmul.f32 %v8236, %v8238
        %v8240 = vadd.f32 %v8239, -0.4999988
        %v8241 = vmul.f32 %v8236, %v8240
        %v8242 = vadd.f32 1.0, %v8241
        %v8243 = vmul.f32 %v8234, %v8234
        %v8244 = vmul.f32 %v8243, -0.00019511016
        %v8245 = vadd.f32 %v8244, 0.008332121
        %v8246 = vmul.f32 %v8243, %v8245
        %v8247 = vadd.f32 %v8246, -0.16666654
        %v8248 = vmul.f32 %v8243, %v8247
        %v8249 = vadd.f32 %v8248, 1.0
        %v8250 = vmul.f32 %v8249, %v8234
        %vm8251 = vweird.f32 %v190
        %v8252 = vadd.s32 %v8235, 3
        %v8253 = vand.u32 %v8252, 3
        %vm8254 = vcmp.lt.s32.totalorder %v8253, 2
        %vm8255 = vcmp.eq.s32.totalorder %v8253, 0
        %v8256 = vxor.u32 %v8250, 2147483648
        %v8257 = vsel %vm8255, %v8242, %v8256
        %vm8258 = vcmp.eq.s32.totalorder %v8253, 2
        %v8259 = vxor.u32 %v8242, 2147483648
        %v8260 = vsel %vm8258, %v8259, %v8250
        %v8261 = vsel %vm8254, %v8257, %v8260
        %v8262 = vsel %vm8251, nan, %v8261
        %v8263 = vand.u32 2147483647, %v191
        %vm8264 = vcmp.le.f32.partialorder %v8263, 0.7853982
        %vm8265 = vcmp.lt.s32.totalorder %v191, 0
        %v8266 = vand.u32 %v191, 2139095040
        %v8267 = vshrl.u32 %v8266, 23
        %v8268 = vsub.s32 %v8267, 127
        %v8269 = vand.u32 2147483647, %v191
        %v8270 = vand.u32 %v8269, 8388607
        %v8271 = vor.u32 %v8270, 8388608
        %v8272 = vsub.s32 0, %v8271
        %v8273 = vadd.s32 %v8268, 1
        %vm8274 = vcmp.gt.s32.totalorder %v8273, 0
        %v8275 = vsel %vm8274, %v8273, 0
        %v8276 = vshrl.u32 %v8275, 5
        %v8277 = vand.u32 %v8275, 31
        %v8278 = vsub.s32 32, %v8277
        %v8279 = vshrl.u32 683565275, %v8278
        %v8280 = vshll.u32 683565275, %v8277
        %v8281 = vshrl.u32 2475754826, %v8278
        %v8282 = vor.u32 %v8280, %v8281
        %v8283 = vshll.u32 2475754826, %v8277
        %v8284 = vshrl.u32 2131351028, %v8278
        %v8285 = vor.u32 %v8283, %v8284
        %v8286 = vshll.u32 2131351028, %v8277
        %v8287 = vshrl.u32 2102212464, %v8278
        %v8288 = vor.u32 %v8286, %v8287
        %v8289 = vshll.u32 2102212464, %v8277
        %v8290 = vshrl.u32 920167782, %v8278
        %v8291 = vor.u32 %v8289, %v8290
        %v8292 = vshll.u32 920167782, %v8277
        %v8293 = vshrl.u32 1326507024, %v8278
        %v8294 = vor.u32 %v8292, %v8293
        %vm8295 = vcmp.lt.s32.totalorder %v8276, 1
        %vm8296 = vcmp.lt.s32.totalorder %v8276, 2
        %vm8297 = vcmp.lt.s32.totalorder %v8276, 3
        %vm8298 = vcmp.lt.s32.totalorder %v8276, 4
        %v8299 = vsel %vm8295, %v8279, %v8282
        %v8300 = vsel %vm8298, %v8288, 2102212464
        %v8301 = vsel %vm8297, %v8285, %v8300
        %v8302 = vsel %vm8296, %v8299, %v8301
        %v8303 = vsel %vm8295, %v8282, %v8285
        %v8304 = vsel %vm8298, %v8291, 920167782
        %v8305 = vsel %vm8297, %v8288, %v8304
        %v8306 = vsel %vm8296, %v8303, %v8305
        %v8307 = vsel %vm8295, %v8285, %v8288
        %v8308 = vsel %vm8298, %v8294, 1326507024
        %v8309 = vsel %vm8297, %v8291, %v8308
        %v8310 = vsel %vm8296, %v8307, %v8309
        %v8311 = vshll.u32 %v8271, 8
        %v8312 = vand.u32 %v8311, 65535
        %v8313 = vshrl.u32 %v8311, 16
        %v8314 = vand.u32 %v8310, 65535
        %v8315 = vshrl.u32 %v8310, 16
        %v8316 = vmul.u32 %v8312, %v8314
        %v8317 = vmul.u32 %v8312, %v8315
        %v8318 = vmul.u32 %v8313, %v8314
        %v8319 = vmul.u32 %v8313, %v8315
        %v8320 = vshll.u32 %v8317, 16
        %v8321 = vshrl.u32 %v8317, 16
        %v8322 = vshll.u32 %v8318, 16
        %v8323 = vshrl.u32 %v8318, 16
        %vm8324 = vc.u32 %v8316, %v8320
        %v8325 = vsel %vm8324, 1, 0
        %v8326 = vadd.s32 %v8316, %v8320
        %v8327 = vadd.s32 %v8319, %v8325
        %vm8328 = vc.u32 %v8326, %v8322
        %v8329 = vsel %vm8328, 1, 0
        %v8330 = vadd.s32 %v8326, %v8322
        %v8331 = vadd.s32 %v8327, %v8329
        %v8332 = vadd.s32 %v8331, %v8321
        %v8333 = vadd.s32 %v8332, %v8323
        %v8334 = vand.u32 %v8311, 65535
        %v8335 = vshrl.u32 %v8311, 16
        %v8336 = vand.u32 %v8306, 65535
        %v8337 = vshrl.u32 %v8306, 16
        %v8338 = vmul.u32 %v8334, %v8336
        %v8339 = vmul.u32 %v8334, %v8337
        %v8340 = vmul.u32 %v8335, %v8336
        %v8341 = vmul.u32 %v8335, %v8337
        %v8342 = vshll.u32 %v8339, 16
        %v8343 = vshrl.u32 %v8339, 16
        %v8344 = vshll.u32 %v8340, 16
        %v8345 = vshrl.u32 %v8340, 16
        %vm8346 = vc.u32 %v8338, %v8342
        %v8347 = vsel %vm8346, 1, 0
        %v8348 = vadd.s32 %v8338, %v8342
        %v8349 = vadd.s32 %v8341, %v8347
        %vm8350 = vc.u32 %v8348, %v8344
        %v8351 = vsel %vm8350, 1, 0
        %v8352 = vadd.s32 %v8348, %v8344
        %v8353 = vadd.s32 %v8349, %v8351
        %v8354 = vadd.s32 %v8353, %v8343
        %v8355 = vadd.s32 %v8354, %v8345
        %v8356 = vmul.u32 %v8311, %v8302
        %v8357 = vadd.s32 %v8333, %v8352
        %vm8358 = vc.u32 %v8333, %v8352
        %v8359 = vadd.s32 %v8355, 1
        %v8360 = vsel %vm8358, %v8359, %v8355
        %v8361 = vadd.s32 %v8356, %v8360
        %v8362 = vadd.s32 %v8361, 536870912
        %v8363 = vshrl.u32 %v8362, 30
        %v8364 = vshll.u32 %v8363, 30
        %v8365 = vsub.s32 %v8361, %v8364
        %vm8366 = vcmp.lt.s32.totalorder %v8365, 0
        %v8367 = vsub.s32 0, %v8365
        %v8368 = vsel %vm8366, %v8367, %v8365
        %v8369 = vclz %v8368
        %v8370 = vsub.s32 %v8369, 2
        %vm8371 = vcmp.gt.s32.totalorder 0, %v8370
        %v8372 = vsel %vm8371, 0, %v8370
        %v8373 = vsub.s32 32, %v8372
        %v8374 = vshll.u32 %v8365, %v8372
        %v8375 = vshrl.u32 %v8357, %v8373
        %v8376 = vor.u32 %v8374, %v8375
        %v8377 = vsub.s32 4294967266, %v8372
        %v8378 = vadd.s32 %v8377, 127
        %v8379 = vshll.u32 %v8378, 23
        %v8380 = vor.u32 4788187, %v8379
        %v8381 = vand.u32 2147483647, %v8380
        %v8383 = vcvt.s32.f32 %v8376
        %v8384 = vmul.f32 %v8383, %v8381
        %v8385 = vxor.u32 %v8384, 2147483648
        %v8386 = vsel %vm8265, %v8385, %v8384
        %v8387 = vsub.s32 4, %v8363
        %v8388 = vsel %vm8265, %v8387, %v8363
        %v8389 = vsel %vm8264, %v191, %v8386
        %v8390 = vsel %vm8264, 0, %v8388
        %v8391 = vmul.f32 %v8389, %v8389
        %v8392 = vmul.f32 %v8391, -0.001358992
        %v8393 = vadd.f32 %v8392, 0.041655596
        %v8394 = vmul.f32 %v8391, %v8393
        %v8395 = vadd.f32 %v8394, -0.4999988
        %v8396 = vmul.f32 %v8391, %v8395
        %v8397 = vadd.f32 1.0, %v8396
        %v8398 = vmul.f32 %v8389, %v8389
        %v8399 = vmul.f32 %v8398, -0.00019511016
        %v8400 = vadd.f32 %v8399, 0.008332121
        %v8401 = vmul.f32 %v8398, %v8400
        %v8402 = vadd.f32 %v8401, -0.16666654
        %v8403 = vmul.f32 %v8398, %v8402
        %v8404 = vadd.f32 %v8403, 1.0
        %v8405 = vmul.f32 %v8404, %v8389
        %vm8406 = vweird.f32 %v191
        %v8407 = vadd.s32 %v8390, 3
        %v8408 = vand.u32 %v8407, 3
        %vm8409 = vcmp.lt.s32.totalorder %v8408, 2
        %vm8410 = vcmp.eq.s32.totalorder %v8408, 0
        %v8411 = vxor.u32 %v8405, 2147483648
        %v8412 = vsel %vm8410, %v8397, %v8411
        %vm8413 = vcmp.eq.s32.totalorder %v8408, 2
        %v8414 = vxor.u32 %v8397, 2147483648
        %v8415 = vsel %vm8413, %v8414, %v8405
        %v8416 = vsel %vm8409, %v8412, %v8415
        %v8417 = vsel %vm8406, nan, %v8416
        %v8418 = vand.u32 2147483647, %v192
        %vm8419 = vcmp.le.f32.partialorder %v8418, 0.7853982
        %vm8420 = vcmp.lt.s32.totalorder %v192, 0
        %v8421 = vand.u32 %v192, 2139095040
        %v8422 = vshrl.u32 %v8421, 23
        %v8423 = vsub.s32 %v8422, 127
        %v8424 = vand.u32 2147483647, %v192
        %v8425 = vand.u32 %v8424, 8388607
        %v8426 = vor.u32 %v8425, 8388608
        %v8427 = vsub.s32 0, %v8426
        %v8428 = vadd.s32 %v8423, 1
        %vm8429 = vcmp.gt.s32.totalorder %v8428, 0
        %v8430 = vsel %vm8429, %v8428, 0
        %v8431 = vshrl.u32 %v8430, 5
        %v8432 = vand.u32 %v8430, 31
        %v8433 = vsub.s32 32, %v8432
        %v8434 = vshrl.u32 683565275, %v8433
        %v8435 = vshll.u32 683565275, %v8432
        %v8436 = vshrl.u32 2475754826, %v8433
        %v8437 = vor.u32 %v8435, %v8436
        %v8438 = vshll.u32 2475754826, %v8432
        %v8439 = vshrl.u32 2131351028, %v8433
        %v8440 = vor.u32 %v8438, %v8439
        %v8441 = vshll.u32 2131351028, %v8432
        %v8442 = vshrl.u32 2102212464, %v8433
        %v8443 = vor.u32 %v8441, %v8442
        %v8444 = vshll.u32 2102212464, %v8432
        %v8445 = vshrl.u32 920167782, %v8433
        %v8446 = vor.u32 %v8444, %v8445
        %v8447 = vshll.u32 920167782, %v8432
        %v8448 = vshrl.u32 1326507024, %v8433
        %v8449 = vor.u32 %v8447, %v8448
        %vm8450 = vcmp.lt.s32.totalorder %v8431, 1
        %vm8451 = vcmp.lt.s32.totalorder %v8431, 2
        %vm8452 = vcmp.lt.s32.totalorder %v8431, 3
        %vm8453 = vcmp.lt.s32.totalorder %v8431, 4
        %v8454 = vsel %vm8450, %v8434, %v8437
        %v8455 = vsel %vm8453, %v8443, 2102212464
        %v8456 = vsel %vm8452, %v8440, %v8455
        %v8457 = vsel %vm8451, %v8454, %v8456
        %v8458 = vsel %vm8450, %v8437, %v8440
        %v8459 = vsel %vm8453, %v8446, 920167782
        %v8460 = vsel %vm8452, %v8443, %v8459
        %v8461 = vsel %vm8451, %v8458, %v8460
        %v8462 = vsel %vm8450, %v8440, %v8443
        %v8463 = vsel %vm8453, %v8449, 1326507024
        %v8464 = vsel %vm8452, %v8446, %v8463
        %v8465 = vsel %vm8451, %v8462, %v8464
        %v8466 = vshll.u32 %v8426, 8
        %v8467 = vand.u32 %v8466, 65535
        %v8468 = vshrl.u32 %v8466, 16
        %v8469 = vand.u32 %v8465, 65535
        %v8470 = vshrl.u32 %v8465, 16
        %v8471 = vmul.u32 %v8467, %v8469
        %v8472 = vmul.u32 %v8467, %v8470
        %v8473 = vmul.u32 %v8468, %v8469
        %v8474 = vmul.u32 %v8468, %v8470
        %v8475 = vshll.u32 %v8472, 16
        %v8476 = vshrl.u32 %v8472, 16
        %v8477 = vshll.u32 %v8473, 16
        %v8478 = vshrl.u32 %v8473, 16
        %vm8479 = vc.u32 %v8471, %v8475
        %v8480 = vsel %vm8479, 1, 0
        %v8481 = vadd.s32 %v8471, %v8475
        %v8482 = vadd.s32 %v8474, %v8480
        %vm8483 = vc.u32 %v8481, %v8477
        %v8484 = vsel %vm8483, 1, 0
        %v8485 = vadd.s32 %v8481, %v8477
        %v8486 = vadd.s32 %v8482, %v8484
        %v8487 = vadd.s32 %v8486, %v8476
        %v8488 = vadd.s32 %v8487, %v8478
        %v8489 = vand.u32 %v8466, 65535
        %v8490 = vshrl.u32 %v8466, 16
        %v8491 = vand.u32 %v8461, 65535
        %v8492 = vshrl.u32 %v8461, 16
        %v8493 = vmul.u32 %v8489, %v8491
        %v8494 = vmul.u32 %v8489, %v8492
        %v8495 = vmul.u32 %v8490, %v8491
        %v8496 = vmul.u32 %v8490, %v8492
        %v8497 = vshll.u32 %v8494, 16
        %v8498 = vshrl.u32 %v8494, 16
        %v8499 = vshll.u32 %v8495, 16
        %v8500 = vshrl.u32 %v8495, 16
        %vm8501 = vc.u32 %v8493, %v8497
        %v8502 = vsel %vm8501, 1, 0
        %v8503 = vadd.s32 %v8493, %v8497
        %v8504 = vadd.s32 %v8496, %v8502
        %vm8505 = vc.u32 %v8503, %v8499
        %v8506 = vsel %vm8505, 1, 0
        %v8507 = vadd.s32 %v8503, %v8499
        %v8508 = vadd.s32 %v8504, %v8506
        %v8509 = vadd.s32 %v8508, %v8498
        %v8510 = vadd.s32 %v8509, %v8500
        %v8511 = vmul.u32 %v8466, %v8457
        %v8512 = vadd.s32 %v8488, %v8507
        %vm8513 = vc.u32 %v8488, %v8507
        %v8514 = vadd.s32 %v8510, 1
        %v8515 = vsel %vm8513, %v8514, %v8510
        %v8516 = vadd.s32 %v8511, %v8515
        %v8517 = vadd.s32 %v8516, 536870912
        %v8518 = vshrl.u32 %v8517, 30
        %v8519 = vshll.u32 %v8518, 30
        %v8520 = vsub.s32 %v8516, %v8519
        %vm8521 = vcmp.lt.s32.totalorder %v8520, 0
        %v8522 = vsub.s32 0, %v8520
        %v8523 = vsel %vm8521, %v8522, %v8520
        %v8524 = vclz %v8523
        %v8525 = vsub.s32 %v8524, 2
        %vm8526 = vcmp.gt.s32.totalorder 0, %v8525
        %v8527 = vsel %vm8526, 0, %v8525
        %v8528 = vsub.s32 32, %v8527
        %v8529 = vshll.u32 %v8520, %v8527
        %v8530 = vshrl.u32 %v8512, %v8528
        %v8531 = vor.u32 %v8529, %v8530
        %v8532 = vsub.s32 4294967266, %v8527
        %v8533 = vadd.s32 %v8532, 127
        %v8534 = vshll.u32 %v8533, 23
        %v8535 = vor.u32 4788187, %v8534
        %v8536 = vand.u32 2147483647, %v8535
        %v8538 = vcvt.s32.f32 %v8531
        %v8539 = vmul.f32 %v8538, %v8536
        %v8540 = vxor.u32 %v8539, 2147483648
        %v8541 = vsel %vm8420, %v8540, %v8539
        %v8542 = vsub.s32 4, %v8518
        %v8543 = vsel %vm8420, %v8542, %v8518
        %v8544 = vsel %vm8419, %v192, %v8541
        %v8545 = vsel %vm8419, 0, %v8543
        %v8546 = vmul.f32 %v8544, %v8544
        %v8547 = vmul.f32 %v8546, -0.001358992
        %v8548 = vadd.f32 %v8547, 0.041655596
        %v8549 = vmul.f32 %v8546, %v8548
        %v8550 = vadd.f32 %v8549, -0.4999988
        %v8551 = vmul.f32 %v8546, %v8550
        %v8552 = vadd.f32 1.0, %v8551
        %v8553 = vmul.f32 %v8544, %v8544
        %v8554 = vmul.f32 %v8553, -0.00019511016
        %v8555 = vadd.f32 %v8554, 0.008332121
        %v8556 = vmul.f32 %v8553, %v8555
        %v8557 = vadd.f32 %v8556, -0.16666654
        %v8558 = vmul.f32 %v8553, %v8557
        %v8559 = vadd.f32 %v8558, 1.0
        %v8560 = vmul.f32 %v8559, %v8544
        %vm8561 = vweird.f32 %v192
        %v8562 = vadd.s32 %v8545, 3
        %v8563 = vand.u32 %v8562, 3
        %vm8564 = vcmp.lt.s32.totalorder %v8563, 2
        %vm8565 = vcmp.eq.s32.totalorder %v8563, 0
        %v8566 = vxor.u32 %v8560, 2147483648
        %v8567 = vsel %vm8565, %v8552, %v8566
        %vm8568 = vcmp.eq.s32.totalorder %v8563, 2
        %v8569 = vxor.u32 %v8552, 2147483648
        %v8570 = vsel %vm8568, %v8569, %v8560
        %v8571 = vsel %vm8564, %v8567, %v8570
        %v8572 = vsel %vm8561, nan, %v8571
        %v8573 = vand.u32 2147483647, %v193
        %vm8574 = vcmp.le.f32.partialorder %v8573, 0.7853982
        %vm8575 = vcmp.lt.s32.totalorder %v193, 0
        %v8576 = vand.u32 %v193, 2139095040
        %v8577 = vshrl.u32 %v8576, 23
        %v8578 = vsub.s32 %v8577, 127
        %v8579 = vand.u32 2147483647, %v193
        %v8580 = vand.u32 %v8579, 8388607
        %v8581 = vor.u32 %v8580, 8388608
        %v8582 = vsub.s32 0, %v8581
        %v8583 = vadd.s32 %v8578, 1
        %vm8584 = vcmp.gt.s32.totalorder %v8583, 0
        %v8585 = vsel %vm8584, %v8583, 0
        %v8586 = vshrl.u32 %v8585, 5
        %v8587 = vand.u32 %v8585, 31
        %v8588 = vsub.s32 32, %v8587
        %v8589 = vshrl.u32 683565275, %v8588
        %v8590 = vshll.u32 683565275, %v8587
        %v8591 = vshrl.u32 2475754826, %v8588
        %v8592 = vor.u32 %v8590, %v8591
        %v8593 = vshll.u32 2475754826, %v8587
        %v8594 = vshrl.u32 2131351028, %v8588
        %v8595 = vor.u32 %v8593, %v8594
        %v8596 = vshll.u32 2131351028, %v8587
        %v8597 = vshrl.u32 2102212464, %v8588
        %v8598 = vor.u32 %v8596, %v8597
        %v8599 = vshll.u32 2102212464, %v8587
        %v8600 = vshrl.u32 920167782, %v8588
        %v8601 = vor.u32 %v8599, %v8600
        %v8602 = vshll.u32 920167782, %v8587
        %v8603 = vshrl.u32 1326507024, %v8588
        %v8604 = vor.u32 %v8602, %v8603
        %vm8605 = vcmp.lt.s32.totalorder %v8586, 1
        %vm8606 = vcmp.lt.s32.totalorder %v8586, 2
        %vm8607 = vcmp.lt.s32.totalorder %v8586, 3
        %vm8608 = vcmp.lt.s32.totalorder %v8586, 4
        %v8609 = vsel %vm8605, %v8589, %v8592
        %v8610 = vsel %vm8608, %v8598, 2102212464
        %v8611 = vsel %vm8607, %v8595, %v8610
        %v8612 = vsel %vm8606, %v8609, %v8611
        %v8613 = vsel %vm8605, %v8592, %v8595
        %v8614 = vsel %vm8608, %v8601, 920167782
        %v8615 = vsel %vm8607, %v8598, %v8614
        %v8616 = vsel %vm8606, %v8613, %v8615
        %v8617 = vsel %vm8605, %v8595, %v8598
        %v8618 = vsel %vm8608, %v8604, 1326507024
        %v8619 = vsel %vm8607, %v8601, %v8618
        %v8620 = vsel %vm8606, %v8617, %v8619
        %v8621 = vshll.u32 %v8581, 8
        %v8622 = vand.u32 %v8621, 65535
        %v8623 = vshrl.u32 %v8621, 16
        %v8624 = vand.u32 %v8620, 65535
        %v8625 = vshrl.u32 %v8620, 16
        %v8626 = vmul.u32 %v8622, %v8624
        %v8627 = vmul.u32 %v8622, %v8625
        %v8628 = vmul.u32 %v8623, %v8624
        %v8629 = vmul.u32 %v8623, %v8625
        %v8630 = vshll.u32 %v8627, 16
        %v8631 = vshrl.u32 %v8627, 16
        %v8632 = vshll.u32 %v8628, 16
        %v8633 = vshrl.u32 %v8628, 16
        %vm8634 = vc.u32 %v8626, %v8630
        %v8635 = vsel %vm8634, 1, 0
        %v8636 = vadd.s32 %v8626, %v8630
        %v8637 = vadd.s32 %v8629, %v8635
        %vm8638 = vc.u32 %v8636, %v8632
        %v8639 = vsel %vm8638, 1, 0
        %v8640 = vadd.s32 %v8636, %v8632
        %v8641 = vadd.s32 %v8637, %v8639
        %v8642 = vadd.s32 %v8641, %v8631
        %v8643 = vadd.s32 %v8642, %v8633
        %v8644 = vand.u32 %v8621, 65535
        %v8645 = vshrl.u32 %v8621, 16
        %v8646 = vand.u32 %v8616, 65535
        %v8647 = vshrl.u32 %v8616, 16
        %v8648 = vmul.u32 %v8644, %v8646
        %v8649 = vmul.u32 %v8644, %v8647
        %v8650 = vmul.u32 %v8645, %v8646
        %v8651 = vmul.u32 %v8645, %v8647
        %v8652 = vshll.u32 %v8649, 16
        %v8653 = vshrl.u32 %v8649, 16
        %v8654 = vshll.u32 %v8650, 16
        %v8655 = vshrl.u32 %v8650, 16
        %vm8656 = vc.u32 %v8648, %v8652
        %v8657 = vsel %vm8656, 1, 0
        %v8658 = vadd.s32 %v8648, %v8652
        %v8659 = vadd.s32 %v8651, %v8657
        %vm8660 = vc.u32 %v8658, %v8654
        %v8661 = vsel %vm8660, 1, 0
        %v8662 = vadd.s32 %v8658, %v8654
        %v8663 = vadd.s32 %v8659, %v8661
        %v8664 = vadd.s32 %v8663, %v8653
        %v8665 = vadd.s32 %v8664, %v8655
        %v8666 = vmul.u32 %v8621, %v8612
        %v8667 = vadd.s32 %v8643, %v8662
        %vm8668 = vc.u32 %v8643, %v8662
        %v8669 = vadd.s32 %v8665, 1
        %v8670 = vsel %vm8668, %v8669, %v8665
        %v8671 = vadd.s32 %v8666, %v8670
        %v8672 = vadd.s32 %v8671, 536870912
        %v8673 = vshrl.u32 %v8672, 30
        %v8674 = vshll.u32 %v8673, 30
        %v8675 = vsub.s32 %v8671, %v8674
        %vm8676 = vcmp.lt.s32.totalorder %v8675, 0
        %v8677 = vsub.s32 0, %v8675
        %v8678 = vsel %vm8676, %v8677, %v8675
        %v8679 = vclz %v8678
        %v8680 = vsub.s32 %v8679, 2
        %vm8681 = vcmp.gt.s32.totalorder 0, %v8680
        %v8682 = vsel %vm8681, 0, %v8680
        %v8683 = vsub.s32 32, %v8682
        %v8684 = vshll.u32 %v8675, %v8682
        %v8685 = vshrl.u32 %v8667, %v8683
        %v8686 = vor.u32 %v8684, %v8685
        %v8687 = vsub.s32 4294967266, %v8682
        %v8688 = vadd.s32 %v8687, 127
        %v8689 = vshll.u32 %v8688, 23
        %v8690 = vor.u32 4788187, %v8689
        %v8691 = vand.u32 2147483647, %v8690
        %v8693 = vcvt.s32.f32 %v8686
        %v8694 = vmul.f32 %v8693, %v8691
        %v8695 = vxor.u32 %v8694, 2147483648
        %v8696 = vsel %vm8575, %v8695, %v8694
        %v8697 = vsub.s32 4, %v8673
        %v8698 = vsel %vm8575, %v8697, %v8673
        %v8699 = vsel %vm8574, %v193, %v8696
        %v8700 = vsel %vm8574, 0, %v8698
        %v8701 = vmul.f32 %v8699, %v8699
        %v8702 = vmul.f32 %v8701, -0.001358992
        %v8703 = vadd.f32 %v8702, 0.041655596
        %v8704 = vmul.f32 %v8701, %v8703
        %v8705 = vadd.f32 %v8704, -0.4999988
        %v8706 = vmul.f32 %v8701, %v8705
        %v8707 = vadd.f32 1.0, %v8706
        %v8708 = vmul.f32 %v8699, %v8699
        %v8709 = vmul.f32 %v8708, -0.00019511016
        %v8710 = vadd.f32 %v8709, 0.008332121
        %v8711 = vmul.f32 %v8708, %v8710
        %v8712 = vadd.f32 %v8711, -0.16666654
        %v8713 = vmul.f32 %v8708, %v8712
        %v8714 = vadd.f32 %v8713, 1.0
        %v8715 = vmul.f32 %v8714, %v8699
        %vm8716 = vweird.f32 %v193
        %v8717 = vadd.s32 %v8700, 3
        %v8718 = vand.u32 %v8717, 3
        %vm8719 = vcmp.lt.s32.totalorder %v8718, 2
        %vm8720 = vcmp.eq.s32.totalorder %v8718, 0
        %v8721 = vxor.u32 %v8715, 2147483648
        %v8722 = vsel %vm8720, %v8707, %v8721
        %vm8723 = vcmp.eq.s32.totalorder %v8718, 2
        %v8724 = vxor.u32 %v8707, 2147483648
        %v8725 = vsel %vm8723, %v8724, %v8715
        %v8726 = vsel %vm8719, %v8722, %v8725
        %v8727 = vsel %vm8716, nan, %v8726
        %v8728 = vand.u32 2147483647, %v194
        %vm8729 = vcmp.le.f32.partialorder %v8728, 0.7853982
        %vm8730 = vcmp.lt.s32.totalorder %v194, 0
        %v8731 = vand.u32 %v194, 2139095040
        %v8732 = vshrl.u32 %v8731, 23
        %v8733 = vsub.s32 %v8732, 127
        %v8734 = vand.u32 2147483647, %v194
        %v8735 = vand.u32 %v8734, 8388607
        %v8736 = vor.u32 %v8735, 8388608
        %v8737 = vsub.s32 0, %v8736
        %v8738 = vadd.s32 %v8733, 1
        %vm8739 = vcmp.gt.s32.totalorder %v8738, 0
        %v8740 = vsel %vm8739, %v8738, 0
        %v8741 = vshrl.u32 %v8740, 5
        %v8742 = vand.u32 %v8740, 31
        %v8743 = vsub.s32 32, %v8742
        %v8744 = vshrl.u32 683565275, %v8743
        %v8745 = vshll.u32 683565275, %v8742
        %v8746 = vshrl.u32 2475754826, %v8743
        %v8747 = vor.u32 %v8745, %v8746
        %v8748 = vshll.u32 2475754826, %v8742
        %v8749 = vshrl.u32 2131351028, %v8743
        %v8750 = vor.u32 %v8748, %v8749
        %v8751 = vshll.u32 2131351028, %v8742
        %v8752 = vshrl.u32 2102212464, %v8743
        %v8753 = vor.u32 %v8751, %v8752
        %v8754 = vshll.u32 2102212464, %v8742
        %v8755 = vshrl.u32 920167782, %v8743
        %v8756 = vor.u32 %v8754, %v8755
        %v8757 = vshll.u32 920167782, %v8742
        %v8758 = vshrl.u32 1326507024, %v8743
        %v8759 = vor.u32 %v8757, %v8758
        %vm8760 = vcmp.lt.s32.totalorder %v8741, 1
        %vm8761 = vcmp.lt.s32.totalorder %v8741, 2
        %vm8762 = vcmp.lt.s32.totalorder %v8741, 3
        %vm8763 = vcmp.lt.s32.totalorder %v8741, 4
        %v8764 = vsel %vm8760, %v8744, %v8747
        %v8765 = vsel %vm8763, %v8753, 2102212464
        %v8766 = vsel %vm8762, %v8750, %v8765
        %v8767 = vsel %vm8761, %v8764, %v8766
        %v8768 = vsel %vm8760, %v8747, %v8750
        %v8769 = vsel %vm8763, %v8756, 920167782
        %v8770 = vsel %vm8762, %v8753, %v8769
        %v8771 = vsel %vm8761, %v8768, %v8770
        %v8772 = vsel %vm8760, %v8750, %v8753
        %v8773 = vsel %vm8763, %v8759, 1326507024
        %v8774 = vsel %vm8762, %v8756, %v8773
        %v8775 = vsel %vm8761, %v8772, %v8774
        %v8776 = vshll.u32 %v8736, 8
        %v8777 = vand.u32 %v8776, 65535
        %v8778 = vshrl.u32 %v8776, 16
        %v8779 = vand.u32 %v8775, 65535
        %v8780 = vshrl.u32 %v8775, 16
        %v8781 = vmul.u32 %v8777, %v8779
        %v8782 = vmul.u32 %v8777, %v8780
        %v8783 = vmul.u32 %v8778, %v8779
        %v8784 = vmul.u32 %v8778, %v8780
        %v8785 = vshll.u32 %v8782, 16
        %v8786 = vshrl.u32 %v8782, 16
        %v8787 = vshll.u32 %v8783, 16
        %v8788 = vshrl.u32 %v8783, 16
        %vm8789 = vc.u32 %v8781, %v8785
        %v8790 = vsel %vm8789, 1, 0
        %v8791 = vadd.s32 %v8781, %v8785
        %v8792 = vadd.s32 %v8784, %v8790
        %vm8793 = vc.u32 %v8791, %v8787
        %v8794 = vsel %vm8793, 1, 0
        %v8795 = vadd.s32 %v8791, %v8787
        %v8796 = vadd.s32 %v8792, %v8794
        %v8797 = vadd.s32 %v8796, %v8786
        %v8798 = vadd.s32 %v8797, %v8788
        %v8799 = vand.u32 %v8776, 65535
        %v8800 = vshrl.u32 %v8776, 16
        %v8801 = vand.u32 %v8771, 65535
        %v8802 = vshrl.u32 %v8771, 16
        %v8803 = vmul.u32 %v8799, %v8801
        %v8804 = vmul.u32 %v8799, %v8802
        %v8805 = vmul.u32 %v8800, %v8801
        %v8806 = vmul.u32 %v8800, %v8802
        %v8807 = vshll.u32 %v8804, 16
        %v8808 = vshrl.u32 %v8804, 16
        %v8809 = vshll.u32 %v8805, 16
        %v8810 = vshrl.u32 %v8805, 16
        %vm8811 = vc.u32 %v8803, %v8807
        %v8812 = vsel %vm8811, 1, 0
        %v8813 = vadd.s32 %v8803, %v8807
        %v8814 = vadd.s32 %v8806, %v8812
        %vm8815 = vc.u32 %v8813, %v8809
        %v8816 = vsel %vm8815, 1, 0
        %v8817 = vadd.s32 %v8813, %v8809
        %v8818 = vadd.s32 %v8814, %v8816
        %v8819 = vadd.s32 %v8818, %v8808
        %v8820 = vadd.s32 %v8819, %v8810
        %v8821 = vmul.u32 %v8776, %v8767
        %v8822 = vadd.s32 %v8798, %v8817
        %vm8823 = vc.u32 %v8798, %v8817
        %v8824 = vadd.s32 %v8820, 1
        %v8825 = vsel %vm8823, %v8824, %v8820
        %v8826 = vadd.s32 %v8821, %v8825
        %v8827 = vadd.s32 %v8826, 536870912
        %v8828 = vshrl.u32 %v8827, 30
        %v8829 = vshll.u32 %v8828, 30
        %v8830 = vsub.s32 %v8826, %v8829
        %vm8831 = vcmp.lt.s32.totalorder %v8830, 0
        %v8832 = vsub.s32 0, %v8830
        %v8833 = vsel %vm8831, %v8832, %v8830
        %v8834 = vclz %v8833
        %v8835 = vsub.s32 %v8834, 2
        %vm8836 = vcmp.gt.s32.totalorder 0, %v8835
        %v8837 = vsel %vm8836, 0, %v8835
        %v8838 = vsub.s32 32, %v8837
        %v8839 = vshll.u32 %v8830, %v8837
        %v8840 = vshrl.u32 %v8822, %v8838
        %v8841 = vor.u32 %v8839, %v8840
        %v8842 = vsub.s32 4294967266, %v8837
        %v8843 = vadd.s32 %v8842, 127
        %v8844 = vshll.u32 %v8843, 23
        %v8845 = vor.u32 4788187, %v8844
        %v8846 = vand.u32 2147483647, %v8845
        %v8848 = vcvt.s32.f32 %v8841
        %v8849 = vmul.f32 %v8848, %v8846
        %v8850 = vxor.u32 %v8849, 2147483648
        %v8851 = vsel %vm8730, %v8850, %v8849
        %v8852 = vsub.s32 4, %v8828
        %v8853 = vsel %vm8730, %v8852, %v8828
        %v8854 = vsel %vm8729, %v194, %v8851
        %v8855 = vsel %vm8729, 0, %v8853
        %v8856 = vmul.f32 %v8854, %v8854
        %v8857 = vmul.f32 %v8856, -0.001358992
        %v8858 = vadd.f32 %v8857, 0.041655596
        %v8859 = vmul.f32 %v8856, %v8858
        %v8860 = vadd.f32 %v8859, -0.4999988
        %v8861 = vmul.f32 %v8856, %v8860
        %v8862 = vadd.f32 1.0, %v8861
        %v8863 = vmul.f32 %v8854, %v8854
        %v8864 = vmul.f32 %v8863, -0.00019511016
        %v8865 = vadd.f32 %v8864, 0.008332121
        %v8866 = vmul.f32 %v8863, %v8865
        %v8867 = vadd.f32 %v8866, -0.16666654
        %v8868 = vmul.f32 %v8863, %v8867
        %v8869 = vadd.f32 %v8868, 1.0
        %v8870 = vmul.f32 %v8869, %v8854
        %vm8871 = vweird.f32 %v194
        %v8872 = vadd.s32 %v8855, 3
        %v8873 = vand.u32 %v8872, 3
        %vm8874 = vcmp.lt.s32.totalorder %v8873, 2
        %vm8875 = vcmp.eq.s32.totalorder %v8873, 0
        %v8876 = vxor.u32 %v8870, 2147483648
        %v8877 = vsel %vm8875, %v8862, %v8876
        %vm8878 = vcmp.eq.s32.totalorder %v8873, 2
        %v8879 = vxor.u32 %v8862, 2147483648
        %v8880 = vsel %vm8878, %v8879, %v8870
        %v8881 = vsel %vm8874, %v8877, %v8880
        %v8882 = vsel %vm8871, nan, %v8881
        %v8883 = vand.u32 2147483647, %v195
        %vm8884 = vcmp.le.f32.partialorder %v8883, 0.7853982
        %vm8885 = vcmp.lt.s32.totalorder %v195, 0
        %v8886 = vand.u32 %v195, 2139095040
        %v8887 = vshrl.u32 %v8886, 23
        %v8888 = vsub.s32 %v8887, 127
        %v8889 = vand.u32 2147483647, %v195
        %v8890 = vand.u32 %v8889, 8388607
        %v8891 = vor.u32 %v8890, 8388608
        %v8892 = vsub.s32 0, %v8891
        %v8893 = vadd.s32 %v8888, 1
        %vm8894 = vcmp.gt.s32.totalorder %v8893, 0
        %v8895 = vsel %vm8894, %v8893, 0
        %v8896 = vshrl.u32 %v8895, 5
        %v8897 = vand.u32 %v8895, 31
        %v8898 = vsub.s32 32, %v8897
        %v8899 = vshrl.u32 683565275, %v8898
        %v8900 = vshll.u32 683565275, %v8897
        %v8901 = vshrl.u32 2475754826, %v8898
        %v8902 = vor.u32 %v8900, %v8901
        %v8903 = vshll.u32 2475754826, %v8897
        %v8904 = vshrl.u32 2131351028, %v8898
        %v8905 = vor.u32 %v8903, %v8904
        %v8906 = vshll.u32 2131351028, %v8897
        %v8907 = vshrl.u32 2102212464, %v8898
        %v8908 = vor.u32 %v8906, %v8907
        %v8909 = vshll.u32 2102212464, %v8897
        %v8910 = vshrl.u32 920167782, %v8898
        %v8911 = vor.u32 %v8909, %v8910
        %v8912 = vshll.u32 920167782, %v8897
        %v8913 = vshrl.u32 1326507024, %v8898
        %v8914 = vor.u32 %v8912, %v8913
        %vm8915 = vcmp.lt.s32.totalorder %v8896, 1
        %vm8916 = vcmp.lt.s32.totalorder %v8896, 2
        %vm8917 = vcmp.lt.s32.totalorder %v8896, 3
        %vm8918 = vcmp.lt.s32.totalorder %v8896, 4
        %v8919 = vsel %vm8915, %v8899, %v8902
        %v8920 = vsel %vm8918, %v8908, 2102212464
        %v8921 = vsel %vm8917, %v8905, %v8920
        %v8922 = vsel %vm8916, %v8919, %v8921
        %v8923 = vsel %vm8915, %v8902, %v8905
        %v8924 = vsel %vm8918, %v8911, 920167782
        %v8925 = vsel %vm8917, %v8908, %v8924
        %v8926 = vsel %vm8916, %v8923, %v8925
        %v8927 = vsel %vm8915, %v8905, %v8908
        %v8928 = vsel %vm8918, %v8914, 1326507024
        %v8929 = vsel %vm8917, %v8911, %v8928
        %v8930 = vsel %vm8916, %v8927, %v8929
        %v8931 = vshll.u32 %v8891, 8
        %v8932 = vand.u32 %v8931, 65535
        %v8933 = vshrl.u32 %v8931, 16
        %v8934 = vand.u32 %v8930, 65535
        %v8935 = vshrl.u32 %v8930, 16
        %v8936 = vmul.u32 %v8932, %v8934
        %v8937 = vmul.u32 %v8932, %v8935
        %v8938 = vmul.u32 %v8933, %v8934
        %v8939 = vmul.u32 %v8933, %v8935
        %v8940 = vshll.u32 %v8937, 16
        %v8941 = vshrl.u32 %v8937, 16
        %v8942 = vshll.u32 %v8938, 16
        %v8943 = vshrl.u32 %v8938, 16
        %vm8944 = vc.u32 %v8936, %v8940
        %v8945 = vsel %vm8944, 1, 0
        %v8946 = vadd.s32 %v8936, %v8940
        %v8947 = vadd.s32 %v8939, %v8945
        %vm8948 = vc.u32 %v8946, %v8942
        %v8949 = vsel %vm8948, 1, 0
        %v8950 = vadd.s32 %v8946, %v8942
        %v8951 = vadd.s32 %v8947, %v8949
        %v8952 = vadd.s32 %v8951, %v8941
        %v8953 = vadd.s32 %v8952, %v8943
        %v8954 = vand.u32 %v8931, 65535
        %v8955 = vshrl.u32 %v8931, 16
        %v8956 = vand.u32 %v8926, 65535
        %v8957 = vshrl.u32 %v8926, 16
        %v8958 = vmul.u32 %v8954, %v8956
        %v8959 = vmul.u32 %v8954, %v8957
        %v8960 = vmul.u32 %v8955, %v8956
        %v8961 = vmul.u32 %v8955, %v8957
        %v8962 = vshll.u32 %v8959, 16
        %v8963 = vshrl.u32 %v8959, 16
        %v8964 = vshll.u32 %v8960, 16
        %v8965 = vshrl.u32 %v8960, 16
        %vm8966 = vc.u32 %v8958, %v8962
        %v8967 = vsel %vm8966, 1, 0
        %v8968 = vadd.s32 %v8958, %v8962
        %v8969 = vadd.s32 %v8961, %v8967
        %vm8970 = vc.u32 %v8968, %v8964
        %v8971 = vsel %vm8970, 1, 0
        %v8972 = vadd.s32 %v8968, %v8964
        %v8973 = vadd.s32 %v8969, %v8971
        %v8974 = vadd.s32 %v8973, %v8963
        %v8975 = vadd.s32 %v8974, %v8965
        %v8976 = vmul.u32 %v8931, %v8922
        %v8977 = vadd.s32 %v8953, %v8972
        %vm8978 = vc.u32 %v8953, %v8972
        %v8979 = vadd.s32 %v8975, 1
        %v8980 = vsel %vm8978, %v8979, %v8975
        %v8981 = vadd.s32 %v8976, %v8980
        %v8982 = vadd.s32 %v8981, 536870912
        %v8983 = vshrl.u32 %v8982, 30
        %v8984 = vshll.u32 %v8983, 30
        %v8985 = vsub.s32 %v8981, %v8984
        %vm8986 = vcmp.lt.s32.totalorder %v8985, 0
        %v8987 = vsub.s32 0, %v8985
        %v8988 = vsel %vm8986, %v8987, %v8985
        %v8989 = vclz %v8988
        %v8990 = vsub.s32 %v8989, 2
        %vm8991 = vcmp.gt.s32.totalorder 0, %v8990
        %v8992 = vsel %vm8991, 0, %v8990
        %v8993 = vsub.s32 32, %v8992
        %v8994 = vshll.u32 %v8985, %v8992
        %v8995 = vshrl.u32 %v8977, %v8993
        %v8996 = vor.u32 %v8994, %v8995
        %v8997 = vsub.s32 4294967266, %v8992
        %v8998 = vadd.s32 %v8997, 127
        %v8999 = vshll.u32 %v8998, 23
        %v9000 = vor.u32 4788187, %v8999
        %v9001 = vand.u32 2147483647, %v9000
        %v9003 = vcvt.s32.f32 %v8996
        %v9004 = vmul.f32 %v9003, %v9001
        %v9005 = vxor.u32 %v9004, 2147483648
        %v9006 = vsel %vm8885, %v9005, %v9004
        %v9007 = vsub.s32 4, %v8983
        %v9008 = vsel %vm8885, %v9007, %v8983
        %v9009 = vsel %vm8884, %v195, %v9006
        %v9010 = vsel %vm8884, 0, %v9008
        %v9011 = vmul.f32 %v9009, %v9009
        %v9012 = vmul.f32 %v9011, -0.001358992
        %v9013 = vadd.f32 %v9012, 0.041655596
        %v9014 = vmul.f32 %v9011, %v9013
        %v9015 = vadd.f32 %v9014, -0.4999988
        %v9016 = vmul.f32 %v9011, %v9015
        %v9017 = vadd.f32 1.0, %v9016
        %v9018 = vmul.f32 %v9009, %v9009
        %v9019 = vmul.f32 %v9018, -0.00019511016
        %v9020 = vadd.f32 %v9019, 0.008332121
        %v9021 = vmul.f32 %v9018, %v9020
        %v9022 = vadd.f32 %v9021, -0.16666654
        %v9023 = vmul.f32 %v9018, %v9022
        %v9024 = vadd.f32 %v9023, 1.0
        %v9025 = vmul.f32 %v9024, %v9009
        %vm9026 = vweird.f32 %v195
        %v9027 = vadd.s32 %v9010, 3
        %v9028 = vand.u32 %v9027, 3
        %vm9029 = vcmp.lt.s32.totalorder %v9028, 2
        %vm9030 = vcmp.eq.s32.totalorder %v9028, 0
        %v9031 = vxor.u32 %v9025, 2147483648
        %v9032 = vsel %vm9030, %v9017, %v9031
        %vm9033 = vcmp.eq.s32.totalorder %v9028, 2
        %v9034 = vxor.u32 %v9017, 2147483648
        %v9035 = vsel %vm9033, %v9034, %v9025
        %v9036 = vsel %vm9029, %v9032, %v9035
        %v9037 = vsel %vm9026, nan, %v9036
        %v9038 = vand.u32 2147483647, %v196
        %vm9039 = vcmp.le.f32.partialorder %v9038, 0.7853982
        %vm9040 = vcmp.lt.s32.totalorder %v196, 0
        %v9041 = vand.u32 %v196, 2139095040
        %v9042 = vshrl.u32 %v9041, 23
        %v9043 = vsub.s32 %v9042, 127
        %v9044 = vand.u32 2147483647, %v196
        %v9045 = vand.u32 %v9044, 8388607
        %v9046 = vor.u32 %v9045, 8388608
        %v9047 = vsub.s32 0, %v9046
        %v9048 = vadd.s32 %v9043, 1
        %vm9049 = vcmp.gt.s32.totalorder %v9048, 0
        %v9050 = vsel %vm9049, %v9048, 0
        %v9051 = vshrl.u32 %v9050, 5
        %v9052 = vand.u32 %v9050, 31
        %v9053 = vsub.s32 32, %v9052
        %v9054 = vshrl.u32 683565275, %v9053
        %v9055 = vshll.u32 683565275, %v9052
        %v9056 = vshrl.u32 2475754826, %v9053
        %v9057 = vor.u32 %v9055, %v9056
        %v9058 = vshll.u32 2475754826, %v9052
        %v9059 = vshrl.u32 2131351028, %v9053
        %v9060 = vor.u32 %v9058, %v9059
        %v9061 = vshll.u32 2131351028, %v9052
        %v9062 = vshrl.u32 2102212464, %v9053
        %v9063 = vor.u32 %v9061, %v9062
        %v9064 = vshll.u32 2102212464, %v9052
        %v9065 = vshrl.u32 920167782, %v9053
        %v9066 = vor.u32 %v9064, %v9065
        %v9067 = vshll.u32 920167782, %v9052
        %v9068 = vshrl.u32 1326507024, %v9053
        %v9069 = vor.u32 %v9067, %v9068
        %vm9070 = vcmp.lt.s32.totalorder %v9051, 1
        %vm9071 = vcmp.lt.s32.totalorder %v9051, 2
        %vm9072 = vcmp.lt.s32.totalorder %v9051, 3
        %vm9073 = vcmp.lt.s32.totalorder %v9051, 4
        %v9074 = vsel %vm9070, %v9054, %v9057
        %v9075 = vsel %vm9073, %v9063, 2102212464
        %v9076 = vsel %vm9072, %v9060, %v9075
        %v9077 = vsel %vm9071, %v9074, %v9076
        %v9078 = vsel %vm9070, %v9057, %v9060
        %v9079 = vsel %vm9073, %v9066, 920167782
        %v9080 = vsel %vm9072, %v9063, %v9079
        %v9081 = vsel %vm9071, %v9078, %v9080
        %v9082 = vsel %vm9070, %v9060, %v9063
        %v9083 = vsel %vm9073, %v9069, 1326507024
        %v9084 = vsel %vm9072, %v9066, %v9083
        %v9085 = vsel %vm9071, %v9082, %v9084
        %v9086 = vshll.u32 %v9046, 8
        %v9087 = vand.u32 %v9086, 65535
        %v9088 = vshrl.u32 %v9086, 16
        %v9089 = vand.u32 %v9085, 65535
        %v9090 = vshrl.u32 %v9085, 16
        %v9091 = vmul.u32 %v9087, %v9089
        %v9092 = vmul.u32 %v9087, %v9090
        %v9093 = vmul.u32 %v9088, %v9089
        %v9094 = vmul.u32 %v9088, %v9090
        %v9095 = vshll.u32 %v9092, 16
        %v9096 = vshrl.u32 %v9092, 16
        %v9097 = vshll.u32 %v9093, 16
        %v9098 = vshrl.u32 %v9093, 16
        %vm9099 = vc.u32 %v9091, %v9095
        %v9100 = vsel %vm9099, 1, 0
        %v9101 = vadd.s32 %v9091, %v9095
        %v9102 = vadd.s32 %v9094, %v9100
        %vm9103 = vc.u32 %v9101, %v9097
        %v9104 = vsel %vm9103, 1, 0
        %v9105 = vadd.s32 %v9101, %v9097
        %v9106 = vadd.s32 %v9102, %v9104
        %v9107 = vadd.s32 %v9106, %v9096
        %v9108 = vadd.s32 %v9107, %v9098
        %v9109 = vand.u32 %v9086, 65535
        %v9110 = vshrl.u32 %v9086, 16
        %v9111 = vand.u32 %v9081, 65535
        %v9112 = vshrl.u32 %v9081, 16
        %v9113 = vmul.u32 %v9109, %v9111
        %v9114 = vmul.u32 %v9109, %v9112
        %v9115 = vmul.u32 %v9110, %v9111
        %v9116 = vmul.u32 %v9110, %v9112
        %v9117 = vshll.u32 %v9114, 16
        %v9118 = vshrl.u32 %v9114, 16
        %v9119 = vshll.u32 %v9115, 16
        %v9120 = vshrl.u32 %v9115, 16
        %vm9121 = vc.u32 %v9113, %v9117
        %v9122 = vsel %vm9121, 1, 0
        %v9123 = vadd.s32 %v9113, %v9117
        %v9124 = vadd.s32 %v9116, %v9122
        %vm9125 = vc.u32 %v9123, %v9119
        %v9126 = vsel %vm9125, 1, 0
        %v9127 = vadd.s32 %v9123, %v9119
        %v9128 = vadd.s32 %v9124, %v9126
        %v9129 = vadd.s32 %v9128, %v9118
        %v9130 = vadd.s32 %v9129, %v9120
        %v9131 = vmul.u32 %v9086, %v9077
        %v9132 = vadd.s32 %v9108, %v9127
        %vm9133 = vc.u32 %v9108, %v9127
        %v9134 = vadd.s32 %v9130, 1
        %v9135 = vsel %vm9133, %v9134, %v9130
        %v9136 = vadd.s32 %v9131, %v9135
        %v9137 = vadd.s32 %v9136, 536870912
        %v9138 = vshrl.u32 %v9137, 30
        %v9139 = vshll.u32 %v9138, 30
        %v9140 = vsub.s32 %v9136, %v9139
        %vm9141 = vcmp.lt.s32.totalorder %v9140, 0
        %v9142 = vsub.s32 0, %v9140
        %v9143 = vsel %vm9141, %v9142, %v9140
        %v9144 = vclz %v9143
        %v9145 = vsub.s32 %v9144, 2
        %vm9146 = vcmp.gt.s32.totalorder 0, %v9145
        %v9147 = vsel %vm9146, 0, %v9145
        %v9148 = vsub.s32 32, %v9147
        %v9149 = vshll.u32 %v9140, %v9147
        %v9150 = vshrl.u32 %v9132, %v9148
        %v9151 = vor.u32 %v9149, %v9150
        %v9152 = vsub.s32 4294967266, %v9147
        %v9153 = vadd.s32 %v9152, 127
        %v9154 = vshll.u32 %v9153, 23
        %v9155 = vor.u32 4788187, %v9154
        %v9156 = vand.u32 2147483647, %v9155
        %v9158 = vcvt.s32.f32 %v9151
        %v9159 = vmul.f32 %v9158, %v9156
        %v9160 = vxor.u32 %v9159, 2147483648
        %v9161 = vsel %vm9040, %v9160, %v9159
        %v9162 = vsub.s32 4, %v9138
        %v9163 = vsel %vm9040, %v9162, %v9138
        %v9164 = vsel %vm9039, %v196, %v9161
        %v9165 = vsel %vm9039, 0, %v9163
        %v9166 = vmul.f32 %v9164, %v9164
        %v9167 = vmul.f32 %v9166, -0.001358992
        %v9168 = vadd.f32 %v9167, 0.041655596
        %v9169 = vmul.f32 %v9166, %v9168
        %v9170 = vadd.f32 %v9169, -0.4999988
        %v9171 = vmul.f32 %v9166, %v9170
        %v9172 = vadd.f32 1.0, %v9171
        %v9173 = vmul.f32 %v9164, %v9164
        %v9174 = vmul.f32 %v9173, -0.00019511016
        %v9175 = vadd.f32 %v9174, 0.008332121
        %v9176 = vmul.f32 %v9173, %v9175
        %v9177 = vadd.f32 %v9176, -0.16666654
        %v9178 = vmul.f32 %v9173, %v9177
        %v9179 = vadd.f32 %v9178, 1.0
        %v9180 = vmul.f32 %v9179, %v9164
        %vm9181 = vweird.f32 %v196
        %v9182 = vadd.s32 %v9165, 3
        %v9183 = vand.u32 %v9182, 3
        %vm9184 = vcmp.lt.s32.totalorder %v9183, 2
        %vm9185 = vcmp.eq.s32.totalorder %v9183, 0
        %v9186 = vxor.u32 %v9180, 2147483648
        %v9187 = vsel %vm9185, %v9172, %v9186
        %vm9188 = vcmp.eq.s32.totalorder %v9183, 2
        %v9189 = vxor.u32 %v9172, 2147483648
        %v9190 = vsel %vm9188, %v9189, %v9180
        %v9191 = vsel %vm9184, %v9187, %v9190
        %v9192 = vsel %vm9181, nan, %v9191
        %v9193 = vand.u32 2147483647, %v197
        %vm9194 = vcmp.le.f32.partialorder %v9193, 0.7853982
        %vm9195 = vcmp.lt.s32.totalorder %v197, 0
        %v9196 = vand.u32 %v197, 2139095040
        %v9197 = vshrl.u32 %v9196, 23
        %v9198 = vsub.s32 %v9197, 127
        %v9199 = vand.u32 2147483647, %v197
        %v9200 = vand.u32 %v9199, 8388607
        %v9201 = vor.u32 %v9200, 8388608
        %v9202 = vsub.s32 0, %v9201
        %v9203 = vadd.s32 %v9198, 1
        %vm9204 = vcmp.gt.s32.totalorder %v9203, 0
        %v9205 = vsel %vm9204, %v9203, 0
        %v9206 = vshrl.u32 %v9205, 5
        %v9207 = vand.u32 %v9205, 31
        %v9208 = vsub.s32 32, %v9207
        %v9209 = vshrl.u32 683565275, %v9208
        %v9210 = vshll.u32 683565275, %v9207
        %v9211 = vshrl.u32 2475754826, %v9208
        %v9212 = vor.u32 %v9210, %v9211
        %v9213 = vshll.u32 2475754826, %v9207
        %v9214 = vshrl.u32 2131351028, %v9208
        %v9215 = vor.u32 %v9213, %v9214
        %v9216 = vshll.u32 2131351028, %v9207
        %v9217 = vshrl.u32 2102212464, %v9208
        %v9218 = vor.u32 %v9216, %v9217
        %v9219 = vshll.u32 2102212464, %v9207
        %v9220 = vshrl.u32 920167782, %v9208
        %v9221 = vor.u32 %v9219, %v9220
        %v9222 = vshll.u32 920167782, %v9207
        %v9223 = vshrl.u32 1326507024, %v9208
        %v9224 = vor.u32 %v9222, %v9223
        %vm9225 = vcmp.lt.s32.totalorder %v9206, 1
        %vm9226 = vcmp.lt.s32.totalorder %v9206, 2
        %vm9227 = vcmp.lt.s32.totalorder %v9206, 3
        %vm9228 = vcmp.lt.s32.totalorder %v9206, 4
        %v9229 = vsel %vm9225, %v9209, %v9212
        %v9230 = vsel %vm9228, %v9218, 2102212464
        %v9231 = vsel %vm9227, %v9215, %v9230
        %v9232 = vsel %vm9226, %v9229, %v9231
        %v9233 = vsel %vm9225, %v9212, %v9215
        %v9234 = vsel %vm9228, %v9221, 920167782
        %v9235 = vsel %vm9227, %v9218, %v9234
        %v9236 = vsel %vm9226, %v9233, %v9235
        %v9237 = vsel %vm9225, %v9215, %v9218
        %v9238 = vsel %vm9228, %v9224, 1326507024
        %v9239 = vsel %vm9227, %v9221, %v9238
        %v9240 = vsel %vm9226, %v9237, %v9239
        %v9241 = vshll.u32 %v9201, 8
        %v9242 = vand.u32 %v9241, 65535
        %v9243 = vshrl.u32 %v9241, 16
        %v9244 = vand.u32 %v9240, 65535
        %v9245 = vshrl.u32 %v9240, 16
        %v9246 = vmul.u32 %v9242, %v9244
        %v9247 = vmul.u32 %v9242, %v9245
        %v9248 = vmul.u32 %v9243, %v9244
        %v9249 = vmul.u32 %v9243, %v9245
        %v9250 = vshll.u32 %v9247, 16
        %v9251 = vshrl.u32 %v9247, 16
        %v9252 = vshll.u32 %v9248, 16
        %v9253 = vshrl.u32 %v9248, 16
        %vm9254 = vc.u32 %v9246, %v9250
        %v9255 = vsel %vm9254, 1, 0
        %v9256 = vadd.s32 %v9246, %v9250
        %v9257 = vadd.s32 %v9249, %v9255
        %vm9258 = vc.u32 %v9256, %v9252
        %v9259 = vsel %vm9258, 1, 0
        %v9260 = vadd.s32 %v9256, %v9252
        %v9261 = vadd.s32 %v9257, %v9259
        %v9262 = vadd.s32 %v9261, %v9251
        %v9263 = vadd.s32 %v9262, %v9253
        %v9264 = vand.u32 %v9241, 65535
        %v9265 = vshrl.u32 %v9241, 16
        %v9266 = vand.u32 %v9236, 65535
        %v9267 = vshrl.u32 %v9236, 16
        %v9268 = vmul.u32 %v9264, %v9266
        %v9269 = vmul.u32 %v9264, %v9267
        %v9270 = vmul.u32 %v9265, %v9266
        %v9271 = vmul.u32 %v9265, %v9267
        %v9272 = vshll.u32 %v9269, 16
        %v9273 = vshrl.u32 %v9269, 16
        %v9274 = vshll.u32 %v9270, 16
        %v9275 = vshrl.u32 %v9270, 16
        %vm9276 = vc.u32 %v9268, %v9272
        %v9277 = vsel %vm9276, 1, 0
        %v9278 = vadd.s32 %v9268, %v9272
        %v9279 = vadd.s32 %v9271, %v9277
        %vm9280 = vc.u32 %v9278, %v9274
        %v9281 = vsel %vm9280, 1, 0
        %v9282 = vadd.s32 %v9278, %v9274
        %v9283 = vadd.s32 %v9279, %v9281
        %v9284 = vadd.s32 %v9283, %v9273
        %v9285 = vadd.s32 %v9284, %v9275
        %v9286 = vmul.u32 %v9241, %v9232
        %v9287 = vadd.s32 %v9263, %v9282
        %vm9288 = vc.u32 %v9263, %v9282
        %v9289 = vadd.s32 %v9285, 1
        %v9290 = vsel %vm9288, %v9289, %v9285
        %v9291 = vadd.s32 %v9286, %v9290
        %v9292 = vadd.s32 %v9291, 536870912
        %v9293 = vshrl.u32 %v9292, 30
        %v9294 = vshll.u32 %v9293, 30
        %v9295 = vsub.s32 %v9291, %v9294
        %vm9296 = vcmp.lt.s32.totalorder %v9295, 0
        %v9297 = vsub.s32 0, %v9295
        %v9298 = vsel %vm9296, %v9297, %v9295
        %v9299 = vclz %v9298
        %v9300 = vsub.s32 %v9299, 2
        %vm9301 = vcmp.gt.s32.totalorder 0, %v9300
        %v9302 = vsel %vm9301, 0, %v9300
        %v9303 = vsub.s32 32, %v9302
        %v9304 = vshll.u32 %v9295, %v9302
        %v9305 = vshrl.u32 %v9287, %v9303
        %v9306 = vor.u32 %v9304, %v9305
        %v9307 = vsub.s32 4294967266, %v9302
        %v9308 = vadd.s32 %v9307, 127
        %v9309 = vshll.u32 %v9308, 23
        %v9310 = vor.u32 4788187, %v9309
        %v9311 = vand.u32 2147483647, %v9310
        %v9313 = vcvt.s32.f32 %v9306
        %v9314 = vmul.f32 %v9313, %v9311
        %v9315 = vxor.u32 %v9314, 2147483648
        %v9316 = vsel %vm9195, %v9315, %v9314
        %v9317 = vsub.s32 4, %v9293
        %v9318 = vsel %vm9195, %v9317, %v9293
        %v9319 = vsel %vm9194, %v197, %v9316
        %v9320 = vsel %vm9194, 0, %v9318
        %v9321 = vmul.f32 %v9319, %v9319
        %v9322 = vmul.f32 %v9321, -0.001358992
        %v9323 = vadd.f32 %v9322, 0.041655596
        %v9324 = vmul.f32 %v9321, %v9323
        %v9325 = vadd.f32 %v9324, -0.4999988
        %v9326 = vmul.f32 %v9321, %v9325
        %v9327 = vadd.f32 1.0, %v9326
        %v9328 = vmul.f32 %v9319, %v9319
        %v9329 = vmul.f32 %v9328, -0.00019511016
        %v9330 = vadd.f32 %v9329, 0.008332121
        %v9331 = vmul.f32 %v9328, %v9330
        %v9332 = vadd.f32 %v9331, -0.16666654
        %v9333 = vmul.f32 %v9328, %v9332
        %v9334 = vadd.f32 %v9333, 1.0
        %v9335 = vmul.f32 %v9334, %v9319
        %vm9336 = vweird.f32 %v197
        %v9337 = vadd.s32 %v9320, 3
        %v9338 = vand.u32 %v9337, 3
        %vm9339 = vcmp.lt.s32.totalorder %v9338, 2
        %vm9340 = vcmp.eq.s32.totalorder %v9338, 0
        %v9341 = vxor.u32 %v9335, 2147483648
        %v9342 = vsel %vm9340, %v9327, %v9341
        %vm9343 = vcmp.eq.s32.totalorder %v9338, 2
        %v9344 = vxor.u32 %v9327, 2147483648
        %v9345 = vsel %vm9343, %v9344, %v9335
        %v9346 = vsel %vm9339, %v9342, %v9345
        %v9347 = vsel %vm9336, nan, %v9346
        %v9348 = vand.u32 2147483647, %v198
        %vm9349 = vcmp.le.f32.partialorder %v9348, 0.7853982
        %vm9350 = vcmp.lt.s32.totalorder %v198, 0
        %v9351 = vand.u32 %v198, 2139095040
        %v9352 = vshrl.u32 %v9351, 23
        %v9353 = vsub.s32 %v9352, 127
        %v9354 = vand.u32 2147483647, %v198
        %v9355 = vand.u32 %v9354, 8388607
        %v9356 = vor.u32 %v9355, 8388608
        %v9357 = vsub.s32 0, %v9356
        %v9358 = vadd.s32 %v9353, 1
        %vm9359 = vcmp.gt.s32.totalorder %v9358, 0
        %v9360 = vsel %vm9359, %v9358, 0
        %v9361 = vshrl.u32 %v9360, 5
        %v9362 = vand.u32 %v9360, 31
        %v9363 = vsub.s32 32, %v9362
        %v9364 = vshrl.u32 683565275, %v9363
        %v9365 = vshll.u32 683565275, %v9362
        %v9366 = vshrl.u32 2475754826, %v9363
        %v9367 = vor.u32 %v9365, %v9366
        %v9368 = vshll.u32 2475754826, %v9362
        %v9369 = vshrl.u32 2131351028, %v9363
        %v9370 = vor.u32 %v9368, %v9369
        %v9371 = vshll.u32 2131351028, %v9362
        %v9372 = vshrl.u32 2102212464, %v9363
        %v9373 = vor.u32 %v9371, %v9372
        %v9374 = vshll.u32 2102212464, %v9362
        %v9375 = vshrl.u32 920167782, %v9363
        %v9376 = vor.u32 %v9374, %v9375
        %v9377 = vshll.u32 920167782, %v9362
        %v9378 = vshrl.u32 1326507024, %v9363
        %v9379 = vor.u32 %v9377, %v9378
        %vm9380 = vcmp.lt.s32.totalorder %v9361, 1
        %vm9381 = vcmp.lt.s32.totalorder %v9361, 2
        %vm9382 = vcmp.lt.s32.totalorder %v9361, 3
        %vm9383 = vcmp.lt.s32.totalorder %v9361, 4
        %v9384 = vsel %vm9380, %v9364, %v9367
        %v9385 = vsel %vm9383, %v9373, 2102212464
        %v9386 = vsel %vm9382, %v9370, %v9385
        %v9387 = vsel %vm9381, %v9384, %v9386
        %v9388 = vsel %vm9380, %v9367, %v9370
        %v9389 = vsel %vm9383, %v9376, 920167782
        %v9390 = vsel %vm9382, %v9373, %v9389
        %v9391 = vsel %vm9381, %v9388, %v9390
        %v9392 = vsel %vm9380, %v9370, %v9373
        %v9393 = vsel %vm9383, %v9379, 1326507024
        %v9394 = vsel %vm9382, %v9376, %v9393
        %v9395 = vsel %vm9381, %v9392, %v9394
        %v9396 = vshll.u32 %v9356, 8
        %v9397 = vand.u32 %v9396, 65535
        %v9398 = vshrl.u32 %v9396, 16
        %v9399 = vand.u32 %v9395, 65535
        %v9400 = vshrl.u32 %v9395, 16
        %v9401 = vmul.u32 %v9397, %v9399
        %v9402 = vmul.u32 %v9397, %v9400
        %v9403 = vmul.u32 %v9398, %v9399
        %v9404 = vmul.u32 %v9398, %v9400
        %v9405 = vshll.u32 %v9402, 16
        %v9406 = vshrl.u32 %v9402, 16
        %v9407 = vshll.u32 %v9403, 16
        %v9408 = vshrl.u32 %v9403, 16
        %vm9409 = vc.u32 %v9401, %v9405
        %v9410 = vsel %vm9409, 1, 0
        %v9411 = vadd.s32 %v9401, %v9405
        %v9412 = vadd.s32 %v9404, %v9410
        %vm9413 = vc.u32 %v9411, %v9407
        %v9414 = vsel %vm9413, 1, 0
        %v9415 = vadd.s32 %v9411, %v9407
        %v9416 = vadd.s32 %v9412, %v9414
        %v9417 = vadd.s32 %v9416, %v9406
        %v9418 = vadd.s32 %v9417, %v9408
        %v9419 = vand.u32 %v9396, 65535
        %v9420 = vshrl.u32 %v9396, 16
        %v9421 = vand.u32 %v9391, 65535
        %v9422 = vshrl.u32 %v9391, 16
        %v9423 = vmul.u32 %v9419, %v9421
        %v9424 = vmul.u32 %v9419, %v9422
        %v9425 = vmul.u32 %v9420, %v9421
        %v9426 = vmul.u32 %v9420, %v9422
        %v9427 = vshll.u32 %v9424, 16
        %v9428 = vshrl.u32 %v9424, 16
        %v9429 = vshll.u32 %v9425, 16
        %v9430 = vshrl.u32 %v9425, 16
        %vm9431 = vc.u32 %v9423, %v9427
        %v9432 = vsel %vm9431, 1, 0
        %v9433 = vadd.s32 %v9423, %v9427
        %v9434 = vadd.s32 %v9426, %v9432
        %vm9435 = vc.u32 %v9433, %v9429
        %v9436 = vsel %vm9435, 1, 0
        %v9437 = vadd.s32 %v9433, %v9429
        %v9438 = vadd.s32 %v9434, %v9436
        %v9439 = vadd.s32 %v9438, %v9428
        %v9440 = vadd.s32 %v9439, %v9430
        %v9441 = vmul.u32 %v9396, %v9387
        %v9442 = vadd.s32 %v9418, %v9437
        %vm9443 = vc.u32 %v9418, %v9437
        %v9444 = vadd.s32 %v9440, 1
        %v9445 = vsel %vm9443, %v9444, %v9440
        %v9446 = vadd.s32 %v9441, %v9445
        %v9447 = vadd.s32 %v9446, 536870912
        %v9448 = vshrl.u32 %v9447, 30
        %v9449 = vshll.u32 %v9448, 30
        %v9450 = vsub.s32 %v9446, %v9449
        %vm9451 = vcmp.lt.s32.totalorder %v9450, 0
        %v9452 = vsub.s32 0, %v9450
        %v9453 = vsel %vm9451, %v9452, %v9450
        %v9454 = vclz %v9453
        %v9455 = vsub.s32 %v9454, 2
        %vm9456 = vcmp.gt.s32.totalorder 0, %v9455
        %v9457 = vsel %vm9456, 0, %v9455
        %v9458 = vsub.s32 32, %v9457
        %v9459 = vshll.u32 %v9450, %v9457
        %v9460 = vshrl.u32 %v9442, %v9458
        %v9461 = vor.u32 %v9459, %v9460
        %v9462 = vsub.s32 4294967266, %v9457
        %v9463 = vadd.s32 %v9462, 127
        %v9464 = vshll.u32 %v9463, 23
        %v9465 = vor.u32 4788187, %v9464
        %v9466 = vand.u32 2147483647, %v9465
        %v9468 = vcvt.s32.f32 %v9461
        %v9469 = vmul.f32 %v9468, %v9466
        %v9470 = vxor.u32 %v9469, 2147483648
        %v9471 = vsel %vm9350, %v9470, %v9469
        %v9472 = vsub.s32 4, %v9448
        %v9473 = vsel %vm9350, %v9472, %v9448
        %v9474 = vsel %vm9349, %v198, %v9471
        %v9475 = vsel %vm9349, 0, %v9473
        %v9476 = vmul.f32 %v9474, %v9474
        %v9477 = vmul.f32 %v9476, -0.001358992
        %v9478 = vadd.f32 %v9477, 0.041655596
        %v9479 = vmul.f32 %v9476, %v9478
        %v9480 = vadd.f32 %v9479, -0.4999988
        %v9481 = vmul.f32 %v9476, %v9480
        %v9482 = vadd.f32 1.0, %v9481
        %v9483 = vmul.f32 %v9474, %v9474
        %v9484 = vmul.f32 %v9483, -0.00019511016
        %v9485 = vadd.f32 %v9484, 0.008332121
        %v9486 = vmul.f32 %v9483, %v9485
        %v9487 = vadd.f32 %v9486, -0.16666654
        %v9488 = vmul.f32 %v9483, %v9487
        %v9489 = vadd.f32 %v9488, 1.0
        %v9490 = vmul.f32 %v9489, %v9474
        %vm9491 = vweird.f32 %v198
        %v9492 = vadd.s32 %v9475, 3
        %v9493 = vand.u32 %v9492, 3
        %vm9494 = vcmp.lt.s32.totalorder %v9493, 2
        %vm9495 = vcmp.eq.s32.totalorder %v9493, 0
        %v9496 = vxor.u32 %v9490, 2147483648
        %v9497 = vsel %vm9495, %v9482, %v9496
        %vm9498 = vcmp.eq.s32.totalorder %v9493, 2
        %v9499 = vxor.u32 %v9482, 2147483648
        %v9500 = vsel %vm9498, %v9499, %v9490
        %v9501 = vsel %vm9494, %v9497, %v9500
        %v9502 = vsel %vm9491, nan, %v9501
        %v9503 = vand.u32 2147483647, %v199
        %vm9504 = vcmp.le.f32.partialorder %v9503, 0.7853982
        %vm9505 = vcmp.lt.s32.totalorder %v199, 0
        %v9506 = vand.u32 %v199, 2139095040
        %v9507 = vshrl.u32 %v9506, 23
        %v9508 = vsub.s32 %v9507, 127
        %v9509 = vand.u32 2147483647, %v199
        %v9510 = vand.u32 %v9509, 8388607
        %v9511 = vor.u32 %v9510, 8388608
        %v9512 = vsub.s32 0, %v9511
        %v9513 = vadd.s32 %v9508, 1
        %vm9514 = vcmp.gt.s32.totalorder %v9513, 0
        %v9515 = vsel %vm9514, %v9513, 0
        %v9516 = vshrl.u32 %v9515, 5
        %v9517 = vand.u32 %v9515, 31
        %v9518 = vsub.s32 32, %v9517
        %v9519 = vshrl.u32 683565275, %v9518
        %v9520 = vshll.u32 683565275, %v9517
        %v9521 = vshrl.u32 2475754826, %v9518
        %v9522 = vor.u32 %v9520, %v9521
        %v9523 = vshll.u32 2475754826, %v9517
        %v9524 = vshrl.u32 2131351028, %v9518
        %v9525 = vor.u32 %v9523, %v9524
        %v9526 = vshll.u32 2131351028, %v9517
        %v9527 = vshrl.u32 2102212464, %v9518
        %v9528 = vor.u32 %v9526, %v9527
        %v9529 = vshll.u32 2102212464, %v9517
        %v9530 = vshrl.u32 920167782, %v9518
        %v9531 = vor.u32 %v9529, %v9530
        %v9532 = vshll.u32 920167782, %v9517
        %v9533 = vshrl.u32 1326507024, %v9518
        %v9534 = vor.u32 %v9532, %v9533
        %vm9535 = vcmp.lt.s32.totalorder %v9516, 1
        %vm9536 = vcmp.lt.s32.totalorder %v9516, 2
        %vm9537 = vcmp.lt.s32.totalorder %v9516, 3
        %vm9538 = vcmp.lt.s32.totalorder %v9516, 4
        %v9539 = vsel %vm9535, %v9519, %v9522
        %v9540 = vsel %vm9538, %v9528, 2102212464
        %v9541 = vsel %vm9537, %v9525, %v9540
        %v9542 = vsel %vm9536, %v9539, %v9541
        %v9543 = vsel %vm9535, %v9522, %v9525
        %v9544 = vsel %vm9538, %v9531, 920167782
        %v9545 = vsel %vm9537, %v9528, %v9544
        %v9546 = vsel %vm9536, %v9543, %v9545
        %v9547 = vsel %vm9535, %v9525, %v9528
        %v9548 = vsel %vm9538, %v9534, 1326507024
        %v9549 = vsel %vm9537, %v9531, %v9548
        %v9550 = vsel %vm9536, %v9547, %v9549
        %v9551 = vshll.u32 %v9511, 8
        %v9552 = vand.u32 %v9551, 65535
        %v9553 = vshrl.u32 %v9551, 16
        %v9554 = vand.u32 %v9550, 65535
        %v9555 = vshrl.u32 %v9550, 16
        %v9556 = vmul.u32 %v9552, %v9554
        %v9557 = vmul.u32 %v9552, %v9555
        %v9558 = vmul.u32 %v9553, %v9554
        %v9559 = vmul.u32 %v9553, %v9555
        %v9560 = vshll.u32 %v9557, 16
        %v9561 = vshrl.u32 %v9557, 16
        %v9562 = vshll.u32 %v9558, 16
        %v9563 = vshrl.u32 %v9558, 16
        %vm9564 = vc.u32 %v9556, %v9560
        %v9565 = vsel %vm9564, 1, 0
        %v9566 = vadd.s32 %v9556, %v9560
        %v9567 = vadd.s32 %v9559, %v9565
        %vm9568 = vc.u32 %v9566, %v9562
        %v9569 = vsel %vm9568, 1, 0
        %v9570 = vadd.s32 %v9566, %v9562
        %v9571 = vadd.s32 %v9567, %v9569
        %v9572 = vadd.s32 %v9571, %v9561
        %v9573 = vadd.s32 %v9572, %v9563
        %v9574 = vand.u32 %v9551, 65535
        %v9575 = vshrl.u32 %v9551, 16
        %v9576 = vand.u32 %v9546, 65535
        %v9577 = vshrl.u32 %v9546, 16
        %v9578 = vmul.u32 %v9574, %v9576
        %v9579 = vmul.u32 %v9574, %v9577
        %v9580 = vmul.u32 %v9575, %v9576
        %v9581 = vmul.u32 %v9575, %v9577
        %v9582 = vshll.u32 %v9579, 16
        %v9583 = vshrl.u32 %v9579, 16
        %v9584 = vshll.u32 %v9580, 16
        %v9585 = vshrl.u32 %v9580, 16
        %vm9586 = vc.u32 %v9578, %v9582
        %v9587 = vsel %vm9586, 1, 0
        %v9588 = vadd.s32 %v9578, %v9582
        %v9589 = vadd.s32 %v9581, %v9587
        %vm9590 = vc.u32 %v9588, %v9584
        %v9591 = vsel %vm9590, 1, 0
        %v9592 = vadd.s32 %v9588, %v9584
        %v9593 = vadd.s32 %v9589, %v9591
        %v9594 = vadd.s32 %v9593, %v9583
        %v9595 = vadd.s32 %v9594, %v9585
        %v9596 = vmul.u32 %v9551, %v9542
        %v9597 = vadd.s32 %v9573, %v9592
        %vm9598 = vc.u32 %v9573, %v9592
        %v9599 = vadd.s32 %v9595, 1
        %v9600 = vsel %vm9598, %v9599, %v9595
        %v9601 = vadd.s32 %v9596, %v9600
        %v9602 = vadd.s32 %v9601, 536870912
        %v9603 = vshrl.u32 %v9602, 30
        %v9604 = vshll.u32 %v9603, 30
        %v9605 = vsub.s32 %v9601, %v9604
        %vm9606 = vcmp.lt.s32.totalorder %v9605, 0
        %v9607 = vsub.s32 0, %v9605
        %v9608 = vsel %vm9606, %v9607, %v9605
        %v9609 = vclz %v9608
        %v9610 = vsub.s32 %v9609, 2
        %vm9611 = vcmp.gt.s32.totalorder 0, %v9610
        %v9612 = vsel %vm9611, 0, %v9610
        %v9613 = vsub.s32 32, %v9612
        %v9614 = vshll.u32 %v9605, %v9612
        %v9615 = vshrl.u32 %v9597, %v9613
        %v9616 = vor.u32 %v9614, %v9615
        %v9617 = vsub.s32 4294967266, %v9612
        %v9618 = vadd.s32 %v9617, 127
        %v9619 = vshll.u32 %v9618, 23
        %v9620 = vor.u32 4788187, %v9619
        %v9621 = vand.u32 2147483647, %v9620
        %v9623 = vcvt.s32.f32 %v9616
        %v9624 = vmul.f32 %v9623, %v9621
        %v9625 = vxor.u32 %v9624, 2147483648
        %v9626 = vsel %vm9505, %v9625, %v9624
        %v9627 = vsub.s32 4, %v9603
        %v9628 = vsel %vm9505, %v9627, %v9603
        %v9629 = vsel %vm9504, %v199, %v9626
        %v9630 = vsel %vm9504, 0, %v9628
        %v9631 = vmul.f32 %v9629, %v9629
        %v9632 = vmul.f32 %v9631, -0.001358992
        %v9633 = vadd.f32 %v9632, 0.041655596
        %v9634 = vmul.f32 %v9631, %v9633
        %v9635 = vadd.f32 %v9634, -0.4999988
        %v9636 = vmul.f32 %v9631, %v9635
        %v9637 = vadd.f32 1.0, %v9636
        %v9638 = vmul.f32 %v9629, %v9629
        %v9639 = vmul.f32 %v9638, -0.00019511016
        %v9640 = vadd.f32 %v9639, 0.008332121
        %v9641 = vmul.f32 %v9638, %v9640
        %v9642 = vadd.f32 %v9641, -0.16666654
        %v9643 = vmul.f32 %v9638, %v9642
        %v9644 = vadd.f32 %v9643, 1.0
        %v9645 = vmul.f32 %v9644, %v9629
        %vm9646 = vweird.f32 %v199
        %v9647 = vadd.s32 %v9630, 3
        %v9648 = vand.u32 %v9647, 3
        %vm9649 = vcmp.lt.s32.totalorder %v9648, 2
        %vm9650 = vcmp.eq.s32.totalorder %v9648, 0
        %v9651 = vxor.u32 %v9645, 2147483648
        %v9652 = vsel %vm9650, %v9637, %v9651
        %vm9653 = vcmp.eq.s32.totalorder %v9648, 2
        %v9654 = vxor.u32 %v9637, 2147483648
        %v9655 = vsel %vm9653, %v9654, %v9645
        %v9656 = vsel %vm9649, %v9652, %v9655
        %v9657 = vsel %vm9646, nan, %v9656
        %v9658 = vand.u32 2147483647, %v200
        %vm9659 = vcmp.le.f32.partialorder %v9658, 0.7853982
        %vm9660 = vcmp.lt.s32.totalorder %v200, 0
        %v9661 = vand.u32 %v200, 2139095040
        %v9662 = vshrl.u32 %v9661, 23
        %v9663 = vsub.s32 %v9662, 127
        %v9664 = vand.u32 2147483647, %v200
        %v9665 = vand.u32 %v9664, 8388607
        %v9666 = vor.u32 %v9665, 8388608
        %v9667 = vsub.s32 0, %v9666
        %v9668 = vadd.s32 %v9663, 1
        %vm9669 = vcmp.gt.s32.totalorder %v9668, 0
        %v9670 = vsel %vm9669, %v9668, 0
        %v9671 = vshrl.u32 %v9670, 5
        %v9672 = vand.u32 %v9670, 31
        %v9673 = vsub.s32 32, %v9672
        %v9674 = vshrl.u32 683565275, %v9673
        %v9675 = vshll.u32 683565275, %v9672
        %v9676 = vshrl.u32 2475754826, %v9673
        %v9677 = vor.u32 %v9675, %v9676
        %v9678 = vshll.u32 2475754826, %v9672
        %v9679 = vshrl.u32 2131351028, %v9673
        %v9680 = vor.u32 %v9678, %v9679
        %v9681 = vshll.u32 2131351028, %v9672
        %v9682 = vshrl.u32 2102212464, %v9673
        %v9683 = vor.u32 %v9681, %v9682
        %v9684 = vshll.u32 2102212464, %v9672
        %v9685 = vshrl.u32 920167782, %v9673
        %v9686 = vor.u32 %v9684, %v9685
        %v9687 = vshll.u32 920167782, %v9672
        %v9688 = vshrl.u32 1326507024, %v9673
        %v9689 = vor.u32 %v9687, %v9688
        %vm9690 = vcmp.lt.s32.totalorder %v9671, 1
        %vm9691 = vcmp.lt.s32.totalorder %v9671, 2
        %vm9692 = vcmp.lt.s32.totalorder %v9671, 3
        %vm9693 = vcmp.lt.s32.totalorder %v9671, 4
        %v9694 = vsel %vm9690, %v9674, %v9677
        %v9695 = vsel %vm9693, %v9683, 2102212464
        %v9696 = vsel %vm9692, %v9680, %v9695
        %v9697 = vsel %vm9691, %v9694, %v9696
        %v9698 = vsel %vm9690, %v9677, %v9680
        %v9699 = vsel %vm9693, %v9686, 920167782
        %v9700 = vsel %vm9692, %v9683, %v9699
        %v9701 = vsel %vm9691, %v9698, %v9700
        %v9702 = vsel %vm9690, %v9680, %v9683
        %v9703 = vsel %vm9693, %v9689, 1326507024
        %v9704 = vsel %vm9692, %v9686, %v9703
        %v9705 = vsel %vm9691, %v9702, %v9704
        %v9706 = vshll.u32 %v9666, 8
        %v9707 = vand.u32 %v9706, 65535
        %v9708 = vshrl.u32 %v9706, 16
        %v9709 = vand.u32 %v9705, 65535
        %v9710 = vshrl.u32 %v9705, 16
        %v9711 = vmul.u32 %v9707, %v9709
        %v9712 = vmul.u32 %v9707, %v9710
        %v9713 = vmul.u32 %v9708, %v9709
        %v9714 = vmul.u32 %v9708, %v9710
        %v9715 = vshll.u32 %v9712, 16
        %v9716 = vshrl.u32 %v9712, 16
        %v9717 = vshll.u32 %v9713, 16
        %v9718 = vshrl.u32 %v9713, 16
        %vm9719 = vc.u32 %v9711, %v9715
        %v9720 = vsel %vm9719, 1, 0
        %v9721 = vadd.s32 %v9711, %v9715
        %v9722 = vadd.s32 %v9714, %v9720
        %vm9723 = vc.u32 %v9721, %v9717
        %v9724 = vsel %vm9723, 1, 0
        %v9725 = vadd.s32 %v9721, %v9717
        %v9726 = vadd.s32 %v9722, %v9724
        %v9727 = vadd.s32 %v9726, %v9716
        %v9728 = vadd.s32 %v9727, %v9718
        %v9729 = vand.u32 %v9706, 65535
        %v9730 = vshrl.u32 %v9706, 16
        %v9731 = vand.u32 %v9701, 65535
        %v9732 = vshrl.u32 %v9701, 16
        %v9733 = vmul.u32 %v9729, %v9731
        %v9734 = vmul.u32 %v9729, %v9732
        %v9735 = vmul.u32 %v9730, %v9731
        %v9736 = vmul.u32 %v9730, %v9732
        %v9737 = vshll.u32 %v9734, 16
        %v9738 = vshrl.u32 %v9734, 16
        %v9739 = vshll.u32 %v9735, 16
        %v9740 = vshrl.u32 %v9735, 16
        %vm9741 = vc.u32 %v9733, %v9737
        %v9742 = vsel %vm9741, 1, 0
        %v9743 = vadd.s32 %v9733, %v9737
        %v9744 = vadd.s32 %v9736, %v9742
        %vm9745 = vc.u32 %v9743, %v9739
        %v9746 = vsel %vm9745, 1, 0
        %v9747 = vadd.s32 %v9743, %v9739
        %v9748 = vadd.s32 %v9744, %v9746
        %v9749 = vadd.s32 %v9748, %v9738
        %v9750 = vadd.s32 %v9749, %v9740
        %v9751 = vmul.u32 %v9706, %v9697
        %v9752 = vadd.s32 %v9728, %v9747
        %vm9753 = vc.u32 %v9728, %v9747
        %v9754 = vadd.s32 %v9750, 1
        %v9755 = vsel %vm9753, %v9754, %v9750
        %v9756 = vadd.s32 %v9751, %v9755
        %v9757 = vadd.s32 %v9756, 536870912
        %v9758 = vshrl.u32 %v9757, 30
        %v9759 = vshll.u32 %v9758, 30
        %v9760 = vsub.s32 %v9756, %v9759
        %vm9761 = vcmp.lt.s32.totalorder %v9760, 0
        %v9762 = vsub.s32 0, %v9760
        %v9763 = vsel %vm9761, %v9762, %v9760
        %v9764 = vclz %v9763
        %v9765 = vsub.s32 %v9764, 2
        %vm9766 = vcmp.gt.s32.totalorder 0, %v9765
        %v9767 = vsel %vm9766, 0, %v9765
        %v9768 = vsub.s32 32, %v9767
        %v9769 = vshll.u32 %v9760, %v9767
        %v9770 = vshrl.u32 %v9752, %v9768
        %v9771 = vor.u32 %v9769, %v9770
        %v9772 = vsub.s32 4294967266, %v9767
        %v9773 = vadd.s32 %v9772, 127
        %v9774 = vshll.u32 %v9773, 23
        %v9775 = vor.u32 4788187, %v9774
        %v9776 = vand.u32 2147483647, %v9775
        %v9778 = vcvt.s32.f32 %v9771
        %v9779 = vmul.f32 %v9778, %v9776
        %v9780 = vxor.u32 %v9779, 2147483648
        %v9781 = vsel %vm9660, %v9780, %v9779
        %v9782 = vsub.s32 4, %v9758
        %v9783 = vsel %vm9660, %v9782, %v9758
        %v9784 = vsel %vm9659, %v200, %v9781
        %v9785 = vsel %vm9659, 0, %v9783
        %v9786 = vmul.f32 %v9784, %v9784
        %v9787 = vmul.f32 %v9786, -0.001358992
        %v9788 = vadd.f32 %v9787, 0.041655596
        %v9789 = vmul.f32 %v9786, %v9788
        %v9790 = vadd.f32 %v9789, -0.4999988
        %v9791 = vmul.f32 %v9786, %v9790
        %v9792 = vadd.f32 1.0, %v9791
        %v9793 = vmul.f32 %v9784, %v9784
        %v9794 = vmul.f32 %v9793, -0.00019511016
        %v9795 = vadd.f32 %v9794, 0.008332121
        %v9796 = vmul.f32 %v9793, %v9795
        %v9797 = vadd.f32 %v9796, -0.16666654
        %v9798 = vmul.f32 %v9793, %v9797
        %v9799 = vadd.f32 %v9798, 1.0
        %v9800 = vmul.f32 %v9799, %v9784
        %vm9801 = vweird.f32 %v200
        %v9802 = vadd.s32 %v9785, 3
        %v9803 = vand.u32 %v9802, 3
        %vm9804 = vcmp.lt.s32.totalorder %v9803, 2
        %vm9805 = vcmp.eq.s32.totalorder %v9803, 0
        %v9806 = vxor.u32 %v9800, 2147483648
        %v9807 = vsel %vm9805, %v9792, %v9806
        %vm9808 = vcmp.eq.s32.totalorder %v9803, 2
        %v9809 = vxor.u32 %v9792, 2147483648
        %v9810 = vsel %vm9808, %v9809, %v9800
        %v9811 = vsel %vm9804, %v9807, %v9810
        %v9812 = vsel %vm9801, nan, %v9811
        %v9813 = vand.u32 2147483647, %v201
        %vm9814 = vcmp.le.f32.partialorder %v9813, 0.7853982
        %vm9815 = vcmp.lt.s32.totalorder %v201, 0
        %v9816 = vand.u32 %v201, 2139095040
        %v9817 = vshrl.u32 %v9816, 23
        %v9818 = vsub.s32 %v9817, 127
        %v9819 = vand.u32 2147483647, %v201
        %v9820 = vand.u32 %v9819, 8388607
        %v9821 = vor.u32 %v9820, 8388608
        %v9822 = vsub.s32 0, %v9821
        %v9823 = vadd.s32 %v9818, 1
        %vm9824 = vcmp.gt.s32.totalorder %v9823, 0
        %v9825 = vsel %vm9824, %v9823, 0
        %v9826 = vshrl.u32 %v9825, 5
        %v9827 = vand.u32 %v9825, 31
        %v9828 = vsub.s32 32, %v9827
        %v9829 = vshrl.u32 683565275, %v9828
        %v9830 = vshll.u32 683565275, %v9827
        %v9831 = vshrl.u32 2475754826, %v9828
        %v9832 = vor.u32 %v9830, %v9831
        %v9833 = vshll.u32 2475754826, %v9827
        %v9834 = vshrl.u32 2131351028, %v9828
        %v9835 = vor.u32 %v9833, %v9834
        %v9836 = vshll.u32 2131351028, %v9827
        %v9837 = vshrl.u32 2102212464, %v9828
        %v9838 = vor.u32 %v9836, %v9837
        %v9839 = vshll.u32 2102212464, %v9827
        %v9840 = vshrl.u32 920167782, %v9828
        %v9841 = vor.u32 %v9839, %v9840
        %v9842 = vshll.u32 920167782, %v9827
        %v9843 = vshrl.u32 1326507024, %v9828
        %v9844 = vor.u32 %v9842, %v9843
        %vm9845 = vcmp.lt.s32.totalorder %v9826, 1
        %vm9846 = vcmp.lt.s32.totalorder %v9826, 2
        %vm9847 = vcmp.lt.s32.totalorder %v9826, 3
        %vm9848 = vcmp.lt.s32.totalorder %v9826, 4
        %v9849 = vsel %vm9845, %v9829, %v9832
        %v9850 = vsel %vm9848, %v9838, 2102212464
        %v9851 = vsel %vm9847, %v9835, %v9850
        %v9852 = vsel %vm9846, %v9849, %v9851
        %v9853 = vsel %vm9845, %v9832, %v9835
        %v9854 = vsel %vm9848, %v9841, 920167782
        %v9855 = vsel %vm9847, %v9838, %v9854
        %v9856 = vsel %vm9846, %v9853, %v9855
        %v9857 = vsel %vm9845, %v9835, %v9838
        %v9858 = vsel %vm9848, %v9844, 1326507024
        %v9859 = vsel %vm9847, %v9841, %v9858
        %v9860 = vsel %vm9846, %v9857, %v9859
        %v9861 = vshll.u32 %v9821, 8
        %v9862 = vand.u32 %v9861, 65535
        %v9863 = vshrl.u32 %v9861, 16
        %v9864 = vand.u32 %v9860, 65535
        %v9865 = vshrl.u32 %v9860, 16
        %v9866 = vmul.u32 %v9862, %v9864
        %v9867 = vmul.u32 %v9862, %v9865
        %v9868 = vmul.u32 %v9863, %v9864
        %v9869 = vmul.u32 %v9863, %v9865
        %v9870 = vshll.u32 %v9867, 16
        %v9871 = vshrl.u32 %v9867, 16
        %v9872 = vshll.u32 %v9868, 16
        %v9873 = vshrl.u32 %v9868, 16
        %vm9874 = vc.u32 %v9866, %v9870
        %v9875 = vsel %vm9874, 1, 0
        %v9876 = vadd.s32 %v9866, %v9870
        %v9877 = vadd.s32 %v9869, %v9875
        %vm9878 = vc.u32 %v9876, %v9872
        %v9879 = vsel %vm9878, 1, 0
        %v9880 = vadd.s32 %v9876, %v9872
        %v9881 = vadd.s32 %v9877, %v9879
        %v9882 = vadd.s32 %v9881, %v9871
        %v9883 = vadd.s32 %v9882, %v9873
        %v9884 = vand.u32 %v9861, 65535
        %v9885 = vshrl.u32 %v9861, 16
        %v9886 = vand.u32 %v9856, 65535
        %v9887 = vshrl.u32 %v9856, 16
        %v9888 = vmul.u32 %v9884, %v9886
        %v9889 = vmul.u32 %v9884, %v9887
        %v9890 = vmul.u32 %v9885, %v9886
        %v9891 = vmul.u32 %v9885, %v9887
        %v9892 = vshll.u32 %v9889, 16
        %v9893 = vshrl.u32 %v9889, 16
        %v9894 = vshll.u32 %v9890, 16
        %v9895 = vshrl.u32 %v9890, 16
        %vm9896 = vc.u32 %v9888, %v9892
        %v9897 = vsel %vm9896, 1, 0
        %v9898 = vadd.s32 %v9888, %v9892
        %v9899 = vadd.s32 %v9891, %v9897
        %vm9900 = vc.u32 %v9898, %v9894
        %v9901 = vsel %vm9900, 1, 0
        %v9902 = vadd.s32 %v9898, %v9894
        %v9903 = vadd.s32 %v9899, %v9901
        %v9904 = vadd.s32 %v9903, %v9893
        %v9905 = vadd.s32 %v9904, %v9895
        %v9906 = vmul.u32 %v9861, %v9852
        %v9907 = vadd.s32 %v9883, %v9902
        %vm9908 = vc.u32 %v9883, %v9902
        %v9909 = vadd.s32 %v9905, 1
        %v9910 = vsel %vm9908, %v9909, %v9905
        %v9911 = vadd.s32 %v9906, %v9910
        %v9912 = vadd.s32 %v9911, 536870912
        %v9913 = vshrl.u32 %v9912, 30
        %v9914 = vshll.u32 %v9913, 30
        %v9915 = vsub.s32 %v9911, %v9914
        %vm9916 = vcmp.lt.s32.totalorder %v9915, 0
        %v9917 = vsub.s32 0, %v9915
        %v9918 = vsel %vm9916, %v9917, %v9915
        %v9919 = vclz %v9918
        %v9920 = vsub.s32 %v9919, 2
        %vm9921 = vcmp.gt.s32.totalorder 0, %v9920
        %v9922 = vsel %vm9921, 0, %v9920
        %v9923 = vsub.s32 32, %v9922
        %v9924 = vshll.u32 %v9915, %v9922
        %v9925 = vshrl.u32 %v9907, %v9923
        %v9926 = vor.u32 %v9924, %v9925
        %v9927 = vsub.s32 4294967266, %v9922
        %v9928 = vadd.s32 %v9927, 127
        %v9929 = vshll.u32 %v9928, 23
        %v9930 = vor.u32 4788187, %v9929
        %v9931 = vand.u32 2147483647, %v9930
        %v9933 = vcvt.s32.f32 %v9926
        %v9934 = vmul.f32 %v9933, %v9931
        %v9935 = vxor.u32 %v9934, 2147483648
        %v9936 = vsel %vm9815, %v9935, %v9934
        %v9937 = vsub.s32 4, %v9913
        %v9938 = vsel %vm9815, %v9937, %v9913
        %v9939 = vsel %vm9814, %v201, %v9936
        %v9940 = vsel %vm9814, 0, %v9938
        %v9941 = vmul.f32 %v9939, %v9939
        %v9942 = vmul.f32 %v9941, -0.001358992
        %v9943 = vadd.f32 %v9942, 0.041655596
        %v9944 = vmul.f32 %v9941, %v9943
        %v9945 = vadd.f32 %v9944, -0.4999988
        %v9946 = vmul.f32 %v9941, %v9945
        %v9947 = vadd.f32 1.0, %v9946
        %v9948 = vmul.f32 %v9939, %v9939
        %v9949 = vmul.f32 %v9948, -0.00019511016
        %v9950 = vadd.f32 %v9949, 0.008332121
        %v9951 = vmul.f32 %v9948, %v9950
        %v9952 = vadd.f32 %v9951, -0.16666654
        %v9953 = vmul.f32 %v9948, %v9952
        %v9954 = vadd.f32 %v9953, 1.0
        %v9955 = vmul.f32 %v9954, %v9939
        %vm9956 = vweird.f32 %v201
        %v9957 = vadd.s32 %v9940, 3
        %v9958 = vand.u32 %v9957, 3
        %vm9959 = vcmp.lt.s32.totalorder %v9958, 2
        %vm9960 = vcmp.eq.s32.totalorder %v9958, 0
        %v9961 = vxor.u32 %v9955, 2147483648
        %v9962 = vsel %vm9960, %v9947, %v9961
        %vm9963 = vcmp.eq.s32.totalorder %v9958, 2
        %v9964 = vxor.u32 %v9947, 2147483648
        %v9965 = vsel %vm9963, %v9964, %v9955
        %v9966 = vsel %vm9959, %v9962, %v9965
        %v9967 = vsel %vm9956, nan, %v9966
        %v9968 = vand.u32 2147483647, %v202
        %vm9969 = vcmp.le.f32.partialorder %v9968, 0.7853982
        %vm9970 = vcmp.lt.s32.totalorder %v202, 0
        %v9971 = vand.u32 %v202, 2139095040
        %v9972 = vshrl.u32 %v9971, 23
        %v9973 = vsub.s32 %v9972, 127
        %v9974 = vand.u32 2147483647, %v202
        %v9975 = vand.u32 %v9974, 8388607
        %v9976 = vor.u32 %v9975, 8388608
        %v9977 = vsub.s32 0, %v9976
        %v9978 = vadd.s32 %v9973, 1
        %vm9979 = vcmp.gt.s32.totalorder %v9978, 0
        %v9980 = vsel %vm9979, %v9978, 0
        %v9981 = vshrl.u32 %v9980, 5
        %v9982 = vand.u32 %v9980, 31
        %v9983 = vsub.s32 32, %v9982
        %v9984 = vshrl.u32 683565275, %v9983
        %v9985 = vshll.u32 683565275, %v9982
        %v9986 = vshrl.u32 2475754826, %v9983
        %v9987 = vor.u32 %v9985, %v9986
        %v9988 = vshll.u32 2475754826, %v9982
        %v9989 = vshrl.u32 2131351028, %v9983
        %v9990 = vor.u32 %v9988, %v9989
        %v9991 = vshll.u32 2131351028, %v9982
        %v9992 = vshrl.u32 2102212464, %v9983
        %v9993 = vor.u32 %v9991, %v9992
        %v9994 = vshll.u32 2102212464, %v9982
        %v9995 = vshrl.u32 920167782, %v9983
        %v9996 = vor.u32 %v9994, %v9995
        %v9997 = vshll.u32 920167782, %v9982
        %v9998 = vshrl.u32 1326507024, %v9983
        %v9999 = vor.u32 %v9997, %v9998
        %vm10000 = vcmp.lt.s32.totalorder %v9981, 1
        %vm10001 = vcmp.lt.s32.totalorder %v9981, 2
        %vm10002 = vcmp.lt.s32.totalorder %v9981, 3
        %vm10003 = vcmp.lt.s32.totalorder %v9981, 4
        %v10004 = vsel %vm10000, %v9984, %v9987
        %v10005 = vsel %vm10003, %v9993, 2102212464
        %v10006 = vsel %vm10002, %v9990, %v10005
        %v10007 = vsel %vm10001, %v10004, %v10006
        %v10008 = vsel %vm10000, %v9987, %v9990
        %v10009 = vsel %vm10003, %v9996, 920167782
        %v10010 = vsel %vm10002, %v9993, %v10009
        %v10011 = vsel %vm10001, %v10008, %v10010
        %v10012 = vsel %vm10000, %v9990, %v9993
        %v10013 = vsel %vm10003, %v9999, 1326507024
        %v10014 = vsel %vm10002, %v9996, %v10013
        %v10015 = vsel %vm10001, %v10012, %v10014
        %v10016 = vshll.u32 %v9976, 8
        %v10017 = vand.u32 %v10016, 65535
        %v10018 = vshrl.u32 %v10016, 16
        %v10019 = vand.u32 %v10015, 65535
        %v10020 = vshrl.u32 %v10015, 16
        %v10021 = vmul.u32 %v10017, %v10019
        %v10022 = vmul.u32 %v10017, %v10020
        %v10023 = vmul.u32 %v10018, %v10019
        %v10024 = vmul.u32 %v10018, %v10020
        %v10025 = vshll.u32 %v10022, 16
        %v10026 = vshrl.u32 %v10022, 16
        %v10027 = vshll.u32 %v10023, 16
        %v10028 = vshrl.u32 %v10023, 16
        %vm10029 = vc.u32 %v10021, %v10025
        %v10030 = vsel %vm10029, 1, 0
        %v10031 = vadd.s32 %v10021, %v10025
        %v10032 = vadd.s32 %v10024, %v10030
        %vm10033 = vc.u32 %v10031, %v10027
        %v10034 = vsel %vm10033, 1, 0
        %v10035 = vadd.s32 %v10031, %v10027
        %v10036 = vadd.s32 %v10032, %v10034
        %v10037 = vadd.s32 %v10036, %v10026
        %v10038 = vadd.s32 %v10037, %v10028
        %v10039 = vand.u32 %v10016, 65535
        %v10040 = vshrl.u32 %v10016, 16
        %v10041 = vand.u32 %v10011, 65535
        %v10042 = vshrl.u32 %v10011, 16
        %v10043 = vmul.u32 %v10039, %v10041
        %v10044 = vmul.u32 %v10039, %v10042
        %v10045 = vmul.u32 %v10040, %v10041
        %v10046 = vmul.u32 %v10040, %v10042
        %v10047 = vshll.u32 %v10044, 16
        %v10048 = vshrl.u32 %v10044, 16
        %v10049 = vshll.u32 %v10045, 16
        %v10050 = vshrl.u32 %v10045, 16
        %vm10051 = vc.u32 %v10043, %v10047
        %v10052 = vsel %vm10051, 1, 0
        %v10053 = vadd.s32 %v10043, %v10047
        %v10054 = vadd.s32 %v10046, %v10052
        %vm10055 = vc.u32 %v10053, %v10049
        %v10056 = vsel %vm10055, 1, 0
        %v10057 = vadd.s32 %v10053, %v10049
        %v10058 = vadd.s32 %v10054, %v10056
        %v10059 = vadd.s32 %v10058, %v10048
        %v10060 = vadd.s32 %v10059, %v10050
        %v10061 = vmul.u32 %v10016, %v10007
        %v10062 = vadd.s32 %v10038, %v10057
        %vm10063 = vc.u32 %v10038, %v10057
        %v10064 = vadd.s32 %v10060, 1
        %v10065 = vsel %vm10063, %v10064, %v10060
        %v10066 = vadd.s32 %v10061, %v10065
        %v10067 = vadd.s32 %v10066, 536870912
        %v10068 = vshrl.u32 %v10067, 30
        %v10069 = vshll.u32 %v10068, 30
        %v10070 = vsub.s32 %v10066, %v10069
        %vm10071 = vcmp.lt.s32.totalorder %v10070, 0
        %v10072 = vsub.s32 0, %v10070
        %v10073 = vsel %vm10071, %v10072, %v10070
        %v10074 = vclz %v10073
        %v10075 = vsub.s32 %v10074, 2
        %vm10076 = vcmp.gt.s32.totalorder 0, %v10075
        %v10077 = vsel %vm10076, 0, %v10075
        %v10078 = vsub.s32 32, %v10077
        %v10079 = vshll.u32 %v10070, %v10077
        %v10080 = vshrl.u32 %v10062, %v10078
        %v10081 = vor.u32 %v10079, %v10080
        %v10082 = vsub.s32 4294967266, %v10077
        %v10083 = vadd.s32 %v10082, 127
        %v10084 = vshll.u32 %v10083, 23
        %v10085 = vor.u32 4788187, %v10084
        %v10086 = vand.u32 2147483647, %v10085
        %v10088 = vcvt.s32.f32 %v10081
        %v10089 = vmul.f32 %v10088, %v10086
        %v10090 = vxor.u32 %v10089, 2147483648
        %v10091 = vsel %vm9970, %v10090, %v10089
        %v10092 = vsub.s32 4, %v10068
        %v10093 = vsel %vm9970, %v10092, %v10068
        %v10094 = vsel %vm9969, %v202, %v10091
        %v10095 = vsel %vm9969, 0, %v10093
        %v10096 = vmul.f32 %v10094, %v10094
        %v10097 = vmul.f32 %v10096, -0.001358992
        %v10098 = vadd.f32 %v10097, 0.041655596
        %v10099 = vmul.f32 %v10096, %v10098
        %v10100 = vadd.f32 %v10099, -0.4999988
        %v10101 = vmul.f32 %v10096, %v10100
        %v10102 = vadd.f32 1.0, %v10101
        %v10103 = vmul.f32 %v10094, %v10094
        %v10104 = vmul.f32 %v10103, -0.00019511016
        %v10105 = vadd.f32 %v10104, 0.008332121
        %v10106 = vmul.f32 %v10103, %v10105
        %v10107 = vadd.f32 %v10106, -0.16666654
        %v10108 = vmul.f32 %v10103, %v10107
        %v10109 = vadd.f32 %v10108, 1.0
        %v10110 = vmul.f32 %v10109, %v10094
        %vm10111 = vweird.f32 %v202
        %v10112 = vadd.s32 %v10095, 3
        %v10113 = vand.u32 %v10112, 3
        %vm10114 = vcmp.lt.s32.totalorder %v10113, 2
        %vm10115 = vcmp.eq.s32.totalorder %v10113, 0
        %v10116 = vxor.u32 %v10110, 2147483648
        %v10117 = vsel %vm10115, %v10102, %v10116
        %vm10118 = vcmp.eq.s32.totalorder %v10113, 2
        %v10119 = vxor.u32 %v10102, 2147483648
        %v10120 = vsel %vm10118, %v10119, %v10110
        %v10121 = vsel %vm10114, %v10117, %v10120
        %v10122 = vsel %vm10111, nan, %v10121
        %10123 = vst [vmem:[%s136] sm:$0xff] %v357
        %10124 = vst [vmem:[%s136 + $0x8] sm:$0xff] %v512
        %10125 = vst [vmem:[%s136 + $0x10] sm:$0xff] %v667
        %10126 = vst [vmem:[%s136 + $0x18] sm:$0xff] %v822
        %10127 = vst [vmem:[%s136 + $0x20] sm:$0xff] %v977
        %10128 = vst [vmem:[%s136 + $0x28] sm:$0xff] %v1132
        %10129 = vst [vmem:[%s136 + $0x30] sm:$0xff] %v1287
        %10130 = vst [vmem:[%s136 + $0x38] sm:$0xff] %v1442
        %10131 = vst [vmem:[%s136 + $0x40] sm:$0xff] %v1597
        %10132 = vst [vmem:[%s136 + $0x48] sm:$0xff] %v1752
        %10133 = vst [vmem:[%s136 + $0x50] sm:$0xff] %v1907
        %10134 = vst [vmem:[%s136 + $0x58] sm:$0xff] %v2062
        %10135 = vst [vmem:[%s136 + $0x60] sm:$0xff] %v2217
        %10136 = vst [vmem:[%s136 + $0x68] sm:$0xff] %v2372
        %10137 = vst [vmem:[%s136 + $0x70] sm:$0xff] %v2527
        %10138 = vst [vmem:[%s136 + $0x78] sm:$0xff] %v2682
        %10139 = vst [vmem:[%s136 + $0x80] sm:$0xff] %v2837
        %10140 = vst [vmem:[%s136 + $0x88] sm:$0xff] %v2992
        %10141 = vst [vmem:[%s136 + $0x90] sm:$0xff] %v3147
        %10142 = vst [vmem:[%s136 + $0x98] sm:$0xff] %v3302
        %10143 = vst [vmem:[%s136 + $0xa0] sm:$0xff] %v3457
        %10144 = vst [vmem:[%s136 + $0xa8] sm:$0xff] %v3612
        %10145 = vst [vmem:[%s136 + $0xb0] sm:$0xff] %v3767
        %10146 = vst [vmem:[%s136 + $0xb8] sm:$0xff] %v3922
        %10147 = vst [vmem:[%s136 + $0xc0] sm:$0xff] %v4077
        %10148 = vst [vmem:[%s136 + $0xc8] sm:$0xff] %v4232
        %10149 = vst [vmem:[%s136 + $0xd0] sm:$0xff] %v4387
        %10150 = vst [vmem:[%s136 + $0xd8] sm:$0xff] %v4542
        %10151 = vst [vmem:[%s136 + $0xe0] sm:$0xff] %v4697
        %10152 = vst [vmem:[%s136 + $0xe8] sm:$0xff] %v4852
        %10153 = vst [vmem:[%s136 + $0xf0] sm:$0xff] %v5007
        %10154 = vst [vmem:[%s136 + $0xf8] sm:$0xff] %v5162
        %10155 = vst [vmem:[%s136 + $0x100] sm:$0xff] %v5317
        %10156 = vst [vmem:[%s136 + $0x108] sm:$0xff] %v5472
        %10157 = vst [vmem:[%s136 + $0x110] sm:$0xff] %v5627
        %10158 = vst [vmem:[%s136 + $0x118] sm:$0xff] %v5782
        %10159 = vst [vmem:[%s136 + $0x120] sm:$0xff] %v5937
        %10160 = vst [vmem:[%s136 + $0x128] sm:$0xff] %v6092
        %10161 = vst [vmem:[%s136 + $0x130] sm:$0xff] %v6247
        %10162 = vst [vmem:[%s136 + $0x138] sm:$0xff] %v6402
        %10163 = vst [vmem:[%s136 + $0x140] sm:$0xff] %v6557
        %10164 = vst [vmem:[%s136 + $0x148] sm:$0xff] %v6712
        %10165 = vst [vmem:[%s136 + $0x150] sm:$0xff] %v6867
        %10166 = vst [vmem:[%s136 + $0x158] sm:$0xff] %v7022
        %10167 = vst [vmem:[%s136 + $0x160] sm:$0xff] %v7177
        %10168 = vst [vmem:[%s136 + $0x168] sm:$0xff] %v7332
        %10169 = vst [vmem:[%s136 + $0x170] sm:$0xff] %v7487
        %10170 = vst [vmem:[%s136 + $0x178] sm:$0xff] %v7642
        %10171 = vst [vmem:[%s136 + $0x180] sm:$0xff] %v7797
        %10172 = vst [vmem:[%s136 + $0x188] sm:$0xff] %v7952
        %10173 = vst [vmem:[%s136 + $0x190] sm:$0xff] %v8107
        %10174 = vst [vmem:[%s136 + $0x198] sm:$0xff] %v8262
        %10175 = vst [vmem:[%s136 + $0x1a0] sm:$0xff] %v8417
        %10176 = vst [vmem:[%s136 + $0x1a8] sm:$0xff] %v8572
        %10177 = vst [vmem:[%s136 + $0x1b0] sm:$0xff] %v8727
        %10178 = vst [vmem:[%s136 + $0x1b8] sm:$0xff] %v8882
        %10179 = vst [vmem:[%s136 + $0x1c0] sm:$0xff] %v9037
        %10180 = vst [vmem:[%s136 + $0x1c8] sm:$0xff] %v9192
        %10181 = vst [vmem:[%s136 + $0x1d0] sm:$0xff] %v9347
        %10182 = vst [vmem:[%s136 + $0x1d8] sm:$0xff] %v9502
        %10183 = vst [vmem:[%s136 + $0x1e0] sm:$0xff] %v9657
        %10184 = vst [vmem:[%s136 + $0x1e8] sm:$0xff] %v9812
        %10185 = vst [vmem:[%s136 + $0x1f0] sm:$0xff] %v9967
        %10186 = vst [vmem:[%s136 + $0x1f8] sm:$0xff] %v10122
        %s10187 = sand.u32 %s52, 1
        %s10188 = scalar_lea.sflag [#allocation4], %s10187
        %s10189 = sand.u32 %s52, 1
        %s10190 = smul.addr %s10189, 512
        %s10191 = scalar_lea.vmem [#allocation5], %s10190
        // Predicated region
        $region29: #{tpu_custom_call.1} parent=23 // pred_check
          %p10192 = pneg %p62
        $region30: #{tpu_custom_call.1} parent=23 // pred_check_branch
          %10194 = sbr.rel (%p10192) target = $region32
        $region31: #{tpu_custom_call.1} parent=23 // pred_region
          %s10195 = smul.u32 64, %s18
          %10197 = vsyncadd %s10188, 0
          %s10198 = smul.addr %s10195, 8
          %s10199 = scalar_lea.hbm %s1, %s10198
          %s10200 = sshll.u32 %s10191, 4
          %s10201 = int_to_ptr.vmem [resolvable:$true] %s10200
          %s10202 = sshll.u32 %s10199, 4
          %s10203 = int_to_ptr.hbm [resolvable:$true] %s10202
          %10208 = dma.vmem_to_hbm [thread:$0]  %s10201, 8192, %s10203, %s10188, 128, 128, 8
        $region32: #{tpu_custom_call.1} parent=23 // pred_fallthru
          _
      $region24: #{tpu_custom_call.1} parent=5 // pred_fallthru
        _
      %p10209 = scmp.le.s32.totalorder 2, %s13
      // Predicated region
      $region33: #{tpu_custom_call.1} parent=5 // pred_check
        %p10210 = pneg %p10209
      $region34: #{tpu_custom_call.1} parent=5 // pred_check_branch
        %10212 = sbr.rel (%p10210) target = $region36
      $region35: #{tpu_custom_call.1} parent=5 // pred_region
        %s10213 = ssub.s32 %s13, 2
        // Predicated region
        $region37: #{tpu_custom_call.1} parent=35 // pred_check
          %p10214 = pneg %p68
        $region38: #{tpu_custom_call.1} parent=35 // pred_check_branch
          %10216 = sbr.rel (%p10214) target = $region40
        $region39: #{tpu_custom_call.1} parent=35 // pred_region
          %s10217 = sand.u32 %s53, 1
          %s10218 = scalar_lea.sflag [#allocation4], %s10217
          %s10219 = sand.u32 %s53, 1
          %s10220 = smul.addr %s10219, 512
          %s10221 = scalar_lea.vmem [#allocation5], %s10220
          %10223 = dma.done %s10218, 8192
        $region40: #{tpu_custom_call.1} parent=35 // pred_fallthru
          _
      $region36: #{tpu_custom_call.1} parent=5 // pred_fallthru
        _
    $region6: #{tpu_custom_call.1} parent=1 // loop_footer
      %s17 = sadd.s32 1, %s13
    $region7: #{tpu_custom_call.1} parent=1 // loop_footer_branch
      %12 = sbr.rel target = $region3
    $region8: #{tpu_custom_call.1} parent=1 // loop_exit
      _
    %10224 = vsyncpa [#allocation3], 1
    %s10225 = scalar_lea.sflag [#allocation3], 1
    %10226 = vsyncpa %s10225, 1
    %10227 = vsyncpa [#allocation4], 1
    %s10228 = scalar_lea.sflag [#allocation4], 1
    %10229 = vsyncpa %s10228, 1

</llo_original>
